<compile_context>
chip_gen: v7x
topology: tpu7x:2x2x1
jax: 0.10.0
libtpu: 0.0.40
codegen_flags: <defaults>
</compile_context>

<pallas_src>
import jax
import jax.numpy as jnp
from jax import lax
from jax.experimental import pallas as pl
from jax.experimental.pallas import tpu as pltpu


# =============================================================================
# Kernel 1: fused conv stack + bidirectional LSTM input projection
# =============================================================================
def _conv_proj_kernel(x_ref, w1_ref, s1_ref, t1_ref,
                      w2_ref, s2_ref, t2_ref,
                      w3_ref, s3_ref, t3_ref,
                      wih_ref, bih_ref, o_ref,
                      h1_scr, h2_scr):
    L = o_ref.shape[1]
    bf16 = jnp.bfloat16

    def conv_taps(load_tap, w_ref):
        # K shifted (L, Cin) x (Cin, Cout) dots accumulated in f32.
        acc = jnp.dot(load_tap(0), w_ref[0], preferred_element_type=jnp.float32)
        for k in range(1, w_ref.shape[0]):
            acc = acc + jnp.dot(load_tap(k), w_ref[k],
                                preferred_element_type=jnp.float32)
        return acc

    # ---- conv1 (K=7, pad=3): input arrives pre-padded along L --------------
    x = x_ref[0]                                             # (L+6, Cin) f32
    z = conv_taps(lambda k: x[k:k + L].astype(bf16), w1_ref)
    h1 = jnp.maximum(z * s1_ref[...] + t1_ref[...], 0.0)     # (L, 128)

    # ---- conv2 (K=5, pad=2): zero-padded VMEM scratch holds h1 -------------
    h1_scr[...] = jnp.zeros_like(h1_scr)
    h1_scr[2:2 + L, :] = h1
    z = conv_taps(lambda k: h1_scr[k:k + L, :].astype(bf16), w2_ref)
    h2 = jnp.maximum(z * s2_ref[...] + t2_ref[...], 0.0)     # (L, 64)

    # ---- conv3 (K=3, pad=1) -------------------------------------------------
    h2_scr[...] = jnp.zeros_like(h2_scr)
    h2_scr[1:1 + L, :] = h2
    z = conv_taps(lambda k: h2_scr[k:k + L, :].astype(bf16), w3_ref)
    h3 = jnp.maximum(z * s3_ref[...] + t3_ref[...], 0.0)     # (L, 32)

    # ---- hoisted LSTM input projection for BOTH directions (+ biases) ------
    xproj = jnp.dot(h3.astype(bf16), wih_ref[...],
                    preferred_element_type=jnp.float32) + bih_ref[...]  # (L, 8H)
    o_ref[0] = xproj


def conv_and_lstm_input_proj(x_pad, conv_params, wih_cat, bih_cat):
    """x_pad: (B, L+6, Cin) f32 -> xproj: (B, L, 8H) f32."""
    B, Lp, Cin = x_pad.shape
    L = Lp - 6
    G8 = wih_cat.shape[1]
    (w1, s1, t1, w2, s2, t2, w3, s3, t3) = conv_params

    def full_spec(arr):
        return pl.BlockSpec(arr.shape, lambda b: (0,) * arr.ndim)

    in_specs = ([pl.BlockSpec((1, Lp, Cin), lambda b: (b, 0, 0))]
                + [full_spec(a) for a in (w1, s1, t1, w2, s2, t2, w3, s3, t3,
                                          wih_cat, bih_cat)])
    # TODO(synk): for long sequences / large batch, additionally tile along L
    # with halo rows instead of keeping the full (L, 128) intermediate in VMEM.
    return pl.pallas_call(
        _conv_proj_kernel,
        out_shape=jax.ShapeDtypeStruct((B, L, G8), jnp.float32),
        grid=(B,),
        in_specs=in_specs,
        out_specs=pl.BlockSpec((1, L, G8), lambda b: (b, 0, 0)),
        scratch_shapes=[pltpu.VMEM((L + 4, 128), jnp.float32),
                        pltpu.VMEM((L + 2, 64), jnp.float32)],
        compiler_params=pltpu.CompilerParams(
            dimension_semantics=("parallel",)),
    )(x_pad, w1, s1, t1, w2, s2, t2, w3, s3, t3, wih_cat, bih_cat)


# =============================================================================
# Kernel 2: fused bidirectional LSTM recurrence + classifier + softmax
# =============================================================================
def _bilstm_classifier_kernel(xp_ref, whh_ref, w1_ref, b1_ref,
                              w2_ref, b2_ref, o_ref):
    T, B, G8 = xp_ref.shape
    H2 = whh_ref.shape[0]            # 2H  (state layout: [fwd H | bwd H])
    H = H2 // 2

    # Lane mask selecting the forward-direction gate columns (hoisted).
    col = lax.broadcasted_iota(jnp.int32, (B, G8), 1)
    fwd_mask = (col % H2) < H

    def step(s, carry):
        h2, c2 = carry
        # ONE MXU op per step for both directions (block-diagonal Whh).
        gh = jnp.dot(h2.astype(jnp.bfloat16), whh_ref[...],
                     preferred_element_type=jnp.float32)          # (B, 8H)
        # fwd direction consumes x[s], bwd direction consumes x[T-1-s].
        gx = jnp.where(fwd_mask, xp_ref[s], xp_ref[T - 1 - s])    # (B, 8H)
        gates = gh + gx
        i = jax.nn.sigmoid(gates[:, 0:H2])
        f = jax.nn.sigmoid(gates[:, H2:2 * H2])
        g = jnp.tanh(gates[:, 2 * H2:3 * H2])
        o = jax.nn.sigmoid(gates[:, 3 * H2:4 * H2])
        c_new = f * c2 + i * g
        h_new = o * jnp.tanh(c_new)
        return h_new, c_new

    z0 = jnp.zeros((B, H2), jnp.float32)
    h2, _ = lax.fori_loop(0, T, step, (z0, z0), unroll=True)

    # Classifier epilogue: Linear(2H->64) + ReLU + Linear(64->5) + softmax.
    # h2 is already [h_fwd | h_bwd], matching torch.cat([hidden[-2], hidden[-1]]).
    h1 = jnp.maximum(jnp.dot(h2, w1_ref[...],
                             preferred_element_type=jnp.float32) + b1_ref[...],
                     0.0)
    logits = jnp.dot(h1, w2_ref[...],
                     preferred_element_type=jnp.float32) + b2_ref[...]
    m = jnp.max(logits, axis=1, keepdims=True)
    e = jnp.exp(logits - m)
    o_ref[...] = e * pl.reciprocal(jnp.sum(e, axis=1, keepdims=True))


def bilstm_classifier(xproj_tm, whh_big, fc1_w, fc1_b, fc2_w, fc2_b):
    T, B, _ = xproj_tm.shape
    n_cls = fc2_w.shape[1]
    vspec = pl.BlockSpec(memory_space=pltpu.MemorySpace.VMEM)
    return pl.pallas_call(
        _bilstm_classifier_kernel,
        out_shape=jax.ShapeDtypeStruct((B, n_cls), jnp.float32),
        in_specs=[vspec] * 6,
        out_specs=vspec,
    )(xproj_tm, whh_big, fc1_w, fc1_b, fc2_w, fc2_b)


# =============================================================================
# PyTorch-layout synthetic parameters + conversion to kernel layouts
# =============================================================================
def make_torch_params(key, input_size, hidden=80):
    ks = iter(jax.random.split(key, 40))

    def rnd(shape, s=0.1):
        return (s * jax.random.normal(next(ks), shape)).astype(jnp.float32)

    def conv(cout, cin, k):
        return dict(w=rnd((cout, cin, k)), b=rnd((cout,)),
                    gamma=1.0 + 0.1 * jnp.abs(rnd((cout,))), beta=rnd((cout,)),
                    mean=rnd((cout,)), var=1.0 + jnp.abs(rnd((cout,))))

    def lstm_dir(inp, h):      # PyTorch: weight_ih (4H, In), weight_hh (4H, H)
        return dict(w_ih=rnd((4 * h, inp)), w_hh=rnd((4 * h, h)),
                    b_ih=rnd((4 * h,)), b_hh=rnd((4 * h,)))

    return dict(conv1=conv(128, input_size, 7), conv2=conv(64, 128, 5),
                conv3=conv(32, 64, 3),
                lstm_f=lstm_dir(32, hidden), lstm_b=lstm_dir(32, hidden),
                fc1_w=rnd((64, 2 * hidden)), fc1_b=rnd((64,)),
                fc2_w=rnd((5, 64)), fc2_b=rnd((5,)))


def _interleave_gate_blocks(mat_f, mat_b, H):
    """[i_f,i_b,f_f,f_b,g_f,g_b,o_f,o_b] layout along the last axis."""
    blocks = []
    for g in range(4):
        blocks.append(mat_f[:, g * H:(g + 1) * H])
        blocks.append(mat_b[:, g * H:(g + 1) * H])
    return jnp.concatenate(blocks, axis=1)


def _build_whh_blockdiag(whh_f_t, whh_b_t, H):
    """(2H, 8H): rows [0:H] drive fwd gate columns, rows [H:2H] drive bwd."""
    zero = jnp.zeros((H, H), jnp.float32)
    top, bot = [], []
    for g in range(4):
        sl = slice(g * H, (g + 1) * H)
        top += [whh_f_t[:, sl], zero]
        bot += [zero, whh_b_t[:, sl]]
    return jnp.concatenate([jnp.concatenate(top, axis=1),
                            jnp.concatenate(bot, axis=1)], axis=0)


def prepare_kernel_params(tp, hidden, eps=1e-5):
    H = hidden

    def conv_block(c):
        w = jnp.transpose(c["w"], (2, 1, 0)).astype(jnp.bfloat16)    # (K,Cin,Cout)
        inv = c["gamma"] / jnp.sqrt(c["var"] + eps)
        scale = inv.reshape(1, -1).astype(jnp.float32)
        shift = ((c["b"] - c["mean"]) * inv + c["beta"]).reshape(1, -1)
        return w, scale, shift.astype(jnp.float32)

    w1, s1, t1 = conv_block(tp["conv1"])
    w2, s2, t2 = conv_block(tp["conv2"])
    w3, s3, t3 = conv_block(tp["conv3"])

    lf, lb = tp["lstm_f"], tp["lstm_b"]
    wih_f, wih_b = lf["w_ih"].T, lb["w_ih"].T            # (In, 4H)
    whh_f, whh_b = lf["w_hh"].T, lb["w_hh"].T            # (H, 4H)
    b_f = (lf["b_ih"] + lf["b_hh"]).reshape(1, -1)       # (1, 4H)
    b_b = (lb["b_ih"] + lb["b_hh"]).reshape(1, -1)

    return dict(
        conv=(w1, s1, t1, w2, s2, t2, w3, s3, t3),
        wih=_interleave_gate_blocks(wih_f, wih_b, H).astype(jnp.bfloat16),
        bih=_interleave_gate_blocks(b_f, b_b, H).astype(jnp.float32),
        whh=_build_whh_blockdiag(whh_f, whh_b, H).astype(jnp.bfloat16),
        fc1_w=tp["fc1_w"].T, fc1_b=tp["fc1_b"].reshape(1, -1),
        fc2_w=tp["fc2_w"].T, fc2_b=tp["fc2_b"].reshape(1, -1),
    )


# =============================================================================
# Full forward pass
# =============================================================================
def regime_detector_forward(kp, x):
    """x: (B, L, input_size) f32 -> (B, 5) regime probabilities."""
    x_pad = jnp.pad(x, ((0, 0), (3, 3), (0, 0)))                 # conv1 padding
    xproj = conv_and_lstm_input_proj(x_pad, kp["conv"], kp["wih"], kp["bih"])
    # Tiny layout glue: (B, T, 8H) -> time-major (T, B, 8H) for the recurrence.
    xproj_tm = jnp.transpose(xproj, (1, 0, 2))
    return bilstm_classifier(xproj_tm, kp["whh"], kp["fc1_w"], kp["fc1_b"],
                             kp["fc2_w"], kp["fc2_b"])


if __name__ == "__main__":
    BATCH, SEQ, INPUT_SIZE, HIDDEN = 2, 16, 4, 80

    key = jax.random.PRNGKey(0)
    k_params, k_x = jax.random.split(key)
    torch_params = make_torch_params(k_params, INPUT_SIZE, HIDDEN)
    kparams = prepare_kernel_params(torch_params, HIDDEN)
    x = jax.random.normal(k_x, (BATCH, SEQ, INPUT_SIZE), dtype=jnp.float32)

    fwd = jax.jit(regime_detector_forward)
    probs = jax.block_until_ready(fwd(kparams, x))

    assert probs.shape == (BATCH, 5)
    assert bool(jnp.all(jnp.isfinite(probs)))
    assert bool(jnp.allclose(jnp.sum(probs, axis=1), 1.0, atol=1e-4))
    print("KERNEL_OK")
</pallas_src>

<mosaic_0001>
module attributes {stable_mosaic.version = 11 : i64} {
  func.func @_conv_proj_kernel(%arg0: i32, %arg1: memref<1x22x4xf32, #tpu.memory_space<vmem>>, %arg2: memref<7x4x128xbf16, #tpu.memory_space<vmem>>, %arg3: memref<1x128xf32, #tpu.memory_space<vmem>>, %arg4: memref<1x128xf32, #tpu.memory_space<vmem>>, %arg5: memref<5x128x64xbf16, #tpu.memory_space<vmem>>, %arg6: memref<1x64xf32, #tpu.memory_space<vmem>>, %arg7: memref<1x64xf32, #tpu.memory_space<vmem>>, %arg8: memref<3x64x32xbf16, #tpu.memory_space<vmem>>, %arg9: memref<1x32xf32, #tpu.memory_space<vmem>>, %arg10: memref<1x32xf32, #tpu.memory_space<vmem>>, %arg11: memref<32x640xbf16, #tpu.memory_space<vmem>>, %arg12: memref<1x640xf32, #tpu.memory_space<vmem>>, %arg13: memref<1x16x640xf32, #tpu.memory_space<vmem>>, %arg14: memref<20x128xf32, #tpu.memory_space<vmem>>, %arg15: memref<18x64xf32, #tpu.memory_space<vmem>>) attributes {dimension_semantics = [#tpu.dimension_semantics<parallel>], iteration_bounds = array<i64: 2>, scalar_prefetch = 0 : i64, scratch_operands = 2 : i64, tpu.core_type = #tpu.core_type<tc>, window_params = [{transform_indices = @transform_0, window_bounds = array<i64: 1, 22, 4>}, {pipeline_mode = #tpu.pipeline_mode<synchronous>, transform_indices = @transform_1, window_bounds = array<i64: 7, 4, 128>}, {pipeline_mode = #tpu.pipeline_mode<synchronous>, transform_indices = @transform_2, window_bounds = array<i64: 1, 128>}, {pipeline_mode = #tpu.pipeline_mode<synchronous>, transform_indices = @transform_3, window_bounds = array<i64: 1, 128>}, {pipeline_mode = #tpu.pipeline_mode<synchronous>, transform_indices = @transform_4, window_bounds = array<i64: 5, 128, 64>}, {pipeline_mode = #tpu.pipeline_mode<synchronous>, transform_indices = @transform_5, window_bounds = array<i64: 1, 64>}, {pipeline_mode = #tpu.pipeline_mode<synchronous>, transform_indices = @transform_6, window_bounds = array<i64: 1, 64>}, {pipeline_mode = #tpu.pipeline_mode<synchronous>, transform_indices = @transform_7, window_bounds = array<i64: 3, 64, 32>}, {pipeline_mode = #tpu.pipeline_mode<synchronous>, transform_indices = @transform_8, window_bounds = array<i64: 1, 32>}, {pipeline_mode = #tpu.pipeline_mode<synchronous>, transform_indices = @transform_9, window_bounds = array<i64: 1, 32>}, {pipeline_mode = #tpu.pipeline_mode<synchronous>, transform_indices = @transform_10, window_bounds = array<i64: 32, 640>}, {pipeline_mode = #tpu.pipeline_mode<synchronous>, transform_indices = @transform_11, window_bounds = array<i64: 1, 640>}, {transform_indices = @transform_12, window_bounds = array<i64: 1, 16, 640>}]} {
    %c0 = arith.constant 0 : index
    %c0_0 = arith.constant 0 : index
    %c0_1 = arith.constant 0 : index
    %0 = vector.load %arg1[%c0, %c0_0, %c0_1] : memref<1x22x4xf32, #tpu.memory_space<vmem>>, vector<1x22x4xf32>
    %1 = vector.shape_cast %0 : vector<1x22x4xf32> to vector<22x4xf32>
    %2 = vector.extract_strided_slice %1 {offsets = [0, 0], sizes = [16, 4], strides = [1, 1]} : vector<22x4xf32> to vector<16x4xf32>
    %3 = arith.truncf %2 : vector<16x4xf32> to vector<16x4xbf16>
    %c0_2 = arith.constant 0 : index
    %c0_3 = arith.constant 0 : index
    %c0_4 = arith.constant 0 : index
    %4 = vector.load %arg2[%c0_2, %c0_3, %c0_4] : memref<7x4x128xbf16, #tpu.memory_space<vmem>>, vector<1x4x128xbf16>
    %5 = vector.shape_cast %4 : vector<1x4x128xbf16> to vector<4x128xbf16>
    %cst = arith.constant dense<0.000000e+00> : vector<16x128xf32>
    %6 = tpu.matmul %3, %5, %cst {dimension_numbers = #tpu.dot_dimension_numbers<[1], [0], [0], [1], [0, 0, 1, 1], [], []>} : vector<16x4xbf16>, vector<4x128xbf16>, vector<16x128xf32> -> vector<16x128xf32>
    %7 = vector.extract_strided_slice %1 {offsets = [1, 0], sizes = [16, 4], strides = [1, 1]} : vector<22x4xf32> to vector<16x4xf32>
    %8 = arith.truncf %7 : vector<16x4xf32> to vector<16x4xbf16>
    %c1 = arith.constant 1 : index
    %c0_5 = arith.constant 0 : index
    %c0_6 = arith.constant 0 : index
    %9 = vector.load %arg2[%c1, %c0_5, %c0_6] : memref<7x4x128xbf16, #tpu.memory_space<vmem>>, vector<1x4x128xbf16>
    %10 = vector.shape_cast %9 : vector<1x4x128xbf16> to vector<4x128xbf16>
    %cst_7 = arith.constant dense<0.000000e+00> : vector<16x128xf32>
    %11 = tpu.matmul %8, %10, %cst_7 {dimension_numbers = #tpu.dot_dimension_numbers<[1], [0], [0], [1], [0, 0, 1, 1], [], []>} : vector<16x4xbf16>, vector<4x128xbf16>, vector<16x128xf32> -> vector<16x128xf32>
    %12 = arith.addf %6, %11 : vector<16x128xf32>
    %13 = vector.extract_strided_slice %1 {offsets = [2, 0], sizes = [16, 4], strides = [1, 1]} : vector<22x4xf32> to vector<16x4xf32>
    %14 = arith.truncf %13 : vector<16x4xf32> to vector<16x4xbf16>
    %c2 = arith.constant 2 : index
    %c0_8 = arith.constant 0 : index
    %c0_9 = arith.constant 0 : index
    %15 = vector.load %arg2[%c2, %c0_8, %c0_9] : memref<7x4x128xbf16, #tpu.memory_space<vmem>>, vector<1x4x128xbf16>
    %16 = vector.shape_cast %15 : vector<1x4x128xbf16> to vector<4x128xbf16>
    %cst_10 = arith.constant dense<0.000000e+00> : vector<16x128xf32>
    %17 = tpu.matmul %14, %16, %cst_10 {dimension_numbers = #tpu.dot_dimension_numbers<[1], [0], [0], [1], [0, 0, 1, 1], [], []>} : vector<16x4xbf16>, vector<4x128xbf16>, vector<16x128xf32> -> vector<16x128xf32>
    %18 = arith.addf %12, %17 : vector<16x128xf32>
    %19 = vector.extract_strided_slice %1 {offsets = [3, 0], sizes = [16, 4], strides = [1, 1]} : vector<22x4xf32> to vector<16x4xf32>
    %20 = arith.truncf %19 : vector<16x4xf32> to vector<16x4xbf16>
    %c3 = arith.constant 3 : index
    %c0_11 = arith.constant 0 : index
    %c0_12 = arith.constant 0 : index
    %21 = vector.load %arg2[%c3, %c0_11, %c0_12] : memref<7x4x128xbf16, #tpu.memory_space<vmem>>, vector<1x4x128xbf16>
    %22 = vector.shape_cast %21 : vector<1x4x128xbf16> to vector<4x128xbf16>
    %cst_13 = arith.constant dense<0.000000e+00> : vector<16x128xf32>
    %23 = tpu.matmul %20, %22, %cst_13 {dimension_numbers = #tpu.dot_dimension_numbers<[1], [0], [0], [1], [0, 0, 1, 1], [], []>} : vector<16x4xbf16>, vector<4x128xbf16>, vector<16x128xf32> -> vector<16x128xf32>
    %24 = arith.addf %18, %23 : vector<16x128xf32>
    %25 = vector.extract_strided_slice %1 {offsets = [4, 0], sizes = [16, 4], strides = [1, 1]} : vector<22x4xf32> to vector<16x4xf32>
    %26 = arith.truncf %25 : vector<16x4xf32> to vector<16x4xbf16>
    %c4 = arith.constant 4 : index
    %c0_14 = arith.constant 0 : index
    %c0_15 = arith.constant 0 : index
    %27 = vector.load %arg2[%c4, %c0_14, %c0_15] : memref<7x4x128xbf16, #tpu.memory_space<vmem>>, vector<1x4x128xbf16>
    %28 = vector.shape_cast %27 : vector<1x4x128xbf16> to vector<4x128xbf16>
    %cst_16 = arith.constant dense<0.000000e+00> : vector<16x128xf32>
    %29 = tpu.matmul %26, %28, %cst_16 {dimension_numbers = #tpu.dot_dimension_numbers<[1], [0], [0], [1], [0, 0, 1, 1], [], []>} : vector<16x4xbf16>, vector<4x128xbf16>, vector<16x128xf32> -> vector<16x128xf32>
    %30 = arith.addf %24, %29 : vector<16x128xf32>
    %31 = vector.extract_strided_slice %1 {offsets = [5, 0], sizes = [16, 4], strides = [1, 1]} : vector<22x4xf32> to vector<16x4xf32>
    %32 = arith.truncf %31 : vector<16x4xf32> to vector<16x4xbf16>
    %c5 = arith.constant 5 : index
    %c0_17 = arith.constant 0 : index
    %c0_18 = arith.constant 0 : index
    %33 = vector.load %arg2[%c5, %c0_17, %c0_18] : memref<7x4x128xbf16, #tpu.memory_space<vmem>>, vector<1x4x128xbf16>
    %34 = vector.shape_cast %33 : vector<1x4x128xbf16> to vector<4x128xbf16>
    %cst_19 = arith.constant dense<0.000000e+00> : vector<16x128xf32>
    %35 = tpu.matmul %32, %34, %cst_19 {dimension_numbers = #tpu.dot_dimension_numbers<[1], [0], [0], [1], [0, 0, 1, 1], [], []>} : vector<16x4xbf16>, vector<4x128xbf16>, vector<16x128xf32> -> vector<16x128xf32>
    %36 = arith.addf %30, %35 : vector<16x128xf32>
    %37 = vector.extract_strided_slice %1 {offsets = [6, 0], sizes = [16, 4], strides = [1, 1]} : vector<22x4xf32> to vector<16x4xf32>
    %38 = arith.truncf %37 : vector<16x4xf32> to vector<16x4xbf16>
    %c6 = arith.constant 6 : index
    %c0_20 = arith.constant 0 : index
    %c0_21 = arith.constant 0 : index
    %39 = vector.load %arg2[%c6, %c0_20, %c0_21] : memref<7x4x128xbf16, #tpu.memory_space<vmem>>, vector<1x4x128xbf16>
    %40 = vector.shape_cast %39 : vector<1x4x128xbf16> to vector<4x128xbf16>
    %cst_22 = arith.constant dense<0.000000e+00> : vector<16x128xf32>
    %41 = tpu.matmul %38, %40, %cst_22 {dimension_numbers = #tpu.dot_dimension_numbers<[1], [0], [0], [1], [0, 0, 1, 1], [], []>} : vector<16x4xbf16>, vector<4x128xbf16>, vector<16x128xf32> -> vector<16x128xf32>
    %42 = arith.addf %36, %41 : vector<16x128xf32>
    %c0_23 = arith.constant 0 : index
    %c0_24 = arith.constant 0 : index
    %43 = vector.load %arg3[%c0_23, %c0_24] : memref<1x128xf32, #tpu.memory_space<vmem>>, vector<1x128xf32>
    %44 = vector.broadcast %43 : vector<1x128xf32> to vector<16x128xf32>
    %45 = arith.mulf %42, %44 : vector<16x128xf32>
    %c0_25 = arith.constant 0 : index
    %c0_26 = arith.constant 0 : index
    %46 = vector.load %arg4[%c0_25, %c0_26] : memref<1x128xf32, #tpu.memory_space<vmem>>, vector<1x128xf32>
    %47 = vector.broadcast %46 : vector<1x128xf32> to vector<16x128xf32>
    %48 = arith.addf %45, %47 : vector<16x128xf32>
    %cst_27 = arith.constant 0.000000e+00 : f32
    %49 = vector.broadcast %cst_27 : f32 to vector<16x128xf32>
    %50 = arith.maximumf %48, %49 : vector<16x128xf32>
    %cst_28 = arith.constant 0.000000e+00 : f32
    %51 = vector.broadcast %cst_28 : f32 to vector<20x128xf32>
    %c0_29 = arith.constant 0 : index
    %c0_30 = arith.constant 0 : index
    %52 = vector.load %arg14[%c0_29, %c0_30] : memref<20x128xf32, #tpu.memory_space<vmem>>, vector<20x128xf32>
    tpu.vector_store %arg14[%c0_29, %c0_30], %51 {strides = array<i32>} : memref<20x128xf32, #tpu.memory_space<vmem>>, vector<20x128xf32>,
    %c2_31 = arith.constant 2 : index
    %c0_32 = arith.constant 0 : index
    %53 = vector.load %arg14[%c2_31, %c0_32] : memref<20x128xf32, #tpu.memory_space<vmem>>, vector<16x128xf32>
    tpu.vector_store %arg14[%c2_31, %c0_32], %50 {strides = array<i32>} : memref<20x128xf32, #tpu.memory_space<vmem>>, vector<16x128xf32>,
    %c0_33 = arith.constant 0 : index
    %c0_34 = arith.constant 0 : index
    %54 = vector.load %arg14[%c0_33, %c0_34] : memref<20x128xf32, #tpu.memory_space<vmem>>, vector<16x128xf32>
    %55 = arith.truncf %54 : vector<16x128xf32> to vector<16x128xbf16>
    %c0_35 = arith.constant 0 : index
    %c0_36 = arith.constant 0 : index
    %c0_37 = arith.constant 0 : index
    %56 = vector.load %arg5[%c0_35, %c0_36, %c0_37] : memref<5x128x64xbf16, #tpu.memory_space<vmem>>, vector<1x128x64xbf16>
    %57 = vector.shape_cast %56 : vector<1x128x64xbf16> to vector<128x64xbf16>
    %cst_38 = arith.constant dense<0.000000e+00> : vector<16x64xf32>
    %58 = tpu.matmul %55, %57, %cst_38 {dimension_numbers = #tpu.dot_dimension_numbers<[1], [0], [0], [1], [0, 0, 1, 1], [], []>} : vector<16x128xbf16>, vector<128x64xbf16>, vector<16x64xf32> -> vector<16x64xf32>
    %c1_39 = arith.constant 1 : index
    %c0_40 = arith.constant 0 : index
    %59 = vector.load %arg14[%c1_39, %c0_40] : memref<20x128xf32, #tpu.memory_space<vmem>>, vector<16x128xf32>
    %60 = arith.truncf %59 : vector<16x128xf32> to vector<16x128xbf16>
    %c1_41 = arith.constant 1 : index
    %c0_42 = arith.constant 0 : index
    %c0_43 = arith.constant 0 : index
    %61 = vector.load %arg5[%c1_41, %c0_42, %c0_43] : memref<5x128x64xbf16, #tpu.memory_space<vmem>>, vector<1x128x64xbf16>
    %62 = vector.shape_cast %61 : vector<1x128x64xbf16> to vector<128x64xbf16>
    %cst_44 = arith.constant dense<0.000000e+00> : vector<16x64xf32>
    %63 = tpu.matmul %60, %62, %cst_44 {dimension_numbers = #tpu.dot_dimension_numbers<[1], [0], [0], [1], [0, 0, 1, 1], [], []>} : vector<16x128xbf16>, vector<128x64xbf16>, vector<16x64xf32> -> vector<16x64xf32>
    %64 = arith.addf %58, %63 : vector<16x64xf32>
    %c2_45 = arith.constant 2 : index
    %c0_46 = arith.constant 0 : index
    %65 = vector.load %arg14[%c2_45, %c0_46] : memref<20x128xf32, #tpu.memory_space<vmem>>, vector<16x128xf32>
    %66 = arith.truncf %65 : vector<16x128xf32> to vector<16x128xbf16>
    %c2_47 = arith.constant 2 : index
    %c0_48 = arith.constant 0 : index
    %c0_49 = arith.constant 0 : index
    %67 = vector.load %arg5[%c2_47, %c0_48, %c0_49] : memref<5x128x64xbf16, #tpu.memory_space<vmem>>, vector<1x128x64xbf16>
    %68 = vector.shape_cast %67 : vector<1x128x64xbf16> to vector<128x64xbf16>
    %cst_50 = arith.constant dense<0.000000e+00> : vector<16x64xf32>
    %69 = tpu.matmul %66, %68, %cst_50 {dimension_numbers = #tpu.dot_dimension_numbers<[1], [0], [0], [1], [0, 0, 1, 1], [], []>} : vector<16x128xbf16>, vector<128x64xbf16>, vector<16x64xf32> -> vector<16x64xf32>
    %70 = arith.addf %64, %69 : vector<16x64xf32>
    %c3_51 = arith.constant 3 : index
    %c0_52 = arith.constant 0 : index
    %71 = vector.load %arg14[%c3_51, %c0_52] : memref<20x128xf32, #tpu.memory_space<vmem>>, vector<16x128xf32>
    %72 = arith.truncf %71 : vector<16x128xf32> to vector<16x128xbf16>
    %c3_53 = arith.constant 3 : index
    %c0_54 = arith.constant 0 : index
    %c0_55 = arith.constant 0 : index
    %73 = vector.load %arg5[%c3_53, %c0_54, %c0_55] : memref<5x128x64xbf16, #tpu.memory_space<vmem>>, vector<1x128x64xbf16>
    %74 = vector.shape_cast %73 : vector<1x128x64xbf16> to vector<128x64xbf16>
    %cst_56 = arith.constant dense<0.000000e+00> : vector<16x64xf32>
    %75 = tpu.matmul %72, %74, %cst_56 {dimension_numbers = #tpu.dot_dimension_numbers<[1], [0], [0], [1], [0, 0, 1, 1], [], []>} : vector<16x128xbf16>, vector<128x64xbf16>, vector<16x64xf32> -> vector<16x64xf32>
    %76 = arith.addf %70, %75 : vector<16x64xf32>
    %c4_57 = arith.constant 4 : index
    %c0_58 = arith.constant 0 : index
    %77 = vector.load %arg14[%c4_57, %c0_58] : memref<20x128xf32, #tpu.memory_space<vmem>>, vector<16x128xf32>
    %78 = arith.truncf %77 : vector<16x128xf32> to vector<16x128xbf16>
    %c4_59 = arith.constant 4 : index
    %c0_60 = arith.constant 0 : index
    %c0_61 = arith.constant 0 : index
    %79 = vector.load %arg5[%c4_59, %c0_60, %c0_61] : memref<5x128x64xbf16, #tpu.memory_space<vmem>>, vector<1x128x64xbf16>
    %80 = vector.shape_cast %79 : vector<1x128x64xbf16> to vector<128x64xbf16>
    %cst_62 = arith.constant dense<0.000000e+00> : vector<16x64xf32>
    %81 = tpu.matmul %78, %80, %cst_62 {dimension_numbers = #tpu.dot_dimension_numbers<[1], [0], [0], [1], [0, 0, 1, 1], [], []>} : vector<16x128xbf16>, vector<128x64xbf16>, vector<16x64xf32> -> vector<16x64xf32>
    %82 = arith.addf %76, %81 : vector<16x64xf32>
    %c0_63 = arith.constant 0 : index
    %c0_64 = arith.constant 0 : index
    %83 = vector.load %arg6[%c0_63, %c0_64] : memref<1x64xf32, #tpu.memory_space<vmem>>, vector<1x64xf32>
    %84 = vector.broadcast %83 : vector<1x64xf32> to vector<16x64xf32>
    %85 = arith.mulf %82, %84 : vector<16x64xf32>
    %c0_65 = arith.constant 0 : index
    %c0_66 = arith.constant 0 : index
    %86 = vector.load %arg7[%c0_65, %c0_66] : memref<1x64xf32, #tpu.memory_space<vmem>>, vector<1x64xf32>
    %87 = vector.broadcast %86 : vector<1x64xf32> to vector<16x64xf32>
    %88 = arith.addf %85, %87 : vector<16x64xf32>
    %cst_67 = arith.constant 0.000000e+00 : f32
    %89 = vector.broadcast %cst_67 : f32 to vector<16x64xf32>
    %90 = arith.maximumf %88, %89 : vector<16x64xf32>
    %cst_68 = arith.constant 0.000000e+00 : f32
    %91 = vector.broadcast %cst_68 : f32 to vector<18x64xf32>
    %c0_69 = arith.constant 0 : index
    %c0_70 = arith.constant 0 : index
    %92 = vector.load %arg15[%c0_69, %c0_70] : memref<18x64xf32, #tpu.memory_space<vmem>>, vector<18x64xf32>
    tpu.vector_store %arg15[%c0_69, %c0_70], %91 {strides = array<i32>} : memref<18x64xf32, #tpu.memory_space<vmem>>, vector<18x64xf32>,
    %c1_71 = arith.constant 1 : index
    %c0_72 = arith.constant 0 : index
    %93 = vector.load %arg15[%c1_71, %c0_72] : memref<18x64xf32, #tpu.memory_space<vmem>>, vector<16x64xf32>
    tpu.vector_store %arg15[%c1_71, %c0_72], %90 {strides = array<i32>} : memref<18x64xf32, #tpu.memory_space<vmem>>, vector<16x64xf32>,
    %c0_73 = arith.constant 0 : index
    %c0_74 = arith.constant 0 : index
    %94 = vector.load %arg15[%c0_73, %c0_74] : memref<18x64xf32, #tpu.memory_space<vmem>>, vector<16x64xf32>
    %95 = arith.truncf %94 : vector<16x64xf32> to vector<16x64xbf16>
    %c0_75 = arith.constant 0 : index
    %c0_76 = arith.constant 0 : index
    %c0_77 = arith.constant 0 : index
    %96 = vector.load %arg8[%c0_75, %c0_76, %c0_77] : memref<3x64x32xbf16, #tpu.memory_space<vmem>>, vector<1x64x32xbf16>
    %97 = vector.shape_cast %96 : vector<1x64x32xbf16> to vector<64x32xbf16>
    %cst_78 = arith.constant dense<0.000000e+00> : vector<16x32xf32>
    %98 = tpu.matmul %95, %97, %cst_78 {dimension_numbers = #tpu.dot_dimension_numbers<[1], [0], [0], [1], [0, 0, 1, 1], [], []>} : vector<16x64xbf16>, vector<64x32xbf16>, vector<16x32xf32> -> vector<16x32xf32>
    %c1_79 = arith.constant 1 : index
    %c0_80 = arith.constant 0 : index
    %99 = vector.load %arg15[%c1_79, %c0_80] : memref<18x64xf32, #tpu.memory_space<vmem>>, vector<16x64xf32>
    %100 = arith.truncf %99 : vector<16x64xf32> to vector<16x64xbf16>
    %c1_81 = arith.constant 1 : index
    %c0_82 = arith.constant 0 : index
    %c0_83 = arith.constant 0 : index
    %101 = vector.load %arg8[%c1_81, %c0_82, %c0_83] : memref<3x64x32xbf16, #tpu.memory_space<vmem>>, vector<1x64x32xbf16>
    %102 = vector.shape_cast %101 : vector<1x64x32xbf16> to vector<64x32xbf16>
    %cst_84 = arith.constant dense<0.000000e+00> : vector<16x32xf32>
    %103 = tpu.matmul %100, %102, %cst_84 {dimension_numbers = #tpu.dot_dimension_numbers<[1], [0], [0], [1], [0, 0, 1, 1], [], []>} : vector<16x64xbf16>, vector<64x32xbf16>, vector<16x32xf32> -> vector<16x32xf32>
    %104 = arith.addf %98, %103 : vector<16x32xf32>
    %c2_85 = arith.constant 2 : index
    %c0_86 = arith.constant 0 : index
    %105 = vector.load %arg15[%c2_85, %c0_86] : memref<18x64xf32, #tpu.memory_space<vmem>>, vector<16x64xf32>
    %106 = arith.truncf %105 : vector<16x64xf32> to vector<16x64xbf16>
    %c2_87 = arith.constant 2 : index
    %c0_88 = arith.constant 0 : index
    %c0_89 = arith.constant 0 : index
    %107 = vector.load %arg8[%c2_87, %c0_88, %c0_89] : memref<3x64x32xbf16, #tpu.memory_space<vmem>>, vector<1x64x32xbf16>
    %108 = vector.shape_cast %107 : vector<1x64x32xbf16> to vector<64x32xbf16>
    %cst_90 = arith.constant dense<0.000000e+00> : vector<16x32xf32>
    %109 = tpu.matmul %106, %108, %cst_90 {dimension_numbers = #tpu.dot_dimension_numbers<[1], [0], [0], [1], [0, 0, 1, 1], [], []>} : vector<16x64xbf16>, vector<64x32xbf16>, vector<16x32xf32> -> vector<16x32xf32>
    %110 = arith.addf %104, %109 : vector<16x32xf32>
    %c0_91 = arith.constant 0 : index
    %c0_92 = arith.constant 0 : index
    %111 = vector.load %arg9[%c0_91, %c0_92] : memref<1x32xf32, #tpu.memory_space<vmem>>, vector<1x32xf32>
    %112 = vector.broadcast %111 : vector<1x32xf32> to vector<16x32xf32>
    %113 = arith.mulf %110, %112 : vector<16x32xf32>
    %c0_93 = arith.constant 0 : index
    %c0_94 = arith.constant 0 : index
    %114 = vector.load %arg10[%c0_93, %c0_94] : memref<1x32xf32, #tpu.memory_space<vmem>>, vector<1x32xf32>
    %115 = vector.broadcast %114 : vector<1x32xf32> to vector<16x32xf32>
    %116 = arith.addf %113, %115 : vector<16x32xf32>
    %cst_95 = arith.constant 0.000000e+00 : f32
    %117 = vector.broadcast %cst_95 : f32 to vector<16x32xf32>
    %118 = arith.maximumf %116, %117 : vector<16x32xf32>
    %119 = arith.truncf %118 : vector<16x32xf32> to vector<16x32xbf16>
    %c0_96 = arith.constant 0 : index
    %c0_97 = arith.constant 0 : index
    %120 = vector.load %arg11[%c0_96, %c0_97] : memref<32x640xbf16, #tpu.memory_space<vmem>>, vector<32x640xbf16>
    %cst_98 = arith.constant dense<0.000000e+00> : vector<16x640xf32>
    %121 = tpu.matmul %119, %120, %cst_98 {dimension_numbers = #tpu.dot_dimension_numbers<[1], [0], [0], [1], [0, 0, 1, 1], [], []>} : vector<16x32xbf16>, vector<32x640xbf16>, vector<16x640xf32> -> vector<16x640xf32>
    %c0_99 = arith.constant 0 : index
    %c0_100 = arith.constant 0 : index
    %122 = vector.load %arg12[%c0_99, %c0_100] : memref<1x640xf32, #tpu.memory_space<vmem>>, vector<1x640xf32>
    %123 = vector.broadcast %122 : vector<1x640xf32> to vector<16x640xf32>
    %124 = arith.addf %121, %123 : vector<16x640xf32>
    %c0_101 = arith.constant 0 : index
    %c0_102 = arith.constant 0 : index
    %c0_103 = arith.constant 0 : index
    %125 = vector.load %arg13[%c0_101, %c0_102, %c0_103] : memref<1x16x640xf32, #tpu.memory_space<vmem>>, vector<1x16x640xf32>
    %126 = vector.shape_cast %125 : vector<1x16x640xf32> to vector<16x640xf32>
    %127 = vector.shape_cast %124 : vector<16x640xf32> to vector<1x16x640xf32>
    tpu.vector_store %arg13[%c0_101, %c0_102, %c0_103], %127 {strides = array<i32>} : memref<1x16x640xf32, #tpu.memory_space<vmem>>, vector<1x16x640xf32>,
    return
  }
  func.func @transform_0(%arg0: i32) -> (i32, i32, i32) {
    %c0_i32 = arith.constant 0 : i32
    %c0_i32_0 = arith.constant 0 : i32
    %c0_i32_1 = arith.constant 0 : i32
    return %arg0, %c0_i32, %c0_i32_0 : i32, i32, i32
  }
  func.func @transform_1(%arg0: i32) -> (i32, i32, i32) {
    %c0_i32 = arith.constant 0 : i32
    %c0_i32_0 = arith.constant 0 : i32
    %c0_i32_1 = arith.constant 0 : i32
    %c0_i32_2 = arith.constant 0 : i32
    return %c0_i32, %c0_i32_0, %c0_i32_1 : i32, i32, i32
  }
  func.func @transform_2(%arg0: i32) -> (i32, i32) {
    %c0_i32 = arith.constant 0 : i32
    %c0_i32_0 = arith.constant 0 : i32
    %c0_i32_1 = arith.constant 0 : i32
    return %c0_i32, %c0_i32_0 : i32, i32
  }
  func.func @transform_3(%arg0: i32) -> (i32, i32) {
    %c0_i32 = arith.constant 0 : i32
    %c0_i32_0 = arith.constant 0 : i32
    %c0_i32_1 = arith.constant 0 : i32
    return %c0_i32, %c0_i32_0 : i32, i32
  }
  func.func @transform_4(%arg0: i32) -> (i32, i32, i32) {
    %c0_i32 = arith.constant 0 : i32
    %c0_i32_0 = arith.constant 0 : i32
    %c0_i32_1 = arith.constant 0 : i32
    %c0_i32_2 = arith.constant 0 : i32
    return %c0_i32, %c0_i32_0, %c0_i32_1 : i32, i32, i32
  }
  func.func @transform_5(%arg0: i32) -> (i32, i32) {
    %c0_i32 = arith.constant 0 : i32
    %c0_i32_0 = arith.constant 0 : i32
    %c0_i32_1 = arith.constant 0 : i32
    return %c0_i32, %c0_i32_0 : i32, i32
  }
  func.func @transform_6(%arg0: i32) -> (i32, i32) {
    %c0_i32 = arith.constant 0 : i32
    %c0_i32_0 = arith.constant 0 : i32
    %c0_i32_1 = arith.constant 0 : i32
    return %c0_i32, %c0_i32_0 : i32, i32
  }
  func.func @transform_7(%arg0: i32) -> (i32, i32, i32) {
    %c0_i32 = arith.constant 0 : i32
    %c0_i32_0 = arith.constant 0 : i32
    %c0_i32_1 = arith.constant 0 : i32
    %c0_i32_2 = arith.constant 0 : i32
    return %c0_i32, %c0_i32_0, %c0_i32_1 : i32, i32, i32
  }
  func.func @transform_8(%arg0: i32) -> (i32, i32) {
    %c0_i32 = arith.constant 0 : i32
    %c0_i32_0 = arith.constant 0 : i32
    %c0_i32_1 = arith.constant 0 : i32
    return %c0_i32, %c0_i32_0 : i32, i32
  }
  func.func @transform_9(%arg0: i32) -> (i32, i32) {
    %c0_i32 = arith.constant 0 : i32
    %c0_i32_0 = arith.constant 0 : i32
    %c0_i32_1 = arith.constant 0 : i32
    return %c0_i32, %c0_i32_0 : i32, i32
  }
  func.func @transform_10(%arg0: i32) -> (i32, i32) {
    %c0_i32 = arith.constant 0 : i32
    %c0_i32_0 = arith.constant 0 : i32
    %c0_i32_1 = arith.constant 0 : i32
    return %c0_i32, %c0_i32_0 : i32, i32
  }
  func.func @transform_11(%arg0: i32) -> (i32, i32) {
    %c0_i32 = arith.constant 0 : i32
    %c0_i32_0 = arith.constant 0 : i32
    %c0_i32_1 = arith.constant 0 : i32
    return %c0_i32, %c0_i32_0 : i32, i32
  }
  func.func @transform_12(%arg0: i32) -> (i32, i32, i32) {
    %c0_i32 = arith.constant 0 : i32
    %c0_i32_0 = arith.constant 0 : i32
    %c0_i32_1 = arith.constant 0 : i32
    return %arg0, %c0_i32, %c0_i32_0 : i32, i32, i32
  }
}

module attributes {stable_mosaic.version = 11 : i64} {
  func.func @_bilstm_classifier_kernel(%arg0: memref<16x2x640xf32, #tpu.memory_space<vmem>>, %arg1: memref<160x640xbf16, #tpu.memory_space<vmem>>, %arg2: memref<160x64xf32, #tpu.memory_space<vmem>>, %arg3: memref<1x64xf32, #tpu.memory_space<vmem>>, %arg4: memref<64x5xf32, #tpu.memory_space<vmem>>, %arg5: memref<1x5xf32, #tpu.memory_space<vmem>>, %arg6: memref<2x5xf32, #tpu.memory_space<vmem>>) attributes {dimension_semantics = [], scalar_prefetch = 0 : i64, scratch_operands = 0 : i64, tpu.core_type = #tpu.core_type<tc>} {
    %0 = tpu.iota {dimensions = array<i32: 1>} : vector<2x640xi32>
    %c160_i32 = arith.constant 160 : i32
    %c0_i32 = arith.constant 0 : i32
    %1 = arith.cmpi eq, %c160_i32, %c0_i32 : i32
    %c1_i32 = arith.constant 1 : i32
    %2 = arith.select %1, %c1_i32, %c160_i32 : i32
    %3 = vector.broadcast %2 : i32 to vector<2x640xi32>
    %4 = arith.remsi %0, %3 : vector<2x640xi32>
    %c0_i32_0 = arith.constant 0 : i32
    %5 = vector.broadcast %c0_i32_0 : i32 to vector<2x640xi32>
    %6 = arith.cmpi ne, %4, %5 : vector<2x640xi32>
    %c0_i32_1 = arith.constant 0 : i32
    %7 = vector.broadcast %c0_i32_1 : i32 to vector<2x640xi32>
    %8 = arith.cmpi slt, %4, %7 : vector<2x640xi32>
    %c0_i32_2 = arith.constant 0 : i32
    %9 = arith.cmpi slt, %2, %c0_i32_2 : i32
    %10 = vector.broadcast %9 : i1 to vector<2x640xi1>
    %11 = vector.broadcast %10 : vector<2x640xi1> to vector<2x640xi1>
    %12 = arith.xori %8, %11 : vector<2x640xi1>
    %13 = arith.andi %12, %6 : vector<2x640xi1>
    %14 = vector.broadcast %2 : i32 to vector<2x640xi32>
    %15 = arith.addi %4, %14 : vector<2x640xi32>
    %16 = arith.select %13, %15, %4 : vector<2x640xi1>, vector<2x640xi32>
    %c80_i32 = arith.constant 80 : i32
    %17 = vector.broadcast %c80_i32 : i32 to vector<2x640xi32>
    %18 = arith.cmpi slt, %16, %17 : vector<2x640xi32>
    %cst = arith.constant 0.000000e+00 : f32
    %19 = vector.broadcast %cst : f32 to vector<2x160xf32>
    %c0_i32_3 = arith.constant 0 : i32
    %20 = arith.truncf %19 : vector<2x160xf32> to vector<2x160xbf16>
    %c0 = arith.constant 0 : index
    %c0_4 = arith.constant 0 : index
    %21 = vector.load %arg1[%c0, %c0_4] : memref<160x640xbf16, #tpu.memory_space<vmem>>, vector<160x640xbf16>
    %cst_5 = arith.constant dense<0.000000e+00> : vector<2x640xf32>
    %22 = tpu.matmul %20, %21, %cst_5 {dimension_numbers = #tpu.dot_dimension_numbers<[1], [0], [0], [1], [0, 0, 1, 1], [], []>} : vector<2x160xbf16>, vector<160x640xbf16>, vector<2x640xf32> -> vector<2x640xf32>
    %23 = arith.index_cast %c0_i32_3 : i32 to index
    %c0_6 = arith.constant 0 : index
    %c0_7 = arith.constant 0 : index
    %24 = vector.load %arg0[%23, %c0_6, %c0_7] : memref<16x2x640xf32, #tpu.memory_space<vmem>>, vector<1x2x640xf32>
    %25 = vector.shape_cast %24 : vector<1x2x640xf32> to vector<2x640xf32>
    %c15_i32 = arith.constant 15 : i32
    %26 = arith.subi %c15_i32, %c0_i32_3 : i32
    %27 = arith.index_cast %26 : i32 to index
    %c0_8 = arith.constant 0 : index
    %c0_9 = arith.constant 0 : index
    %28 = vector.load %arg0[%27, %c0_8, %c0_9] : memref<16x2x640xf32, #tpu.memory_space<vmem>>, vector<1x2x640xf32>
    %29 = vector.shape_cast %28 : vector<1x2x640xf32> to vector<2x640xf32>
    %30 = arith.select %18, %25, %29 : vector<2x640xi1>, vector<2x640xf32>
    %31 = arith.addf %22, %30 : vector<2x640xf32>
    %32 = vector.extract_strided_slice %31 {offsets = [0, 0], sizes = [2, 160], strides = [1, 1]} : vector<2x640xf32> to vector<2x160xf32>
    %33 = arith.negf %32 : vector<2x160xf32>
    %34 = math.exp %33 : vector<2x160xf32>
    %cst_10 = arith.constant 1.000000e+00 : f32
    %35 = vector.broadcast %cst_10 : f32 to vector<2x160xf32>
    %36 = arith.addf %35, %34 : vector<2x160xf32>
    %37 = arith.divf %35, %36 : vector<2x160xf32>
    %38 = vector.extract_strided_slice %31 {offsets = [0, 160], sizes = [2, 160], strides = [1, 1]} : vector<2x640xf32> to vector<2x160xf32>
    %39 = arith.negf %38 : vector<2x160xf32>
    %40 = math.exp %39 : vector<2x160xf32>
    %cst_11 = arith.constant 1.000000e+00 : f32
    %41 = vector.broadcast %cst_11 : f32 to vector<2x160xf32>
    %42 = arith.addf %41, %40 : vector<2x160xf32>
    %43 = arith.divf %41, %42 : vector<2x160xf32>
    %44 = vector.extract_strided_slice %31 {offsets = [0, 320], sizes = [2, 160], strides = [1, 1]} : vector<2x640xf32> to vector<2x160xf32>
    %45 = math.tanh %44 : vector<2x160xf32>
    %46 = vector.extract_strided_slice %31 {offsets = [0, 480], sizes = [2, 160], strides = [1, 1]} : vector<2x640xf32> to vector<2x160xf32>
    %47 = arith.negf %46 : vector<2x160xf32>
    %48 = math.exp %47 : vector<2x160xf32>
    %cst_12 = arith.constant 1.000000e+00 : f32
    %49 = vector.broadcast %cst_12 : f32 to vector<2x160xf32>
    %50 = arith.addf %49, %48 : vector<2x160xf32>
    %51 = arith.divf %49, %50 : vector<2x160xf32>
    %52 = arith.mulf %43, %19 : vector<2x160xf32>
    %53 = arith.mulf %37, %45 : vector<2x160xf32>
    %54 = arith.addf %52, %53 : vector<2x160xf32>
    %55 = math.tanh %54 : vector<2x160xf32>
    %56 = arith.mulf %51, %55 : vector<2x160xf32>
    %c1_i32_13 = arith.constant 1 : i32
    %57 = arith.truncf %56 : vector<2x160xf32> to vector<2x160xbf16>
    %c0_14 = arith.constant 0 : index
    %c0_15 = arith.constant 0 : index
    %58 = vector.load %arg1[%c0_14, %c0_15] : memref<160x640xbf16, #tpu.memory_space<vmem>>, vector<160x640xbf16>
    %cst_16 = arith.constant dense<0.000000e+00> : vector<2x640xf32>
    %59 = tpu.matmul %57, %58, %cst_16 {dimension_numbers = #tpu.dot_dimension_numbers<[1], [0], [0], [1], [0, 0, 1, 1], [], []>} : vector<2x160xbf16>, vector<160x640xbf16>, vector<2x640xf32> -> vector<2x640xf32>
    %60 = arith.index_cast %c1_i32_13 : i32 to index
    %c0_17 = arith.constant 0 : index
    %c0_18 = arith.constant 0 : index
    %61 = vector.load %arg0[%60, %c0_17, %c0_18] : memref<16x2x640xf32, #tpu.memory_space<vmem>>, vector<1x2x640xf32>
    %62 = vector.shape_cast %61 : vector<1x2x640xf32> to vector<2x640xf32>
    %c15_i32_19 = arith.constant 15 : i32
    %63 = arith.subi %c15_i32_19, %c1_i32_13 : i32
    %64 = arith.index_cast %63 : i32 to index
    %c0_20 = arith.constant 0 : index
    %c0_21 = arith.constant 0 : index
    %65 = vector.load %arg0[%64, %c0_20, %c0_21] : memref<16x2x640xf32, #tpu.memory_space<vmem>>, vector<1x2x640xf32>
    %66 = vector.shape_cast %65 : vector<1x2x640xf32> to vector<2x640xf32>
    %67 = arith.select %18, %62, %66 : vector<2x640xi1>, vector<2x640xf32>
    %68 = arith.addf %59, %67 : vector<2x640xf32>
    %69 = vector.extract_strided_slice %68 {offsets = [0, 0], sizes = [2, 160], strides = [1, 1]} : vector<2x640xf32> to vector<2x160xf32>
    %70 = arith.negf %69 : vector<2x160xf32>
    %71 = math.exp %70 : vector<2x160xf32>
    %cst_22 = arith.constant 1.000000e+00 : f32
    %72 = vector.broadcast %cst_22 : f32 to vector<2x160xf32>
    %73 = arith.addf %72, %71 : vector<2x160xf32>
    %74 = arith.divf %72, %73 : vector<2x160xf32>
    %75 = vector.extract_strided_slice %68 {offsets = [0, 160], sizes = [2, 160], strides = [1, 1]} : vector<2x640xf32> to vector<2x160xf32>
    %76 = arith.negf %75 : vector<2x160xf32>
    %77 = math.exp %76 : vector<2x160xf32>
    %cst_23 = arith.constant 1.000000e+00 : f32
    %78 = vector.broadcast %cst_23 : f32 to vector<2x160xf32>
    %79 = arith.addf %78, %77 : vector<2x160xf32>
    %80 = arith.divf %78, %79 : vector<2x160xf32>
    %81 = vector.extract_strided_slice %68 {offsets = [0, 320], sizes = [2, 160], strides = [1, 1]} : vector<2x640xf32> to vector<2x160xf32>
    %82 = math.tanh %81 : vector<2x160xf32>
    %83 = vector.extract_strided_slice %68 {offsets = [0, 480], sizes = [2, 160], strides = [1, 1]} : vector<2x640xf32> to vector<2x160xf32>
    %84 = arith.negf %83 : vector<2x160xf32>
    %85 = math.exp %84 : vector<2x160xf32>
    %cst_24 = arith.constant 1.000000e+00 : f32
    %86 = vector.broadcast %cst_24 : f32 to vector<2x160xf32>
    %87 = arith.addf %86, %85 : vector<2x160xf32>
    %88 = arith.divf %86, %87 : vector<2x160xf32>
    %89 = arith.mulf %80, %54 : vector<2x160xf32>
    %90 = arith.mulf %74, %82 : vector<2x160xf32>
    %91 = arith.addf %89, %90 : vector<2x160xf32>
    %92 = math.tanh %91 : vector<2x160xf32>
    %93 = arith.mulf %88, %92 : vector<2x160xf32>
    %c2_i32 = arith.constant 2 : i32
    %94 = arith.truncf %93 : vector<2x160xf32> to vector<2x160xbf16>
    %c0_25 = arith.constant 0 : index
    %c0_26 = arith.constant 0 : index
    %95 = vector.load %arg1[%c0_25, %c0_26] : memref<160x640xbf16, #tpu.memory_space<vmem>>, vector<160x640xbf16>
    %cst_27 = arith.constant dense<0.000000e+00> : vector<2x640xf32>
    %96 = tpu.matmul %94, %95, %cst_27 {dimension_numbers = #tpu.dot_dimension_numbers<[1], [0], [0], [1], [0, 0, 1, 1], [], []>} : vector<2x160xbf16>, vector<160x640xbf16>, vector<2x640xf32> -> vector<2x640xf32>
    %97 = arith.index_cast %c2_i32 : i32 to index
    %c0_28 = arith.constant 0 : index
    %c0_29 = arith.constant 0 : index
    %98 = vector.load %arg0[%97, %c0_28, %c0_29] : memref<16x2x640xf32, #tpu.memory_space<vmem>>, vector<1x2x640xf32>
    %99 = vector.shape_cast %98 : vector<1x2x640xf32> to vector<2x640xf32>
    %c15_i32_30 = arith.constant 15 : i32
    %100 = arith.subi %c15_i32_30, %c2_i32 : i32
    %101 = arith.index_cast %100 : i32 to index
    %c0_31 = arith.constant 0 : index
    %c0_32 = arith.constant 0 : index
    %102 = vector.load %arg0[%101, %c0_31, %c0_32] : memref<16x2x640xf32, #tpu.memory_space<vmem>>, vector<1x2x640xf32>
    %103 = vector.shape_cast %102 : vector<1x2x640xf32> to vector<2x640xf32>
    %104 = arith.select %18, %99, %103 : vector<2x640xi1>, vector<2x640xf32>
    %105 = arith.addf %96, %104 : vector<2x640xf32>
    %106 = vector.extract_strided_slice %105 {offsets = [0, 0], sizes = [2, 160], strides = [1, 1]} : vector<2x640xf32> to vector<2x160xf32>
    %107 = arith.negf %106 : vector<2x160xf32>
    %108 = math.exp %107 : vector<2x160xf32>
    %cst_33 = arith.constant 1.000000e+00 : f32
    %109 = vector.broadcast %cst_33 : f32 to vector<2x160xf32>
    %110 = arith.addf %109, %108 : vector<2x160xf32>
    %111 = arith.divf %109, %110 : vector<2x160xf32>
    %112 = vector.extract_strided_slice %105 {offsets = [0, 160], sizes = [2, 160], strides = [1, 1]} : vector<2x640xf32> to vector<2x160xf32>
    %113 = arith.negf %112 : vector<2x160xf32>
    %114 = math.exp %113 : vector<2x160xf32>
    %cst_34 = arith.constant 1.000000e+00 : f32
    %115 = vector.broadcast %cst_34 : f32 to vector<2x160xf32>
    %116 = arith.addf %115, %114 : vector<2x160xf32>
    %117 = arith.divf %115, %116 : vector<2x160xf32>
    %118 = vector.extract_strided_slice %105 {offsets = [0, 320], sizes = [2, 160], strides = [1, 1]} : vector<2x640xf32> to vector<2x160xf32>
    %119 = math.tanh %118 : vector<2x160xf32>
    %120 = vector.extract_strided_slice %105 {offsets = [0, 480], sizes = [2, 160], strides = [1, 1]} : vector<2x640xf32> to vector<2x160xf32>
    %121 = arith.negf %120 : vector<2x160xf32>
    %122 = math.exp %121 : vector<2x160xf32>
    %cst_35 = arith.constant 1.000000e+00 : f32
    %123 = vector.broadcast %cst_35 : f32 to vector<2x160xf32>
    %124 = arith.addf %123, %122 : vector<2x160xf32>
    %125 = arith.divf %123, %124 : vector<2x160xf32>
    %126 = arith.mulf %117, %91 : vector<2x160xf32>
    %127 = arith.mulf %111, %119 : vector<2x160xf32>
    %128 = arith.addf %126, %127 : vector<2x160xf32>
    %129 = math.tanh %128 : vector<2x160xf32>
    %130 = arith.mulf %125, %129 : vector<2x160xf32>
    %c3_i32 = arith.constant 3 : i32
    %131 = arith.truncf %130 : vector<2x160xf32> to vector<2x160xbf16>
    %c0_36 = arith.constant 0 : index
    %c0_37 = arith.constant 0 : index
    %132 = vector.load %arg1[%c0_36, %c0_37] : memref<160x640xbf16, #tpu.memory_space<vmem>>, vector<160x640xbf16>
    %cst_38 = arith.constant dense<0.000000e+00> : vector<2x640xf32>
    %133 = tpu.matmul %131, %132, %cst_38 {dimension_numbers = #tpu.dot_dimension_numbers<[1], [0], [0], [1], [0, 0, 1, 1], [], []>} : vector<2x160xbf16>, vector<160x640xbf16>, vector<2x640xf32> -> vector<2x640xf32>
    %134 = arith.index_cast %c3_i32 : i32 to index
    %c0_39 = arith.constant 0 : index
    %c0_40 = arith.constant 0 : index
    %135 = vector.load %arg0[%134, %c0_39, %c0_40] : memref<16x2x640xf32, #tpu.memory_space<vmem>>, vector<1x2x640xf32>
    %136 = vector.shape_cast %135 : vector<1x2x640xf32> to vector<2x640xf32>
    %c15_i32_41 = arith.constant 15 : i32
    %137 = arith.subi %c15_i32_41, %c3_i32 : i32
    %138 = arith.index_cast %137 : i32 to index
    %c0_42 = arith.constant 0 : index
    %c0_43 = arith.constant 0 : index
    %139 = vector.load %arg0[%138, %c0_42, %c0_43] : memref<16x2x640xf32, #tpu.memory_space<vmem>>, vector<1x2x640xf32>
    %140 = vector.shape_cast %139 : vector<1x2x640xf32> to vector<2x640xf32>
    %141 = arith.select %18, %136, %140 : vector<2x640xi1>, vector<2x640xf32>
    %142 = arith.addf %133, %141 : vector<2x640xf32>
    %143 = vector.extract_strided_slice %142 {offsets = [0, 0], sizes = [2, 160], strides = [1, 1]} : vector<2x640xf32> to vector<2x160xf32>
    %144 = arith.negf %143 : vector<2x160xf32>
    %145 = math.exp %144 : vector<2x160xf32>
    %cst_44 = arith.constant 1.000000e+00 : f32
    %146 = vector.broadcast %cst_44 : f32 to vector<2x160xf32>
    %147 = arith.addf %146, %145 : vector<2x160xf32>
    %148 = arith.divf %146, %147 : vector<2x160xf32>
    %149 = vector.extract_strided_slice %142 {offsets = [0, 160], sizes = [2, 160], strides = [1, 1]} : vector<2x640xf32> to vector<2x160xf32>
    %150 = arith.negf %149 : vector<2x160xf32>
    %151 = math.exp %150 : vector<2x160xf32>
    %cst_45 = arith.constant 1.000000e+00 : f32
    %152 = vector.broadcast %cst_45 : f32 to vector<2x160xf32>
    %153 = arith.addf %152, %151 : vector<2x160xf32>
    %154 = arith.divf %152, %153 : vector<2x160xf32>
    %155 = vector.extract_strided_slice %142 {offsets = [0, 320], sizes = [2, 160], strides = [1, 1]} : vector<2x640xf32> to vector<2x160xf32>
    %156 = math.tanh %155 : vector<2x160xf32>
    %157 = vector.extract_strided_slice %142 {offsets = [0, 480], sizes = [2, 160], strides = [1, 1]} : vector<2x640xf32> to vector<2x160xf32>
    %158 = arith.negf %157 : vector<2x160xf32>
    %159 = math.exp %158 : vector<2x160xf32>
    %cst_46 = arith.constant 1.000000e+00 : f32
    %160 = vector.broadcast %cst_46 : f32 to vector<2x160xf32>
    %161 = arith.addf %160, %159 : vector<2x160xf32>
    %162 = arith.divf %160, %161 : vector<2x160xf32>
    %163 = arith.mulf %154, %128 : vector<2x160xf32>
    %164 = arith.mulf %148, %156 : vector<2x160xf32>
    %165 = arith.addf %163, %164 : vector<2x160xf32>
    %166 = math.tanh %165 : vector<2x160xf32>
    %167 = arith.mulf %162, %166 : vector<2x160xf32>
    %c4_i32 = arith.constant 4 : i32
    %168 = arith.truncf %167 : vector<2x160xf32> to vector<2x160xbf16>
    %c0_47 = arith.constant 0 : index
    %c0_48 = arith.constant 0 : index
    %169 = vector.load %arg1[%c0_47, %c0_48] : memref<160x640xbf16, #tpu.memory_space<vmem>>, vector<160x640xbf16>
    %cst_49 = arith.constant dense<0.000000e+00> : vector<2x640xf32>
    %170 = tpu.matmul %168, %169, %cst_49 {dimension_numbers = #tpu.dot_dimension_numbers<[1], [0], [0], [1], [0, 0, 1, 1], [], []>} : vector<2x160xbf16>, vector<160x640xbf16>, vector<2x640xf32> -> vector<2x640xf32>
    %171 = arith.index_cast %c4_i32 : i32 to index
    %c0_50 = arith.constant 0 : index
    %c0_51 = arith.constant 0 : index
    %172 = vector.load %arg0[%171, %c0_50, %c0_51] : memref<16x2x640xf32, #tpu.memory_space<vmem>>, vector<1x2x640xf32>
    %173 = vector.shape_cast %172 : vector<1x2x640xf32> to vector<2x640xf32>
    %c15_i32_52 = arith.constant 15 : i32
    %174 = arith.subi %c15_i32_52, %c4_i32 : i32
    %175 = arith.index_cast %174 : i32 to index
    %c0_53 = arith.constant 0 : index
    %c0_54 = arith.constant 0 : index
    %176 = vector.load %arg0[%175, %c0_53, %c0_54] : memref<16x2x640xf32, #tpu.memory_space<vmem>>, vector<1x2x640xf32>
    %177 = vector.shape_cast %176 : vector<1x2x640xf32> to vector<2x640xf32>
    %178 = arith.select %18, %173, %177 : vector<2x640xi1>, vector<2x640xf32>
    %179 = arith.addf %170, %178 : vector<2x640xf32>
    %180 = vector.extract_strided_slice %179 {offsets = [0, 0], sizes = [2, 160], strides = [1, 1]} : vector<2x640xf32> to vector<2x160xf32>
    %181 = arith.negf %180 : vector<2x160xf32>
    %182 = math.exp %181 : vector<2x160xf32>
    %cst_55 = arith.constant 1.000000e+00 : f32
    %183 = vector.broadcast %cst_55 : f32 to vector<2x160xf32>
    %184 = arith.addf %183, %182 : vector<2x160xf32>
    %185 = arith.divf %183, %184 : vector<2x160xf32>
    %186 = vector.extract_strided_slice %179 {offsets = [0, 160], sizes = [2, 160], strides = [1, 1]} : vector<2x640xf32> to vector<2x160xf32>
    %187 = arith.negf %186 : vector<2x160xf32>
    %188 = math.exp %187 : vector<2x160xf32>
    %cst_56 = arith.constant 1.000000e+00 : f32
    %189 = vector.broadcast %cst_56 : f32 to vector<2x160xf32>
    %190 = arith.addf %189, %188 : vector<2x160xf32>
    %191 = arith.divf %189, %190 : vector<2x160xf32>
    %192 = vector.extract_strided_slice %179 {offsets = [0, 320], sizes = [2, 160], strides = [1, 1]} : vector<2x640xf32> to vector<2x160xf32>
    %193 = math.tanh %192 : vector<2x160xf32>
    %194 = vector.extract_strided_slice %179 {offsets = [0, 480], sizes = [2, 160], strides = [1, 1]} : vector<2x640xf32> to vector<2x160xf32>
    %195 = arith.negf %194 : vector<2x160xf32>
    %196 = math.exp %195 : vector<2x160xf32>
    %cst_57 = arith.constant 1.000000e+00 : f32
    %197 = vector.broadcast %cst_57 : f32 to vector<2x160xf32>
    %198 = arith.addf %197, %196 : vector<2x160xf32>
    %199 = arith.divf %197, %198 : vector<2x160xf32>
    %200 = arith.mulf %191, %165 : vector<2x160xf32>
    %201 = arith.mulf %185, %193 : vector<2x160xf32>
    %202 = arith.addf %200, %201 : vector<2x160xf32>
    %203 = math.tanh %202 : vector<2x160xf32>
    %204 = arith.mulf %199, %203 : vector<2x160xf32>
    %c5_i32 = arith.constant 5 : i32
    %205 = arith.truncf %204 : vector<2x160xf32> to vector<2x160xbf16>
    %c0_58 = arith.constant 0 : index
    %c0_59 = arith.constant 0 : index
    %206 = vector.load %arg1[%c0_58, %c0_59] : memref<160x640xbf16, #tpu.memory_space<vmem>>, vector<160x640xbf16>
    %cst_60 = arith.constant dense<0.000000e+00> : vector<2x640xf32>
    %207 = tpu.matmul %205, %206, %cst_60 {dimension_numbers = #tpu.dot_dimension_numbers<[1], [0], [0], [1], [0, 0, 1, 1], [], []>} : vector<2x160xbf16>, vector<160x640xbf16>, vector<2x640xf32> -> vector<2x640xf32>
    %208 = arith.index_cast %c5_i32 : i32 to index
    %c0_61 = arith.constant 0 : index
    %c0_62 = arith.constant 0 : index
    %209 = vector.load %arg0[%208, %c0_61, %c0_62] : memref<16x2x640xf32, #tpu.memory_space<vmem>>, vector<1x2x640xf32>
    %210 = vector.shape_cast %209 : vector<1x2x640xf32> to vector<2x640xf32>
    %c15_i32_63 = arith.constant 15 : i32
    %211 = arith.subi %c15_i32_63, %c5_i32 : i32
    %212 = arith.index_cast %211 : i32 to index
    %c0_64 = arith.constant 0 : index
    %c0_65 = arith.constant 0 : index
    %213 = vector.load %arg0[%212, %c0_64, %c0_65] : memref<16x2x640xf32, #tpu.memory_space<vmem>>, vector<1x2x640xf32>
    %214 = vector.shape_cast %213 : vector<1x2x640xf32> to vector<2x640xf32>
    %215 = arith.select %18, %210, %214 : vector<2x640xi1>, vector<2x640xf32>
    %216 = arith.addf %207, %215 : vector<2x640xf32>
    %217 = vector.extract_strided_slice %216 {offsets = [0, 0], sizes = [2, 160], strides = [1, 1]} : vector<2x640xf32> to vector<2x160xf32>
    %218 = arith.negf %217 : vector<2x160xf32>
    %219 = math.exp %218 : vector<2x160xf32>
    %cst_66 = arith.constant 1.000000e+00 : f32
    %220 = vector.broadcast %cst_66 : f32 to vector<2x160xf32>
    %221 = arith.addf %220, %219 : vector<2x160xf32>
    %222 = arith.divf %220, %221 : vector<2x160xf32>
    %223 = vector.extract_strided_slice %216 {offsets = [0, 160], sizes = [2, 160], strides = [1, 1]} : vector<2x640xf32> to vector<2x160xf32>
    %224 = arith.negf %223 : vector<2x160xf32>
    %225 = math.exp %224 : vector<2x160xf32>
    %cst_67 = arith.constant 1.000000e+00 : f32
    %226 = vector.broadcast %cst_67 : f32 to vector<2x160xf32>
    %227 = arith.addf %226, %225 : vector<2x160xf32>
    %228 = arith.divf %226, %227 : vector<2x160xf32>
    %229 = vector.extract_strided_slice %216 {offsets = [0, 320], sizes = [2, 160], strides = [1, 1]} : vector<2x640xf32> to vector<2x160xf32>
    %230 = math.tanh %229 : vector<2x160xf32>
    %231 = vector.extract_strided_slice %216 {offsets = [0, 480], sizes = [2, 160], strides = [1, 1]} : vector<2x640xf32> to vector<2x160xf32>
    %232 = arith.negf %231 : vector<2x160xf32>
    %233 = math.exp %232 : vector<2x160xf32>
    %cst_68 = arith.constant 1.000000e+00 : f32
    %234 = vector.broadcast %cst_68 : f32 to vector<2x160xf32>
    %235 = arith.addf %234, %233 : vector<2x160xf32>
    %236 = arith.divf %234, %235 : vector<2x160xf32>
    %237 = arith.mulf %228, %202 : vector<2x160xf32>
    %238 = arith.mulf %222, %230 : vector<2x160xf32>
    %239 = arith.addf %237, %238 : vector<2x160xf32>
    %240 = math.tanh %239 : vector<2x160xf32>
    %241 = arith.mulf %236, %240 : vector<2x160xf32>
    %c6_i32 = arith.constant 6 : i32
    %242 = arith.truncf %241 : vector<2x160xf32> to vector<2x160xbf16>
    %c0_69 = arith.constant 0 : index
    %c0_70 = arith.constant 0 : index
    %243 = vector.load %arg1[%c0_69, %c0_70] : memref<160x640xbf16, #tpu.memory_space<vmem>>, vector<160x640xbf16>
    %cst_71 = arith.constant dense<0.000000e+00> : vector<2x640xf32>
    %244 = tpu.matmul %242, %243, %cst_71 {dimension_numbers = #tpu.dot_dimension_numbers<[1], [0], [0], [1], [0, 0, 1, 1], [], []>} : vector<2x160xbf16>, vector<160x640xbf16>, vector<2x640xf32> -> vector<2x640xf32>
    %245 = arith.index_cast %c6_i32 : i32 to index
    %c0_72 = arith.constant 0 : index
    %c0_73 = arith.constant 0 : index
    %246 = vector.load %arg0[%245, %c0_72, %c0_73] : memref<16x2x640xf32, #tpu.memory_space<vmem>>, vector<1x2x640xf32>
    %247 = vector.shape_cast %246 : vector<1x2x640xf32> to vector<2x640xf32>
    %c15_i32_74 = arith.constant 15 : i32
    %248 = arith.subi %c15_i32_74, %c6_i32 : i32
    %249 = arith.index_cast %248 : i32 to index
    %c0_75 = arith.constant 0 : index
    %c0_76 = arith.constant 0 : index
    %250 = vector.load %arg0[%249, %c0_75, %c0_76] : memref<16x2x640xf32, #tpu.memory_space<vmem>>, vector<1x2x640xf32>
    %251 = vector.shape_cast %250 : vector<1x2x640xf32> to vector<2x640xf32>
    %252 = arith.select %18, %247, %251 : vector<2x640xi1>, vector<2x640xf32>
    %253 = arith.addf %244, %252 : vector<2x640xf32>
    %254 = vector.extract_strided_slice %253 {offsets = [0, 0], sizes = [2, 160], strides = [1, 1]} : vector<2x640xf32> to vector<2x160xf32>
    %255 = arith.negf %254 : vector<2x160xf32>
    %256 = math.exp %255 : vector<2x160xf32>
    %cst_77 = arith.constant 1.000000e+00 : f32
    %257 = vector.broadcast %cst_77 : f32 to vector<2x160xf32>
    %258 = arith.addf %257, %256 : vector<2x160xf32>
    %259 = arith.divf %257, %258 : vector<2x160xf32>
    %260 = vector.extract_strided_slice %253 {offsets = [0, 160], sizes = [2, 160], strides = [1, 1]} : vector<2x640xf32> to vector<2x160xf32>
    %261 = arith.negf %260 : vector<2x160xf32>
    %262 = math.exp %261 : vector<2x160xf32>
    %cst_78 = arith.constant 1.000000e+00 : f32
    %263 = vector.broadcast %cst_78 : f32 to vector<2x160xf32>
    %264 = arith.addf %263, %262 : vector<2x160xf32>
    %265 = arith.divf %263, %264 : vector<2x160xf32>
    %266 = vector.extract_strided_slice %253 {offsets = [0, 320], sizes = [2, 160], strides = [1, 1]} : vector<2x640xf32> to vector<2x160xf32>
    %267 = math.tanh %266 : vector<2x160xf32>
    %268 = vector.extract_strided_slice %253 {offsets = [0, 480], sizes = [2, 160], strides = [1, 1]} : vector<2x640xf32> to vector<2x160xf32>
    %269 = arith.negf %268 : vector<2x160xf32>
    %270 = math.exp %269 : vector<2x160xf32>
    %cst_79 = arith.constant 1.000000e+00 : f32
    %271 = vector.broadcast %cst_79 : f32 to vector<2x160xf32>
    %272 = arith.addf %271, %270 : vector<2x160xf32>
    %273 = arith.divf %271, %272 : vector<2x160xf32>
    %274 = arith.mulf %265, %239 : vector<2x160xf32>
    %275 = arith.mulf %259, %267 : vector<2x160xf32>
    %276 = arith.addf %274, %275 : vector<2x160xf32>
    %277 = math.tanh %276 : vector<2x160xf32>
    %278 = arith.mulf %273, %277 : vector<2x160xf32>
    %c7_i32 = arith.constant 7 : i32
    %279 = arith.truncf %278 : vector<2x160xf32> to vector<2x160xbf16>
    %c0_80 = arith.constant 0 : index
    %c0_81 = arith.constant 0 : index
    %280 = vector.load %arg1[%c0_80, %c0_81] : memref<160x640xbf16, #tpu.memory_space<vmem>>, vector<160x640xbf16>
    %cst_82 = arith.constant dense<0.000000e+00> : vector<2x640xf32>
    %281 = tpu.matmul %279, %280, %cst_82 {dimension_numbers = #tpu.dot_dimension_numbers<[1], [0], [0], [1], [0, 0, 1, 1], [], []>} : vector<2x160xbf16>, vector<160x640xbf16>, vector<2x640xf32> -> vector<2x640xf32>
    %282 = arith.index_cast %c7_i32 : i32 to index
    %c0_83 = arith.constant 0 : index
    %c0_84 = arith.constant 0 : index
    %283 = vector.load %arg0[%282, %c0_83, %c0_84] : memref<16x2x640xf32, #tpu.memory_space<vmem>>, vector<1x2x640xf32>
    %284 = vector.shape_cast %283 : vector<1x2x640xf32> to vector<2x640xf32>
    %c15_i32_85 = arith.constant 15 : i32
    %285 = arith.subi %c15_i32_85, %c7_i32 : i32
    %286 = arith.index_cast %285 : i32 to index
    %c0_86 = arith.constant 0 : index
    %c0_87 = arith.constant 0 : index
    %287 = vector.load %arg0[%286, %c0_86, %c0_87] : memref<16x2x640xf32, #tpu.memory_space<vmem>>, vector<1x2x640xf32>
    %288 = vector.shape_cast %287 : vector<1x2x640xf32> to vector<2x640xf32>
    %289 = arith.select %18, %284, %288 : vector<2x640xi1>, vector<2x640xf32>
    %290 = arith.addf %281, %289 : vector<2x640xf32>
    %291 = vector.extract_strided_slice %290 {offsets = [0, 0], sizes = [2, 160], strides = [1, 1]} : vector<2x640xf32> to vector<2x160xf32>
    %292 = arith.negf %291 : vector<2x160xf32>
    %293 = math.exp %292 : vector<2x160xf32>
    %cst_88 = arith.constant 1.000000e+00 : f32
    %294 = vector.broadcast %cst_88 : f32 to vector<2x160xf32>
    %295 = arith.addf %294, %293 : vector<2x160xf32>
    %296 = arith.divf %294, %295 : vector<2x160xf32>
    %297 = vector.extract_strided_slice %290 {offsets = [0, 160], sizes = [2, 160], strides = [1, 1]} : vector<2x640xf32> to vector<2x160xf32>
    %298 = arith.negf %297 : vector<2x160xf32>
    %299 = math.exp %298 : vector<2x160xf32>
    %cst_89 = arith.constant 1.000000e+00 : f32
    %300 = vector.broadcast %cst_89 : f32 to vector<2x160xf32>
    %301 = arith.addf %300, %299 : vector<2x160xf32>
    %302 = arith.divf %300, %301 : vector<2x160xf32>
    %303 = vector.extract_strided_slice %290 {offsets = [0, 320], sizes = [2, 160], strides = [1, 1]} : vector<2x640xf32> to vector<2x160xf32>
    %304 = math.tanh %303 : vector<2x160xf32>
    %305 = vector.extract_strided_slice %290 {offsets = [0, 480], sizes = [2, 160], strides = [1, 1]} : vector<2x640xf32> to vector<2x160xf32>
    %306 = arith.negf %305 : vector<2x160xf32>
    %307 = math.exp %306 : vector<2x160xf32>
    %cst_90 = arith.constant 1.000000e+00 : f32
    %308 = vector.broadcast %cst_90 : f32 to vector<2x160xf32>
    %309 = arith.addf %308, %307 : vector<2x160xf32>
    %310 = arith.divf %308, %309 : vector<2x160xf32>
    %311 = arith.mulf %302, %276 : vector<2x160xf32>
    %312 = arith.mulf %296, %304 : vector<2x160xf32>
    %313 = arith.addf %311, %312 : vector<2x160xf32>
    %314 = math.tanh %313 : vector<2x160xf32>
    %315 = arith.mulf %310, %314 : vector<2x160xf32>
    %c8_i32 = arith.constant 8 : i32
    %316 = arith.truncf %315 : vector<2x160xf32> to vector<2x160xbf16>
    %c0_91 = arith.constant 0 : index
    %c0_92 = arith.constant 0 : index
    %317 = vector.load %arg1[%c0_91, %c0_92] : memref<160x640xbf16, #tpu.memory_space<vmem>>, vector<160x640xbf16>
    %cst_93 = arith.constant dense<0.000000e+00> : vector<2x640xf32>
    %318 = tpu.matmul %316, %317, %cst_93 {dimension_numbers = #tpu.dot_dimension_numbers<[1], [0], [0], [1], [0, 0, 1, 1], [], []>} : vector<2x160xbf16>, vector<160x640xbf16>, vector<2x640xf32> -> vector<2x640xf32>
    %319 = arith.index_cast %c8_i32 : i32 to index
    %c0_94 = arith.constant 0 : index
    %c0_95 = arith.constant 0 : index
    %320 = vector.load %arg0[%319, %c0_94, %c0_95] : memref<16x2x640xf32, #tpu.memory_space<vmem>>, vector<1x2x640xf32>
    %321 = vector.shape_cast %320 : vector<1x2x640xf32> to vector<2x640xf32>
    %c15_i32_96 = arith.constant 15 : i32
    %322 = arith.subi %c15_i32_96, %c8_i32 : i32
    %323 = arith.index_cast %322 : i32 to index
    %c0_97 = arith.constant 0 : index
    %c0_98 = arith.constant 0 : index
    %324 = vector.load %arg0[%323, %c0_97, %c0_98] : memref<16x2x640xf32, #tpu.memory_space<vmem>>, vector<1x2x640xf32>
    %325 = vector.shape_cast %324 : vector<1x2x640xf32> to vector<2x640xf32>
    %326 = arith.select %18, %321, %325 : vector<2x640xi1>, vector<2x640xf32>
    %327 = arith.addf %318, %326 : vector<2x640xf32>
    %328 = vector.extract_strided_slice %327 {offsets = [0, 0], sizes = [2, 160], strides = [1, 1]} : vector<2x640xf32> to vector<2x160xf32>
    %329 = arith.negf %328 : vector<2x160xf32>
    %330 = math.exp %329 : vector<2x160xf32>
    %cst_99 = arith.constant 1.000000e+00 : f32
    %331 = vector.broadcast %cst_99 : f32 to vector<2x160xf32>
    %332 = arith.addf %331, %330 : vector<2x160xf32>
    %333 = arith.divf %331, %332 : vector<2x160xf32>
    %334 = vector.extract_strided_slice %327 {offsets = [0, 160], sizes = [2, 160], strides = [1, 1]} : vector<2x640xf32> to vector<2x160xf32>
    %335 = arith.negf %334 : vector<2x160xf32>
    %336 = math.exp %335 : vector<2x160xf32>
    %cst_100 = arith.constant 1.000000e+00 : f32
    %337 = vector.broadcast %cst_100 : f32 to vector<2x160xf32>
    %338 = arith.addf %337, %336 : vector<2x160xf32>
    %339 = arith.divf %337, %338 : vector<2x160xf32>
    %340 = vector.extract_strided_slice %327 {offsets = [0, 320], sizes = [2, 160], strides = [1, 1]} : vector<2x640xf32> to vector<2x160xf32>
    %341 = math.tanh %340 : vector<2x160xf32>
    %342 = vector.extract_strided_slice %327 {offsets = [0, 480], sizes = [2, 160], strides = [1, 1]} : vector<2x640xf32> to vector<2x160xf32>
    %343 = arith.negf %342 : vector<2x160xf32>
    %344 = math.exp %343 : vector<2x160xf32>
    %cst_101 = arith.constant 1.000000e+00 : f32
    %345 = vector.broadcast %cst_101 : f32 to vector<2x160xf32>
    %346 = arith.addf %345, %344 : vector<2x160xf32>
    %347 = arith.divf %345, %346 : vector<2x160xf32>
    %348 = arith.mulf %339, %313 : vector<2x160xf32>
    %349 = arith.mulf %333, %341 : vector<2x160xf32>
    %350 = arith.addf %348, %349 : vector<2x160xf32>
    %351 = math.tanh %350 : vector<2x160xf32>
    %352 = arith.mulf %347, %351 : vector<2x160xf32>
    %c9_i32 = arith.constant 9 : i32
    %353 = arith.truncf %352 : vector<2x160xf32> to vector<2x160xbf16>
    %c0_102 = arith.constant 0 : index
    %c0_103 = arith.constant 0 : index
    %354 = vector.load %arg1[%c0_102, %c0_103] : memref<160x640xbf16, #tpu.memory_space<vmem>>, vector<160x640xbf16>
    %cst_104 = arith.constant dense<0.000000e+00> : vector<2x640xf32>
    %355 = tpu.matmul %353, %354, %cst_104 {dimension_numbers = #tpu.dot_dimension_numbers<[1], [0], [0], [1], [0, 0, 1, 1], [], []>} : vector<2x160xbf16>, vector<160x640xbf16>, vector<2x640xf32> -> vector<2x640xf32>
    %356 = arith.index_cast %c9_i32 : i32 to index
    %c0_105 = arith.constant 0 : index
    %c0_106 = arith.constant 0 : index
    %357 = vector.load %arg0[%356, %c0_105, %c0_106] : memref<16x2x640xf32, #tpu.memory_space<vmem>>, vector<1x2x640xf32>
    %358 = vector.shape_cast %357 : vector<1x2x640xf32> to vector<2x640xf32>
    %c15_i32_107 = arith.constant 15 : i32
    %359 = arith.subi %c15_i32_107, %c9_i32 : i32
    %360 = arith.index_cast %359 : i32 to index
    %c0_108 = arith.constant 0 : index
    %c0_109 = arith.constant 0 : index
    %361 = vector.load %arg0[%360, %c0_108, %c0_109] : memref<16x2x640xf32, #tpu.memory_space<vmem>>, vector<1x2x640xf32>
    %362 = vector.shape_cast %361 : vector<1x2x640xf32> to vector<2x640xf32>
    %363 = arith.select %18, %358, %362 : vector<2x640xi1>, vector<2x640xf32>
    %364 = arith.addf %355, %363 : vector<2x640xf32>
    %365 = vector.extract_strided_slice %364 {offsets = [0, 0], sizes = [2, 160], strides = [1, 1]} : vector<2x640xf32> to vector<2x160xf32>
    %366 = arith.negf %365 : vector<2x160xf32>
    %367 = math.exp %366 : vector<2x160xf32>
    %cst_110 = arith.constant 1.000000e+00 : f32
    %368 = vector.broadcast %cst_110 : f32 to vector<2x160xf32>
    %369 = arith.addf %368, %367 : vector<2x160xf32>
    %370 = arith.divf %368, %369 : vector<2x160xf32>
    %371 = vector.extract_strided_slice %364 {offsets = [0, 160], sizes = [2, 160], strides = [1, 1]} : vector<2x640xf32> to vector<2x160xf32>
    %372 = arith.negf %371 : vector<2x160xf32>
    %373 = math.exp %372 : vector<2x160xf32>
    %cst_111 = arith.constant 1.000000e+00 : f32
    %374 = vector.broadcast %cst_111 : f32 to vector<2x160xf32>
    %375 = arith.addf %374, %373 : vector<2x160xf32>
    %376 = arith.divf %374, %375 : vector<2x160xf32>
    %377 = vector.extract_strided_slice %364 {offsets = [0, 320], sizes = [2, 160], strides = [1, 1]} : vector<2x640xf32> to vector<2x160xf32>
    %378 = math.tanh %377 : vector<2x160xf32>
    %379 = vector.extract_strided_slice %364 {offsets = [0, 480], sizes = [2, 160], strides = [1, 1]} : vector<2x640xf32> to vector<2x160xf32>
    %380 = arith.negf %379 : vector<2x160xf32>
    %381 = math.exp %380 : vector<2x160xf32>
    %cst_112 = arith.constant 1.000000e+00 : f32
    %382 = vector.broadcast %cst_112 : f32 to vector<2x160xf32>
    %383 = arith.addf %382, %381 : vector<2x160xf32>
    %384 = arith.divf %382, %383 : vector<2x160xf32>
    %385 = arith.mulf %376, %350 : vector<2x160xf32>
    %386 = arith.mulf %370, %378 : vector<2x160xf32>
    %387 = arith.addf %385, %386 : vector<2x160xf32>
    %388 = math.tanh %387 : vector<2x160xf32>
    %389 = arith.mulf %384, %388 : vector<2x160xf32>
    %c10_i32 = arith.constant 10 : i32
    %390 = arith.truncf %389 : vector<2x160xf32> to vector<2x160xbf16>
    %c0_113 = arith.constant 0 : index
    %c0_114 = arith.constant 0 : index
    %391 = vector.load %arg1[%c0_113, %c0_114] : memref<160x640xbf16, #tpu.memory_space<vmem>>, vector<160x640xbf16>
    %cst_115 = arith.constant dense<0.000000e+00> : vector<2x640xf32>
    %392 = tpu.matmul %390, %391, %cst_115 {dimension_numbers = #tpu.dot_dimension_numbers<[1], [0], [0], [1], [0, 0, 1, 1], [], []>} : vector<2x160xbf16>, vector<160x640xbf16>, vector<2x640xf32> -> vector<2x640xf32>
    %393 = arith.index_cast %c10_i32 : i32 to index
    %c0_116 = arith.constant 0 : index
    %c0_117 = arith.constant 0 : index
    %394 = vector.load %arg0[%393, %c0_116, %c0_117] : memref<16x2x640xf32, #tpu.memory_space<vmem>>, vector<1x2x640xf32>
    %395 = vector.shape_cast %394 : vector<1x2x640xf32> to vector<2x640xf32>
    %c15_i32_118 = arith.constant 15 : i32
    %396 = arith.subi %c15_i32_118, %c10_i32 : i32
    %397 = arith.index_cast %396 : i32 to index
    %c0_119 = arith.constant 0 : index
    %c0_120 = arith.constant 0 : index
    %398 = vector.load %arg0[%397, %c0_119, %c0_120] : memref<16x2x640xf32, #tpu.memory_space<vmem>>, vector<1x2x640xf32>
    %399 = vector.shape_cast %398 : vector<1x2x640xf32> to vector<2x640xf32>
    %400 = arith.select %18, %395, %399 : vector<2x640xi1>, vector<2x640xf32>
    %401 = arith.addf %392, %400 : vector<2x640xf32>
    %402 = vector.extract_strided_slice %401 {offsets = [0, 0], sizes = [2, 160], strides = [1, 1]} : vector<2x640xf32> to vector<2x160xf32>
    %403 = arith.negf %402 : vector<2x160xf32>
    %404 = math.exp %403 : vector<2x160xf32>
    %cst_121 = arith.constant 1.000000e+00 : f32
    %405 = vector.broadcast %cst_121 : f32 to vector<2x160xf32>
    %406 = arith.addf %405, %404 : vector<2x160xf32>
    %407 = arith.divf %405, %406 : vector<2x160xf32>
    %408 = vector.extract_strided_slice %401 {offsets = [0, 160], sizes = [2, 160], strides = [1, 1]} : vector<2x640xf32> to vector<2x160xf32>
    %409 = arith.negf %408 : vector<2x160xf32>
    %410 = math.exp %409 : vector<2x160xf32>
    %cst_122 = arith.constant 1.000000e+00 : f32
    %411 = vector.broadcast %cst_122 : f32 to vector<2x160xf32>
    %412 = arith.addf %411, %410 : vector<2x160xf32>
    %413 = arith.divf %411, %412 : vector<2x160xf32>
    %414 = vector.extract_strided_slice %401 {offsets = [0, 320], sizes = [2, 160], strides = [1, 1]} : vector<2x640xf32> to vector<2x160xf32>
    %415 = math.tanh %414 : vector<2x160xf32>
    %416 = vector.extract_strided_slice %401 {offsets = [0, 480], sizes = [2, 160], strides = [1, 1]} : vector<2x640xf32> to vector<2x160xf32>
    %417 = arith.negf %416 : vector<2x160xf32>
    %418 = math.exp %417 : vector<2x160xf32>
    %cst_123 = arith.constant 1.000000e+00 : f32
    %419 = vector.broadcast %cst_123 : f32 to vector<2x160xf32>
    %420 = arith.addf %419, %418 : vector<2x160xf32>
    %421 = arith.divf %419, %420 : vector<2x160xf32>
    %422 = arith.mulf %413, %387 : vector<2x160xf32>
    %423 = arith.mulf %407, %415 : vector<2x160xf32>
    %424 = arith.addf %422, %423 : vector<2x160xf32>
    %425 = math.tanh %424 : vector<2x160xf32>
    %426 = arith.mulf %421, %425 : vector<2x160xf32>
    %c11_i32 = arith.constant 11 : i32
    %427 = arith.truncf %426 : vector<2x160xf32> to vector<2x160xbf16>
    %c0_124 = arith.constant 0 : index
    %c0_125 = arith.constant 0 : index
    %428 = vector.load %arg1[%c0_124, %c0_125] : memref<160x640xbf16, #tpu.memory_space<vmem>>, vector<160x640xbf16>
    %cst_126 = arith.constant dense<0.000000e+00> : vector<2x640xf32>
    %429 = tpu.matmul %427, %428, %cst_126 {dimension_numbers = #tpu.dot_dimension_numbers<[1], [0], [0], [1], [0, 0, 1, 1], [], []>} : vector<2x160xbf16>, vector<160x640xbf16>, vector<2x640xf32> -> vector<2x640xf32>
    %430 = arith.index_cast %c11_i32 : i32 to index
    %c0_127 = arith.constant 0 : index
    %c0_128 = arith.constant 0 : index
    %431 = vector.load %arg0[%430, %c0_127, %c0_128] : memref<16x2x640xf32, #tpu.memory_space<vmem>>, vector<1x2x640xf32>
    %432 = vector.shape_cast %431 : vector<1x2x640xf32> to vector<2x640xf32>
    %c15_i32_129 = arith.constant 15 : i32
    %433 = arith.subi %c15_i32_129, %c11_i32 : i32
    %434 = arith.index_cast %433 : i32 to index
    %c0_130 = arith.constant 0 : index
    %c0_131 = arith.constant 0 : index
    %435 = vector.load %arg0[%434, %c0_130, %c0_131] : memref<16x2x640xf32, #tpu.memory_space<vmem>>, vector<1x2x640xf32>
    %436 = vector.shape_cast %435 : vector<1x2x640xf32> to vector<2x640xf32>
    %437 = arith.select %18, %432, %436 : vector<2x640xi1>, vector<2x640xf32>
    %438 = arith.addf %429, %437 : vector<2x640xf32>
    %439 = vector.extract_strided_slice %438 {offsets = [0, 0], sizes = [2, 160], strides = [1, 1]} : vector<2x640xf32> to vector<2x160xf32>
    %440 = arith.negf %439 : vector<2x160xf32>
    %441 = math.exp %440 : vector<2x160xf32>
    %cst_132 = arith.constant 1.000000e+00 : f32
    %442 = vector.broadcast %cst_132 : f32 to vector<2x160xf32>
    %443 = arith.addf %442, %441 : vector<2x160xf32>
    %444 = arith.divf %442, %443 : vector<2x160xf32>
    %445 = vector.extract_strided_slice %438 {offsets = [0, 160], sizes = [2, 160], strides = [1, 1]} : vector<2x640xf32> to vector<2x160xf32>
    %446 = arith.negf %445 : vector<2x160xf32>
    %447 = math.exp %446 : vector<2x160xf32>
    %cst_133 = arith.constant 1.000000e+00 : f32
    %448 = vector.broadcast %cst_133 : f32 to vector<2x160xf32>
    %449 = arith.addf %448, %447 : vector<2x160xf32>
    %450 = arith.divf %448, %449 : vector<2x160xf32>
    %451 = vector.extract_strided_slice %438 {offsets = [0, 320], sizes = [2, 160], strides = [1, 1]} : vector<2x640xf32> to vector<2x160xf32>
    %452 = math.tanh %451 : vector<2x160xf32>
    %453 = vector.extract_strided_slice %438 {offsets = [0, 480], sizes = [2, 160], strides = [1, 1]} : vector<2x640xf32> to vector<2x160xf32>
    %454 = arith.negf %453 : vector<2x160xf32>
    %455 = math.exp %454 : vector<2x160xf32>
    %cst_134 = arith.constant 1.000000e+00 : f32
    %456 = vector.broadcast %cst_134 : f32 to vector<2x160xf32>
    %457 = arith.addf %456, %455 : vector<2x160xf32>
    %458 = arith.divf %456, %457 : vector<2x160xf32>
    %459 = arith.mulf %450, %424 : vector<2x160xf32>
    %460 = arith.mulf %444, %452 : vector<2x160xf32>
    %461 = arith.addf %459, %460 : vector<2x160xf32>
    %462 = math.tanh %461 : vector<2x160xf32>
    %463 = arith.mulf %458, %462 : vector<2x160xf32>
    %c12_i32 = arith.constant 12 : i32
    %464 = arith.truncf %463 : vector<2x160xf32> to vector<2x160xbf16>
    %c0_135 = arith.constant 0 : index
    %c0_136 = arith.constant 0 : index
    %465 = vector.load %arg1[%c0_135, %c0_136] : memref<160x640xbf16, #tpu.memory_space<vmem>>, vector<160x640xbf16>
    %cst_137 = arith.constant dense<0.000000e+00> : vector<2x640xf32>
    %466 = tpu.matmul %464, %465, %cst_137 {dimension_numbers = #tpu.dot_dimension_numbers<[1], [0], [0], [1], [0, 0, 1, 1], [], []>} : vector<2x160xbf16>, vector<160x640xbf16>, vector<2x640xf32> -> vector<2x640xf32>
    %467 = arith.index_cast %c12_i32 : i32 to index
    %c0_138 = arith.constant 0 : index
    %c0_139 = arith.constant 0 : index
    %468 = vector.load %arg0[%467, %c0_138, %c0_139] : memref<16x2x640xf32, #tpu.memory_space<vmem>>, vector<1x2x640xf32>
    %469 = vector.shape_cast %468 : vector<1x2x640xf32> to vector<2x640xf32>
    %c15_i32_140 = arith.constant 15 : i32
    %470 = arith.subi %c15_i32_140, %c12_i32 : i32
    %471 = arith.index_cast %470 : i32 to index
    %c0_141 = arith.constant 0 : index
    %c0_142 = arith.constant 0 : index
    %472 = vector.load %arg0[%471, %c0_141, %c0_142] : memref<16x2x640xf32, #tpu.memory_space<vmem>>, vector<1x2x640xf32>
    %473 = vector.shape_cast %472 : vector<1x2x640xf32> to vector<2x640xf32>
    %474 = arith.select %18, %469, %473 : vector<2x640xi1>, vector<2x640xf32>
    %475 = arith.addf %466, %474 : vector<2x640xf32>
    %476 = vector.extract_strided_slice %475 {offsets = [0, 0], sizes = [2, 160], strides = [1, 1]} : vector<2x640xf32> to vector<2x160xf32>
    %477 = arith.negf %476 : vector<2x160xf32>
    %478 = math.exp %477 : vector<2x160xf32>
    %cst_143 = arith.constant 1.000000e+00 : f32
    %479 = vector.broadcast %cst_143 : f32 to vector<2x160xf32>
    %480 = arith.addf %479, %478 : vector<2x160xf32>
    %481 = arith.divf %479, %480 : vector<2x160xf32>
    %482 = vector.extract_strided_slice %475 {offsets = [0, 160], sizes = [2, 160], strides = [1, 1]} : vector<2x640xf32> to vector<2x160xf32>
    %483 = arith.negf %482 : vector<2x160xf32>
    %484 = math.exp %483 : vector<2x160xf32>
    %cst_144 = arith.constant 1.000000e+00 : f32
    %485 = vector.broadcast %cst_144 : f32 to vector<2x160xf32>
    %486 = arith.addf %485, %484 : vector<2x160xf32>
    %487 = arith.divf %485, %486 : vector<2x160xf32>
    %488 = vector.extract_strided_slice %475 {offsets = [0, 320], sizes = [2, 160], strides = [1, 1]} : vector<2x640xf32> to vector<2x160xf32>
    %489 = math.tanh %488 : vector<2x160xf32>
    %490 = vector.extract_strided_slice %475 {offsets = [0, 480], sizes = [2, 160], strides = [1, 1]} : vector<2x640xf32> to vector<2x160xf32>
    %491 = arith.negf %490 : vector<2x160xf32>
    %492 = math.exp %491 : vector<2x160xf32>
    %cst_145 = arith.constant 1.000000e+00 : f32
    %493 = vector.broadcast %cst_145 : f32 to vector<2x160xf32>
    %494 = arith.addf %493, %492 : vector<2x160xf32>
    %495 = arith.divf %493, %494 : vector<2x160xf32>
    %496 = arith.mulf %487, %461 : vector<2x160xf32>
    %497 = arith.mulf %481, %489 : vector<2x160xf32>
    %498 = arith.addf %496, %497 : vector<2x160xf32>
    %499 = math.tanh %498 : vector<2x160xf32>
    %500 = arith.mulf %495, %499 : vector<2x160xf32>
    %c13_i32 = arith.constant 13 : i32
    %501 = arith.truncf %500 : vector<2x160xf32> to vector<2x160xbf16>
    %c0_146 = arith.constant 0 : index
    %c0_147 = arith.constant 0 : index
    %502 = vector.load %arg1[%c0_146, %c0_147] : memref<160x640xbf16, #tpu.memory_space<vmem>>, vector<160x640xbf16>
    %cst_148 = arith.constant dense<0.000000e+00> : vector<2x640xf32>
    %503 = tpu.matmul %501, %502, %cst_148 {dimension_numbers = #tpu.dot_dimension_numbers<[1], [0], [0], [1], [0, 0, 1, 1], [], []>} : vector<2x160xbf16>, vector<160x640xbf16>, vector<2x640xf32> -> vector<2x640xf32>
    %504 = arith.index_cast %c13_i32 : i32 to index
    %c0_149 = arith.constant 0 : index
    %c0_150 = arith.constant 0 : index
    %505 = vector.load %arg0[%504, %c0_149, %c0_150] : memref<16x2x640xf32, #tpu.memory_space<vmem>>, vector<1x2x640xf32>
    %506 = vector.shape_cast %505 : vector<1x2x640xf32> to vector<2x640xf32>
    %c15_i32_151 = arith.constant 15 : i32
    %507 = arith.subi %c15_i32_151, %c13_i32 : i32
    %508 = arith.index_cast %507 : i32 to index
    %c0_152 = arith.constant 0 : index
    %c0_153 = arith.constant 0 : index
    %509 = vector.load %arg0[%508, %c0_152, %c0_153] : memref<16x2x640xf32, #tpu.memory_space<vmem>>, vector<1x2x640xf32>
    %510 = vector.shape_cast %509 : vector<1x2x640xf32> to vector<2x640xf32>
    %511 = arith.select %18, %506, %510 : vector<2x640xi1>, vector<2x640xf32>
    %512 = arith.addf %503, %511 : vector<2x640xf32>
    %513 = vector.extract_strided_slice %512 {offsets = [0, 0], sizes = [2, 160], strides = [1, 1]} : vector<2x640xf32> to vector<2x160xf32>
    %514 = arith.negf %513 : vector<2x160xf32>
    %515 = math.exp %514 : vector<2x160xf32>
    %cst_154 = arith.constant 1.000000e+00 : f32
    %516 = vector.broadcast %cst_154 : f32 to vector<2x160xf32>
    %517 = arith.addf %516, %515 : vector<2x160xf32>
    %518 = arith.divf %516, %517 : vector<2x160xf32>
    %519 = vector.extract_strided_slice %512 {offsets = [0, 160], sizes = [2, 160], strides = [1, 1]} : vector<2x640xf32> to vector<2x160xf32>
    %520 = arith.negf %519 : vector<2x160xf32>
    %521 = math.exp %520 : vector<2x160xf32>
    %cst_155 = arith.constant 1.000000e+00 : f32
    %522 = vector.broadcast %cst_155 : f32 to vector<2x160xf32>
    %523 = arith.addf %522, %521 : vector<2x160xf32>
    %524 = arith.divf %522, %523 : vector<2x160xf32>
    %525 = vector.extract_strided_slice %512 {offsets = [0, 320], sizes = [2, 160], strides = [1, 1]} : vector<2x640xf32> to vector<2x160xf32>
    %526 = math.tanh %525 : vector<2x160xf32>
    %527 = vector.extract_strided_slice %512 {offsets = [0, 480], sizes = [2, 160], strides = [1, 1]} : vector<2x640xf32> to vector<2x160xf32>
    %528 = arith.negf %527 : vector<2x160xf32>
    %529 = math.exp %528 : vector<2x160xf32>
    %cst_156 = arith.constant 1.000000e+00 : f32
    %530 = vector.broadcast %cst_156 : f32 to vector<2x160xf32>
    %531 = arith.addf %530, %529 : vector<2x160xf32>
    %532 = arith.divf %530, %531 : vector<2x160xf32>
    %533 = arith.mulf %524, %498 : vector<2x160xf32>
    %534 = arith.mulf %518, %526 : vector<2x160xf32>
    %535 = arith.addf %533, %534 : vector<2x160xf32>
    %536 = math.tanh %535 : vector<2x160xf32>
    %537 = arith.mulf %532, %536 : vector<2x160xf32>
    %c14_i32 = arith.constant 14 : i32
    %538 = arith.truncf %537 : vector<2x160xf32> to vector<2x160xbf16>
    %c0_157 = arith.constant 0 : index
    %c0_158 = arith.constant 0 : index
    %539 = vector.load %arg1[%c0_157, %c0_158] : memref<160x640xbf16, #tpu.memory_space<vmem>>, vector<160x640xbf16>
    %cst_159 = arith.constant dense<0.000000e+00> : vector<2x640xf32>
    %540 = tpu.matmul %538, %539, %cst_159 {dimension_numbers = #tpu.dot_dimension_numbers<[1], [0], [0], [1], [0, 0, 1, 1], [], []>} : vector<2x160xbf16>, vector<160x640xbf16>, vector<2x640xf32> -> vector<2x640xf32>
    %541 = arith.index_cast %c14_i32 : i32 to index
    %c0_160 = arith.constant 0 : index
    %c0_161 = arith.constant 0 : index
    %542 = vector.load %arg0[%541, %c0_160, %c0_161] : memref<16x2x640xf32, #tpu.memory_space<vmem>>, vector<1x2x640xf32>
    %543 = vector.shape_cast %542 : vector<1x2x640xf32> to vector<2x640xf32>
    %c15_i32_162 = arith.constant 15 : i32
    %544 = arith.subi %c15_i32_162, %c14_i32 : i32
    %545 = arith.index_cast %544 : i32 to index
    %c0_163 = arith.constant 0 : index
    %c0_164 = arith.constant 0 : index
    %546 = vector.load %arg0[%545, %c0_163, %c0_164] : memref<16x2x640xf32, #tpu.memory_space<vmem>>, vector<1x2x640xf32>
    %547 = vector.shape_cast %546 : vector<1x2x640xf32> to vector<2x640xf32>
    %548 = arith.select %18, %543, %547 : vector<2x640xi1>, vector<2x640xf32>
    %549 = arith.addf %540, %548 : vector<2x640xf32>
    %550 = vector.extract_strided_slice %549 {offsets = [0, 0], sizes = [2, 160], strides = [1, 1]} : vector<2x640xf32> to vector<2x160xf32>
    %551 = arith.negf %550 : vector<2x160xf32>
    %552 = math.exp %551 : vector<2x160xf32>
    %cst_165 = arith.constant 1.000000e+00 : f32
    %553 = vector.broadcast %cst_165 : f32 to vector<2x160xf32>
    %554 = arith.addf %553, %552 : vector<2x160xf32>
    %555 = arith.divf %553, %554 : vector<2x160xf32>
    %556 = vector.extract_strided_slice %549 {offsets = [0, 160], sizes = [2, 160], strides = [1, 1]} : vector<2x640xf32> to vector<2x160xf32>
    %557 = arith.negf %556 : vector<2x160xf32>
    %558 = math.exp %557 : vector<2x160xf32>
    %cst_166 = arith.constant 1.000000e+00 : f32
    %559 = vector.broadcast %cst_166 : f32 to vector<2x160xf32>
    %560 = arith.addf %559, %558 : vector<2x160xf32>
    %561 = arith.divf %559, %560 : vector<2x160xf32>
    %562 = vector.extract_strided_slice %549 {offsets = [0, 320], sizes = [2, 160], strides = [1, 1]} : vector<2x640xf32> to vector<2x160xf32>
    %563 = math.tanh %562 : vector<2x160xf32>
    %564 = vector.extract_strided_slice %549 {offsets = [0, 480], sizes = [2, 160], strides = [1, 1]} : vector<2x640xf32> to vector<2x160xf32>
    %565 = arith.negf %564 : vector<2x160xf32>
    %566 = math.exp %565 : vector<2x160xf32>
    %cst_167 = arith.constant 1.000000e+00 : f32
    %567 = vector.broadcast %cst_167 : f32 to vector<2x160xf32>
    %568 = arith.addf %567, %566 : vector<2x160xf32>
    %569 = arith.divf %567, %568 : vector<2x160xf32>
    %570 = arith.mulf %561, %535 : vector<2x160xf32>
    %571 = arith.mulf %555, %563 : vector<2x160xf32>
    %572 = arith.addf %570, %571 : vector<2x160xf32>
    %573 = math.tanh %572 : vector<2x160xf32>
    %574 = arith.mulf %569, %573 : vector<2x160xf32>
    %c15_i32_168 = arith.constant 15 : i32
    %575 = arith.truncf %574 : vector<2x160xf32> to vector<2x160xbf16>
    %c0_169 = arith.constant 0 : index
    %c0_170 = arith.constant 0 : index
    %576 = vector.load %arg1[%c0_169, %c0_170] : memref<160x640xbf16, #tpu.memory_space<vmem>>, vector<160x640xbf16>
    %cst_171 = arith.constant dense<0.000000e+00> : vector<2x640xf32>
    %577 = tpu.matmul %575, %576, %cst_171 {dimension_numbers = #tpu.dot_dimension_numbers<[1], [0], [0], [1], [0, 0, 1, 1], [], []>} : vector<2x160xbf16>, vector<160x640xbf16>, vector<2x640xf32> -> vector<2x640xf32>
    %578 = arith.index_cast %c15_i32_168 : i32 to index
    %c0_172 = arith.constant 0 : index
    %c0_173 = arith.constant 0 : index
    %579 = vector.load %arg0[%578, %c0_172, %c0_173] : memref<16x2x640xf32, #tpu.memory_space<vmem>>, vector<1x2x640xf32>
    %580 = vector.shape_cast %579 : vector<1x2x640xf32> to vector<2x640xf32>
    %c15_i32_174 = arith.constant 15 : i32
    %581 = arith.subi %c15_i32_174, %c15_i32_168 : i32
    %582 = arith.index_cast %581 : i32 to index
    %c0_175 = arith.constant 0 : index
    %c0_176 = arith.constant 0 : index
    %583 = vector.load %arg0[%582, %c0_175, %c0_176] : memref<16x2x640xf32, #tpu.memory_space<vmem>>, vector<1x2x640xf32>
    %584 = vector.shape_cast %583 : vector<1x2x640xf32> to vector<2x640xf32>
    %585 = arith.select %18, %580, %584 : vector<2x640xi1>, vector<2x640xf32>
    %586 = arith.addf %577, %585 : vector<2x640xf32>
    %587 = vector.extract_strided_slice %586 {offsets = [0, 0], sizes = [2, 160], strides = [1, 1]} : vector<2x640xf32> to vector<2x160xf32>
    %588 = arith.negf %587 : vector<2x160xf32>
    %589 = math.exp %588 : vector<2x160xf32>
    %cst_177 = arith.constant 1.000000e+00 : f32
    %590 = vector.broadcast %cst_177 : f32 to vector<2x160xf32>
    %591 = arith.addf %590, %589 : vector<2x160xf32>
    %592 = arith.divf %590, %591 : vector<2x160xf32>
    %593 = vector.extract_strided_slice %586 {offsets = [0, 160], sizes = [2, 160], strides = [1, 1]} : vector<2x640xf32> to vector<2x160xf32>
    %594 = arith.negf %593 : vector<2x160xf32>
    %595 = math.exp %594 : vector<2x160xf32>
    %cst_178 = arith.constant 1.000000e+00 : f32
    %596 = vector.broadcast %cst_178 : f32 to vector<2x160xf32>
    %597 = arith.addf %596, %595 : vector<2x160xf32>
    %598 = arith.divf %596, %597 : vector<2x160xf32>
    %599 = vector.extract_strided_slice %586 {offsets = [0, 320], sizes = [2, 160], strides = [1, 1]} : vector<2x640xf32> to vector<2x160xf32>
    %600 = math.tanh %599 : vector<2x160xf32>
    %601 = vector.extract_strided_slice %586 {offsets = [0, 480], sizes = [2, 160], strides = [1, 1]} : vector<2x640xf32> to vector<2x160xf32>
    %602 = arith.negf %601 : vector<2x160xf32>
    %603 = math.exp %602 : vector<2x160xf32>
    %cst_179 = arith.constant 1.000000e+00 : f32
    %604 = vector.broadcast %cst_179 : f32 to vector<2x160xf32>
    %605 = arith.addf %604, %603 : vector<2x160xf32>
    %606 = arith.divf %604, %605 : vector<2x160xf32>
    %607 = arith.mulf %598, %572 : vector<2x160xf32>
    %608 = arith.mulf %592, %600 : vector<2x160xf32>
    %609 = arith.addf %607, %608 : vector<2x160xf32>
    %610 = math.tanh %609 : vector<2x160xf32>
    %611 = arith.mulf %606, %610 : vector<2x160xf32>
    %c16_i32 = arith.constant 16 : i32
    %c0_180 = arith.constant 0 : index
    %c0_181 = arith.constant 0 : index
    %612 = vector.load %arg2[%c0_180, %c0_181] : memref<160x64xf32, #tpu.memory_space<vmem>>, vector<160x64xf32>
    %cst_182 = arith.constant dense<0.000000e+00> : vector<2x64xf32>
    %613 = tpu.matmul %611, %612, %cst_182 {dimension_numbers = #tpu.dot_dimension_numbers<[1], [0], [0], [1], [0, 0, 1, 1], [], []>} : vector<2x160xf32>, vector<160x64xf32>, vector<2x64xf32> -> vector<2x64xf32>
    %c0_183 = arith.constant 0 : index
    %c0_184 = arith.constant 0 : index
    %614 = vector.load %arg3[%c0_183, %c0_184] : memref<1x64xf32, #tpu.memory_space<vmem>>, vector<1x64xf32>
    %615 = vector.broadcast %614 : vector<1x64xf32> to vector<2x64xf32>
    %616 = arith.addf %613, %615 : vector<2x64xf32>
    %cst_185 = arith.constant 0.000000e+00 : f32
    %617 = vector.broadcast %cst_185 : f32 to vector<2x64xf32>
    %618 = arith.maximumf %616, %617 : vector<2x64xf32>
    %c0_186 = arith.constant 0 : index
    %c0_187 = arith.constant 0 : index
    %619 = vector.load %arg4[%c0_186, %c0_187] : memref<64x5xf32, #tpu.memory_space<vmem>>, vector<64x5xf32>
    %cst_188 = arith.constant dense<0.000000e+00> : vector<2x5xf32>
    %620 = tpu.matmul %618, %619, %cst_188 {dimension_numbers = #tpu.dot_dimension_numbers<[1], [0], [0], [1], [0, 0, 1, 1], [], []>} : vector<2x64xf32>, vector<64x5xf32>, vector<2x5xf32> -> vector<2x5xf32>
    %c0_189 = arith.constant 0 : index
    %c0_190 = arith.constant 0 : index
    %621 = vector.load %arg5[%c0_189, %c0_190] : memref<1x5xf32, #tpu.memory_space<vmem>>, vector<1x5xf32>
    %622 = vector.broadcast %621 : vector<1x5xf32> to vector<2x5xf32>
    %623 = arith.addf %620, %622 : vector<2x5xf32>
    %cst_191 = arith.constant dense<0xFF800000> : vector<2xf32>
    %624 = vector.multi_reduction <maximumf>, %623, %cst_191 [1] : vector<2x5xf32> to vector<2xf32>
    %625 = vector.shape_cast %624 : vector<2xf32> to vector<2x1xf32>
    %626 = vector.broadcast %625 : vector<2x1xf32> to vector<2x5xf32>
    %627 = arith.subf %623, %626 : vector<2x5xf32>
    %628 = math.exp %627 : vector<2x5xf32>
    %cst_192 = arith.constant dense<0.000000e+00> : vector<2xf32>
    %629 = vector.multi_reduction <add>, %628, %cst_192 [1] : vector<2x5xf32> to vector<2xf32>
    %630 = vector.shape_cast %629 : vector<2xf32> to vector<2x1xf32>
    %631 = tpu.reciprocal %630 : vector<2x1xf32> -> vector<2x1xf32>
    %632 = vector.broadcast %631 : vector<2x1xf32> to vector<2x5xf32>
    %633 = arith.mulf %628, %632 : vector<2x5xf32>
    %c0_193 = arith.constant 0 : index
    %c0_194 = arith.constant 0 : index
    %634 = vector.load %arg6[%c0_193, %c0_194] : memref<2x5xf32, #tpu.memory_space<vmem>>, vector<2x5xf32>
    tpu.vector_store %arg6[%c0_193, %c0_194], %633 {strides = array<i32>} : memref<2x5xf32, #tpu.memory_space<vmem>>, vector<2x5xf32>,
    return
  }
}

</mosaic_0001>

<llo_original>
// kernel: regime_detector_forward.2
$region0: #{regime_detector_forward.2}
  #allocation0 [shape = 'u32[]', space=smem, size = 0x4, offset = 0x4, fixed_abs, tag = 'smem constant byte address 0x4 - core index']
  #allocation1 [shape = 'u32[144,128]{1,0:T(1,128)}', space=vmem, size = 0x12000, scoped, tag = 'internal scratch']
  #allocation2 [shape = 'f32[20,128]{1,0:T(8,128)}', space=vmem, size = 0x3000, scoped, tag = 'scratch operand']
  #allocation3 [shape = 'f32[18,64]{1,0:T(8,128)}', space=vmem, size = 0x3000, scoped, tag = 'scratch operand']
  %s0 = inlined_call_operand.vmem [shape: f32[2,22,4], index: 0, kind: input, shape index: {}]
  %s1 = inlined_call_operand.vmem [shape: bf16[7,4,128], index: 1, kind: input, shape index: {}]
  %s2 = inlined_call_operand.vmem [shape: f32[1,128], index: 2, kind: input, shape index: {}]
  %s3 = inlined_call_operand.vmem [shape: f32[1,128], index: 3, kind: input, shape index: {}]
  %s4 = inlined_call_operand.vmem [shape: bf16[5,128,64], index: 4, kind: input, shape index: {}]
  %s5 = inlined_call_operand.vmem [shape: f32[1,64], index: 5, kind: input, shape index: {}]
  %s6 = inlined_call_operand.vmem [shape: f32[1,64], index: 6, kind: input, shape index: {}]
  %s7 = inlined_call_operand.vmem [shape: bf16[3,64,32], index: 7, kind: input, shape index: {}]
  %s8 = inlined_call_operand.vmem [shape: f32[1,32], index: 8, kind: input, shape index: {}]
  %s9 = inlined_call_operand.vmem [shape: f32[1,32], index: 9, kind: input, shape index: {}]
  %s10 = inlined_call_operand.vmem [shape: bf16[32,640], index: 10, kind: input, shape index: {}]
  %s11 = inlined_call_operand.vmem [shape: f32[1,640], index: 11, kind: input, shape index: {}]
  %s12 = inlined_call_operand.vmem [shape: f32[2,16,640], index: 12, kind: output, shape index: {}]
  %s13 = sld [smem:[#allocation0]]
  $region81: #{regime_detector_forward.2} parent=0
    _
  %s15 = ssub.s32 1, %s13
  %s16 = scalar_select 0, %s15, %s13
  loop: start=0, step=1, limit=4
  $region2: #{regime_detector_forward.2} parent=0 // loop_pre_header
    _
  $region3: #{regime_detector_forward.2} parent=0 // loop_header
    %s18 = sphi 0, %s22
    %p19 = scmp.ge.s32.totalorder %s18, 4
    %s28 = sphi 0, %s30
    %s31 = sphi 0, %s28
    %s32 = sphi 0, %s31
    %s48 = sphi 0, %s32
    %s52 = sphi 0, %s52
    %s54 = sphi 0, %s52
    %s55 = sphi 0, %s54
    %s69 = sphi 0, %s55
    %s73 = sphi 0, %s73
    %s75 = sphi 0, %s73
    %s76 = sphi 0, %s75
    %s90 = sphi 0, %s76
    %s94 = sphi 0, %s94
    %s96 = sphi 0, %s94
    %s97 = sphi 0, %s96
    %s111 = sphi 0, %s97
    %s115 = sphi 0, %s115
    %s117 = sphi 0, %s115
    %s118 = sphi 0, %s117
    %s132 = sphi 0, %s118
    %s136 = sphi 0, %s136
    %s138 = sphi 0, %s136
    %s139 = sphi 0, %s138
    %s153 = sphi 0, %s139
    %s157 = sphi 0, %s157
    %s159 = sphi 0, %s157
    %s160 = sphi 0, %s159
    %s174 = sphi 0, %s160
    %s178 = sphi 0, %s178
    %s180 = sphi 0, %s178
    %s181 = sphi 0, %s180
    %s195 = sphi 0, %s181
    %s199 = sphi 0, %s199
    %s201 = sphi 0, %s199
    %s202 = sphi 0, %s201
    %s216 = sphi 0, %s202
    %s220 = sphi 0, %s220
    %s222 = sphi 0, %s220
    %s223 = sphi 0, %s222
    %s237 = sphi 0, %s223
    %s241 = sphi 0, %s241
    %s243 = sphi 0, %s241
    %s244 = sphi 0, %s243
    %s258 = sphi 0, %s244
    %s262 = sphi 0, %s262
    %s264 = sphi 0, %s262
    %s265 = sphi 0, %s264
    %s279 = sphi 0, %s265
    %s285 = sphi 0, %s287
    %s288 = sphi 0, %s285
    %s289 = sphi 0, %s288
    %s305 = sphi 0, %s289
  $region4: #{regime_detector_forward.2} parent=0 // loop_header_branch
    %21 = sbr.rel (%p19) target = $region8
  $region5: #{regime_detector_forward.2} parent=0 // loop_body
    %s23 = ssub.s32 %s18, 1
    %s24 = ssub.s32 %s18, 2
    %s25 = sadd.s32 %s18, 1
    %s26 = ssub.s32 %s18, %s25
    %p27 = scmp.eq.s32.totalorder %s26, 0
    %s29 = sadd.s32 %s28, 1
    %s30 = scalar_select %p27, %s28, %s29
    %p33 = pneg %p27
    %p34 = scmp.eq.s32.totalorder %s18, 1
    %p35 = por %p33, %p34
    %p36 = scmp.ne.s32.totalorder %s28, %s31
    %p37 = scmp.eq.s32.totalorder %s18, 0
    %p38 = por %p36, %p37
    %p39 = scmp.ne.s32.totalorder %s28, %s31
    %p40 = scmp.eq.s32.totalorder %s23, 1
    %p41 = por %p39, %p40
    %p42 = scmp.ne.s32.totalorder %s31, %s32
    %p43 = scmp.eq.s32.totalorder %s23, 0
    %p44 = por %p42, %p43
    %p45 = scmp.ne.s32.totalorder %s31, %s32
    %p46 = scmp.eq.s32.totalorder %s24, 1
    %p47 = por %p45, %p46
    %p49 = scmp.ne.s32.totalorder %s32, %s48
    %p50 = scmp.eq.s32.totalorder %s24, 0
    %p51 = por %p49, %p50
    %s53 = sadd.s32 %s52, 1
    %p56 = scmp.eq.s32.totalorder %s18, 1
    %p57 = scmp.ne.s32.totalorder %s52, %s54
    %p58 = scmp.eq.s32.totalorder %s18, 0
    %p59 = por %p57, %p58
    %p60 = scmp.ne.s32.totalorder %s52, %s54
    %p61 = scmp.eq.s32.totalorder %s23, 1
    %p62 = por %p60, %p61
    %p63 = scmp.ne.s32.totalorder %s54, %s55
    %p64 = scmp.eq.s32.totalorder %s23, 0
    %p65 = por %p63, %p64
    %p66 = scmp.ne.s32.totalorder %s54, %s55
    %p67 = scmp.eq.s32.totalorder %s24, 1
    %p68 = por %p66, %p67
    %p70 = scmp.ne.s32.totalorder %s55, %s69
    %p71 = scmp.eq.s32.totalorder %s24, 0
    %p72 = por %p70, %p71
    %s74 = sadd.s32 %s73, 1
    %p77 = scmp.eq.s32.totalorder %s18, 1
    %p78 = scmp.ne.s32.totalorder %s73, %s75
    %p79 = scmp.eq.s32.totalorder %s18, 0
    %p80 = por %p78, %p79
    %p81 = scmp.ne.s32.totalorder %s73, %s75
    %p82 = scmp.eq.s32.totalorder %s23, 1
    %p83 = por %p81, %p82
    %p84 = scmp.ne.s32.totalorder %s75, %s76
    %p85 = scmp.eq.s32.totalorder %s23, 0
    %p86 = por %p84, %p85
    %p87 = scmp.ne.s32.totalorder %s75, %s76
    %p88 = scmp.eq.s32.totalorder %s24, 1
    %p89 = por %p87, %p88
    %p91 = scmp.ne.s32.totalorder %s76, %s90
    %p92 = scmp.eq.s32.totalorder %s24, 0
    %p93 = por %p91, %p92
    %s95 = sadd.s32 %s94, 1
    %p98 = scmp.eq.s32.totalorder %s18, 1
    %p99 = scmp.ne.s32.totalorder %s94, %s96
    %p100 = scmp.eq.s32.totalorder %s18, 0
    %p101 = por %p99, %p100
    %p102 = scmp.ne.s32.totalorder %s94, %s96
    %p103 = scmp.eq.s32.totalorder %s23, 1
    %p104 = por %p102, %p103
    %p105 = scmp.ne.s32.totalorder %s96, %s97
    %p106 = scmp.eq.s32.totalorder %s23, 0
    %p107 = por %p105, %p106
    %p108 = scmp.ne.s32.totalorder %s96, %s97
    %p109 = scmp.eq.s32.totalorder %s24, 1
    %p110 = por %p108, %p109
    %p112 = scmp.ne.s32.totalorder %s97, %s111
    %p113 = scmp.eq.s32.totalorder %s24, 0
    %p114 = por %p112, %p113
    %s116 = sadd.s32 %s115, 1
    %p119 = scmp.eq.s32.totalorder %s18, 1
    %p120 = scmp.ne.s32.totalorder %s115, %s117
    %p121 = scmp.eq.s32.totalorder %s18, 0
    %p122 = por %p120, %p121
    %p123 = scmp.ne.s32.totalorder %s115, %s117
    %p124 = scmp.eq.s32.totalorder %s23, 1
    %p125 = por %p123, %p124
    %p126 = scmp.ne.s32.totalorder %s117, %s118
    %p127 = scmp.eq.s32.totalorder %s23, 0
    %p128 = por %p126, %p127
    %p129 = scmp.ne.s32.totalorder %s117, %s118
    %p130 = scmp.eq.s32.totalorder %s24, 1
    %p131 = por %p129, %p130
    %p133 = scmp.ne.s32.totalorder %s118, %s132
    %p134 = scmp.eq.s32.totalorder %s24, 0
    %p135 = por %p133, %p134
    %s137 = sadd.s32 %s136, 1
    %p140 = scmp.eq.s32.totalorder %s18, 1
    %p141 = scmp.ne.s32.totalorder %s136, %s138
    %p142 = scmp.eq.s32.totalorder %s18, 0
    %p143 = por %p141, %p142
    %p144 = scmp.ne.s32.totalorder %s136, %s138
    %p145 = scmp.eq.s32.totalorder %s23, 1
    %p146 = por %p144, %p145
    %p147 = scmp.ne.s32.totalorder %s138, %s139
    %p148 = scmp.eq.s32.totalorder %s23, 0
    %p149 = por %p147, %p148
    %p150 = scmp.ne.s32.totalorder %s138, %s139
    %p151 = scmp.eq.s32.totalorder %s24, 1
    %p152 = por %p150, %p151
    %p154 = scmp.ne.s32.totalorder %s139, %s153
    %p155 = scmp.eq.s32.totalorder %s24, 0
    %p156 = por %p154, %p155
    %s158 = sadd.s32 %s157, 1
    %p161 = scmp.eq.s32.totalorder %s18, 1
    %p162 = scmp.ne.s32.totalorder %s157, %s159
    %p163 = scmp.eq.s32.totalorder %s18, 0
    %p164 = por %p162, %p163
    %p165 = scmp.ne.s32.totalorder %s157, %s159
    %p166 = scmp.eq.s32.totalorder %s23, 1
    %p167 = por %p165, %p166
    %p168 = scmp.ne.s32.totalorder %s159, %s160
    %p169 = scmp.eq.s32.totalorder %s23, 0
    %p170 = por %p168, %p169
    %p171 = scmp.ne.s32.totalorder %s159, %s160
    %p172 = scmp.eq.s32.totalorder %s24, 1
    %p173 = por %p171, %p172
    %p175 = scmp.ne.s32.totalorder %s160, %s174
    %p176 = scmp.eq.s32.totalorder %s24, 0
    %p177 = por %p175, %p176
    %s179 = sadd.s32 %s178, 1
    %p182 = scmp.eq.s32.totalorder %s18, 1
    %p183 = scmp.ne.s32.totalorder %s178, %s180
    %p184 = scmp.eq.s32.totalorder %s18, 0
    %p185 = por %p183, %p184
    %p186 = scmp.ne.s32.totalorder %s178, %s180
    %p187 = scmp.eq.s32.totalorder %s23, 1
    %p188 = por %p186, %p187
    %p189 = scmp.ne.s32.totalorder %s180, %s181
    %p190 = scmp.eq.s32.totalorder %s23, 0
    %p191 = por %p189, %p190
    %p192 = scmp.ne.s32.totalorder %s180, %s181
    %p193 = scmp.eq.s32.totalorder %s24, 1
    %p194 = por %p192, %p193
    %p196 = scmp.ne.s32.totalorder %s181, %s195
    %p197 = scmp.eq.s32.totalorder %s24, 0
    %p198 = por %p196, %p197
    %s200 = sadd.s32 %s199, 1
    %p203 = scmp.eq.s32.totalorder %s18, 1
    %p204 = scmp.ne.s32.totalorder %s199, %s201
    %p205 = scmp.eq.s32.totalorder %s18, 0
    %p206 = por %p204, %p205
    %p207 = scmp.ne.s32.totalorder %s199, %s201
    %p208 = scmp.eq.s32.totalorder %s23, 1
    %p209 = por %p207, %p208
    %p210 = scmp.ne.s32.totalorder %s201, %s202
    %p211 = scmp.eq.s32.totalorder %s23, 0
    %p212 = por %p210, %p211
    %p213 = scmp.ne.s32.totalorder %s201, %s202
    %p214 = scmp.eq.s32.totalorder %s24, 1
    %p215 = por %p213, %p214
    %p217 = scmp.ne.s32.totalorder %s202, %s216
    %p218 = scmp.eq.s32.totalorder %s24, 0
    %p219 = por %p217, %p218
    %s221 = sadd.s32 %s220, 1
    %p224 = scmp.eq.s32.totalorder %s18, 1
    %p225 = scmp.ne.s32.totalorder %s220, %s222
    %p226 = scmp.eq.s32.totalorder %s18, 0
    %p227 = por %p225, %p226
    %p228 = scmp.ne.s32.totalorder %s220, %s222
    %p229 = scmp.eq.s32.totalorder %s23, 1
    %p230 = por %p228, %p229
    %p231 = scmp.ne.s32.totalorder %s222, %s223
    %p232 = scmp.eq.s32.totalorder %s23, 0
    %p233 = por %p231, %p232
    %p234 = scmp.ne.s32.totalorder %s222, %s223
    %p235 = scmp.eq.s32.totalorder %s24, 1
    %p236 = por %p234, %p235
    %p238 = scmp.ne.s32.totalorder %s223, %s237
    %p239 = scmp.eq.s32.totalorder %s24, 0
    %p240 = por %p238, %p239
    %s242 = sadd.s32 %s241, 1
    %p245 = scmp.eq.s32.totalorder %s18, 1
    %p246 = scmp.ne.s32.totalorder %s241, %s243
    %p247 = scmp.eq.s32.totalorder %s18, 0
    %p248 = por %p246, %p247
    %p249 = scmp.ne.s32.totalorder %s241, %s243
    %p250 = scmp.eq.s32.totalorder %s23, 1
    %p251 = por %p249, %p250
    %p252 = scmp.ne.s32.totalorder %s243, %s244
    %p253 = scmp.eq.s32.totalorder %s23, 0
    %p254 = por %p252, %p253
    %p255 = scmp.ne.s32.totalorder %s243, %s244
    %p256 = scmp.eq.s32.totalorder %s24, 1
    %p257 = por %p255, %p256
    %p259 = scmp.ne.s32.totalorder %s244, %s258
    %p260 = scmp.eq.s32.totalorder %s24, 0
    %p261 = por %p259, %p260
    %s263 = sadd.s32 %s262, 1
    %p266 = scmp.eq.s32.totalorder %s18, 1
    %p267 = scmp.ne.s32.totalorder %s262, %s264
    %p268 = scmp.eq.s32.totalorder %s18, 0
    %p269 = por %p267, %p268
    %p270 = scmp.ne.s32.totalorder %s262, %s264
    %p271 = scmp.eq.s32.totalorder %s23, 1
    %p272 = por %p270, %p271
    %p273 = scmp.ne.s32.totalorder %s264, %s265
    %p274 = scmp.eq.s32.totalorder %s23, 0
    %p275 = por %p273, %p274
    %p276 = scmp.ne.s32.totalorder %s264, %s265
    %p277 = scmp.eq.s32.totalorder %s24, 1
    %p278 = por %p276, %p277
    %p280 = scmp.ne.s32.totalorder %s265, %s279
    %p281 = scmp.eq.s32.totalorder %s24, 0
    %p282 = por %p280, %p281
    %s283 = ssub.s32 %s18, %s25
    %p284 = scmp.eq.s32.totalorder %s283, 0
    %s286 = sadd.s32 %s285, 1
    %s287 = scalar_select %p284, %s285, %s286
    %p290 = pneg %p284
    %p291 = scmp.eq.s32.totalorder %s18, 1
    %p292 = por %p290, %p291
    %p293 = scmp.ne.s32.totalorder %s285, %s288
    %p294 = scmp.eq.s32.totalorder %s18, 0
    %p295 = por %p293, %p294
    %p296 = scmp.ne.s32.totalorder %s285, %s288
    %p297 = scmp.eq.s32.totalorder %s23, 1
    %p298 = por %p296, %p297
    %p299 = scmp.ne.s32.totalorder %s288, %s289
    %p300 = scmp.eq.s32.totalorder %s23, 0
    %p301 = por %p299, %p300
    %p302 = scmp.ne.s32.totalorder %s288, %s289
    %p303 = scmp.eq.s32.totalorder %s24, 1
    %p304 = por %p302, %p303
    %p306 = scmp.ne.s32.totalorder %s289, %s305
    %p307 = scmp.eq.s32.totalorder %s24, 0
    %p308 = por %p306, %p307
    %p309 = scmp.le.s32.totalorder 1, %s18
    %p310 = scmp.lt.s32.totalorder %s18, 3
    %p311 = pnand %p309, %p310
    %p312 = pneg %p311
    // Predicated region
    $region9: #{regime_detector_forward.2} parent=5 // pred_check
      _
    $region10: #{regime_detector_forward.2} parent=5 // pred_check_branch
      %314 = sbr.rel (%p311) target = $region12
    $region11: #{regime_detector_forward.2} parent=5 // pred_region
      %s315 = ssub.s32 %s18, 1
      // Predicated region
      $region13: #{regime_detector_forward.2} parent=11 // pred_check
        %p316 = pneg %p65
      $region14: #{regime_detector_forward.2} parent=11 // pred_check_branch
        %318 = sbr.rel (%p316) target = $region16
      $region15: #{regime_detector_forward.2} parent=11 // pred_region
        _
      $region16: #{regime_detector_forward.2} parent=11 // pred_fallthru
        _
      // Predicated region
      $region17: #{regime_detector_forward.2} parent=11 // pred_check
        %p319 = pneg %p86
      $region18: #{regime_detector_forward.2} parent=11 // pred_check_branch
        %321 = sbr.rel (%p319) target = $region20
      $region19: #{regime_detector_forward.2} parent=11 // pred_region
        _
      $region20: #{regime_detector_forward.2} parent=11 // pred_fallthru
        _
      // Predicated region
      $region21: #{regime_detector_forward.2} parent=11 // pred_check
        %p322 = pneg %p107
      $region22: #{regime_detector_forward.2} parent=11 // pred_check_branch
        %324 = sbr.rel (%p322) target = $region24
      $region23: #{regime_detector_forward.2} parent=11 // pred_region
        _
      $region24: #{regime_detector_forward.2} parent=11 // pred_fallthru
        _
      // Predicated region
      $region25: #{regime_detector_forward.2} parent=11 // pred_check
        %p325 = pneg %p128
      $region26: #{regime_detector_forward.2} parent=11 // pred_check_branch
        %327 = sbr.rel (%p325) target = $region28
      $region27: #{regime_detector_forward.2} parent=11 // pred_region
        _
      $region28: #{regime_detector_forward.2} parent=11 // pred_fallthru
        _
      // Predicated region
      $region29: #{regime_detector_forward.2} parent=11 // pred_check
        %p328 = pneg %p149
      $region30: #{regime_detector_forward.2} parent=11 // pred_check_branch
        %330 = sbr.rel (%p328) target = $region32
      $region31: #{regime_detector_forward.2} parent=11 // pred_region
        _
      $region32: #{regime_detector_forward.2} parent=11 // pred_fallthru
        _
      // Predicated region
      $region33: #{regime_detector_forward.2} parent=11 // pred_check
        %p331 = pneg %p170
      $region34: #{regime_detector_forward.2} parent=11 // pred_check_branch
        %333 = sbr.rel (%p331) target = $region36
      $region35: #{regime_detector_forward.2} parent=11 // pred_region
        _
      $region36: #{regime_detector_forward.2} parent=11 // pred_fallthru
        _
      // Predicated region
      $region37: #{regime_detector_forward.2} parent=11 // pred_check
        %p334 = pneg %p191
      $region38: #{regime_detector_forward.2} parent=11 // pred_check_branch
        %336 = sbr.rel (%p334) target = $region40
      $region39: #{regime_detector_forward.2} parent=11 // pred_region
        _
      $region40: #{regime_detector_forward.2} parent=11 // pred_fallthru
        _
      // Predicated region
      $region41: #{regime_detector_forward.2} parent=11 // pred_check
        %p337 = pneg %p212
      $region42: #{regime_detector_forward.2} parent=11 // pred_check_branch
        %339 = sbr.rel (%p337) target = $region44
      $region43: #{regime_detector_forward.2} parent=11 // pred_region
        _
      $region44: #{regime_detector_forward.2} parent=11 // pred_fallthru
        _
      // Predicated region
      $region45: #{regime_detector_forward.2} parent=11 // pred_check
        %p340 = pneg %p233
      $region46: #{regime_detector_forward.2} parent=11 // pred_check_branch
        %342 = sbr.rel (%p340) target = $region48
      $region47: #{regime_detector_forward.2} parent=11 // pred_region
        _
      $region48: #{regime_detector_forward.2} parent=11 // pred_fallthru
        _
      // Predicated region
      $region49: #{regime_detector_forward.2} parent=11 // pred_check
        %p343 = pneg %p254
      $region50: #{regime_detector_forward.2} parent=11 // pred_check_branch
        %345 = sbr.rel (%p343) target = $region52
      $region51: #{regime_detector_forward.2} parent=11 // pred_region
        _
      $region52: #{regime_detector_forward.2} parent=11 // pred_fallthru
        _
      // Predicated region
      $region53: #{regime_detector_forward.2} parent=11 // pred_check
        %p346 = pneg %p275
      $region54: #{regime_detector_forward.2} parent=11 // pred_check_branch
        %348 = sbr.rel (%p346) target = $region56
      $region55: #{regime_detector_forward.2} parent=11 // pred_region
        _
      $region56: #{regime_detector_forward.2} parent=11 // pred_fallthru
        _
    $region12: #{regime_detector_forward.2} parent=5 // pred_fallthru
      _
    %p349 = scmp.lt.s32.totalorder %s18, 2
    // Predicated region
    $region57: #{regime_detector_forward.2} parent=5 // pred_check
      %p350 = pneg %p349
    $region58: #{regime_detector_forward.2} parent=5 // pred_check_branch
      %352 = sbr.rel (%p350) target = $region60
    $region59: #{regime_detector_forward.2} parent=5 // pred_region
      // Predicated region
      $region61: #{regime_detector_forward.2} parent=59 // pred_check
        %p353 = pneg %p38
      $region62: #{regime_detector_forward.2} parent=59 // pred_check_branch
        %355 = sbr.rel (%p353) target = $region64
      $region63: #{regime_detector_forward.2} parent=59 // pred_region
        %p356 = scmp.lt.s32.totalorder %s18, 1
        %s357 = scalar_select %p356, %s18, 1
        %s358 = smul.addr %s357, 3
        %s359 = smul.addr %s358, 8
        %s360 = scalar_lea.vmem %s0, %s359
      $region64: #{regime_detector_forward.2} parent=59 // pred_fallthru
        _
    $region60: #{regime_detector_forward.2} parent=5 // pred_fallthru
      _
    %p361 = scmp.le.s32.totalorder 1, %s18
    %p362 = scmp.lt.s32.totalorder %s18, 3
    %p363 = pnand %p361, %p362
    %p364 = pneg %p363
    // Predicated region
    $region65: #{regime_detector_forward.2} parent=5 // pred_check
      _
    $region66: #{regime_detector_forward.2} parent=5 // pred_check_branch
      %366 = sbr.rel (%p363) target = $region68
    $region67: #{regime_detector_forward.2} parent=5 // pred_region
      %s367 = ssub.s32 %s18, 1
      %p368 = scmp.lt.s32.totalorder %s23, 1
      %s369 = scalar_select %p368, %s23, 1
      %s370 = smul.addr %s369, 3
      %s371 = smul.addr %s370, 8
      %s372 = scalar_lea.vmem %s0, %s371
      %p373 = pneg %p44
      %p374 = pneg %p41
      %p375 = pneg %p65
      %p376 = pneg %p62
      %p377 = pneg %p86
      %p378 = pneg %p83
      %p379 = pneg %p107
      %p380 = pneg %p104
      %p381 = pneg %p128
      %p382 = pneg %p125
      %p383 = pneg %p149
      %p384 = pneg %p146
      %p385 = pneg %p170
      %p386 = pneg %p167
      %p387 = pneg %p191
      %p388 = pneg %p188
      %p389 = pneg %p212
      %p390 = pneg %p209
      %p391 = pneg %p233
      %p392 = pneg %p230
      %p393 = pneg %p254
      %p394 = pneg %p251
      %p395 = pneg %p275
      %p396 = pneg %p272
      %p397 = pneg %p301
      %p398 = pneg %p298
      %p399 = scmp.lt.s32.totalorder %s23, 1
      %s400 = scalar_select %p399, %s23, 1
      %s401 = smul.addr %s400, 10
      %s402 = smul.addr %s401, 8
      %s403 = scalar_lea.vmem %s12, %s402
      %p404 = scmp.lt.s32.totalorder %s23, 1
      %s405 = scalar_select %p404, %s23, 1
      %s406 = smul.addr %s405, 3
      %s407 = smul.addr %s406, 8
      %s408 = scalar_lea.vmem %s0, %s407
      %p409 = scmp.lt.s32.totalorder %s23, 1
      %s410 = scalar_select %p409, %s23, 1
      %s411 = smul.addr %s410, 10
      %s412 = smul.addr %s411, 8
      %s413 = scalar_lea.vmem %s12, %s412
      %v415 = vld [vmem:[%s408] sm:$0xff]
      %v416 = vld [vmem:[%s408 + $0x8] sm:$0xff]
      %v417 = vld [vmem:[%s408 + $0x10] sm:$0x3f]
      %v418 = vpack.c.bf16 %v416, %v415
      %v419 = vld [vmem:[%s1] sm:$0x3]
      %v420 = vpack.c.bf16 %v417, %v417
      %s421 = scalar_lea.vmem %s1, 2
      %v422 = vld [vmem:[%s421] sm:$0x3]
      %vm423 = vsmask.f32 7424
      %v425 = vshrl.u32 %v418, 16
      %v427 = vshll.u32 %v418, 16
      %v429 = vrot.slane %v427, 1
      %v430 = vor.u32 %v425, %v429
      %v432 = vshll.u32 %v420, 16
      %v434 = vrot.slane %v432, 1
      %v435 = vsel %vm423, %v430, %v434
      %vm436 = vcmask 31744
      %v438 = vsel %vm436, %v435, 0
      %vm440 = vcmask 1041408
      %v442 = vsel %vm440, %v422, 0
      %444 = vmatprep.subr.bf16.mxu0 0
      %445 = vmatpush1.bf16.msra.mxu0 %v442
      %446 = vmatprep.subr.bf16.mxu0 0
      %447 = vmatpush1.bf16.msra.mxu0 0
      %448 = vmatprep.subr.bf16.mxu0 0
      %449 = vmatpush1.bf16.msra.mxu0 0
      %450 = vmatprep.subr.bf16.mxu0 0
      %451 = vmatpush1.bf16.msra.mxu0 0
      %452 = vmatprep.subr.bf16.mxu0 0
      %453 = vmatpush1.bf16.msra.mxu0 0
      %454 = vmatprep.subr.bf16.mxu0 0
      %455 = vmatpush1.bf16.msra.mxu0 0
      %456 = vmatprep.subr.bf16.mxu0 0
      %457 = vmatpush1.bf16.msra.mxu0 0
      %458 = vmatprep.subr.bf16.mxu0 0
      %459 = vmatpush1.bf16.msra.mxu0 0
      %460 = vmatprep.subr.bf16.mxu0 0
      %461 = vmatpush1.bf16.msra.mxu0 0
      %462 = vmatprep.subr.bf16.mxu0 0
      %463 = vmatpush1.bf16.msra.mxu0 0
      %464 = vmatprep.subr.bf16.mxu0 0
      %465 = vmatpush1.bf16.msra.mxu0 0
      %466 = vmatprep.subr.bf16.mxu0 0
      %467 = vmatpush1.bf16.msra.mxu0 0
      %468 = vmatprep.subr.bf16.mxu0 0
      %469 = vmatpush1.bf16.msra.mxu0 0
      %470 = vmatprep.subr.bf16.mxu0 0
      %471 = vmatpush1.bf16.msra.mxu0 0
      %472 = vmatprep.subr.bf16.mxu0 0
      %473 = vmatpush1.bf16.msra.mxu0 0
      %474 = vmatprep.subr.bf16.mxu0 0
      %475 = vmatpush1.bf16.msra.mxu0 0
      %476 = vmatprep.mubr.bf16.mxu0 0
      %477 = vmatmul.mubr.bf16.gmra.mrb[0].mxu0 %v438
      %v478 = vpop.f32.mrb[0].mxu0
      %v479 = vadd.f32 0.0, %v478
      %v480 = vpop.f32.mrb[0].mxu0
      %v481 = vpop.f32.mrb[0].mxu0
      %v482 = vadd.f32 0.0, %v481
      %v483 = vpop.f32.mrb[0].mxu0
      %484 = vdwg.mxu0
      %v485 = vsel %vm436, %v418, 0
      %v488 = vsel %vm440, %v419, 0
      %490 = vmatprep.subr.bf16.mxu0 0
      %491 = vmatpush1.bf16.msra.mxu0 %v488
      %492 = vmatprep.subr.bf16.mxu0 0
      %493 = vmatpush1.bf16.msra.mxu0 0
      %494 = vmatprep.subr.bf16.mxu0 0
      %495 = vmatpush1.bf16.msra.mxu0 0
      %496 = vmatprep.subr.bf16.mxu0 0
      %497 = vmatpush1.bf16.msra.mxu0 0
      %498 = vmatprep.subr.bf16.mxu0 0
      %499 = vmatpush1.bf16.msra.mxu0 0
      %500 = vmatprep.subr.bf16.mxu0 0
      %501 = vmatpush1.bf16.msra.mxu0 0
      %502 = vmatprep.subr.bf16.mxu0 0
      %503 = vmatpush1.bf16.msra.mxu0 0
      %504 = vmatprep.subr.bf16.mxu0 0
      %505 = vmatpush1.bf16.msra.mxu0 0
      %506 = vmatprep.subr.bf16.mxu0 0
      %507 = vmatpush1.bf16.msra.mxu0 0
      %508 = vmatprep.subr.bf16.mxu0 0
      %509 = vmatpush1.bf16.msra.mxu0 0
      %510 = vmatprep.subr.bf16.mxu0 0
      %511 = vmatpush1.bf16.msra.mxu0 0
      %512 = vmatprep.subr.bf16.mxu0 0
      %513 = vmatpush1.bf16.msra.mxu0 0
      %514 = vmatprep.subr.bf16.mxu0 0
      %515 = vmatpush1.bf16.msra.mxu0 0
      %516 = vmatprep.subr.bf16.mxu0 0
      %517 = vmatpush1.bf16.msra.mxu0 0
      %518 = vmatprep.subr.bf16.mxu0 0
      %519 = vmatpush1.bf16.msra.mxu0 0
      %520 = vmatprep.subr.bf16.mxu0 0
      %521 = vmatpush1.bf16.msra.mxu0 0
      %522 = vmatprep.mubr.bf16.mxu0 0
      %523 = vmatmul.mubr.bf16.gmra.mrb[0].mxu0 %v485
      %v524 = vpop.f32.mrb[0].mxu0
      %v525 = vadd.f32 %v479, %v524
      %v526 = vpop.f32.mrb[0].mxu0
      %v527 = vpop.f32.mrb[0].mxu0
      %v528 = vadd.f32 %v482, %v527
      %v529 = vpop.f32.mrb[0].mxu0
      %530 = vdwg.mxu0
      %s531 = scalar_lea.vmem %s1, 4
      %v532 = vld [vmem:[%s531] sm:$0x3]
      %vm535 = vcmask 1046528
      %v536 = vrot.slane %v418, 1
      %v537 = vrot.slane %v420, 1
      %v538 = vsel %vm535, %v536, %v537
      %v540 = vsel %vm436, %v538, 0
      %v543 = vsel %vm440, %v532, 0
      %545 = vmatprep.subr.bf16.mxu0 0
      %546 = vmatpush1.bf16.msra.mxu0 %v543
      %547 = vmatprep.subr.bf16.mxu0 0
      %548 = vmatpush1.bf16.msra.mxu0 0
      %549 = vmatprep.subr.bf16.mxu0 0
      %550 = vmatpush1.bf16.msra.mxu0 0
      %551 = vmatprep.subr.bf16.mxu0 0
      %552 = vmatpush1.bf16.msra.mxu0 0
      %553 = vmatprep.subr.bf16.mxu0 0
      %554 = vmatpush1.bf16.msra.mxu0 0
      %555 = vmatprep.subr.bf16.mxu0 0
      %556 = vmatpush1.bf16.msra.mxu0 0
      %557 = vmatprep.subr.bf16.mxu0 0
      %558 = vmatpush1.bf16.msra.mxu0 0
      %559 = vmatprep.subr.bf16.mxu0 0
      %560 = vmatpush1.bf16.msra.mxu0 0
      %561 = vmatprep.subr.bf16.mxu0 0
      %562 = vmatpush1.bf16.msra.mxu0 0
      %563 = vmatprep.subr.bf16.mxu0 0
      %564 = vmatpush1.bf16.msra.mxu0 0
      %565 = vmatprep.subr.bf16.mxu0 0
      %566 = vmatpush1.bf16.msra.mxu0 0
      %567 = vmatprep.subr.bf16.mxu0 0
      %568 = vmatpush1.bf16.msra.mxu0 0
      %569 = vmatprep.subr.bf16.mxu0 0
      %570 = vmatpush1.bf16.msra.mxu0 0
      %571 = vmatprep.subr.bf16.mxu0 0
      %572 = vmatpush1.bf16.msra.mxu0 0
      %573 = vmatprep.subr.bf16.mxu0 0
      %574 = vmatpush1.bf16.msra.mxu0 0
      %575 = vmatprep.subr.bf16.mxu0 0
      %576 = vmatpush1.bf16.msra.mxu0 0
      %577 = vmatprep.mubr.bf16.mxu0 0
      %578 = vmatmul.mubr.bf16.gmra.mrb[0].mxu0 %v540
      %v579 = vpop.f32.mrb[0].mxu0
      %v580 = vadd.f32 0.0, %v579
      %v581 = vpop.f32.mrb[0].mxu0
      %v582 = vpop.f32.mrb[0].mxu0
      %v583 = vadd.f32 0.0, %v582
      %v584 = vpop.f32.mrb[0].mxu0
      %585 = vdwg.mxu0
      %v586 = vadd.f32 %v525, %v580
      %v587 = vadd.f32 %v528, %v583
      %s588 = scalar_lea.vmem %s1, 6
      %v589 = vld [vmem:[%s588] sm:$0x3]
      %vm590 = vsmask.f32 6400
      %v591 = vrot.slane %v425, 1
      %v592 = vrot.slane %v427, 2
      %v593 = vor.u32 %v591, %v592
      %v594 = vshrl.u32 %v420, 16
      %v596 = vrot.slane %v594, 1
      %v597 = vrot.slane %v432, 2
      %v598 = vor.u32 %v596, %v597
      %v599 = vsel %vm590, %v593, %v598
      %v601 = vsel %vm436, %v599, 0
      %v604 = vsel %vm440, %v589, 0
      %606 = vmatprep.subr.bf16.mxu0 0
      %607 = vmatpush1.bf16.msra.mxu0 %v604
      %608 = vmatprep.subr.bf16.mxu0 0
      %609 = vmatpush1.bf16.msra.mxu0 0
      %610 = vmatprep.subr.bf16.mxu0 0
      %611 = vmatpush1.bf16.msra.mxu0 0
      %612 = vmatprep.subr.bf16.mxu0 0
      %613 = vmatpush1.bf16.msra.mxu0 0
      %614 = vmatprep.subr.bf16.mxu0 0
      %615 = vmatpush1.bf16.msra.mxu0 0
      %616 = vmatprep.subr.bf16.mxu0 0
      %617 = vmatpush1.bf16.msra.mxu0 0
      %618 = vmatprep.subr.bf16.mxu0 0
      %619 = vmatpush1.bf16.msra.mxu0 0
      %620 = vmatprep.subr.bf16.mxu0 0
      %621 = vmatpush1.bf16.msra.mxu0 0
      %622 = vmatprep.subr.bf16.mxu0 0
      %623 = vmatpush1.bf16.msra.mxu0 0
      %624 = vmatprep.subr.bf16.mxu0 0
      %625 = vmatpush1.bf16.msra.mxu0 0
      %626 = vmatprep.subr.bf16.mxu0 0
      %627 = vmatpush1.bf16.msra.mxu0 0
      %628 = vmatprep.subr.bf16.mxu0 0
      %629 = vmatpush1.bf16.msra.mxu0 0
      %630 = vmatprep.subr.bf16.mxu0 0
      %631 = vmatpush1.bf16.msra.mxu0 0
      %632 = vmatprep.subr.bf16.mxu0 0
      %633 = vmatpush1.bf16.msra.mxu0 0
      %634 = vmatprep.subr.bf16.mxu0 0
      %635 = vmatpush1.bf16.msra.mxu0 0
      %636 = vmatprep.subr.bf16.mxu0 0
      %637 = vmatpush1.bf16.msra.mxu0 0
      %638 = vmatprep.mubr.bf16.mxu0 0
      %639 = vmatmul.mubr.bf16.gmra.mrb[0].mxu0 %v601
      %v640 = vpop.f32.mrb[0].mxu0
      %v641 = vadd.f32 0.0, %v640
      %v642 = vpop.f32.mrb[0].mxu0
      %v643 = vpop.f32.mrb[0].mxu0
      %v644 = vadd.f32 0.0, %v643
      %v645 = vpop.f32.mrb[0].mxu0
      %646 = vdwg.mxu0
      %v647 = vadd.f32 %v586, %v641
      %v648 = vadd.f32 %v587, %v644
      %s649 = scalar_lea.vmem %s1, 8
      %v650 = vld [vmem:[%s649] sm:$0x3]
      %vm651 = vcmask 1045504
      %v652 = vrot.slane %v418, 2
      %v653 = vrot.slane %v420, 2
      %v654 = vsel %vm651, %v652, %v653
      %v656 = vsel %vm436, %v654, 0
      %v659 = vsel %vm440, %v650, 0
      %661 = vmatprep.subr.bf16.mxu0 0
      %662 = vmatpush1.bf16.msra.mxu0 %v659
      %663 = vmatprep.subr.bf16.mxu0 0
      %664 = vmatpush1.bf16.msra.mxu0 0
      %665 = vmatprep.subr.bf16.mxu0 0
      %666 = vmatpush1.bf16.msra.mxu0 0
      %667 = vmatprep.subr.bf16.mxu0 0
      %668 = vmatpush1.bf16.msra.mxu0 0
      %669 = vmatprep.subr.bf16.mxu0 0
      %670 = vmatpush1.bf16.msra.mxu0 0
      %671 = vmatprep.subr.bf16.mxu0 0
      %672 = vmatpush1.bf16.msra.mxu0 0
      %673 = vmatprep.subr.bf16.mxu0 0
      %674 = vmatpush1.bf16.msra.mxu0 0
      %675 = vmatprep.subr.bf16.mxu0 0
      %676 = vmatpush1.bf16.msra.mxu0 0
      %677 = vmatprep.subr.bf16.mxu0 0
      %678 = vmatpush1.bf16.msra.mxu0 0
      %679 = vmatprep.subr.bf16.mxu0 0
      %680 = vmatpush1.bf16.msra.mxu0 0
      %681 = vmatprep.subr.bf16.mxu0 0
      %682 = vmatpush1.bf16.msra.mxu0 0
      %683 = vmatprep.subr.bf16.mxu0 0
      %684 = vmatpush1.bf16.msra.mxu0 0
      %685 = vmatprep.subr.bf16.mxu0 0
      %686 = vmatpush1.bf16.msra.mxu0 0
      %687 = vmatprep.subr.bf16.mxu0 0
      %688 = vmatpush1.bf16.msra.mxu0 0
      %689 = vmatprep.subr.bf16.mxu0 0
      %690 = vmatpush1.bf16.msra.mxu0 0
      %691 = vmatprep.subr.bf16.mxu0 0
      %692 = vmatpush1.bf16.msra.mxu0 0
      %693 = vmatprep.mubr.bf16.mxu0 0
      %694 = vmatmul.mubr.bf16.gmra.mrb[0].mxu0 %v656
      %v695 = vpop.f32.mrb[0].mxu0
      %v696 = vadd.f32 0.0, %v695
      %v697 = vpop.f32.mrb[0].mxu0
      %v698 = vpop.f32.mrb[0].mxu0
      %v699 = vadd.f32 0.0, %v698
      %v700 = vpop.f32.mrb[0].mxu0
      %701 = vdwg.mxu0
      %v702 = vadd.f32 %v647, %v696
      %v703 = vadd.f32 %v648, %v699
      %s704 = scalar_lea.vmem %s1, 10
      %v705 = vld [vmem:[%s704] sm:$0x3]
      %vm706 = vsmask.f32 5376
      %v707 = vrot.slane %v425, 2
      %v708 = vrot.slane %v427, 3
      %v709 = vor.u32 %v707, %v708
      %v710 = vrot.slane %v594, 2
      %v711 = vrot.slane %v432, 3
      %v712 = vor.u32 %v710, %v711
      %v713 = vsel %vm706, %v709, %v712
      %v715 = vsel %vm436, %v713, 0
      %v718 = vsel %vm440, %v705, 0
      %720 = vmatprep.subr.bf16.mxu0 0
      %721 = vmatpush1.bf16.msra.mxu0 %v718
      %722 = vmatprep.subr.bf16.mxu0 0
      %723 = vmatpush1.bf16.msra.mxu0 0
      %724 = vmatprep.subr.bf16.mxu0 0
      %725 = vmatpush1.bf16.msra.mxu0 0
      %726 = vmatprep.subr.bf16.mxu0 0
      %727 = vmatpush1.bf16.msra.mxu0 0
      %728 = vmatprep.subr.bf16.mxu0 0
      %729 = vmatpush1.bf16.msra.mxu0 0
      %730 = vmatprep.subr.bf16.mxu0 0
      %731 = vmatpush1.bf16.msra.mxu0 0
      %732 = vmatprep.subr.bf16.mxu0 0
      %733 = vmatpush1.bf16.msra.mxu0 0
      %734 = vmatprep.subr.bf16.mxu0 0
      %735 = vmatpush1.bf16.msra.mxu0 0
      %736 = vmatprep.subr.bf16.mxu0 0
      %737 = vmatpush1.bf16.msra.mxu0 0
      %738 = vmatprep.subr.bf16.mxu0 0
      %739 = vmatpush1.bf16.msra.mxu0 0
      %740 = vmatprep.subr.bf16.mxu0 0
      %741 = vmatpush1.bf16.msra.mxu0 0
      %742 = vmatprep.subr.bf16.mxu0 0
      %743 = vmatpush1.bf16.msra.mxu0 0
      %744 = vmatprep.subr.bf16.mxu0 0
      %745 = vmatpush1.bf16.msra.mxu0 0
      %746 = vmatprep.subr.bf16.mxu0 0
      %747 = vmatpush1.bf16.msra.mxu0 0
      %748 = vmatprep.subr.bf16.mxu0 0
      %749 = vmatpush1.bf16.msra.mxu0 0
      %750 = vmatprep.subr.bf16.mxu0 0
      %751 = vmatpush1.bf16.msra.mxu0 0
      %752 = vmatprep.mubr.bf16.mxu0 0
      %753 = vmatmul.mubr.bf16.gmra.mrb[0].mxu0 %v715
      %v754 = vpop.f32.mrb[0].mxu0
      %v755 = vadd.f32 0.0, %v754
      %v756 = vpop.f32.mrb[0].mxu0
      %v757 = vpop.f32.mrb[0].mxu0
      %v758 = vadd.f32 0.0, %v757
      %v759 = vpop.f32.mrb[0].mxu0
      %760 = vdwg.mxu0
      %v761 = vadd.f32 %v702, %v755
      %v762 = vadd.f32 %v703, %v758
      %s763 = scalar_lea.vmem %s1, 12
      %v764 = vld [vmem:[%s763] sm:$0x3]
      %vm765 = vcmask 1044480
      %v766 = vrot.slane %v418, 3
      %v767 = vrot.slane %v420, 3
      %v768 = vsel %vm765, %v766, %v767
      %v770 = vsel %vm436, %v768, 0
      %v773 = vsel %vm440, %v764, 0
      %775 = vmatprep.subr.bf16.mxu0 0
      %776 = vmatpush1.bf16.msra.mxu0 %v773
      %777 = vmatprep.subr.bf16.mxu0 0
      %778 = vmatpush1.bf16.msra.mxu0 0
      %779 = vmatprep.subr.bf16.mxu0 0
      %780 = vmatpush1.bf16.msra.mxu0 0
      %781 = vmatprep.subr.bf16.mxu0 0
      %782 = vmatpush1.bf16.msra.mxu0 0
      %783 = vmatprep.subr.bf16.mxu0 0
      %784 = vmatpush1.bf16.msra.mxu0 0
      %785 = vmatprep.subr.bf16.mxu0 0
      %786 = vmatpush1.bf16.msra.mxu0 0
      %787 = vmatprep.subr.bf16.mxu0 0
      %788 = vmatpush1.bf16.msra.mxu0 0
      %789 = vmatprep.subr.bf16.mxu0 0
      %790 = vmatpush1.bf16.msra.mxu0 0
      %791 = vmatprep.subr.bf16.mxu0 0
      %792 = vmatpush1.bf16.msra.mxu0 0
      %793 = vmatprep.subr.bf16.mxu0 0
      %794 = vmatpush1.bf16.msra.mxu0 0
      %795 = vmatprep.subr.bf16.mxu0 0
      %796 = vmatpush1.bf16.msra.mxu0 0
      %797 = vmatprep.subr.bf16.mxu0 0
      %798 = vmatpush1.bf16.msra.mxu0 0
      %799 = vmatprep.subr.bf16.mxu0 0
      %800 = vmatpush1.bf16.msra.mxu0 0
      %801 = vmatprep.subr.bf16.mxu0 0
      %802 = vmatpush1.bf16.msra.mxu0 0
      %803 = vmatprep.subr.bf16.mxu0 0
      %804 = vmatpush1.bf16.msra.mxu0 0
      %805 = vmatprep.subr.bf16.mxu0 0
      %806 = vmatpush1.bf16.msra.mxu0 0
      %807 = vmatprep.mubr.bf16.mxu0 0
      %808 = vmatmul.mubr.bf16.gmra.mrb[0].mxu0 %v770
      %v809 = vpop.f32.mrb[0].mxu0
      %v810 = vadd.f32 0.0, %v809
      %v811 = vpop.f32.mrb[0].mxu0
      %v812 = vpop.f32.mrb[0].mxu0
      %v813 = vadd.f32 0.0, %v812
      %v814 = vpop.f32.mrb[0].mxu0
      %815 = vdwg.mxu0
      %v816 = vadd.f32 %v761, %v810
      %v817 = vadd.f32 %v762, %v813
      %v818 = vld [vmem:[%s2] sm:$0x1]
      %v820 = vlaneseq
      %v821 = vshrl.u32 %v820, 7
      %v822 = vsub.s32 0, %v821
      %v823 = vrot.slane %v818, %v822
      %v825 = vmul.f32 %v816, %v823
      %v826 = vmul.f32 %v817, %v823
      %v827 = vld [vmem:[%s3] sm:$0x1]
      %v829 = vlaneseq
      %v830 = vshrl.u32 %v829, 7
      %v831 = vsub.s32 0, %v830
      %v832 = vrot.slane %v827, %v831
      %v834 = vadd.f32 %v825, %v832
      %v835 = vadd.f32 %v826, %v832
      %v836 = vmax.f32 %v834, 0.0
      %v837 = vmax.f32 %v835, 0.0
      %838 = vst [vmem:[#allocation2] sm:$0xff] 0.0
      %839 = vst [vmem:[#allocation2 + $0x8] sm:$0xff] 0.0
      %840 = vst [vmem:[#allocation2 + $0x10] sm:$0xf] 0.0
      %841 = vst [vmem:[#allocation2 + $0x2] sm:$0xff] %v836
      %842 = vst [vmem:[#allocation2 + $0xa] sm:$0xff] %v837
      %v843 = vld [vmem:[#allocation2] sm:$0xff]
      %v844 = vld [vmem:[#allocation2 + $0x8] sm:$0xff]
      %v845 = vpack.c.bf16 %v844, %v843
      %v846 = vld [vmem:[%s4] sm:$0xf]
      %v847 = vld [vmem:[%s4 + $0x4] sm:$0xf]
      %v848 = vld [vmem:[%s4 + $0x8] sm:$0xf]
      %v849 = vld [vmem:[%s4 + $0xc] sm:$0xf]
      %v850 = vld [vmem:[%s4 + $0x10] sm:$0xf]
      %v851 = vld [vmem:[%s4 + $0x14] sm:$0xf]
      %v852 = vld [vmem:[%s4 + $0x18] sm:$0xf]
      %v853 = vld [vmem:[%s4 + $0x1c] sm:$0xf]
      %v854 = vld [vmem:[%s4 + $0x20] sm:$0xf]
      %v855 = vld [vmem:[%s4 + $0x24] sm:$0xf]
      %v856 = vld [vmem:[%s4 + $0x28] sm:$0xf]
      %v857 = vld [vmem:[%s4 + $0x2c] sm:$0xf]
      %v858 = vld [vmem:[%s4 + $0x30] sm:$0xf]
      %v859 = vld [vmem:[%s4 + $0x34] sm:$0xf]
      %v860 = vld [vmem:[%s4 + $0x38] sm:$0xf]
      %v861 = vld [vmem:[%s4 + $0x3c] sm:$0xf]
      %v862 = vld [vmem:[#allocation2 + $0x1] sm:$0xff]
      %v863 = vld [vmem:[#allocation2 + $0x9] sm:$0xff]
      %v864 = vpack.c.bf16 %v863, %v862
      %s865 = scalar_lea.vmem %s4, 64
      %v866 = vld [vmem:[%s865] sm:$0xf]
      %v867 = vld [vmem:[%s865 + $0x4] sm:$0xf]
      %v868 = vld [vmem:[%s865 + $0x8] sm:$0xf]
      %v869 = vld [vmem:[%s865 + $0xc] sm:$0xf]
      %v870 = vld [vmem:[%s865 + $0x10] sm:$0xf]
      %v871 = vld [vmem:[%s865 + $0x14] sm:$0xf]
      %v872 = vld [vmem:[%s865 + $0x18] sm:$0xf]
      %v873 = vld [vmem:[%s865 + $0x1c] sm:$0xf]
      %v874 = vld [vmem:[%s865 + $0x20] sm:$0xf]
      %v875 = vld [vmem:[%s865 + $0x24] sm:$0xf]
      %v876 = vld [vmem:[%s865 + $0x28] sm:$0xf]
      %v877 = vld [vmem:[%s865 + $0x2c] sm:$0xf]
      %v878 = vld [vmem:[%s865 + $0x30] sm:$0xf]
      %v879 = vld [vmem:[%s865 + $0x34] sm:$0xf]
      %v880 = vld [vmem:[%s865 + $0x38] sm:$0xf]
      %v881 = vld [vmem:[%s865 + $0x3c] sm:$0xf]
      %v898 = vunpack.c.l.b16 %v866
      %v899 = vunpack.c.l.b16 %v867
      %v900 = vunpack.c.l.b16 %v868
      %v901 = vunpack.c.l.b16 %v869
      %v902 = vunpack.c.l.b16 %v870
      %v903 = vunpack.c.l.b16 %v871
      %v904 = vunpack.c.l.b16 %v872
      %v905 = vunpack.c.l.b16 %v873
      %v906 = vunpack.c.l.b16 %v874
      %v907 = vunpack.c.l.b16 %v875
      %v908 = vunpack.c.l.b16 %v876
      %v909 = vunpack.c.l.b16 %v877
      %v910 = vunpack.c.l.b16 %v878
      %v911 = vunpack.c.l.b16 %v879
      %v912 = vunpack.c.l.b16 %v880
      %v913 = vunpack.c.l.b16 %v881
      %v914 = vpack.c.b16 %v899, %v898
      %v915 = vpack.c.b16 %v901, %v900
      %v916 = vpack.c.b16 %v903, %v902
      %v917 = vpack.c.b16 %v905, %v904
      %v918 = vpack.c.b16 %v907, %v906
      %v919 = vpack.c.b16 %v909, %v908
      %v920 = vpack.c.b16 %v911, %v910
      %v921 = vpack.c.b16 %v913, %v912
      %930 = vmatprep.subr.bf16.mxu0 0
      %931 = vmatpush1.bf16.msra.mxu0 %v914
      %932 = vmatprep.subr.bf16.mxu0 0
      %933 = vmatpush1.bf16.msra.mxu0 %v915
      %934 = vmatprep.subr.bf16.mxu0 0
      %935 = vmatpush1.bf16.msra.mxu0 %v916
      %936 = vmatprep.subr.bf16.mxu0 0
      %937 = vmatpush1.bf16.msra.mxu0 %v917
      %938 = vmatprep.subr.bf16.mxu0 0
      %939 = vmatpush1.bf16.msra.mxu0 %v918
      %940 = vmatprep.subr.bf16.mxu0 0
      %941 = vmatpush1.bf16.msra.mxu0 %v919
      %942 = vmatprep.subr.bf16.mxu0 0
      %943 = vmatpush1.bf16.msra.mxu0 %v920
      %944 = vmatprep.subr.bf16.mxu0 0
      %945 = vmatpush1.bf16.msra.mxu0 %v921
      %946 = vmatprep.subr.bf16.mxu0 0
      %947 = vmatpush1.bf16.msra.mxu0 0
      %948 = vmatprep.subr.bf16.mxu0 0
      %949 = vmatpush1.bf16.msra.mxu0 0
      %950 = vmatprep.subr.bf16.mxu0 0
      %951 = vmatpush1.bf16.msra.mxu0 0
      %952 = vmatprep.subr.bf16.mxu0 0
      %953 = vmatpush1.bf16.msra.mxu0 0
      %954 = vmatprep.subr.bf16.mxu0 0
      %955 = vmatpush1.bf16.msra.mxu0 0
      %956 = vmatprep.subr.bf16.mxu0 0
      %957 = vmatpush1.bf16.msra.mxu0 0
      %958 = vmatprep.subr.bf16.mxu0 0
      %959 = vmatpush1.bf16.msra.mxu0 0
      %960 = vmatprep.subr.bf16.mxu0 0
      %961 = vmatpush1.bf16.msra.mxu0 0
      %962 = vmatprep.mubr.bf16.mxu0 0
      %963 = vmatmul.mubr.bf16.gmra.mrb[0].mxu0 %v864
      %v964 = vpop.f32.mrb[0].mxu0
      %v965 = vadd.f32 0.0, %v964
      %v966 = vpop.f32.mrb[0].mxu0
      %v967 = vpop.f32.mrb[0].mxu0
      %v968 = vadd.f32 0.0, %v967
      %v969 = vpop.f32.mrb[0].mxu0
      %970 = vdwg.mxu0
      %v987 = vunpack.c.l.b16 %v846
      %v988 = vunpack.c.l.b16 %v847
      %v989 = vunpack.c.l.b16 %v848
      %v990 = vunpack.c.l.b16 %v849
      %v991 = vunpack.c.l.b16 %v850
      %v992 = vunpack.c.l.b16 %v851
      %v993 = vunpack.c.l.b16 %v852
      %v994 = vunpack.c.l.b16 %v853
      %v995 = vunpack.c.l.b16 %v854
      %v996 = vunpack.c.l.b16 %v855
      %v997 = vunpack.c.l.b16 %v856
      %v998 = vunpack.c.l.b16 %v857
      %v999 = vunpack.c.l.b16 %v858
      %v1000 = vunpack.c.l.b16 %v859
      %v1001 = vunpack.c.l.b16 %v860
      %v1002 = vunpack.c.l.b16 %v861
      %v1003 = vpack.c.b16 %v988, %v987
      %v1004 = vpack.c.b16 %v990, %v989
      %v1005 = vpack.c.b16 %v992, %v991
      %v1006 = vpack.c.b16 %v994, %v993
      %v1007 = vpack.c.b16 %v996, %v995
      %v1008 = vpack.c.b16 %v998, %v997
      %v1009 = vpack.c.b16 %v1000, %v999
      %v1010 = vpack.c.b16 %v1002, %v1001
      %1019 = vmatprep.subr.bf16.mxu0 0
      %1020 = vmatpush1.bf16.msra.mxu0 %v1003
      %1021 = vmatprep.subr.bf16.mxu0 0
      %1022 = vmatpush1.bf16.msra.mxu0 %v1004
      %1023 = vmatprep.subr.bf16.mxu0 0
      %1024 = vmatpush1.bf16.msra.mxu0 %v1005
      %1025 = vmatprep.subr.bf16.mxu0 0
      %1026 = vmatpush1.bf16.msra.mxu0 %v1006
      %1027 = vmatprep.subr.bf16.mxu0 0
      %1028 = vmatpush1.bf16.msra.mxu0 %v1007
      %1029 = vmatprep.subr.bf16.mxu0 0
      %1030 = vmatpush1.bf16.msra.mxu0 %v1008
      %1031 = vmatprep.subr.bf16.mxu0 0
      %1032 = vmatpush1.bf16.msra.mxu0 %v1009
      %1033 = vmatprep.subr.bf16.mxu0 0
      %1034 = vmatpush1.bf16.msra.mxu0 %v1010
      %1035 = vmatprep.subr.bf16.mxu0 0
      %1036 = vmatpush1.bf16.msra.mxu0 0
      %1037 = vmatprep.subr.bf16.mxu0 0
      %1038 = vmatpush1.bf16.msra.mxu0 0
      %1039 = vmatprep.subr.bf16.mxu0 0
      %1040 = vmatpush1.bf16.msra.mxu0 0
      %1041 = vmatprep.subr.bf16.mxu0 0
      %1042 = vmatpush1.bf16.msra.mxu0 0
      %1043 = vmatprep.subr.bf16.mxu0 0
      %1044 = vmatpush1.bf16.msra.mxu0 0
      %1045 = vmatprep.subr.bf16.mxu0 0
      %1046 = vmatpush1.bf16.msra.mxu0 0
      %1047 = vmatprep.subr.bf16.mxu0 0
      %1048 = vmatpush1.bf16.msra.mxu0 0
      %1049 = vmatprep.subr.bf16.mxu0 0
      %1050 = vmatpush1.bf16.msra.mxu0 0
      %1051 = vmatprep.mubr.bf16.mxu0 0
      %1052 = vmatmul.mubr.bf16.gmra.mrb[0].mxu0 %v845
      %v1053 = vpop.f32.mrb[0].mxu0
      %v1054 = vadd.f32 %v965, %v1053
      %v1055 = vpop.f32.mrb[0].mxu0
      %v1056 = vpop.f32.mrb[0].mxu0
      %v1057 = vadd.f32 %v968, %v1056
      %v1058 = vpop.f32.mrb[0].mxu0
      %1059 = vdwg.mxu0
      %v1060 = vld [vmem:[#allocation2 + $0x2] sm:$0xff]
      %v1061 = vld [vmem:[#allocation2 + $0xa] sm:$0xff]
      %v1062 = vpack.c.bf16 %v1061, %v1060
      %s1063 = scalar_lea.vmem %s4, 128
      %v1064 = vld [vmem:[%s1063] sm:$0xf]
      %v1065 = vld [vmem:[%s1063 + $0x4] sm:$0xf]
      %v1066 = vld [vmem:[%s1063 + $0x8] sm:$0xf]
      %v1067 = vld [vmem:[%s1063 + $0xc] sm:$0xf]
      %v1068 = vld [vmem:[%s1063 + $0x10] sm:$0xf]
      %v1069 = vld [vmem:[%s1063 + $0x14] sm:$0xf]
      %v1070 = vld [vmem:[%s1063 + $0x18] sm:$0xf]
      %v1071 = vld [vmem:[%s1063 + $0x1c] sm:$0xf]
      %v1072 = vld [vmem:[%s1063 + $0x20] sm:$0xf]
      %v1073 = vld [vmem:[%s1063 + $0x24] sm:$0xf]
      %v1074 = vld [vmem:[%s1063 + $0x28] sm:$0xf]
      %v1075 = vld [vmem:[%s1063 + $0x2c] sm:$0xf]
      %v1076 = vld [vmem:[%s1063 + $0x30] sm:$0xf]
      %v1077 = vld [vmem:[%s1063 + $0x34] sm:$0xf]
      %v1078 = vld [vmem:[%s1063 + $0x38] sm:$0xf]
      %v1079 = vld [vmem:[%s1063 + $0x3c] sm:$0xf]
      %v1096 = vunpack.c.l.b16 %v1064
      %v1097 = vunpack.c.l.b16 %v1065
      %v1098 = vunpack.c.l.b16 %v1066
      %v1099 = vunpack.c.l.b16 %v1067
      %v1100 = vunpack.c.l.b16 %v1068
      %v1101 = vunpack.c.l.b16 %v1069
      %v1102 = vunpack.c.l.b16 %v1070
      %v1103 = vunpack.c.l.b16 %v1071
      %v1104 = vunpack.c.l.b16 %v1072
      %v1105 = vunpack.c.l.b16 %v1073
      %v1106 = vunpack.c.l.b16 %v1074
      %v1107 = vunpack.c.l.b16 %v1075
      %v1108 = vunpack.c.l.b16 %v1076
      %v1109 = vunpack.c.l.b16 %v1077
      %v1110 = vunpack.c.l.b16 %v1078
      %v1111 = vunpack.c.l.b16 %v1079
      %v1112 = vpack.c.b16 %v1097, %v1096
      %v1113 = vpack.c.b16 %v1099, %v1098
      %v1114 = vpack.c.b16 %v1101, %v1100
      %v1115 = vpack.c.b16 %v1103, %v1102
      %v1116 = vpack.c.b16 %v1105, %v1104
      %v1117 = vpack.c.b16 %v1107, %v1106
      %v1118 = vpack.c.b16 %v1109, %v1108
      %v1119 = vpack.c.b16 %v1111, %v1110
      %1128 = vmatprep.subr.bf16.mxu0 0
      %1129 = vmatpush1.bf16.msra.mxu0 %v1112
      %1130 = vmatprep.subr.bf16.mxu0 0
      %1131 = vmatpush1.bf16.msra.mxu0 %v1113
      %1132 = vmatprep.subr.bf16.mxu0 0
      %1133 = vmatpush1.bf16.msra.mxu0 %v1114
      %1134 = vmatprep.subr.bf16.mxu0 0
      %1135 = vmatpush1.bf16.msra.mxu0 %v1115
      %1136 = vmatprep.subr.bf16.mxu0 0
      %1137 = vmatpush1.bf16.msra.mxu0 %v1116
      %1138 = vmatprep.subr.bf16.mxu0 0
      %1139 = vmatpush1.bf16.msra.mxu0 %v1117
      %1140 = vmatprep.subr.bf16.mxu0 0
      %1141 = vmatpush1.bf16.msra.mxu0 %v1118
      %1142 = vmatprep.subr.bf16.mxu0 0
      %1143 = vmatpush1.bf16.msra.mxu0 %v1119
      %1144 = vmatprep.subr.bf16.mxu0 0
      %1145 = vmatpush1.bf16.msra.mxu0 0
      %1146 = vmatprep.subr.bf16.mxu0 0
      %1147 = vmatpush1.bf16.msra.mxu0 0
      %1148 = vmatprep.subr.bf16.mxu0 0
      %1149 = vmatpush1.bf16.msra.mxu0 0
      %1150 = vmatprep.subr.bf16.mxu0 0
      %1151 = vmatpush1.bf16.msra.mxu0 0
      %1152 = vmatprep.subr.bf16.mxu0 0
      %1153 = vmatpush1.bf16.msra.mxu0 0
      %1154 = vmatprep.subr.bf16.mxu0 0
      %1155 = vmatpush1.bf16.msra.mxu0 0
      %1156 = vmatprep.subr.bf16.mxu0 0
      %1157 = vmatpush1.bf16.msra.mxu0 0
      %1158 = vmatprep.subr.bf16.mxu0 0
      %1159 = vmatpush1.bf16.msra.mxu0 0
      %1160 = vmatprep.mubr.bf16.mxu0 0
      %1161 = vmatmul.mubr.bf16.gmra.mrb[0].mxu0 %v1062
      %v1162 = vpop.f32.mrb[0].mxu0
      %v1163 = vadd.f32 0.0, %v1162
      %v1164 = vpop.f32.mrb[0].mxu0
      %v1165 = vpop.f32.mrb[0].mxu0
      %v1166 = vadd.f32 0.0, %v1165
      %v1167 = vpop.f32.mrb[0].mxu0
      %1168 = vdwg.mxu0
      %v1169 = vadd.f32 %v1054, %v1163
      %v1170 = vadd.f32 %v1057, %v1166
      %v1171 = vld [vmem:[#allocation2 + $0x3] sm:$0xff]
      %v1172 = vld [vmem:[#allocation2 + $0xb] sm:$0xff]
      %v1173 = vpack.c.bf16 %v1172, %v1171
      %s1174 = scalar_lea.vmem %s4, 192
      %v1175 = vld [vmem:[%s1174] sm:$0xf]
      %v1176 = vld [vmem:[%s1174 + $0x4] sm:$0xf]
      %v1177 = vld [vmem:[%s1174 + $0x8] sm:$0xf]
      %v1178 = vld [vmem:[%s1174 + $0xc] sm:$0xf]
      %v1179 = vld [vmem:[%s1174 + $0x10] sm:$0xf]
      %v1180 = vld [vmem:[%s1174 + $0x14] sm:$0xf]
      %v1181 = vld [vmem:[%s1174 + $0x18] sm:$0xf]
      %v1182 = vld [vmem:[%s1174 + $0x1c] sm:$0xf]
      %v1183 = vld [vmem:[%s1174 + $0x20] sm:$0xf]
      %v1184 = vld [vmem:[%s1174 + $0x24] sm:$0xf]
      %v1185 = vld [vmem:[%s1174 + $0x28] sm:$0xf]
      %v1186 = vld [vmem:[%s1174 + $0x2c] sm:$0xf]
      %v1187 = vld [vmem:[%s1174 + $0x30] sm:$0xf]
      %v1188 = vld [vmem:[%s1174 + $0x34] sm:$0xf]
      %v1189 = vld [vmem:[%s1174 + $0x38] sm:$0xf]
      %v1190 = vld [vmem:[%s1174 + $0x3c] sm:$0xf]
      %v1207 = vunpack.c.l.b16 %v1175
      %v1208 = vunpack.c.l.b16 %v1176
      %v1209 = vunpack.c.l.b16 %v1177
      %v1210 = vunpack.c.l.b16 %v1178
      %v1211 = vunpack.c.l.b16 %v1179
      %v1212 = vunpack.c.l.b16 %v1180
      %v1213 = vunpack.c.l.b16 %v1181
      %v1214 = vunpack.c.l.b16 %v1182
      %v1215 = vunpack.c.l.b16 %v1183
      %v1216 = vunpack.c.l.b16 %v1184
      %v1217 = vunpack.c.l.b16 %v1185
      %v1218 = vunpack.c.l.b16 %v1186
      %v1219 = vunpack.c.l.b16 %v1187
      %v1220 = vunpack.c.l.b16 %v1188
      %v1221 = vunpack.c.l.b16 %v1189
      %v1222 = vunpack.c.l.b16 %v1190
      %v1223 = vpack.c.b16 %v1208, %v1207
      %v1224 = vpack.c.b16 %v1210, %v1209
      %v1225 = vpack.c.b16 %v1212, %v1211
      %v1226 = vpack.c.b16 %v1214, %v1213
      %v1227 = vpack.c.b16 %v1216, %v1215
      %v1228 = vpack.c.b16 %v1218, %v1217
      %v1229 = vpack.c.b16 %v1220, %v1219
      %v1230 = vpack.c.b16 %v1222, %v1221
      %1239 = vmatprep.subr.bf16.mxu0 0
      %1240 = vmatpush1.bf16.msra.mxu0 %v1223
      %1241 = vmatprep.subr.bf16.mxu0 0
      %1242 = vmatpush1.bf16.msra.mxu0 %v1224
      %1243 = vmatprep.subr.bf16.mxu0 0
      %1244 = vmatpush1.bf16.msra.mxu0 %v1225
      %1245 = vmatprep.subr.bf16.mxu0 0
      %1246 = vmatpush1.bf16.msra.mxu0 %v1226
      %1247 = vmatprep.subr.bf16.mxu0 0
      %1248 = vmatpush1.bf16.msra.mxu0 %v1227
      %1249 = vmatprep.subr.bf16.mxu0 0
      %1250 = vmatpush1.bf16.msra.mxu0 %v1228
      %1251 = vmatprep.subr.bf16.mxu0 0
      %1252 = vmatpush1.bf16.msra.mxu0 %v1229
      %1253 = vmatprep.subr.bf16.mxu0 0
      %1254 = vmatpush1.bf16.msra.mxu0 %v1230
      %1255 = vmatprep.subr.bf16.mxu0 0
      %1256 = vmatpush1.bf16.msra.mxu0 0
      %1257 = vmatprep.subr.bf16.mxu0 0
      %1258 = vmatpush1.bf16.msra.mxu0 0
      %1259 = vmatprep.subr.bf16.mxu0 0
      %1260 = vmatpush1.bf16.msra.mxu0 0
      %1261 = vmatprep.subr.bf16.mxu0 0
      %1262 = vmatpush1.bf16.msra.mxu0 0
      %1263 = vmatprep.subr.bf16.mxu0 0
      %1264 = vmatpush1.bf16.msra.mxu0 0
      %1265 = vmatprep.subr.bf16.mxu0 0
      %1266 = vmatpush1.bf16.msra.mxu0 0
      %1267 = vmatprep.subr.bf16.mxu0 0
      %1268 = vmatpush1.bf16.msra.mxu0 0
      %1269 = vmatprep.subr.bf16.mxu0 0
      %1270 = vmatpush1.bf16.msra.mxu0 0
      %1271 = vmatprep.mubr.bf16.mxu0 0
      %1272 = vmatmul.mubr.bf16.gmra.mrb[0].mxu0 %v1173
      %v1273 = vpop.f32.mrb[0].mxu0
      %v1274 = vadd.f32 0.0, %v1273
      %v1275 = vpop.f32.mrb[0].mxu0
      %v1276 = vpop.f32.mrb[0].mxu0
      %v1277 = vadd.f32 0.0, %v1276
      %v1278 = vpop.f32.mrb[0].mxu0
      %1279 = vdwg.mxu0
      %v1280 = vadd.f32 %v1169, %v1274
      %v1281 = vadd.f32 %v1170, %v1277
      %v1282 = vld [vmem:[#allocation2 + $0x4] sm:$0xff]
      %v1283 = vld [vmem:[#allocation2 + $0xc] sm:$0xff]
      %v1284 = vpack.c.bf16 %v1283, %v1282
      %s1285 = scalar_lea.vmem %s4, 256
      %v1286 = vld [vmem:[%s1285] sm:$0xf]
      %v1287 = vld [vmem:[%s1285 + $0x4] sm:$0xf]
      %v1288 = vld [vmem:[%s1285 + $0x8] sm:$0xf]
      %v1289 = vld [vmem:[%s1285 + $0xc] sm:$0xf]
      %v1290 = vld [vmem:[%s1285 + $0x10] sm:$0xf]
      %v1291 = vld [vmem:[%s1285 + $0x14] sm:$0xf]
      %v1292 = vld [vmem:[%s1285 + $0x18] sm:$0xf]
      %v1293 = vld [vmem:[%s1285 + $0x1c] sm:$0xf]
      %v1294 = vld [vmem:[%s1285 + $0x20] sm:$0xf]
      %v1295 = vld [vmem:[%s1285 + $0x24] sm:$0xf]
      %v1296 = vld [vmem:[%s1285 + $0x28] sm:$0xf]
      %v1297 = vld [vmem:[%s1285 + $0x2c] sm:$0xf]
      %v1298 = vld [vmem:[%s1285 + $0x30] sm:$0xf]
      %v1299 = vld [vmem:[%s1285 + $0x34] sm:$0xf]
      %v1300 = vld [vmem:[%s1285 + $0x38] sm:$0xf]
      %v1301 = vld [vmem:[%s1285 + $0x3c] sm:$0xf]
      %v1318 = vunpack.c.l.b16 %v1286
      %v1319 = vunpack.c.l.b16 %v1287
      %v1320 = vunpack.c.l.b16 %v1288
      %v1321 = vunpack.c.l.b16 %v1289
      %v1322 = vunpack.c.l.b16 %v1290
      %v1323 = vunpack.c.l.b16 %v1291
      %v1324 = vunpack.c.l.b16 %v1292
      %v1325 = vunpack.c.l.b16 %v1293
      %v1326 = vunpack.c.l.b16 %v1294
      %v1327 = vunpack.c.l.b16 %v1295
      %v1328 = vunpack.c.l.b16 %v1296
      %v1329 = vunpack.c.l.b16 %v1297
      %v1330 = vunpack.c.l.b16 %v1298
      %v1331 = vunpack.c.l.b16 %v1299
      %v1332 = vunpack.c.l.b16 %v1300
      %v1333 = vunpack.c.l.b16 %v1301
      %v1334 = vpack.c.b16 %v1319, %v1318
      %v1335 = vpack.c.b16 %v1321, %v1320
      %v1336 = vpack.c.b16 %v1323, %v1322
      %v1337 = vpack.c.b16 %v1325, %v1324
      %v1338 = vpack.c.b16 %v1327, %v1326
      %v1339 = vpack.c.b16 %v1329, %v1328
      %v1340 = vpack.c.b16 %v1331, %v1330
      %v1341 = vpack.c.b16 %v1333, %v1332
      %1350 = vmatprep.subr.bf16.mxu0 0
      %1351 = vmatpush1.bf16.msra.mxu0 %v1334
      %1352 = vmatprep.subr.bf16.mxu0 0
      %1353 = vmatpush1.bf16.msra.mxu0 %v1335
      %1354 = vmatprep.subr.bf16.mxu0 0
      %1355 = vmatpush1.bf16.msra.mxu0 %v1336
      %1356 = vmatprep.subr.bf16.mxu0 0
      %1357 = vmatpush1.bf16.msra.mxu0 %v1337
      %1358 = vmatprep.subr.bf16.mxu0 0
      %1359 = vmatpush1.bf16.msra.mxu0 %v1338
      %1360 = vmatprep.subr.bf16.mxu0 0
      %1361 = vmatpush1.bf16.msra.mxu0 %v1339
      %1362 = vmatprep.subr.bf16.mxu0 0
      %1363 = vmatpush1.bf16.msra.mxu0 %v1340
      %1364 = vmatprep.subr.bf16.mxu0 0
      %1365 = vmatpush1.bf16.msra.mxu0 %v1341
      %1366 = vmatprep.subr.bf16.mxu0 0
      %1367 = vmatpush1.bf16.msra.mxu0 0
      %1368 = vmatprep.subr.bf16.mxu0 0
      %1369 = vmatpush1.bf16.msra.mxu0 0
      %1370 = vmatprep.subr.bf16.mxu0 0
      %1371 = vmatpush1.bf16.msra.mxu0 0
      %1372 = vmatprep.subr.bf16.mxu0 0
      %1373 = vmatpush1.bf16.msra.mxu0 0
      %1374 = vmatprep.subr.bf16.mxu0 0
      %1375 = vmatpush1.bf16.msra.mxu0 0
      %1376 = vmatprep.subr.bf16.mxu0 0
      %1377 = vmatpush1.bf16.msra.mxu0 0
      %1378 = vmatprep.subr.bf16.mxu0 0
      %1379 = vmatpush1.bf16.msra.mxu0 0
      %1380 = vmatprep.subr.bf16.mxu0 0
      %1381 = vmatpush1.bf16.msra.mxu0 0
      %1382 = vmatprep.mubr.bf16.mxu0 0
      %1383 = vmatmul.mubr.bf16.gmra.mrb[0].mxu0 %v1284
      %v1384 = vpop.f32.mrb[0].mxu0
      %v1385 = vadd.f32 0.0, %v1384
      %v1386 = vpop.f32.mrb[0].mxu0
      %v1387 = vpop.f32.mrb[0].mxu0
      %v1388 = vadd.f32 0.0, %v1387
      %v1389 = vpop.f32.mrb[0].mxu0
      %1390 = vdwg.mxu0
      %v1391 = vadd.f32 %v1280, %v1385
      %v1392 = vadd.f32 %v1281, %v1388
      %v1393 = vld [vmem:[%s5] sm:$0x1]
      %v1395 = vlaneseq
      %v1396 = vshrl.u32 %v1395, 7
      %v1397 = vsub.s32 0, %v1396
      %v1398 = vrot.slane %v1393, %v1397
      %v1400 = vmul.f32 %v1391, %v1398
      %v1401 = vmul.f32 %v1392, %v1398
      %v1402 = vld [vmem:[%s6] sm:$0x1]
      %v1404 = vlaneseq
      %v1405 = vshrl.u32 %v1404, 7
      %v1406 = vsub.s32 0, %v1405
      %v1407 = vrot.slane %v1402, %v1406
      %v1409 = vadd.f32 %v1400, %v1407
      %v1410 = vadd.f32 %v1401, %v1407
      %v1411 = vmax.f32 %v1409, 0.0
      %v1412 = vmax.f32 %v1410, 0.0
      %vm1413 = vcmask 523264
      %1414 = vst.msk [vmem:[#allocation3] sm:$0xff] %vm1413, 0.0
      %1415 = vst.msk [vmem:[#allocation3 + $0x8] sm:$0xff] %vm1413, 0.0
      %vm1416 = vcmask 517120
      %1417 = vst.msk [vmem:[#allocation3 + $0x10] sm:$0x3] %vm1416, 0.0
      %1418 = vst.msk [vmem:[#allocation3 + $0x1] sm:$0xff] %vm1413, %v1411
      %1419 = vst.msk [vmem:[#allocation3 + $0x9] sm:$0xff] %vm1413, %v1412
      %v1420 = vld [vmem:[#allocation3] sm:$0xff]
      %v1421 = vld [vmem:[#allocation3 + $0x8] sm:$0xff]
      %v1422 = vpack.c.bf16 %v1421, %v1420
      %v1423 = vld [vmem:[%s7] sm:$0xf]
      %v1424 = vld [vmem:[%s7 + $0x4] sm:$0xf]
      %v1425 = vld [vmem:[%s7 + $0x8] sm:$0xf]
      %v1426 = vld [vmem:[%s7 + $0xc] sm:$0xf]
      %v1427 = vld [vmem:[%s7 + $0x10] sm:$0xf]
      %v1428 = vld [vmem:[%s7 + $0x14] sm:$0xf]
      %v1429 = vld [vmem:[%s7 + $0x18] sm:$0xf]
      %v1430 = vld [vmem:[%s7 + $0x1c] sm:$0xf]
      %v1431 = vld [vmem:[#allocation3 + $0x1] sm:$0xff]
      %v1432 = vld [vmem:[#allocation3 + $0x9] sm:$0xff]
      %v1433 = vpack.c.bf16 %v1432, %v1431
      %s1434 = scalar_lea.vmem %s7, 32
      %v1435 = vld [vmem:[%s1434] sm:$0xf]
      %v1436 = vld [vmem:[%s1434 + $0x4] sm:$0xf]
      %v1437 = vld [vmem:[%s1434 + $0x8] sm:$0xf]
      %v1438 = vld [vmem:[%s1434 + $0xc] sm:$0xf]
      %v1439 = vld [vmem:[%s1434 + $0x10] sm:$0xf]
      %v1440 = vld [vmem:[%s1434 + $0x14] sm:$0xf]
      %v1441 = vld [vmem:[%s1434 + $0x18] sm:$0xf]
      %v1442 = vld [vmem:[%s1434 + $0x1c] sm:$0xf]
      %v1451 = vunpack.c.l.b16 %v1435
      %v1452 = vunpack.c.l.b16 %v1436
      %v1453 = vunpack.c.l.b16 %v1437
      %v1454 = vunpack.c.l.b16 %v1438
      %v1455 = vunpack.c.l.b16 %v1439
      %v1456 = vunpack.c.l.b16 %v1440
      %v1457 = vunpack.c.l.b16 %v1441
      %v1458 = vunpack.c.l.b16 %v1442
      %v1459 = vpack.c.b16 %v1452, %v1451
      %v1460 = vpack.c.b16 %v1454, %v1453
      %v1461 = vpack.c.b16 %v1456, %v1455
      %v1462 = vpack.c.b16 %v1458, %v1457
      %v1468 = vsel %vm1413, %v1433, 0
      %1470 = vmatprep.subr.bf16.mxu0 0
      %1471 = vmatpush1.bf16.msra.mxu0 %v1459
      %1472 = vmatprep.subr.bf16.mxu0 0
      %1473 = vmatpush1.bf16.msra.mxu0 %v1460
      %1474 = vmatprep.subr.bf16.mxu0 0
      %1475 = vmatpush1.bf16.msra.mxu0 %v1461
      %1476 = vmatprep.subr.bf16.mxu0 0
      %1477 = vmatpush1.bf16.msra.mxu0 %v1462
      %1478 = vmatprep.subr.bf16.mxu0 0
      %1479 = vmatpush1.bf16.msra.mxu0 0
      %1480 = vmatprep.subr.bf16.mxu0 0
      %1481 = vmatpush1.bf16.msra.mxu0 0
      %1482 = vmatprep.subr.bf16.mxu0 0
      %1483 = vmatpush1.bf16.msra.mxu0 0
      %1484 = vmatprep.subr.bf16.mxu0 0
      %1485 = vmatpush1.bf16.msra.mxu0 0
      %1486 = vmatprep.subr.bf16.mxu0 0
      %1487 = vmatpush1.bf16.msra.mxu0 0
      %1488 = vmatprep.subr.bf16.mxu0 0
      %1489 = vmatpush1.bf16.msra.mxu0 0
      %1490 = vmatprep.subr.bf16.mxu0 0
      %1491 = vmatpush1.bf16.msra.mxu0 0
      %1492 = vmatprep.subr.bf16.mxu0 0
      %1493 = vmatpush1.bf16.msra.mxu0 0
      %1494 = vmatprep.subr.bf16.mxu0 0
      %1495 = vmatpush1.bf16.msra.mxu0 0
      %1496 = vmatprep.subr.bf16.mxu0 0
      %1497 = vmatpush1.bf16.msra.mxu0 0
      %1498 = vmatprep.subr.bf16.mxu0 0
      %1499 = vmatpush1.bf16.msra.mxu0 0
      %1500 = vmatprep.subr.bf16.mxu0 0
      %1501 = vmatpush1.bf16.msra.mxu0 0
      %1502 = vmatprep.mubr.bf16.mxu0 0
      %1503 = vmatmul.mubr.bf16.gmra.mrb[0].mxu0 %v1468
      %v1504 = vpop.f32.mrb[0].mxu0
      %v1505 = vadd.f32 0.0, %v1504
      %v1506 = vpop.f32.mrb[0].mxu0
      %v1507 = vpop.f32.mrb[0].mxu0
      %v1508 = vadd.f32 0.0, %v1507
      %v1509 = vpop.f32.mrb[0].mxu0
      %1510 = vdwg.mxu0
      %v1519 = vunpack.c.l.b16 %v1423
      %v1520 = vunpack.c.l.b16 %v1424
      %v1521 = vunpack.c.l.b16 %v1425
      %v1522 = vunpack.c.l.b16 %v1426
      %v1523 = vunpack.c.l.b16 %v1427
      %v1524 = vunpack.c.l.b16 %v1428
      %v1525 = vunpack.c.l.b16 %v1429
      %v1526 = vunpack.c.l.b16 %v1430
      %v1527 = vpack.c.b16 %v1520, %v1519
      %v1528 = vpack.c.b16 %v1522, %v1521
      %v1529 = vpack.c.b16 %v1524, %v1523
      %v1530 = vpack.c.b16 %v1526, %v1525
      %v1536 = vsel %vm1413, %v1422, 0
      %1538 = vmatprep.subr.bf16.mxu0 0
      %1539 = vmatpush1.bf16.msra.mxu0 %v1527
      %1540 = vmatprep.subr.bf16.mxu0 0
      %1541 = vmatpush1.bf16.msra.mxu0 %v1528
      %1542 = vmatprep.subr.bf16.mxu0 0
      %1543 = vmatpush1.bf16.msra.mxu0 %v1529
      %1544 = vmatprep.subr.bf16.mxu0 0
      %1545 = vmatpush1.bf16.msra.mxu0 %v1530
      %1546 = vmatprep.subr.bf16.mxu0 0
      %1547 = vmatpush1.bf16.msra.mxu0 0
      %1548 = vmatprep.subr.bf16.mxu0 0
      %1549 = vmatpush1.bf16.msra.mxu0 0
      %1550 = vmatprep.subr.bf16.mxu0 0
      %1551 = vmatpush1.bf16.msra.mxu0 0
      %1552 = vmatprep.subr.bf16.mxu0 0
      %1553 = vmatpush1.bf16.msra.mxu0 0
      %1554 = vmatprep.subr.bf16.mxu0 0
      %1555 = vmatpush1.bf16.msra.mxu0 0
      %1556 = vmatprep.subr.bf16.mxu0 0
      %1557 = vmatpush1.bf16.msra.mxu0 0
      %1558 = vmatprep.subr.bf16.mxu0 0
      %1559 = vmatpush1.bf16.msra.mxu0 0
      %1560 = vmatprep.subr.bf16.mxu0 0
      %1561 = vmatpush1.bf16.msra.mxu0 0
      %1562 = vmatprep.subr.bf16.mxu0 0
      %1563 = vmatpush1.bf16.msra.mxu0 0
      %1564 = vmatprep.subr.bf16.mxu0 0
      %1565 = vmatpush1.bf16.msra.mxu0 0
      %1566 = vmatprep.subr.bf16.mxu0 0
      %1567 = vmatpush1.bf16.msra.mxu0 0
      %1568 = vmatprep.subr.bf16.mxu0 0
      %1569 = vmatpush1.bf16.msra.mxu0 0
      %1570 = vmatprep.mubr.bf16.mxu0 0
      %1571 = vmatmul.mubr.bf16.gmra.mrb[0].mxu0 %v1536
      %v1572 = vpop.f32.mrb[0].mxu0
      %v1573 = vadd.f32 %v1505, %v1572
      %v1574 = vpop.f32.mrb[0].mxu0
      %v1575 = vpop.f32.mrb[0].mxu0
      %v1576 = vadd.f32 %v1508, %v1575
      %v1577 = vpop.f32.mrb[0].mxu0
      %1578 = vdwg.mxu0
      %v1579 = vld [vmem:[#allocation3 + $0x2] sm:$0xff]
      %v1580 = vld [vmem:[#allocation3 + $0xa] sm:$0xff]
      %v1581 = vpack.c.bf16 %v1580, %v1579
      %s1582 = scalar_lea.vmem %s7, 64
      %v1583 = vld [vmem:[%s1582] sm:$0xf]
      %v1584 = vld [vmem:[%s1582 + $0x4] sm:$0xf]
      %v1585 = vld [vmem:[%s1582 + $0x8] sm:$0xf]
      %v1586 = vld [vmem:[%s1582 + $0xc] sm:$0xf]
      %v1587 = vld [vmem:[%s1582 + $0x10] sm:$0xf]
      %v1588 = vld [vmem:[%s1582 + $0x14] sm:$0xf]
      %v1589 = vld [vmem:[%s1582 + $0x18] sm:$0xf]
      %v1590 = vld [vmem:[%s1582 + $0x1c] sm:$0xf]
      %v1599 = vunpack.c.l.b16 %v1583
      %v1600 = vunpack.c.l.b16 %v1584
      %v1601 = vunpack.c.l.b16 %v1585
      %v1602 = vunpack.c.l.b16 %v1586
      %v1603 = vunpack.c.l.b16 %v1587
      %v1604 = vunpack.c.l.b16 %v1588
      %v1605 = vunpack.c.l.b16 %v1589
      %v1606 = vunpack.c.l.b16 %v1590
      %v1607 = vpack.c.b16 %v1600, %v1599
      %v1608 = vpack.c.b16 %v1602, %v1601
      %v1609 = vpack.c.b16 %v1604, %v1603
      %v1610 = vpack.c.b16 %v1606, %v1605
      %v1616 = vsel %vm1413, %v1581, 0
      %1618 = vmatprep.subr.bf16.mxu0 0
      %1619 = vmatpush1.bf16.msra.mxu0 %v1607
      %1620 = vmatprep.subr.bf16.mxu0 0
      %1621 = vmatpush1.bf16.msra.mxu0 %v1608
      %1622 = vmatprep.subr.bf16.mxu0 0
      %1623 = vmatpush1.bf16.msra.mxu0 %v1609
      %1624 = vmatprep.subr.bf16.mxu0 0
      %1625 = vmatpush1.bf16.msra.mxu0 %v1610
      %1626 = vmatprep.subr.bf16.mxu0 0
      %1627 = vmatpush1.bf16.msra.mxu0 0
      %1628 = vmatprep.subr.bf16.mxu0 0
      %1629 = vmatpush1.bf16.msra.mxu0 0
      %1630 = vmatprep.subr.bf16.mxu0 0
      %1631 = vmatpush1.bf16.msra.mxu0 0
      %1632 = vmatprep.subr.bf16.mxu0 0
      %1633 = vmatpush1.bf16.msra.mxu0 0
      %1634 = vmatprep.subr.bf16.mxu0 0
      %1635 = vmatpush1.bf16.msra.mxu0 0
      %1636 = vmatprep.subr.bf16.mxu0 0
      %1637 = vmatpush1.bf16.msra.mxu0 0
      %1638 = vmatprep.subr.bf16.mxu0 0
      %1639 = vmatpush1.bf16.msra.mxu0 0
      %1640 = vmatprep.subr.bf16.mxu0 0
      %1641 = vmatpush1.bf16.msra.mxu0 0
      %1642 = vmatprep.subr.bf16.mxu0 0
      %1643 = vmatpush1.bf16.msra.mxu0 0
      %1644 = vmatprep.subr.bf16.mxu0 0
      %1645 = vmatpush1.bf16.msra.mxu0 0
      %1646 = vmatprep.subr.bf16.mxu0 0
      %1647 = vmatpush1.bf16.msra.mxu0 0
      %1648 = vmatprep.subr.bf16.mxu0 0
      %1649 = vmatpush1.bf16.msra.mxu0 0
      %1650 = vmatprep.mubr.bf16.mxu0 0
      %1651 = vmatmul.mubr.bf16.gmra.mrb[0].mxu0 %v1616
      %v1652 = vpop.f32.mrb[0].mxu0
      %v1653 = vadd.f32 0.0, %v1652
      %v1654 = vpop.f32.mrb[0].mxu0
      %v1655 = vpop.f32.mrb[0].mxu0
      %v1656 = vadd.f32 0.0, %v1655
      %v1657 = vpop.f32.mrb[0].mxu0
      %1658 = vdwg.mxu0
      %v1659 = vadd.f32 %v1573, %v1653
      %v1660 = vadd.f32 %v1576, %v1656
      %v1661 = vld [vmem:[%s8] sm:$0x1]
      %v1663 = vlaneseq
      %v1664 = vshrl.u32 %v1663, 7
      %v1665 = vsub.s32 0, %v1664
      %v1666 = vrot.slane %v1661, %v1665
      %v1668 = vmul.f32 %v1659, %v1666
      %v1669 = vmul.f32 %v1660, %v1666
      %v1670 = vld [vmem:[%s9] sm:$0x1]
      %v1672 = vlaneseq
      %v1673 = vshrl.u32 %v1672, 7
      %v1674 = vsub.s32 0, %v1673
      %v1675 = vrot.slane %v1670, %v1674
      %v1677 = vadd.f32 %v1668, %v1675
      %v1678 = vadd.f32 %v1669, %v1675
      %v1679 = vmax.f32 %v1677, 0.0
      %v1680 = vmax.f32 %v1678, 0.0
      %v1681 = vpack.c.bf16 %v1680, %v1679
      %v1682 = vld [vmem:[%s10] sm:$0xff]
      %v1683 = vld [vmem:[%s10 + $0x8] sm:$0xff]
      %v1684 = vld [vmem:[%s10 + $0x10] sm:$0xf]
      %v1685 = vld [vmem:[%s10 + $0x14] sm:$0xff]
      %v1686 = vld [vmem:[%s10 + $0x1c] sm:$0xff]
      %v1687 = vld [vmem:[%s10 + $0x24] sm:$0xf]
      %v1688 = vld [vmem:[%s10 + $0x28] sm:$0xff]
      %v1689 = vld [vmem:[%s10 + $0x30] sm:$0xff]
      %v1690 = vld [vmem:[%s10 + $0x38] sm:$0xf]
      %v1691 = vld [vmem:[%s10 + $0x3c] sm:$0xff]
      %v1692 = vld [vmem:[%s10 + $0x44] sm:$0xff]
      %v1693 = vld [vmem:[%s10 + $0x4c] sm:$0xf]
      %v1694 = vld [vmem:[%s11] sm:$0x1f]
      %v1696 = vlaneseq
      %v1697 = vshrl.u32 %v1696, 7
      %v1698 = vsub.s32 0, %v1697
      %v1699 = vrot.slane %v1694, %v1698
      %v1700 = vlaneseq
      %v1701 = vshrl.u32 %v1700, 7
      %v1702 = vsub.s32 1, %v1701
      %v1703 = vrot.slane %v1694, %v1702
      %v1704 = vlaneseq
      %v1705 = vshrl.u32 %v1704, 7
      %v1706 = vsub.s32 2, %v1705
      %v1707 = vrot.slane %v1694, %v1706
      %v1708 = vlaneseq
      %v1709 = vshrl.u32 %v1708, 7
      %v1710 = vsub.s32 3, %v1709
      %v1711 = vrot.slane %v1694, %v1710
      %v1712 = vlaneseq
      %v1713 = vshrl.u32 %v1712, 7
      %v1714 = vsub.s32 4, %v1713
      %v1715 = vrot.slane %v1694, %v1714
      %v1733 = vunpack.c.l.b16 %v1682
      %v1734 = vunpack.c.h.b16 %v1682
      %v1735 = vunpack.c.l.b16 %v1683
      %v1736 = vunpack.c.h.b16 %v1683
      %v1737 = vunpack.c.l.b16 %v1684
      %v1738 = vunpack.c.l.b16 %v1685
      %v1739 = vunpack.c.h.b16 %v1685
      %v1740 = vunpack.c.l.b16 %v1686
      %v1741 = vunpack.c.h.b16 %v1686
      %v1742 = vunpack.c.l.b16 %v1687
      %v1743 = vunpack.c.l.b16 %v1688
      %v1744 = vunpack.c.h.b16 %v1688
      %v1745 = vunpack.c.l.b16 %v1689
      %v1746 = vunpack.c.h.b16 %v1689
      %v1747 = vunpack.c.l.b16 %v1690
      %v1748 = vunpack.c.l.b16 %v1691
      %v1749 = vunpack.c.h.b16 %v1691
      %v1750 = vunpack.c.l.b16 %v1692
      %v1751 = vunpack.c.h.b16 %v1692
      %v1752 = vunpack.c.l.b16 %v1693
      %v1753 = vpack.c.b16 %v1738, %v1733
      %v1754 = vpack.c.b16 %v1739, %v1734
      %v1755 = vpack.c.b16 %v1740, %v1735
      %v1756 = vpack.c.b16 %v1741, %v1736
      %v1757 = vpack.c.b16 %v1742, %v1737
      %v1758 = vpack.c.b16 %v1748, %v1743
      %v1759 = vpack.c.b16 %v1749, %v1744
      %v1760 = vpack.c.b16 %v1750, %v1745
      %v1761 = vpack.c.b16 %v1751, %v1746
      %v1762 = vpack.c.b16 %v1752, %v1747
      %vm1773 = vcmask 261120
      %v1775 = vsel %vm1773, %v1681, 0
      %1777 = vmatprep.subr.bf16.mxu0 %v1754
      %1778 = vmatpush1.bf16.msra.mxu0 %v1753
      %1779 = vmatprep.subr.bf16.mxu0 %v1759
      %1780 = vmatpush1.bf16.msra.mxu0 %v1758
      %1781 = vmatprep.subr.bf16.mxu0 0
      %1782 = vmatpush1.bf16.msra.mxu0 0
      %1783 = vmatprep.subr.bf16.mxu0 0
      %1784 = vmatpush1.bf16.msra.mxu0 0
      %1785 = vmatprep.subr.bf16.mxu0 0
      %1786 = vmatpush1.bf16.msra.mxu0 0
      %1787 = vmatprep.subr.bf16.mxu0 0
      %1788 = vmatpush1.bf16.msra.mxu0 0
      %1789 = vmatprep.subr.bf16.mxu0 0
      %1790 = vmatpush1.bf16.msra.mxu0 0
      %1791 = vmatprep.subr.bf16.mxu0 0
      %1792 = vmatpush1.bf16.msra.mxu0 0
      %1793 = vmatprep.subr.bf16.mxu0 0
      %1794 = vmatpush1.bf16.msra.mxu0 0
      %1795 = vmatprep.subr.bf16.mxu0 0
      %1796 = vmatpush1.bf16.msra.mxu0 0
      %1797 = vmatprep.subr.bf16.mxu0 0
      %1798 = vmatpush1.bf16.msra.mxu0 0
      %1799 = vmatprep.subr.bf16.mxu0 0
      %1800 = vmatpush1.bf16.msra.mxu0 0
      %1801 = vmatprep.subr.bf16.mxu0 0
      %1802 = vmatpush1.bf16.msra.mxu0 0
      %1803 = vmatprep.subr.bf16.mxu0 0
      %1804 = vmatpush1.bf16.msra.mxu0 0
      %1805 = vmatprep.subr.bf16.mxu0 0
      %1806 = vmatpush1.bf16.msra.mxu0 0
      %1807 = vmatprep.subr.bf16.mxu0 0
      %1808 = vmatpush1.bf16.msra.mxu0 0
      %1809 = vmatprep.mubr.bf16.mxu0 0
      %1810 = vmatmul.mubr.bf16.gmra.mrb[0].mxu0 %v1775
      %v1811 = vpop.f32.mrb[0].mxu0
      %v1812 = vadd.f32 %v1699, %v1811
      %v1813 = vpop.f32.mrb[0].mxu0
      %v1814 = vadd.f32 %v1703, %v1813
      %v1815 = vpop.f32.mrb[0].mxu0
      %v1816 = vadd.f32 %v1699, %v1815
      %v1817 = vpop.f32.mrb[0].mxu0
      %v1818 = vadd.f32 %v1703, %v1817
      %1819 = vdwg.mxu0
      %1820 = vmatprep.subr.bf16.mxu0 %v1756
      %1821 = vmatpush1.bf16.msra.mxu0 %v1755
      %1822 = vmatprep.subr.bf16.mxu0 %v1761
      %1823 = vmatpush1.bf16.msra.mxu0 %v1760
      %1824 = vmatprep.subr.bf16.mxu0 0
      %1825 = vmatpush1.bf16.msra.mxu0 0
      %1826 = vmatprep.subr.bf16.mxu0 0
      %1827 = vmatpush1.bf16.msra.mxu0 0
      %1828 = vmatprep.subr.bf16.mxu0 0
      %1829 = vmatpush1.bf16.msra.mxu0 0
      %1830 = vmatprep.subr.bf16.mxu0 0
      %1831 = vmatpush1.bf16.msra.mxu0 0
      %1832 = vmatprep.subr.bf16.mxu0 0
      %1833 = vmatpush1.bf16.msra.mxu0 0
      %1834 = vmatprep.subr.bf16.mxu0 0
      %1835 = vmatpush1.bf16.msra.mxu0 0
      %1836 = vmatprep.subr.bf16.mxu0 0
      %1837 = vmatpush1.bf16.msra.mxu0 0
      %1838 = vmatprep.subr.bf16.mxu0 0
      %1839 = vmatpush1.bf16.msra.mxu0 0
      %1840 = vmatprep.subr.bf16.mxu0 0
      %1841 = vmatpush1.bf16.msra.mxu0 0
      %1842 = vmatprep.subr.bf16.mxu0 0
      %1843 = vmatpush1.bf16.msra.mxu0 0
      %1844 = vmatprep.subr.bf16.mxu0 0
      %1845 = vmatpush1.bf16.msra.mxu0 0
      %1846 = vmatprep.subr.bf16.mxu0 0
      %1847 = vmatpush1.bf16.msra.mxu0 0
      %1848 = vmatprep.subr.bf16.mxu0 0
      %1849 = vmatpush1.bf16.msra.mxu0 0
      %1850 = vmatprep.subr.bf16.mxu0 0
      %1851 = vmatpush1.bf16.msra.mxu0 0
      %1852 = vmatprep.mubr.bf16.mxu0 0
      %1853 = vmatmul.mubr.bf16.gmra.mrb[0].mxu0 %v1775
      %v1854 = vpop.f32.mrb[0].mxu0
      %v1855 = vadd.f32 %v1707, %v1854
      %v1856 = vpop.f32.mrb[0].mxu0
      %v1857 = vadd.f32 %v1711, %v1856
      %v1858 = vpop.f32.mrb[0].mxu0
      %v1859 = vadd.f32 %v1707, %v1858
      %v1860 = vpop.f32.mrb[0].mxu0
      %v1861 = vadd.f32 %v1711, %v1860
      %1862 = vdwg.mxu0
      %1863 = vmatprep.subr.bf16.mxu0 0
      %1864 = vmatpush1.bf16.msra.mxu0 %v1757
      %1865 = vmatprep.subr.bf16.mxu0 0
      %1866 = vmatpush1.bf16.msra.mxu0 %v1762
      %1867 = vmatprep.subr.bf16.mxu0 0
      %1868 = vmatpush1.bf16.msra.mxu0 0
      %1869 = vmatprep.subr.bf16.mxu0 0
      %1870 = vmatpush1.bf16.msra.mxu0 0
      %1871 = vmatprep.subr.bf16.mxu0 0
      %1872 = vmatpush1.bf16.msra.mxu0 0
      %1873 = vmatprep.subr.bf16.mxu0 0
      %1874 = vmatpush1.bf16.msra.mxu0 0
      %1875 = vmatprep.subr.bf16.mxu0 0
      %1876 = vmatpush1.bf16.msra.mxu0 0
      %1877 = vmatprep.subr.bf16.mxu0 0
      %1878 = vmatpush1.bf16.msra.mxu0 0
      %1879 = vmatprep.subr.bf16.mxu0 0
      %1880 = vmatpush1.bf16.msra.mxu0 0
      %1881 = vmatprep.subr.bf16.mxu0 0
      %1882 = vmatpush1.bf16.msra.mxu0 0
      %1883 = vmatprep.subr.bf16.mxu0 0
      %1884 = vmatpush1.bf16.msra.mxu0 0
      %1885 = vmatprep.subr.bf16.mxu0 0
      %1886 = vmatpush1.bf16.msra.mxu0 0
      %1887 = vmatprep.subr.bf16.mxu0 0
      %1888 = vmatpush1.bf16.msra.mxu0 0
      %1889 = vmatprep.subr.bf16.mxu0 0
      %1890 = vmatpush1.bf16.msra.mxu0 0
      %1891 = vmatprep.subr.bf16.mxu0 0
      %1892 = vmatpush1.bf16.msra.mxu0 0
      %1893 = vmatprep.subr.bf16.mxu0 0
      %1894 = vmatpush1.bf16.msra.mxu0 0
      %1895 = vmatprep.mubr.bf16.mxu0 0
      %1896 = vmatmul.mubr.bf16.gmra.mrb[0].mxu0 %v1775
      %v1897 = vpop.f32.mrb[0].mxu0
      %v1898 = vadd.f32 %v1715, %v1897
      %v1899 = vpop.f32.mrb[0].mxu0
      %v1900 = vpop.f32.mrb[0].mxu0
      %v1901 = vadd.f32 %v1715, %v1900
      %v1902 = vpop.f32.mrb[0].mxu0
      %1903 = vdwg.mxu0
      %1904 = vst [vmem:[%s413] sm:$0xff] %v1812
      %1905 = vst [vmem:[%s413 + $0x8] sm:$0xff] %v1814
      %1906 = vst [vmem:[%s413 + $0x10] sm:$0xff] %v1855
      %1907 = vst [vmem:[%s413 + $0x18] sm:$0xff] %v1857
      %1908 = vst [vmem:[%s413 + $0x20] sm:$0xff] %v1898
      %1909 = vst [vmem:[%s413 + $0x28] sm:$0xff] %v1816
      %1910 = vst [vmem:[%s413 + $0x30] sm:$0xff] %v1818
      %1911 = vst [vmem:[%s413 + $0x38] sm:$0xff] %v1859
      %1912 = vst [vmem:[%s413 + $0x40] sm:$0xff] %v1861
      %1913 = vst [vmem:[%s413 + $0x48] sm:$0xff] %v1901
      %p1914 = scmp.lt.s32.totalorder %s23, 1
      %s1915 = scalar_select %p1914, %s23, 1
      %s1916 = smul.addr %s1915, 10
      %s1917 = smul.addr %s1916, 8
      %s1918 = scalar_lea.vmem %s12, %s1917
      // Predicated region
      $region69: #{regime_detector_forward.2} parent=67 // pred_check
        %p1919 = pneg %p298
      $region70: #{regime_detector_forward.2} parent=67 // pred_check_branch
        %1921 = sbr.rel (%p1919) target = $region72
      $region71: #{regime_detector_forward.2} parent=67 // pred_region
        _
      $region72: #{regime_detector_forward.2} parent=67 // pred_fallthru
        _
    $region68: #{regime_detector_forward.2} parent=5 // pred_fallthru
      _
    %p1922 = scmp.le.s32.totalorder 2, %s18
    // Predicated region
    $region73: #{regime_detector_forward.2} parent=5 // pred_check
      %p1923 = pneg %p1922
    $region74: #{regime_detector_forward.2} parent=5 // pred_check_branch
      %1925 = sbr.rel (%p1923) target = $region76
    $region75: #{regime_detector_forward.2} parent=5 // pred_region
      %s1926 = ssub.s32 %s18, 2
      // Predicated region
      $region77: #{regime_detector_forward.2} parent=75 // pred_check
        %p1927 = pneg %p304
      $region78: #{regime_detector_forward.2} parent=75 // pred_check_branch
        %1929 = sbr.rel (%p1927) target = $region80
      $region79: #{regime_detector_forward.2} parent=75 // pred_region
        %p1930 = scmp.lt.s32.totalorder %s24, 1
        %s1931 = scalar_select %p1930, %s24, 1
        %s1932 = smul.addr %s1931, 10
        %s1933 = smul.addr %s1932, 8
        %s1934 = scalar_lea.vmem %s12, %s1933
      $region80: #{regime_detector_forward.2} parent=75 // pred_fallthru
        _
    $region76: #{regime_detector_forward.2} parent=5 // pred_fallthru
      _
  $region6: #{regime_detector_forward.2} parent=0 // loop_footer
    %s22 = sadd.s32 1, %s18
  $region7: #{regime_detector_forward.2} parent=0 // loop_footer_branch
    %17 = sbr.rel target = $region3
  $region8: #{regime_detector_forward.2} parent=0 // loop_exit
    _

// kernel: regime_detector_forward.3
$region0: #{regime_detector_forward.3}
  #allocation0 [shape = 'u32[]', space=smem, size = 0x4, offset = 0x4, fixed_abs, tag = 'smem constant byte address 0x4 - core index']
  #allocation1 [shape = 'u32[144,128]{1,0:T(1,128)}', space=vmem, size = 0x12000, scoped, tag = 'internal scratch']
  %s0 = inlined_call_operand.vmem [shape: f32[16,2,640], index: 0, kind: input, shape index: {}]
  %s1 = inlined_call_operand.vmem [shape: bf16[160,640], index: 1, kind: input, shape index: {}]
  %s2 = inlined_call_operand.vmem [shape: f32[160,64], index: 2, kind: input, shape index: {}]
  %s3 = inlined_call_operand.vmem [shape: f32[1,64], index: 3, kind: input, shape index: {}]
  %s4 = inlined_call_operand.vmem [shape: f32[64,5], index: 4, kind: input, shape index: {}]
  %s5 = inlined_call_operand.vmem [shape: f32[1,5], index: 5, kind: input, shape index: {}]
  %s6 = inlined_call_operand.hbm [shape: f32[2,5], index: 6, kind: output, shape index: {}]
  %s7 = sld [smem:[#allocation0]]
  $region34: #{regime_detector_forward.3} parent=0
    _
  %s9 = ssub.s32 1, %s7
  %s10 = scalar_select 0, %s9, %s7
  $region1: #{regime_detector_forward.3} parent=0
    #allocation2 [shape = 'u8[1024]{0}', space=vmem, size = 0x400, scoped, tag = 'output window, operand 0, single buffered']
    #allocation3 [shape = 's32[1]{0}', space=sflag, size = 0x4, scoped, tag = 'scoped memory for regime_detector_forward.3']
    %11 = vsyncpa [#allocation3], 0
    // Predicated region
    $region2: #{regime_detector_forward.3} parent=1 // pred_check
      _
    $region3: #{regime_detector_forward.3} parent=1 // pred_check_branch
      %13 = sbr.rel (0) target = $region5
    $region4: #{regime_detector_forward.3} parent=1 // pred_region
      _
    $region5: #{regime_detector_forward.3} parent=1 // pred_fallthru
      _
    // Predicated region
    $region6: #{regime_detector_forward.3} parent=1 // pred_check
      _
    $region7: #{regime_detector_forward.3} parent=1 // pred_check_branch
      %15 = sbr.rel (0) target = $region9
    $region8: #{regime_detector_forward.3} parent=1 // pred_region
      _
    $region9: #{regime_detector_forward.3} parent=1 // pred_fallthru
      _
    // Predicated region
    $region10: #{regime_detector_forward.3} parent=1 // pred_check
      _
    $region11: #{regime_detector_forward.3} parent=1 // pred_check_branch
      %17 = sbr.rel (0) target = $region13
    $region12: #{regime_detector_forward.3} parent=1 // pred_region
      _
    $region13: #{regime_detector_forward.3} parent=1 // pred_fallthru
      _
    // Predicated region
    $region14: #{regime_detector_forward.3} parent=1 // pred_check
      _
    $region15: #{regime_detector_forward.3} parent=1 // pred_check_branch
      %19 = sbr.rel (0) target = $region17
    $region16: #{regime_detector_forward.3} parent=1 // pred_region
      _
    $region17: #{regime_detector_forward.3} parent=1 // pred_fallthru
      _
    // Predicated region
    $region18: #{regime_detector_forward.3} parent=1 // pred_check
      _
    $region19: #{regime_detector_forward.3} parent=1 // pred_check_branch
      %21 = sbr.rel (0) target = $region21
    $region20: #{regime_detector_forward.3} parent=1 // pred_region
      _
    $region21: #{regime_detector_forward.3} parent=1 // pred_fallthru
      _
    // Predicated region
    $region22: #{regime_detector_forward.3} parent=1 // pred_check
      _
    $region23: #{regime_detector_forward.3} parent=1 // pred_check_branch
      %23 = sbr.rel (0) target = $region25
    $region24: #{regime_detector_forward.3} parent=1 // pred_region
      _
    $region25: #{regime_detector_forward.3} parent=1 // pred_fallthru
      _
    %v25 = vlaneseq
    %v26 = vand.u32 %v25, 127
    %v27 = vadd.s32 %v26, 128
    %v28 = vadd.s32 %v26, 256
    %v29 = vadd.s32 %v26, 384
    %v30 = vadd.s32 %v26, 512
    %vm31 = vcmp.lt.s32.totalorder %v26, 0
    %v32 = vsub.s32 0, %v26
    %v33 = vsel %vm31, %v32, %v26
    %v34 = vmul.u32.u64.compose %v33, 3435973837
    %v35 = vextract.low.u32 %v34
    %v36 = vextract.high.u32 %v34
    %v37 = vshrl.u32 %v36, 7
    %v38 = vmul.u32 %v37, 160
    %v39 = vsub.s32 %v33, %v38
    %v40 = vsub.s32 0, %v39
    %v41 = vsel %vm31, %v40, %v39
    %vm42 = vcmp.lt.s32.totalorder %v27, 0
    %v43 = vsub.s32 0, %v27
    %v44 = vsel %vm42, %v43, %v27
    %v45 = vmul.u32.u64.compose %v44, 3435973837
    %v46 = vextract.low.u32 %v45
    %v47 = vextract.high.u32 %v45
    %v48 = vshrl.u32 %v47, 7
    %v49 = vmul.u32 %v48, 160
    %v50 = vsub.s32 %v44, %v49
    %v51 = vsub.s32 0, %v50
    %v52 = vsel %vm42, %v51, %v50
    %vm53 = vcmp.lt.s32.totalorder %v28, 0
    %v54 = vsub.s32 0, %v28
    %v55 = vsel %vm53, %v54, %v28
    %v56 = vmul.u32.u64.compose %v55, 3435973837
    %v57 = vextract.low.u32 %v56
    %v58 = vextract.high.u32 %v56
    %v59 = vshrl.u32 %v58, 7
    %v60 = vmul.u32 %v59, 160
    %v61 = vsub.s32 %v55, %v60
    %v62 = vsub.s32 0, %v61
    %v63 = vsel %vm53, %v62, %v61
    %vm64 = vcmp.lt.s32.totalorder %v29, 0
    %v65 = vsub.s32 0, %v29
    %v66 = vsel %vm64, %v65, %v29
    %v67 = vmul.u32.u64.compose %v66, 3435973837
    %v68 = vextract.low.u32 %v67
    %v69 = vextract.high.u32 %v67
    %v70 = vshrl.u32 %v69, 7
    %v71 = vmul.u32 %v70, 160
    %v72 = vsub.s32 %v66, %v71
    %v73 = vsub.s32 0, %v72
    %v74 = vsel %vm64, %v73, %v72
    %vm75 = vcmp.lt.s32.totalorder %v30, 0
    %v76 = vsub.s32 0, %v30
    %v77 = vsel %vm75, %v76, %v30
    %v78 = vmul.u32.u64.compose %v77, 3435973837
    %v79 = vextract.low.u32 %v78
    %v80 = vextract.high.u32 %v78
    %v81 = vshrl.u32 %v80, 7
    %v82 = vmul.u32 %v81, 160
    %v83 = vsub.s32 %v77, %v82
    %v84 = vsub.s32 0, %v83
    %v85 = vsel %vm75, %v84, %v83
    %vm86 = vcmp.ne.s32.totalorder %v41, 0
    %vm87 = vcmp.ne.s32.totalorder %v52, 0
    %vm88 = vcmp.ne.s32.totalorder %v63, 0
    %vm89 = vcmp.ne.s32.totalorder %v74, 0
    %vm90 = vcmp.ne.s32.totalorder %v85, 0
    %vm91 = vcmp.lt.s32.totalorder %v41, 0
    %vm92 = vcmp.lt.s32.totalorder %v52, 0
    %vm93 = vcmp.lt.s32.totalorder %v63, 0
    %vm94 = vcmp.lt.s32.totalorder %v74, 0
    %vm95 = vcmp.lt.s32.totalorder %v85, 0
    %vm96 = vmand %vm91, %vm86
    %vm97 = vmand %vm92, %vm87
    %vm98 = vmand %vm93, %vm88
    %vm99 = vmand %vm94, %vm89
    %vm100 = vmand %vm95, %vm90
    %v101 = vadd.s32 %v41, 160
    %v102 = vadd.s32 %v52, 160
    %v103 = vadd.s32 %v63, 160
    %v104 = vadd.s32 %v74, 160
    %v105 = vadd.s32 %v85, 160
    %v106 = vsel %vm96, %v101, %v41
    %v107 = vsel %vm97, %v102, %v52
    %v108 = vsel %vm98, %v103, %v63
    %v109 = vsel %vm99, %v104, %v74
    %v110 = vsel %vm100, %v105, %v85
    %vm111 = vcmp.lt.s32.totalorder %v106, 80
    %vm112 = vcmp.lt.s32.totalorder %v107, 80
    %vm113 = vcmp.lt.s32.totalorder %v108, 80
    %vm114 = vcmp.lt.s32.totalorder %v109, 80
    %vm115 = vcmp.lt.s32.totalorder %v110, 80
    %v116 = vld [vmem:[%s1] sm:$0xff]
    %v117 = vld [vmem:[%s1 + $0x8] sm:$0xff]
    %v118 = vld [vmem:[%s1 + $0x10] sm:$0xf]
    %v119 = vld [vmem:[%s1 + $0x14] sm:$0xff]
    %v120 = vld [vmem:[%s1 + $0x1c] sm:$0xff]
    %v121 = vld [vmem:[%s1 + $0x24] sm:$0xf]
    %v122 = vld [vmem:[%s1 + $0x28] sm:$0xff]
    %v123 = vld [vmem:[%s1 + $0x30] sm:$0xff]
    %v124 = vld [vmem:[%s1 + $0x38] sm:$0xf]
    %v125 = vld [vmem:[%s1 + $0x3c] sm:$0xff]
    %v126 = vld [vmem:[%s1 + $0x44] sm:$0xff]
    %v127 = vld [vmem:[%s1 + $0x4c] sm:$0xf]
    %v128 = vld [vmem:[%s1 + $0x50] sm:$0xff]
    %v129 = vld [vmem:[%s1 + $0x58] sm:$0xff]
    %v130 = vld [vmem:[%s1 + $0x60] sm:$0xf]
    %v131 = vld [vmem:[%s1 + $0x64] sm:$0xff]
    %v132 = vld [vmem:[%s1 + $0x6c] sm:$0xff]
    %v133 = vld [vmem:[%s1 + $0x74] sm:$0xf]
    %v134 = vld [vmem:[%s1 + $0x78] sm:$0xff]
    %v135 = vld [vmem:[%s1 + $0x80] sm:$0xff]
    %v136 = vld [vmem:[%s1 + $0x88] sm:$0xf]
    %v137 = vld [vmem:[%s1 + $0x8c] sm:$0xff]
    %v138 = vld [vmem:[%s1 + $0x94] sm:$0xff]
    %v139 = vld [vmem:[%s1 + $0x9c] sm:$0xf]
    %v140 = vld [vmem:[%s1 + $0xa0] sm:$0xff]
    %v141 = vld [vmem:[%s1 + $0xa8] sm:$0xff]
    %v142 = vld [vmem:[%s1 + $0xb0] sm:$0xf]
    %v143 = vld [vmem:[%s1 + $0xb4] sm:$0xff]
    %v144 = vld [vmem:[%s1 + $0xbc] sm:$0xff]
    %v145 = vld [vmem:[%s1 + $0xc4] sm:$0xf]
    %v146 = vld [vmem:[%s1 + $0xc8] sm:$0xff]
    %v147 = vld [vmem:[%s1 + $0xd0] sm:$0xff]
    %v148 = vld [vmem:[%s1 + $0xd8] sm:$0xf]
    %v149 = vld [vmem:[%s1 + $0xdc] sm:$0xff]
    %v150 = vld [vmem:[%s1 + $0xe4] sm:$0xff]
    %v151 = vld [vmem:[%s1 + $0xec] sm:$0xf]
    %v152 = vld [vmem:[%s1 + $0xf0] sm:$0xff]
    %v153 = vld [vmem:[%s1 + $0xf8] sm:$0xff]
    %v154 = vld [vmem:[%s1 + $0x100] sm:$0xf]
    %v155 = vld [vmem:[%s1 + $0x104] sm:$0xff]
    %v156 = vld [vmem:[%s1 + $0x10c] sm:$0xff]
    %v157 = vld [vmem:[%s1 + $0x114] sm:$0xf]
    %v158 = vld [vmem:[%s1 + $0x118] sm:$0xff]
    %v159 = vld [vmem:[%s1 + $0x120] sm:$0xff]
    %v160 = vld [vmem:[%s1 + $0x128] sm:$0xf]
    %v161 = vld [vmem:[%s1 + $0x12c] sm:$0xff]
    %v162 = vld [vmem:[%s1 + $0x134] sm:$0xff]
    %v163 = vld [vmem:[%s1 + $0x13c] sm:$0xf]
    %v164 = vld [vmem:[%s1 + $0x140] sm:$0xff]
    %v165 = vld [vmem:[%s1 + $0x148] sm:$0xff]
    %v166 = vld [vmem:[%s1 + $0x150] sm:$0xf]
    %v167 = vld [vmem:[%s1 + $0x154] sm:$0xff]
    %v168 = vld [vmem:[%s1 + $0x15c] sm:$0xff]
    %v169 = vld [vmem:[%s1 + $0x164] sm:$0xf]
    %v170 = vld [vmem:[%s1 + $0x168] sm:$0xff]
    %v171 = vld [vmem:[%s1 + $0x170] sm:$0xff]
    %v172 = vld [vmem:[%s1 + $0x178] sm:$0xf]
    %v173 = vld [vmem:[%s1 + $0x17c] sm:$0xff]
    %v174 = vld [vmem:[%s1 + $0x184] sm:$0xff]
    %v175 = vld [vmem:[%s1 + $0x18c] sm:$0xf]
    %v176 = vld [vmem:[%s0] sm:$0xff]
    %v177 = vld [vmem:[%s0 + $0x8] sm:$0x3]
    %s178 = scalar_lea.vmem %s0, 150
    %v179 = vld [vmem:[%s178] sm:$0xff]
    %v180 = vld [vmem:[%s178 + $0x8] sm:$0x3]
    %v183 = vcombine.high %v176, %v176
    %v185 = vunpack.c.l.s4 1983009808
    %v186 = vunpack.c.0.s8 %v185
    %v187 = vlaneseq
    %v188 = vshrl.u32 %v187, 7
    %v189 = vsub.s32 %v186, %v188
    %v190 = vrot.slane %v176, %v189
    %v192 = vunpack.c.l.s4 1983009808
    %v193 = vunpack.c.0.s8 %v192
    %v194 = vlaneseq
    %v195 = vshrl.u32 %v194, 7
    %v196 = vsub.s32 %v193, %v195
    %v197 = vrot.slane %v183, %v196
    %v198 = vcombine.high %v190, %v190
    %v199 = vcombine.high %v197, %v197
    %v201 = vunpack.c.l.s4 1983009808
    %v202 = vunpack.c.0.s8 %v201
    %v203 = vlaneseq
    %v204 = vshrl.u32 %v203, 7
    %v205 = vsub.s32 %v202, %v204
    %v206 = vrot.slane %v177, %v205
    %v214 = vcombine.high %v179, %v179
    %v216 = vunpack.c.l.s4 1983009808
    %v217 = vunpack.c.0.s8 %v216
    %v218 = vlaneseq
    %v219 = vshrl.u32 %v218, 7
    %v220 = vsub.s32 %v217, %v219
    %v221 = vrot.slane %v179, %v220
    %v223 = vunpack.c.l.s4 1983009808
    %v224 = vunpack.c.0.s8 %v223
    %v225 = vlaneseq
    %v226 = vshrl.u32 %v225, 7
    %v227 = vsub.s32 %v224, %v226
    %v228 = vrot.slane %v214, %v227
    %v229 = vcombine.high %v221, %v221
    %v230 = vcombine.high %v228, %v228
    %v232 = vunpack.c.l.s4 1983009808
    %v233 = vunpack.c.0.s8 %v232
    %v234 = vlaneseq
    %v235 = vshrl.u32 %v234, 7
    %v236 = vsub.s32 %v233, %v235
    %v237 = vrot.slane %v180, %v236
    %v243 = vsel %vm111, %v190, %v221
    %v244 = vsel %vm112, %v198, %v229
    %v245 = vsel %vm113, %v197, %v228
    %v246 = vsel %vm114, %v199, %v230
    %v247 = vsel %vm115, %v206, %v237
    %v308 = vunpack.c.l.b16 %v116
    %v309 = vunpack.c.h.b16 %v116
    %v310 = vunpack.c.l.b16 %v117
    %v311 = vunpack.c.h.b16 %v117
    %v312 = vunpack.c.l.b16 %v118
    %v313 = vunpack.c.l.b16 %v119
    %v314 = vunpack.c.h.b16 %v119
    %v315 = vunpack.c.l.b16 %v120
    %v316 = vunpack.c.h.b16 %v120
    %v317 = vunpack.c.l.b16 %v121
    %v318 = vunpack.c.l.b16 %v122
    %v319 = vunpack.c.h.b16 %v122
    %v320 = vunpack.c.l.b16 %v123
    %v321 = vunpack.c.h.b16 %v123
    %v322 = vunpack.c.l.b16 %v124
    %v323 = vunpack.c.l.b16 %v125
    %v324 = vunpack.c.h.b16 %v125
    %v325 = vunpack.c.l.b16 %v126
    %v326 = vunpack.c.h.b16 %v126
    %v327 = vunpack.c.l.b16 %v127
    %v328 = vunpack.c.l.b16 %v128
    %v329 = vunpack.c.h.b16 %v128
    %v330 = vunpack.c.l.b16 %v129
    %v331 = vunpack.c.h.b16 %v129
    %v332 = vunpack.c.l.b16 %v130
    %v333 = vunpack.c.l.b16 %v131
    %v334 = vunpack.c.h.b16 %v131
    %v335 = vunpack.c.l.b16 %v132
    %v336 = vunpack.c.h.b16 %v132
    %v337 = vunpack.c.l.b16 %v133
    %v338 = vunpack.c.l.b16 %v134
    %v339 = vunpack.c.h.b16 %v134
    %v340 = vunpack.c.l.b16 %v135
    %v341 = vunpack.c.h.b16 %v135
    %v342 = vunpack.c.l.b16 %v136
    %v343 = vunpack.c.l.b16 %v137
    %v344 = vunpack.c.h.b16 %v137
    %v345 = vunpack.c.l.b16 %v138
    %v346 = vunpack.c.h.b16 %v138
    %v347 = vunpack.c.l.b16 %v139
    %v348 = vunpack.c.l.b16 %v140
    %v349 = vunpack.c.h.b16 %v140
    %v350 = vunpack.c.l.b16 %v141
    %v351 = vunpack.c.h.b16 %v141
    %v352 = vunpack.c.l.b16 %v142
    %v353 = vunpack.c.l.b16 %v143
    %v354 = vunpack.c.h.b16 %v143
    %v355 = vunpack.c.l.b16 %v144
    %v356 = vunpack.c.h.b16 %v144
    %v357 = vunpack.c.l.b16 %v145
    %v358 = vunpack.c.l.b16 %v146
    %v359 = vunpack.c.h.b16 %v146
    %v360 = vunpack.c.l.b16 %v147
    %v361 = vunpack.c.h.b16 %v147
    %v362 = vunpack.c.l.b16 %v148
    %v363 = vunpack.c.l.b16 %v149
    %v364 = vunpack.c.h.b16 %v149
    %v365 = vunpack.c.l.b16 %v150
    %v366 = vunpack.c.h.b16 %v150
    %v367 = vunpack.c.l.b16 %v151
    %v368 = vunpack.c.l.b16 %v152
    %v369 = vunpack.c.h.b16 %v152
    %v370 = vunpack.c.l.b16 %v153
    %v371 = vunpack.c.h.b16 %v153
    %v372 = vunpack.c.l.b16 %v154
    %v373 = vunpack.c.l.b16 %v155
    %v374 = vunpack.c.h.b16 %v155
    %v375 = vunpack.c.l.b16 %v156
    %v376 = vunpack.c.h.b16 %v156
    %v377 = vunpack.c.l.b16 %v157
    %v378 = vunpack.c.l.b16 %v158
    %v379 = vunpack.c.h.b16 %v158
    %v380 = vunpack.c.l.b16 %v159
    %v381 = vunpack.c.h.b16 %v159
    %v382 = vunpack.c.l.b16 %v160
    %v383 = vunpack.c.l.b16 %v161
    %v384 = vunpack.c.h.b16 %v161
    %v385 = vunpack.c.l.b16 %v162
    %v386 = vunpack.c.h.b16 %v162
    %v387 = vunpack.c.l.b16 %v163
    %v388 = vunpack.c.l.b16 %v164
    %v389 = vunpack.c.h.b16 %v164
    %v390 = vunpack.c.l.b16 %v165
    %v391 = vunpack.c.h.b16 %v165
    %v392 = vunpack.c.l.b16 %v166
    %v393 = vunpack.c.l.b16 %v167
    %v394 = vunpack.c.h.b16 %v167
    %v395 = vunpack.c.l.b16 %v168
    %v396 = vunpack.c.h.b16 %v168
    %v397 = vunpack.c.l.b16 %v169
    %v398 = vunpack.c.l.b16 %v170
    %v399 = vunpack.c.h.b16 %v170
    %v400 = vunpack.c.l.b16 %v171
    %v401 = vunpack.c.h.b16 %v171
    %v402 = vunpack.c.l.b16 %v172
    %v403 = vunpack.c.l.b16 %v173
    %v404 = vunpack.c.h.b16 %v173
    %v405 = vunpack.c.l.b16 %v174
    %v406 = vunpack.c.h.b16 %v174
    %v407 = vunpack.c.l.b16 %v175
    %v408 = vpack.c.b16 %v313, %v308
    %v409 = vpack.c.b16 %v314, %v309
    %v410 = vpack.c.b16 %v315, %v310
    %v411 = vpack.c.b16 %v316, %v311
    %v412 = vpack.c.b16 %v317, %v312
    %v413 = vpack.c.b16 %v323, %v318
    %v414 = vpack.c.b16 %v324, %v319
    %v415 = vpack.c.b16 %v325, %v320
    %v416 = vpack.c.b16 %v326, %v321
    %v417 = vpack.c.b16 %v327, %v322
    %v418 = vpack.c.b16 %v333, %v328
    %v419 = vpack.c.b16 %v334, %v329
    %v420 = vpack.c.b16 %v335, %v330
    %v421 = vpack.c.b16 %v336, %v331
    %v422 = vpack.c.b16 %v337, %v332
    %v423 = vpack.c.b16 %v343, %v338
    %v424 = vpack.c.b16 %v344, %v339
    %v425 = vpack.c.b16 %v345, %v340
    %v426 = vpack.c.b16 %v346, %v341
    %v427 = vpack.c.b16 %v347, %v342
    %v428 = vpack.c.b16 %v353, %v348
    %v429 = vpack.c.b16 %v354, %v349
    %v430 = vpack.c.b16 %v355, %v350
    %v431 = vpack.c.b16 %v356, %v351
    %v432 = vpack.c.b16 %v357, %v352
    %v433 = vpack.c.b16 %v363, %v358
    %v434 = vpack.c.b16 %v364, %v359
    %v435 = vpack.c.b16 %v365, %v360
    %v436 = vpack.c.b16 %v366, %v361
    %v437 = vpack.c.b16 %v367, %v362
    %v438 = vpack.c.b16 %v373, %v368
    %v439 = vpack.c.b16 %v374, %v369
    %v440 = vpack.c.b16 %v375, %v370
    %v441 = vpack.c.b16 %v376, %v371
    %v442 = vpack.c.b16 %v377, %v372
    %v443 = vpack.c.b16 %v383, %v378
    %v444 = vpack.c.b16 %v384, %v379
    %v445 = vpack.c.b16 %v385, %v380
    %v446 = vpack.c.b16 %v386, %v381
    %v447 = vpack.c.b16 %v387, %v382
    %v448 = vpack.c.b16 %v393, %v388
    %v449 = vpack.c.b16 %v394, %v389
    %v450 = vpack.c.b16 %v395, %v390
    %v451 = vpack.c.b16 %v396, %v391
    %v452 = vpack.c.b16 %v397, %v392
    %v453 = vpack.c.b16 %v403, %v398
    %v454 = vpack.c.b16 %v404, %v399
    %v455 = vpack.c.b16 %v405, %v400
    %v456 = vpack.c.b16 %v406, %v401
    %v457 = vpack.c.b16 %v407, %v402
    %vm508 = vcmask 261120
    %v510 = vsel %vm508, 0, 0
    %512 = vmatprep.subr.bf16.mxu0 %v409
    %513 = vmatpush1.bf16.msra.mxu0 %v408
    %514 = vmatprep.subr.bf16.mxu0 %v414
    %515 = vmatpush1.bf16.msra.mxu0 %v413
    %516 = vmatprep.subr.bf16.mxu0 %v419
    %517 = vmatpush1.bf16.msra.mxu0 %v418
    %518 = vmatprep.subr.bf16.mxu0 %v424
    %519 = vmatpush1.bf16.msra.mxu0 %v423
    %520 = vmatprep.subr.bf16.mxu0 %v429
    %521 = vmatpush1.bf16.msra.mxu0 %v428
    %522 = vmatprep.subr.bf16.mxu0 %v434
    %523 = vmatpush1.bf16.msra.mxu0 %v433
    %524 = vmatprep.subr.bf16.mxu0 %v439
    %525 = vmatpush1.bf16.msra.mxu0 %v438
    %526 = vmatprep.subr.bf16.mxu0 %v444
    %527 = vmatpush1.bf16.msra.mxu0 %v443
    %528 = vmatprep.subr.bf16.mxu0 %v449
    %529 = vmatpush1.bf16.msra.mxu0 %v448
    %530 = vmatprep.subr.bf16.mxu0 %v454
    %531 = vmatpush1.bf16.msra.mxu0 %v453
    %532 = vmatprep.subr.bf16.mxu0 0
    %533 = vmatpush1.bf16.msra.mxu0 0
    %534 = vmatprep.subr.bf16.mxu0 0
    %535 = vmatpush1.bf16.msra.mxu0 0
    %536 = vmatprep.subr.bf16.mxu0 0
    %537 = vmatpush1.bf16.msra.mxu0 0
    %538 = vmatprep.subr.bf16.mxu0 0
    %539 = vmatpush1.bf16.msra.mxu0 0
    %540 = vmatprep.subr.bf16.mxu0 0
    %541 = vmatpush1.bf16.msra.mxu0 0
    %542 = vmatprep.subr.bf16.mxu0 0
    %543 = vmatpush1.bf16.msra.mxu0 0
    %544 = vmatprep.mubr.bf16.mxu0 %v510
    %545 = vmatmul.mubr.bf16.gmra.mrb[0].mxu0 0
    %v546 = vpop.f32.mrb[0].mxu0
    %v547 = vadd.f32 %v243, %v546
    %v548 = vpop.f32.mrb[0].mxu0
    %v549 = vadd.f32 %v244, %v548
    %v550 = vpop.f32.mrb[0].mxu0
    %v551 = vpop.f32.mrb[0].mxu0
    %552 = vdwg.mxu0
    %553 = vmatprep.subr.bf16.mxu0 %v411
    %554 = vmatpush1.bf16.msra.mxu0 %v410
    %555 = vmatprep.subr.bf16.mxu0 %v416
    %556 = vmatpush1.bf16.msra.mxu0 %v415
    %557 = vmatprep.subr.bf16.mxu0 %v421
    %558 = vmatpush1.bf16.msra.mxu0 %v420
    %559 = vmatprep.subr.bf16.mxu0 %v426
    %560 = vmatpush1.bf16.msra.mxu0 %v425
    %561 = vmatprep.subr.bf16.mxu0 %v431
    %562 = vmatpush1.bf16.msra.mxu0 %v430
    %563 = vmatprep.subr.bf16.mxu0 %v436
    %564 = vmatpush1.bf16.msra.mxu0 %v435
    %565 = vmatprep.subr.bf16.mxu0 %v441
    %566 = vmatpush1.bf16.msra.mxu0 %v440
    %567 = vmatprep.subr.bf16.mxu0 %v446
    %568 = vmatpush1.bf16.msra.mxu0 %v445
    %569 = vmatprep.subr.bf16.mxu0 %v451
    %570 = vmatpush1.bf16.msra.mxu0 %v450
    %571 = vmatprep.subr.bf16.mxu0 %v456
    %572 = vmatpush1.bf16.msra.mxu0 %v455
    %573 = vmatprep.subr.bf16.mxu0 0
    %574 = vmatpush1.bf16.msra.mxu0 0
    %575 = vmatprep.subr.bf16.mxu0 0
    %576 = vmatpush1.bf16.msra.mxu0 0
    %577 = vmatprep.subr.bf16.mxu0 0
    %578 = vmatpush1.bf16.msra.mxu0 0
    %579 = vmatprep.subr.bf16.mxu0 0
    %580 = vmatpush1.bf16.msra.mxu0 0
    %581 = vmatprep.subr.bf16.mxu0 0
    %582 = vmatpush1.bf16.msra.mxu0 0
    %583 = vmatprep.subr.bf16.mxu0 0
    %584 = vmatpush1.bf16.msra.mxu0 0
    %585 = vmatprep.mubr.bf16.mxu0 %v510
    %586 = vmatmul.mubr.bf16.gmra.mrb[0].mxu0 0
    %v587 = vpop.f32.mrb[0].mxu0
    %v588 = vadd.f32 %v245, %v587
    %v589 = vpop.f32.mrb[0].mxu0
    %v590 = vadd.f32 %v246, %v589
    %v591 = vpop.f32.mrb[0].mxu0
    %v592 = vpop.f32.mrb[0].mxu0
    %593 = vdwg.mxu0
    %594 = vmatprep.subr.bf16.mxu0 0
    %595 = vmatpush1.bf16.msra.mxu0 %v412
    %596 = vmatprep.subr.bf16.mxu0 0
    %597 = vmatpush1.bf16.msra.mxu0 %v417
    %598 = vmatprep.subr.bf16.mxu0 0
    %599 = vmatpush1.bf16.msra.mxu0 %v422
    %600 = vmatprep.subr.bf16.mxu0 0
    %601 = vmatpush1.bf16.msra.mxu0 %v427
    %602 = vmatprep.subr.bf16.mxu0 0
    %603 = vmatpush1.bf16.msra.mxu0 %v432
    %604 = vmatprep.subr.bf16.mxu0 0
    %605 = vmatpush1.bf16.msra.mxu0 %v437
    %606 = vmatprep.subr.bf16.mxu0 0
    %607 = vmatpush1.bf16.msra.mxu0 %v442
    %608 = vmatprep.subr.bf16.mxu0 0
    %609 = vmatpush1.bf16.msra.mxu0 %v447
    %610 = vmatprep.subr.bf16.mxu0 0
    %611 = vmatpush1.bf16.msra.mxu0 %v452
    %612 = vmatprep.subr.bf16.mxu0 0
    %613 = vmatpush1.bf16.msra.mxu0 %v457
    %614 = vmatprep.subr.bf16.mxu0 0
    %615 = vmatpush1.bf16.msra.mxu0 0
    %616 = vmatprep.subr.bf16.mxu0 0
    %617 = vmatpush1.bf16.msra.mxu0 0
    %618 = vmatprep.subr.bf16.mxu0 0
    %619 = vmatpush1.bf16.msra.mxu0 0
    %620 = vmatprep.subr.bf16.mxu0 0
    %621 = vmatpush1.bf16.msra.mxu0 0
    %622 = vmatprep.subr.bf16.mxu0 0
    %623 = vmatpush1.bf16.msra.mxu0 0
    %624 = vmatprep.subr.bf16.mxu0 0
    %625 = vmatpush1.bf16.msra.mxu0 0
    %626 = vmatprep.mubr.bf16.mxu0 %v510
    %627 = vmatmul.mubr.bf16.gmra.mrb[0].mxu0 0
    %v628 = vpop.f32.mrb[0].mxu0
    %v629 = vadd.f32 %v247, %v628
    %v630 = vpop.f32.mrb[0].mxu0
    %v631 = vpop.f32.mrb[0].mxu0
    %v632 = vpop.f32.mrb[0].mxu0
    %633 = vdwg.mxu0
    %v634 = vxor.u32 %v547, 2147483648
    %v635 = vxor.u32 %v549, 2147483648
    %v636 = vmul.f32 %v634, 1.442695
    %v637 = vpow.pop %v636
    %v638 = vmul.f32 %v635, 1.442695
    %v639 = vpow.pop %v638
    %v640 = vadd.f32 %v637, 1.0
    %v641 = vadd.f32 %v639, 1.0
    %v642 = vrcp.pop %v640
    %v643 = vmul.f32 1.0, %v642
    %v644 = vrcp.pop %v641
    %v645 = vmul.f32 1.0, %v644
    %v646 = vxor.u32 %v588, 2147483648
    %v647 = vmul.f32 %v646, 1.442695
    %v648 = vpow.pop %v647
    %v649 = vadd.f32 %v648, 1.0
    %v650 = vrcp.pop %v649
    %v651 = vmul.f32 1.0, %v650
    %v652 = vtanh.pop %v588
    %v653 = vtanh.pop %v590
    %v654 = vxor.u32 %v590, 2147483648
    %v655 = vxor.u32 %v629, 2147483648
    %v656 = vmul.f32 %v654, 1.442695
    %v657 = vpow.pop %v656
    %v658 = vmul.f32 %v655, 1.442695
    %v659 = vpow.pop %v658
    %v660 = vadd.f32 %v657, 1.0
    %v661 = vadd.f32 %v659, 1.0
    %v662 = vrcp.pop %v660
    %v663 = vmul.f32 1.0, %v662
    %v664 = vrcp.pop %v661
    %v665 = vmul.f32 1.0, %v664
    %v666 = vmul.f32 %v645, 0.0
    %v667 = vmul.f32 %v651, 0.0
    %670 = vrot.lane.b32.xlu0 %v652, 64
    %v671 = vpop.permute.xlu0 %670
    %672 = vrot.lane.b32.xlu0 %v653, 64
    %v673 = vpop.permute.xlu0 %672
    %vm674 = vcmask 523264
    %v675 = vsel %vm674, %v671, %v673
    %v678 = vmul.f32 %v643, %v675
    %v679 = vmul.f32 %v645, %v673
    %682 = vrot.lane.b32.xlu0 %v678, 32
    %v683 = vpop.permute.xlu0 %682
    %684 = vrot.lane.b32.xlu0 %v679, 32
    %v685 = vpop.permute.xlu0 %684
    %v686 = vsel %vm508, %v683, %v685
    %v689 = vadd.f32 %v666, %v683
    %v690 = vadd.f32 %v667, %v686
    %v691 = vtanh.pop %v689
    %v692 = vtanh.pop %v690
    %695 = vrot.lane.b32.xlu0 %v691, 64
    %v696 = vpop.permute.xlu0 %695
    %697 = vrot.lane.b32.xlu0 %v692, 64
    %v698 = vpop.permute.xlu0 %697
    %v699 = vsel %vm674, %v696, %v698
    %v702 = vmul.f32 %v663, %v696
    %v703 = vmul.f32 %v665, %v699
    %v704 = vpack.c.bf16 %v702, %v702
    %v705 = vpack.c.bf16 %v703, %v703
    %s706 = scalar_lea.vmem %s0, 10
    %v707 = vld [vmem:[%s706] sm:$0xff]
    %v708 = vld [vmem:[%s706 + $0x8] sm:$0x3]
    %s709 = scalar_lea.vmem %s0, 140
    %v710 = vld [vmem:[%s709] sm:$0xff]
    %v711 = vld [vmem:[%s709 + $0x8] sm:$0x3]
    %v714 = vcombine.high %v707, %v707
    %v716 = vunpack.c.l.s4 1983009808
    %v717 = vunpack.c.0.s8 %v716
    %v718 = vlaneseq
    %v719 = vshrl.u32 %v718, 7
    %v720 = vsub.s32 %v717, %v719
    %v721 = vrot.slane %v707, %v720
    %v723 = vunpack.c.l.s4 1983009808
    %v724 = vunpack.c.0.s8 %v723
    %v725 = vlaneseq
    %v726 = vshrl.u32 %v725, 7
    %v727 = vsub.s32 %v724, %v726
    %v728 = vrot.slane %v714, %v727
    %v729 = vcombine.high %v721, %v721
    %v730 = vcombine.high %v728, %v728
    %v732 = vunpack.c.l.s4 1983009808
    %v733 = vunpack.c.0.s8 %v732
    %v734 = vlaneseq
    %v735 = vshrl.u32 %v734, 7
    %v736 = vsub.s32 %v733, %v735
    %v737 = vrot.slane %v708, %v736
    %v745 = vcombine.high %v710, %v710
    %v747 = vunpack.c.l.s4 1983009808
    %v748 = vunpack.c.0.s8 %v747
    %v749 = vlaneseq
    %v750 = vshrl.u32 %v749, 7
    %v751 = vsub.s32 %v748, %v750
    %v752 = vrot.slane %v710, %v751
    %v754 = vunpack.c.l.s4 1983009808
    %v755 = vunpack.c.0.s8 %v754
    %v756 = vlaneseq
    %v757 = vshrl.u32 %v756, 7
    %v758 = vsub.s32 %v755, %v757
    %v759 = vrot.slane %v745, %v758
    %v760 = vcombine.high %v752, %v752
    %v761 = vcombine.high %v759, %v759
    %v763 = vunpack.c.l.s4 1983009808
    %v764 = vunpack.c.0.s8 %v763
    %v765 = vlaneseq
    %v766 = vshrl.u32 %v765, 7
    %v767 = vsub.s32 %v764, %v766
    %v768 = vrot.slane %v711, %v767
    %v774 = vsel %vm111, %v721, %v752
    %v775 = vsel %vm112, %v729, %v760
    %v776 = vsel %vm113, %v728, %v759
    %v777 = vsel %vm114, %v730, %v761
    %v778 = vsel %vm115, %v737, %v768
    %781 = vrot.lane.b32.xlu0 %v704, 32
    %v782 = vpop.permute.xlu0 %781
    %783 = vrot.lane.b32.xlu0 %v705, 32
    %v784 = vpop.permute.xlu0 %783
    %vm785 = vcmask 261120
    %v786 = vsel %vm785, %v782, %v784
    %v789 = vsel %vm508, %v784, 0
    %791 = vmatprep.subr.bf16.mxu0 %v409
    %792 = vmatpush1.bf16.msra.mxu0 %v408
    %793 = vmatprep.subr.bf16.mxu0 %v414
    %794 = vmatpush1.bf16.msra.mxu0 %v413
    %795 = vmatprep.subr.bf16.mxu0 %v419
    %796 = vmatpush1.bf16.msra.mxu0 %v418
    %797 = vmatprep.subr.bf16.mxu0 %v424
    %798 = vmatpush1.bf16.msra.mxu0 %v423
    %799 = vmatprep.subr.bf16.mxu0 %v429
    %800 = vmatpush1.bf16.msra.mxu0 %v428
    %801 = vmatprep.subr.bf16.mxu0 %v434
    %802 = vmatpush1.bf16.msra.mxu0 %v433
    %803 = vmatprep.subr.bf16.mxu0 %v439
    %804 = vmatpush1.bf16.msra.mxu0 %v438
    %805 = vmatprep.subr.bf16.mxu0 %v444
    %806 = vmatpush1.bf16.msra.mxu0 %v443
    %807 = vmatprep.subr.bf16.mxu0 %v449
    %808 = vmatpush1.bf16.msra.mxu0 %v448
    %809 = vmatprep.subr.bf16.mxu0 %v454
    %810 = vmatpush1.bf16.msra.mxu0 %v453
    %811 = vmatprep.subr.bf16.mxu0 0
    %812 = vmatpush1.bf16.msra.mxu0 0
    %813 = vmatprep.subr.bf16.mxu0 0
    %814 = vmatpush1.bf16.msra.mxu0 0
    %815 = vmatprep.subr.bf16.mxu0 0
    %816 = vmatpush1.bf16.msra.mxu0 0
    %817 = vmatprep.subr.bf16.mxu0 0
    %818 = vmatpush1.bf16.msra.mxu0 0
    %819 = vmatprep.subr.bf16.mxu0 0
    %820 = vmatpush1.bf16.msra.mxu0 0
    %821 = vmatprep.subr.bf16.mxu0 0
    %822 = vmatpush1.bf16.msra.mxu0 0
    %823 = vmatprep.mubr.bf16.mxu0 %v789
    %824 = vmatmul.mubr.bf16.gmra.mrb[0].mxu0 %v786
    %v825 = vpop.f32.mrb[0].mxu0
    %v826 = vadd.f32 %v774, %v825
    %v827 = vpop.f32.mrb[0].mxu0
    %v828 = vadd.f32 %v775, %v827
    %v829 = vpop.f32.mrb[0].mxu0
    %v830 = vpop.f32.mrb[0].mxu0
    %831 = vdwg.mxu0
    %832 = vmatprep.subr.bf16.mxu0 %v411
    %833 = vmatpush1.bf16.msra.mxu0 %v410
    %834 = vmatprep.subr.bf16.mxu0 %v416
    %835 = vmatpush1.bf16.msra.mxu0 %v415
    %836 = vmatprep.subr.bf16.mxu0 %v421
    %837 = vmatpush1.bf16.msra.mxu0 %v420
    %838 = vmatprep.subr.bf16.mxu0 %v426
    %839 = vmatpush1.bf16.msra.mxu0 %v425
    %840 = vmatprep.subr.bf16.mxu0 %v431
    %841 = vmatpush1.bf16.msra.mxu0 %v430
    %842 = vmatprep.subr.bf16.mxu0 %v436
    %843 = vmatpush1.bf16.msra.mxu0 %v435
    %844 = vmatprep.subr.bf16.mxu0 %v441
    %845 = vmatpush1.bf16.msra.mxu0 %v440
    %846 = vmatprep.subr.bf16.mxu0 %v446
    %847 = vmatpush1.bf16.msra.mxu0 %v445
    %848 = vmatprep.subr.bf16.mxu0 %v451
    %849 = vmatpush1.bf16.msra.mxu0 %v450
    %850 = vmatprep.subr.bf16.mxu0 %v456
    %851 = vmatpush1.bf16.msra.mxu0 %v455
    %852 = vmatprep.subr.bf16.mxu0 0
    %853 = vmatpush1.bf16.msra.mxu0 0
    %854 = vmatprep.subr.bf16.mxu0 0
    %855 = vmatpush1.bf16.msra.mxu0 0
    %856 = vmatprep.subr.bf16.mxu0 0
    %857 = vmatpush1.bf16.msra.mxu0 0
    %858 = vmatprep.subr.bf16.mxu0 0
    %859 = vmatpush1.bf16.msra.mxu0 0
    %860 = vmatprep.subr.bf16.mxu0 0
    %861 = vmatpush1.bf16.msra.mxu0 0
    %862 = vmatprep.subr.bf16.mxu0 0
    %863 = vmatpush1.bf16.msra.mxu0 0
    %864 = vmatprep.mubr.bf16.mxu0 %v789
    %865 = vmatmul.mubr.bf16.gmra.mrb[0].mxu0 %v786
    %v866 = vpop.f32.mrb[0].mxu0
    %v867 = vadd.f32 %v776, %v866
    %v868 = vpop.f32.mrb[0].mxu0
    %v869 = vadd.f32 %v777, %v868
    %v870 = vpop.f32.mrb[0].mxu0
    %v871 = vpop.f32.mrb[0].mxu0
    %872 = vdwg.mxu0
    %873 = vmatprep.subr.bf16.mxu0 0
    %874 = vmatpush1.bf16.msra.mxu0 %v412
    %875 = vmatprep.subr.bf16.mxu0 0
    %876 = vmatpush1.bf16.msra.mxu0 %v417
    %877 = vmatprep.subr.bf16.mxu0 0
    %878 = vmatpush1.bf16.msra.mxu0 %v422
    %879 = vmatprep.subr.bf16.mxu0 0
    %880 = vmatpush1.bf16.msra.mxu0 %v427
    %881 = vmatprep.subr.bf16.mxu0 0
    %882 = vmatpush1.bf16.msra.mxu0 %v432
    %883 = vmatprep.subr.bf16.mxu0 0
    %884 = vmatpush1.bf16.msra.mxu0 %v437
    %885 = vmatprep.subr.bf16.mxu0 0
    %886 = vmatpush1.bf16.msra.mxu0 %v442
    %887 = vmatprep.subr.bf16.mxu0 0
    %888 = vmatpush1.bf16.msra.mxu0 %v447
    %889 = vmatprep.subr.bf16.mxu0 0
    %890 = vmatpush1.bf16.msra.mxu0 %v452
    %891 = vmatprep.subr.bf16.mxu0 0
    %892 = vmatpush1.bf16.msra.mxu0 %v457
    %893 = vmatprep.subr.bf16.mxu0 0
    %894 = vmatpush1.bf16.msra.mxu0 0
    %895 = vmatprep.subr.bf16.mxu0 0
    %896 = vmatpush1.bf16.msra.mxu0 0
    %897 = vmatprep.subr.bf16.mxu0 0
    %898 = vmatpush1.bf16.msra.mxu0 0
    %899 = vmatprep.subr.bf16.mxu0 0
    %900 = vmatpush1.bf16.msra.mxu0 0
    %901 = vmatprep.subr.bf16.mxu0 0
    %902 = vmatpush1.bf16.msra.mxu0 0
    %903 = vmatprep.subr.bf16.mxu0 0
    %904 = vmatpush1.bf16.msra.mxu0 0
    %905 = vmatprep.mubr.bf16.mxu0 %v789
    %906 = vmatmul.mubr.bf16.gmra.mrb[0].mxu0 %v786
    %v907 = vpop.f32.mrb[0].mxu0
    %v908 = vadd.f32 %v778, %v907
    %v909 = vpop.f32.mrb[0].mxu0
    %v910 = vpop.f32.mrb[0].mxu0
    %v911 = vpop.f32.mrb[0].mxu0
    %912 = vdwg.mxu0
    %v913 = vxor.u32 %v826, 2147483648
    %v914 = vxor.u32 %v828, 2147483648
    %v915 = vmul.f32 %v913, 1.442695
    %v916 = vpow.pop %v915
    %v917 = vmul.f32 %v914, 1.442695
    %v918 = vpow.pop %v917
    %v919 = vadd.f32 %v916, 1.0
    %v920 = vadd.f32 %v918, 1.0
    %v921 = vrcp.pop %v919
    %v922 = vmul.f32 1.0, %v921
    %v923 = vrcp.pop %v920
    %v924 = vmul.f32 1.0, %v923
    %v925 = vxor.u32 %v867, 2147483648
    %v926 = vmul.f32 %v925, 1.442695
    %v927 = vpow.pop %v926
    %v928 = vadd.f32 %v927, 1.0
    %v929 = vrcp.pop %v928
    %v930 = vmul.f32 1.0, %v929
    %v931 = vtanh.pop %v867
    %v932 = vtanh.pop %v869
    %v933 = vxor.u32 %v869, 2147483648
    %v934 = vxor.u32 %v908, 2147483648
    %v935 = vmul.f32 %v933, 1.442695
    %v936 = vpow.pop %v935
    %v937 = vmul.f32 %v934, 1.442695
    %v938 = vpow.pop %v937
    %v939 = vadd.f32 %v936, 1.0
    %v940 = vadd.f32 %v938, 1.0
    %v941 = vrcp.pop %v939
    %v942 = vmul.f32 1.0, %v941
    %v943 = vrcp.pop %v940
    %v944 = vmul.f32 1.0, %v943
    %v945 = vmul.f32 %v924, %v689
    %v946 = vmul.f32 %v930, %v690
    %949 = vrot.lane.b32.xlu0 %v931, 64
    %v950 = vpop.permute.xlu0 %949
    %951 = vrot.lane.b32.xlu0 %v932, 64
    %v952 = vpop.permute.xlu0 %951
    %v953 = vsel %vm674, %v950, %v952
    %v956 = vmul.f32 %v922, %v953
    %v957 = vmul.f32 %v924, %v952
    %960 = vrot.lane.b32.xlu0 %v956, 32
    %v961 = vpop.permute.xlu0 %960
    %962 = vrot.lane.b32.xlu0 %v957, 32
    %v963 = vpop.permute.xlu0 %962
    %v964 = vsel %vm508, %v961, %v963
    %v967 = vadd.f32 %v945, %v961
    %v968 = vadd.f32 %v946, %v964
    %v969 = vtanh.pop %v967
    %v970 = vtanh.pop %v968
    %973 = vrot.lane.b32.xlu0 %v969, 64
    %v974 = vpop.permute.xlu0 %973
    %975 = vrot.lane.b32.xlu0 %v970, 64
    %v976 = vpop.permute.xlu0 %975
    %v977 = vsel %vm674, %v974, %v976
    %v980 = vmul.f32 %v942, %v974
    %v981 = vmul.f32 %v944, %v977
    %v982 = vpack.c.bf16 %v980, %v980
    %v983 = vpack.c.bf16 %v981, %v981
    %s984 = scalar_lea.vmem %s0, 20
    %v985 = vld [vmem:[%s984] sm:$0xff]
    %v986 = vld [vmem:[%s984 + $0x8] sm:$0x3]
    %s987 = scalar_lea.vmem %s0, 130
    %v988 = vld [vmem:[%s987] sm:$0xff]
    %v989 = vld [vmem:[%s987 + $0x8] sm:$0x3]
    %v992 = vcombine.high %v985, %v985
    %v994 = vunpack.c.l.s4 1983009808
    %v995 = vunpack.c.0.s8 %v994
    %v996 = vlaneseq
    %v997 = vshrl.u32 %v996, 7
    %v998 = vsub.s32 %v995, %v997
    %v999 = vrot.slane %v985, %v998
    %v1001 = vunpack.c.l.s4 1983009808
    %v1002 = vunpack.c.0.s8 %v1001
    %v1003 = vlaneseq
    %v1004 = vshrl.u32 %v1003, 7
    %v1005 = vsub.s32 %v1002, %v1004
    %v1006 = vrot.slane %v992, %v1005
    %v1007 = vcombine.high %v999, %v999
    %v1008 = vcombine.high %v1006, %v1006
    %v1010 = vunpack.c.l.s4 1983009808
    %v1011 = vunpack.c.0.s8 %v1010
    %v1012 = vlaneseq
    %v1013 = vshrl.u32 %v1012, 7
    %v1014 = vsub.s32 %v1011, %v1013
    %v1015 = vrot.slane %v986, %v1014
    %v1023 = vcombine.high %v988, %v988
    %v1025 = vunpack.c.l.s4 1983009808
    %v1026 = vunpack.c.0.s8 %v1025
    %v1027 = vlaneseq
    %v1028 = vshrl.u32 %v1027, 7
    %v1029 = vsub.s32 %v1026, %v1028
    %v1030 = vrot.slane %v988, %v1029
    %v1032 = vunpack.c.l.s4 1983009808
    %v1033 = vunpack.c.0.s8 %v1032
    %v1034 = vlaneseq
    %v1035 = vshrl.u32 %v1034, 7
    %v1036 = vsub.s32 %v1033, %v1035
    %v1037 = vrot.slane %v1023, %v1036
    %v1038 = vcombine.high %v1030, %v1030
    %v1039 = vcombine.high %v1037, %v1037
    %v1041 = vunpack.c.l.s4 1983009808
    %v1042 = vunpack.c.0.s8 %v1041
    %v1043 = vlaneseq
    %v1044 = vshrl.u32 %v1043, 7
    %v1045 = vsub.s32 %v1042, %v1044
    %v1046 = vrot.slane %v989, %v1045
    %v1052 = vsel %vm111, %v999, %v1030
    %v1053 = vsel %vm112, %v1007, %v1038
    %v1054 = vsel %vm113, %v1006, %v1037
    %v1055 = vsel %vm114, %v1008, %v1039
    %v1056 = vsel %vm115, %v1015, %v1046
    %1059 = vrot.lane.b32.xlu0 %v982, 32
    %v1060 = vpop.permute.xlu0 %1059
    %1061 = vrot.lane.b32.xlu0 %v983, 32
    %v1062 = vpop.permute.xlu0 %1061
    %v1063 = vsel %vm785, %v1060, %v1062
    %v1066 = vsel %vm508, %v1062, 0
    %1068 = vmatprep.subr.bf16.mxu0 %v409
    %1069 = vmatpush1.bf16.msra.mxu0 %v408
    %1070 = vmatprep.subr.bf16.mxu0 %v414
    %1071 = vmatpush1.bf16.msra.mxu0 %v413
    %1072 = vmatprep.subr.bf16.mxu0 %v419
    %1073 = vmatpush1.bf16.msra.mxu0 %v418
    %1074 = vmatprep.subr.bf16.mxu0 %v424
    %1075 = vmatpush1.bf16.msra.mxu0 %v423
    %1076 = vmatprep.subr.bf16.mxu0 %v429
    %1077 = vmatpush1.bf16.msra.mxu0 %v428
    %1078 = vmatprep.subr.bf16.mxu0 %v434
    %1079 = vmatpush1.bf16.msra.mxu0 %v433
    %1080 = vmatprep.subr.bf16.mxu0 %v439
    %1081 = vmatpush1.bf16.msra.mxu0 %v438
    %1082 = vmatprep.subr.bf16.mxu0 %v444
    %1083 = vmatpush1.bf16.msra.mxu0 %v443
    %1084 = vmatprep.subr.bf16.mxu0 %v449
    %1085 = vmatpush1.bf16.msra.mxu0 %v448
    %1086 = vmatprep.subr.bf16.mxu0 %v454
    %1087 = vmatpush1.bf16.msra.mxu0 %v453
    %1088 = vmatprep.subr.bf16.mxu0 0
    %1089 = vmatpush1.bf16.msra.mxu0 0
    %1090 = vmatprep.subr.bf16.mxu0 0
    %1091 = vmatpush1.bf16.msra.mxu0 0
    %1092 = vmatprep.subr.bf16.mxu0 0
    %1093 = vmatpush1.bf16.msra.mxu0 0
    %1094 = vmatprep.subr.bf16.mxu0 0
    %1095 = vmatpush1.bf16.msra.mxu0 0
    %1096 = vmatprep.subr.bf16.mxu0 0
    %1097 = vmatpush1.bf16.msra.mxu0 0
    %1098 = vmatprep.subr.bf16.mxu0 0
    %1099 = vmatpush1.bf16.msra.mxu0 0
    %1100 = vmatprep.mubr.bf16.mxu0 %v1066
    %1101 = vmatmul.mubr.bf16.gmra.mrb[0].mxu0 %v1063
    %v1102 = vpop.f32.mrb[0].mxu0
    %v1103 = vadd.f32 %v1052, %v1102
    %v1104 = vpop.f32.mrb[0].mxu0
    %v1105 = vadd.f32 %v1053, %v1104
    %v1106 = vpop.f32.mrb[0].mxu0
    %v1107 = vpop.f32.mrb[0].mxu0
    %1108 = vdwg.mxu0
    %1109 = vmatprep.subr.bf16.mxu0 %v411
    %1110 = vmatpush1.bf16.msra.mxu0 %v410
    %1111 = vmatprep.subr.bf16.mxu0 %v416
    %1112 = vmatpush1.bf16.msra.mxu0 %v415
    %1113 = vmatprep.subr.bf16.mxu0 %v421
    %1114 = vmatpush1.bf16.msra.mxu0 %v420
    %1115 = vmatprep.subr.bf16.mxu0 %v426
    %1116 = vmatpush1.bf16.msra.mxu0 %v425
    %1117 = vmatprep.subr.bf16.mxu0 %v431
    %1118 = vmatpush1.bf16.msra.mxu0 %v430
    %1119 = vmatprep.subr.bf16.mxu0 %v436
    %1120 = vmatpush1.bf16.msra.mxu0 %v435
    %1121 = vmatprep.subr.bf16.mxu0 %v441
    %1122 = vmatpush1.bf16.msra.mxu0 %v440
    %1123 = vmatprep.subr.bf16.mxu0 %v446
    %1124 = vmatpush1.bf16.msra.mxu0 %v445
    %1125 = vmatprep.subr.bf16.mxu0 %v451
    %1126 = vmatpush1.bf16.msra.mxu0 %v450
    %1127 = vmatprep.subr.bf16.mxu0 %v456
    %1128 = vmatpush1.bf16.msra.mxu0 %v455
    %1129 = vmatprep.subr.bf16.mxu0 0
    %1130 = vmatpush1.bf16.msra.mxu0 0
    %1131 = vmatprep.subr.bf16.mxu0 0
    %1132 = vmatpush1.bf16.msra.mxu0 0
    %1133 = vmatprep.subr.bf16.mxu0 0
    %1134 = vmatpush1.bf16.msra.mxu0 0
    %1135 = vmatprep.subr.bf16.mxu0 0
    %1136 = vmatpush1.bf16.msra.mxu0 0
    %1137 = vmatprep.subr.bf16.mxu0 0
    %1138 = vmatpush1.bf16.msra.mxu0 0
    %1139 = vmatprep.subr.bf16.mxu0 0
    %1140 = vmatpush1.bf16.msra.mxu0 0
    %1141 = vmatprep.mubr.bf16.mxu0 %v1066
    %1142 = vmatmul.mubr.bf16.gmra.mrb[0].mxu0 %v1063
    %v1143 = vpop.f32.mrb[0].mxu0
    %v1144 = vadd.f32 %v1054, %v1143
    %v1145 = vpop.f32.mrb[0].mxu0
    %v1146 = vadd.f32 %v1055, %v1145
    %v1147 = vpop.f32.mrb[0].mxu0
    %v1148 = vpop.f32.mrb[0].mxu0
    %1149 = vdwg.mxu0
    %1150 = vmatprep.subr.bf16.mxu0 0
    %1151 = vmatpush1.bf16.msra.mxu0 %v412
    %1152 = vmatprep.subr.bf16.mxu0 0
    %1153 = vmatpush1.bf16.msra.mxu0 %v417
    %1154 = vmatprep.subr.bf16.mxu0 0
    %1155 = vmatpush1.bf16.msra.mxu0 %v422
    %1156 = vmatprep.subr.bf16.mxu0 0
    %1157 = vmatpush1.bf16.msra.mxu0 %v427
    %1158 = vmatprep.subr.bf16.mxu0 0
    %1159 = vmatpush1.bf16.msra.mxu0 %v432
    %1160 = vmatprep.subr.bf16.mxu0 0
    %1161 = vmatpush1.bf16.msra.mxu0 %v437
    %1162 = vmatprep.subr.bf16.mxu0 0
    %1163 = vmatpush1.bf16.msra.mxu0 %v442
    %1164 = vmatprep.subr.bf16.mxu0 0
    %1165 = vmatpush1.bf16.msra.mxu0 %v447
    %1166 = vmatprep.subr.bf16.mxu0 0
    %1167 = vmatpush1.bf16.msra.mxu0 %v452
    %1168 = vmatprep.subr.bf16.mxu0 0
    %1169 = vmatpush1.bf16.msra.mxu0 %v457
    %1170 = vmatprep.subr.bf16.mxu0 0
    %1171 = vmatpush1.bf16.msra.mxu0 0
    %1172 = vmatprep.subr.bf16.mxu0 0
    %1173 = vmatpush1.bf16.msra.mxu0 0
    %1174 = vmatprep.subr.bf16.mxu0 0
    %1175 = vmatpush1.bf16.msra.mxu0 0
    %1176 = vmatprep.subr.bf16.mxu0 0
    %1177 = vmatpush1.bf16.msra.mxu0 0
    %1178 = vmatprep.subr.bf16.mxu0 0
    %1179 = vmatpush1.bf16.msra.mxu0 0
    %1180 = vmatprep.subr.bf16.mxu0 0
    %1181 = vmatpush1.bf16.msra.mxu0 0
    %1182 = vmatprep.mubr.bf16.mxu0 %v1066
    %1183 = vmatmul.mubr.bf16.gmra.mrb[0].mxu0 %v1063
    %v1184 = vpop.f32.mrb[0].mxu0
    %v1185 = vadd.f32 %v1056, %v1184
    %v1186 = vpop.f32.mrb[0].mxu0
    %v1187 = vpop.f32.mrb[0].mxu0
    %v1188 = vpop.f32.mrb[0].mxu0
    %1189 = vdwg.mxu0
    %v1190 = vxor.u32 %v1103, 2147483648
    %v1191 = vxor.u32 %v1105, 2147483648
    %v1192 = vmul.f32 %v1190, 1.442695
    %v1193 = vpow.pop %v1192
    %v1194 = vmul.f32 %v1191, 1.442695
    %v1195 = vpow.pop %v1194
    %v1196 = vadd.f32 %v1193, 1.0
    %v1197 = vadd.f32 %v1195, 1.0
    %v1198 = vrcp.pop %v1196
    %v1199 = vmul.f32 1.0, %v1198
    %v1200 = vrcp.pop %v1197
    %v1201 = vmul.f32 1.0, %v1200
    %v1202 = vxor.u32 %v1144, 2147483648
    %v1203 = vmul.f32 %v1202, 1.442695
    %v1204 = vpow.pop %v1203
    %v1205 = vadd.f32 %v1204, 1.0
    %v1206 = vrcp.pop %v1205
    %v1207 = vmul.f32 1.0, %v1206
    %v1208 = vtanh.pop %v1144
    %v1209 = vtanh.pop %v1146
    %v1210 = vxor.u32 %v1146, 2147483648
    %v1211 = vxor.u32 %v1185, 2147483648
    %v1212 = vmul.f32 %v1210, 1.442695
    %v1213 = vpow.pop %v1212
    %v1214 = vmul.f32 %v1211, 1.442695
    %v1215 = vpow.pop %v1214
    %v1216 = vadd.f32 %v1213, 1.0
    %v1217 = vadd.f32 %v1215, 1.0
    %v1218 = vrcp.pop %v1216
    %v1219 = vmul.f32 1.0, %v1218
    %v1220 = vrcp.pop %v1217
    %v1221 = vmul.f32 1.0, %v1220
    %v1222 = vmul.f32 %v1201, %v967
    %v1223 = vmul.f32 %v1207, %v968
    %1226 = vrot.lane.b32.xlu0 %v1208, 64
    %v1227 = vpop.permute.xlu0 %1226
    %1228 = vrot.lane.b32.xlu0 %v1209, 64
    %v1229 = vpop.permute.xlu0 %1228
    %v1230 = vsel %vm674, %v1227, %v1229
    %v1233 = vmul.f32 %v1199, %v1230
    %v1234 = vmul.f32 %v1201, %v1229
    %1237 = vrot.lane.b32.xlu0 %v1233, 32
    %v1238 = vpop.permute.xlu0 %1237
    %1239 = vrot.lane.b32.xlu0 %v1234, 32
    %v1240 = vpop.permute.xlu0 %1239
    %v1241 = vsel %vm508, %v1238, %v1240
    %v1244 = vadd.f32 %v1222, %v1238
    %v1245 = vadd.f32 %v1223, %v1241
    %v1246 = vtanh.pop %v1244
    %v1247 = vtanh.pop %v1245
    %1250 = vrot.lane.b32.xlu0 %v1246, 64
    %v1251 = vpop.permute.xlu0 %1250
    %1252 = vrot.lane.b32.xlu0 %v1247, 64
    %v1253 = vpop.permute.xlu0 %1252
    %v1254 = vsel %vm674, %v1251, %v1253
    %v1257 = vmul.f32 %v1219, %v1251
    %v1258 = vmul.f32 %v1221, %v1254
    %v1259 = vpack.c.bf16 %v1257, %v1257
    %v1260 = vpack.c.bf16 %v1258, %v1258
    %s1261 = scalar_lea.vmem %s0, 30
    %v1262 = vld [vmem:[%s1261] sm:$0xff]
    %v1263 = vld [vmem:[%s1261 + $0x8] sm:$0x3]
    %s1264 = scalar_lea.vmem %s0, 120
    %v1265 = vld [vmem:[%s1264] sm:$0xff]
    %v1266 = vld [vmem:[%s1264 + $0x8] sm:$0x3]
    %v1269 = vcombine.high %v1262, %v1262
    %v1271 = vunpack.c.l.s4 1983009808
    %v1272 = vunpack.c.0.s8 %v1271
    %v1273 = vlaneseq
    %v1274 = vshrl.u32 %v1273, 7
    %v1275 = vsub.s32 %v1272, %v1274
    %v1276 = vrot.slane %v1262, %v1275
    %v1278 = vunpack.c.l.s4 1983009808
    %v1279 = vunpack.c.0.s8 %v1278
    %v1280 = vlaneseq
    %v1281 = vshrl.u32 %v1280, 7
    %v1282 = vsub.s32 %v1279, %v1281
    %v1283 = vrot.slane %v1269, %v1282
    %v1284 = vcombine.high %v1276, %v1276
    %v1285 = vcombine.high %v1283, %v1283
    %v1287 = vunpack.c.l.s4 1983009808
    %v1288 = vunpack.c.0.s8 %v1287
    %v1289 = vlaneseq
    %v1290 = vshrl.u32 %v1289, 7
    %v1291 = vsub.s32 %v1288, %v1290
    %v1292 = vrot.slane %v1263, %v1291
    %v1300 = vcombine.high %v1265, %v1265
    %v1302 = vunpack.c.l.s4 1983009808
    %v1303 = vunpack.c.0.s8 %v1302
    %v1304 = vlaneseq
    %v1305 = vshrl.u32 %v1304, 7
    %v1306 = vsub.s32 %v1303, %v1305
    %v1307 = vrot.slane %v1265, %v1306
    %v1309 = vunpack.c.l.s4 1983009808
    %v1310 = vunpack.c.0.s8 %v1309
    %v1311 = vlaneseq
    %v1312 = vshrl.u32 %v1311, 7
    %v1313 = vsub.s32 %v1310, %v1312
    %v1314 = vrot.slane %v1300, %v1313
    %v1315 = vcombine.high %v1307, %v1307
    %v1316 = vcombine.high %v1314, %v1314
    %v1318 = vunpack.c.l.s4 1983009808
    %v1319 = vunpack.c.0.s8 %v1318
    %v1320 = vlaneseq
    %v1321 = vshrl.u32 %v1320, 7
    %v1322 = vsub.s32 %v1319, %v1321
    %v1323 = vrot.slane %v1266, %v1322
    %v1329 = vsel %vm111, %v1276, %v1307
    %v1330 = vsel %vm112, %v1284, %v1315
    %v1331 = vsel %vm113, %v1283, %v1314
    %v1332 = vsel %vm114, %v1285, %v1316
    %v1333 = vsel %vm115, %v1292, %v1323
    %1336 = vrot.lane.b32.xlu0 %v1259, 32
    %v1337 = vpop.permute.xlu0 %1336
    %1338 = vrot.lane.b32.xlu0 %v1260, 32
    %v1339 = vpop.permute.xlu0 %1338
    %v1340 = vsel %vm785, %v1337, %v1339
    %v1343 = vsel %vm508, %v1339, 0
    %1345 = vmatprep.subr.bf16.mxu0 %v409
    %1346 = vmatpush1.bf16.msra.mxu0 %v408
    %1347 = vmatprep.subr.bf16.mxu0 %v414
    %1348 = vmatpush1.bf16.msra.mxu0 %v413
    %1349 = vmatprep.subr.bf16.mxu0 %v419
    %1350 = vmatpush1.bf16.msra.mxu0 %v418
    %1351 = vmatprep.subr.bf16.mxu0 %v424
    %1352 = vmatpush1.bf16.msra.mxu0 %v423
    %1353 = vmatprep.subr.bf16.mxu0 %v429
    %1354 = vmatpush1.bf16.msra.mxu0 %v428
    %1355 = vmatprep.subr.bf16.mxu0 %v434
    %1356 = vmatpush1.bf16.msra.mxu0 %v433
    %1357 = vmatprep.subr.bf16.mxu0 %v439
    %1358 = vmatpush1.bf16.msra.mxu0 %v438
    %1359 = vmatprep.subr.bf16.mxu0 %v444
    %1360 = vmatpush1.bf16.msra.mxu0 %v443
    %1361 = vmatprep.subr.bf16.mxu0 %v449
    %1362 = vmatpush1.bf16.msra.mxu0 %v448
    %1363 = vmatprep.subr.bf16.mxu0 %v454
    %1364 = vmatpush1.bf16.msra.mxu0 %v453
    %1365 = vmatprep.subr.bf16.mxu0 0
    %1366 = vmatpush1.bf16.msra.mxu0 0
    %1367 = vmatprep.subr.bf16.mxu0 0
    %1368 = vmatpush1.bf16.msra.mxu0 0
    %1369 = vmatprep.subr.bf16.mxu0 0
    %1370 = vmatpush1.bf16.msra.mxu0 0
    %1371 = vmatprep.subr.bf16.mxu0 0
    %1372 = vmatpush1.bf16.msra.mxu0 0
    %1373 = vmatprep.subr.bf16.mxu0 0
    %1374 = vmatpush1.bf16.msra.mxu0 0
    %1375 = vmatprep.subr.bf16.mxu0 0
    %1376 = vmatpush1.bf16.msra.mxu0 0
    %1377 = vmatprep.mubr.bf16.mxu0 %v1343
    %1378 = vmatmul.mubr.bf16.gmra.mrb[0].mxu0 %v1340
    %v1379 = vpop.f32.mrb[0].mxu0
    %v1380 = vadd.f32 %v1329, %v1379
    %v1381 = vpop.f32.mrb[0].mxu0
    %v1382 = vadd.f32 %v1330, %v1381
    %v1383 = vpop.f32.mrb[0].mxu0
    %v1384 = vpop.f32.mrb[0].mxu0
    %1385 = vdwg.mxu0
    %1386 = vmatprep.subr.bf16.mxu0 %v411
    %1387 = vmatpush1.bf16.msra.mxu0 %v410
    %1388 = vmatprep.subr.bf16.mxu0 %v416
    %1389 = vmatpush1.bf16.msra.mxu0 %v415
    %1390 = vmatprep.subr.bf16.mxu0 %v421
    %1391 = vmatpush1.bf16.msra.mxu0 %v420
    %1392 = vmatprep.subr.bf16.mxu0 %v426
    %1393 = vmatpush1.bf16.msra.mxu0 %v425
    %1394 = vmatprep.subr.bf16.mxu0 %v431
    %1395 = vmatpush1.bf16.msra.mxu0 %v430
    %1396 = vmatprep.subr.bf16.mxu0 %v436
    %1397 = vmatpush1.bf16.msra.mxu0 %v435
    %1398 = vmatprep.subr.bf16.mxu0 %v441
    %1399 = vmatpush1.bf16.msra.mxu0 %v440
    %1400 = vmatprep.subr.bf16.mxu0 %v446
    %1401 = vmatpush1.bf16.msra.mxu0 %v445
    %1402 = vmatprep.subr.bf16.mxu0 %v451
    %1403 = vmatpush1.bf16.msra.mxu0 %v450
    %1404 = vmatprep.subr.bf16.mxu0 %v456
    %1405 = vmatpush1.bf16.msra.mxu0 %v455
    %1406 = vmatprep.subr.bf16.mxu0 0
    %1407 = vmatpush1.bf16.msra.mxu0 0
    %1408 = vmatprep.subr.bf16.mxu0 0
    %1409 = vmatpush1.bf16.msra.mxu0 0
    %1410 = vmatprep.subr.bf16.mxu0 0
    %1411 = vmatpush1.bf16.msra.mxu0 0
    %1412 = vmatprep.subr.bf16.mxu0 0
    %1413 = vmatpush1.bf16.msra.mxu0 0
    %1414 = vmatprep.subr.bf16.mxu0 0
    %1415 = vmatpush1.bf16.msra.mxu0 0
    %1416 = vmatprep.subr.bf16.mxu0 0
    %1417 = vmatpush1.bf16.msra.mxu0 0
    %1418 = vmatprep.mubr.bf16.mxu0 %v1343
    %1419 = vmatmul.mubr.bf16.gmra.mrb[0].mxu0 %v1340
    %v1420 = vpop.f32.mrb[0].mxu0
    %v1421 = vadd.f32 %v1331, %v1420
    %v1422 = vpop.f32.mrb[0].mxu0
    %v1423 = vadd.f32 %v1332, %v1422
    %v1424 = vpop.f32.mrb[0].mxu0
    %v1425 = vpop.f32.mrb[0].mxu0
    %1426 = vdwg.mxu0
    %1427 = vmatprep.subr.bf16.mxu0 0
    %1428 = vmatpush1.bf16.msra.mxu0 %v412
    %1429 = vmatprep.subr.bf16.mxu0 0
    %1430 = vmatpush1.bf16.msra.mxu0 %v417
    %1431 = vmatprep.subr.bf16.mxu0 0
    %1432 = vmatpush1.bf16.msra.mxu0 %v422
    %1433 = vmatprep.subr.bf16.mxu0 0
    %1434 = vmatpush1.bf16.msra.mxu0 %v427
    %1435 = vmatprep.subr.bf16.mxu0 0
    %1436 = vmatpush1.bf16.msra.mxu0 %v432
    %1437 = vmatprep.subr.bf16.mxu0 0
    %1438 = vmatpush1.bf16.msra.mxu0 %v437
    %1439 = vmatprep.subr.bf16.mxu0 0
    %1440 = vmatpush1.bf16.msra.mxu0 %v442
    %1441 = vmatprep.subr.bf16.mxu0 0
    %1442 = vmatpush1.bf16.msra.mxu0 %v447
    %1443 = vmatprep.subr.bf16.mxu0 0
    %1444 = vmatpush1.bf16.msra.mxu0 %v452
    %1445 = vmatprep.subr.bf16.mxu0 0
    %1446 = vmatpush1.bf16.msra.mxu0 %v457
    %1447 = vmatprep.subr.bf16.mxu0 0
    %1448 = vmatpush1.bf16.msra.mxu0 0
    %1449 = vmatprep.subr.bf16.mxu0 0
    %1450 = vmatpush1.bf16.msra.mxu0 0
    %1451 = vmatprep.subr.bf16.mxu0 0
    %1452 = vmatpush1.bf16.msra.mxu0 0
    %1453 = vmatprep.subr.bf16.mxu0 0
    %1454 = vmatpush1.bf16.msra.mxu0 0
    %1455 = vmatprep.subr.bf16.mxu0 0
    %1456 = vmatpush1.bf16.msra.mxu0 0
    %1457 = vmatprep.subr.bf16.mxu0 0
    %1458 = vmatpush1.bf16.msra.mxu0 0
    %1459 = vmatprep.mubr.bf16.mxu0 %v1343
    %1460 = vmatmul.mubr.bf16.gmra.mrb[0].mxu0 %v1340
    %v1461 = vpop.f32.mrb[0].mxu0
    %v1462 = vadd.f32 %v1333, %v1461
    %v1463 = vpop.f32.mrb[0].mxu0
    %v1464 = vpop.f32.mrb[0].mxu0
    %v1465 = vpop.f32.mrb[0].mxu0
    %1466 = vdwg.mxu0
    %v1467 = vxor.u32 %v1380, 2147483648
    %v1468 = vxor.u32 %v1382, 2147483648
    %v1469 = vmul.f32 %v1467, 1.442695
    %v1470 = vpow.pop %v1469
    %v1471 = vmul.f32 %v1468, 1.442695
    %v1472 = vpow.pop %v1471
    %v1473 = vadd.f32 %v1470, 1.0
    %v1474 = vadd.f32 %v1472, 1.0
    %v1475 = vrcp.pop %v1473
    %v1476 = vmul.f32 1.0, %v1475
    %v1477 = vrcp.pop %v1474
    %v1478 = vmul.f32 1.0, %v1477
    %v1479 = vxor.u32 %v1421, 2147483648
    %v1480 = vmul.f32 %v1479, 1.442695
    %v1481 = vpow.pop %v1480
    %v1482 = vadd.f32 %v1481, 1.0
    %v1483 = vrcp.pop %v1482
    %v1484 = vmul.f32 1.0, %v1483
    %v1485 = vtanh.pop %v1421
    %v1486 = vtanh.pop %v1423
    %v1487 = vxor.u32 %v1423, 2147483648
    %v1488 = vxor.u32 %v1462, 2147483648
    %v1489 = vmul.f32 %v1487, 1.442695
    %v1490 = vpow.pop %v1489
    %v1491 = vmul.f32 %v1488, 1.442695
    %v1492 = vpow.pop %v1491
    %v1493 = vadd.f32 %v1490, 1.0
    %v1494 = vadd.f32 %v1492, 1.0
    %v1495 = vrcp.pop %v1493
    %v1496 = vmul.f32 1.0, %v1495
    %v1497 = vrcp.pop %v1494
    %v1498 = vmul.f32 1.0, %v1497
    %v1499 = vmul.f32 %v1478, %v1244
    %v1500 = vmul.f32 %v1484, %v1245
    %1503 = vrot.lane.b32.xlu0 %v1485, 64
    %v1504 = vpop.permute.xlu0 %1503
    %1505 = vrot.lane.b32.xlu0 %v1486, 64
    %v1506 = vpop.permute.xlu0 %1505
    %v1507 = vsel %vm674, %v1504, %v1506
    %v1510 = vmul.f32 %v1476, %v1507
    %v1511 = vmul.f32 %v1478, %v1506
    %1514 = vrot.lane.b32.xlu0 %v1510, 32
    %v1515 = vpop.permute.xlu0 %1514
    %1516 = vrot.lane.b32.xlu0 %v1511, 32
    %v1517 = vpop.permute.xlu0 %1516
    %v1518 = vsel %vm508, %v1515, %v1517
    %v1521 = vadd.f32 %v1499, %v1515
    %v1522 = vadd.f32 %v1500, %v1518
    %v1523 = vtanh.pop %v1521
    %v1524 = vtanh.pop %v1522
    %1527 = vrot.lane.b32.xlu0 %v1523, 64
    %v1528 = vpop.permute.xlu0 %1527
    %1529 = vrot.lane.b32.xlu0 %v1524, 64
    %v1530 = vpop.permute.xlu0 %1529
    %v1531 = vsel %vm674, %v1528, %v1530
    %v1534 = vmul.f32 %v1496, %v1528
    %v1535 = vmul.f32 %v1498, %v1531
    %v1536 = vpack.c.bf16 %v1534, %v1534
    %v1537 = vpack.c.bf16 %v1535, %v1535
    %s1538 = scalar_lea.vmem %s0, 40
    %v1539 = vld [vmem:[%s1538] sm:$0xff]
    %v1540 = vld [vmem:[%s1538 + $0x8] sm:$0x3]
    %s1541 = scalar_lea.vmem %s0, 110
    %v1542 = vld [vmem:[%s1541] sm:$0xff]
    %v1543 = vld [vmem:[%s1541 + $0x8] sm:$0x3]
    %v1546 = vcombine.high %v1539, %v1539
    %v1548 = vunpack.c.l.s4 1983009808
    %v1549 = vunpack.c.0.s8 %v1548
    %v1550 = vlaneseq
    %v1551 = vshrl.u32 %v1550, 7
    %v1552 = vsub.s32 %v1549, %v1551
    %v1553 = vrot.slane %v1539, %v1552
    %v1555 = vunpack.c.l.s4 1983009808
    %v1556 = vunpack.c.0.s8 %v1555
    %v1557 = vlaneseq
    %v1558 = vshrl.u32 %v1557, 7
    %v1559 = vsub.s32 %v1556, %v1558
    %v1560 = vrot.slane %v1546, %v1559
    %v1561 = vcombine.high %v1553, %v1553
    %v1562 = vcombine.high %v1560, %v1560
    %v1564 = vunpack.c.l.s4 1983009808
    %v1565 = vunpack.c.0.s8 %v1564
    %v1566 = vlaneseq
    %v1567 = vshrl.u32 %v1566, 7
    %v1568 = vsub.s32 %v1565, %v1567
    %v1569 = vrot.slane %v1540, %v1568
    %v1577 = vcombine.high %v1542, %v1542
    %v1579 = vunpack.c.l.s4 1983009808
    %v1580 = vunpack.c.0.s8 %v1579
    %v1581 = vlaneseq
    %v1582 = vshrl.u32 %v1581, 7
    %v1583 = vsub.s32 %v1580, %v1582
    %v1584 = vrot.slane %v1542, %v1583
    %v1586 = vunpack.c.l.s4 1983009808
    %v1587 = vunpack.c.0.s8 %v1586
    %v1588 = vlaneseq
    %v1589 = vshrl.u32 %v1588, 7
    %v1590 = vsub.s32 %v1587, %v1589
    %v1591 = vrot.slane %v1577, %v1590
    %v1592 = vcombine.high %v1584, %v1584
    %v1593 = vcombine.high %v1591, %v1591
    %v1595 = vunpack.c.l.s4 1983009808
    %v1596 = vunpack.c.0.s8 %v1595
    %v1597 = vlaneseq
    %v1598 = vshrl.u32 %v1597, 7
    %v1599 = vsub.s32 %v1596, %v1598
    %v1600 = vrot.slane %v1543, %v1599
    %v1606 = vsel %vm111, %v1553, %v1584
    %v1607 = vsel %vm112, %v1561, %v1592
    %v1608 = vsel %vm113, %v1560, %v1591
    %v1609 = vsel %vm114, %v1562, %v1593
    %v1610 = vsel %vm115, %v1569, %v1600
    %1613 = vrot.lane.b32.xlu0 %v1536, 32
    %v1614 = vpop.permute.xlu0 %1613
    %1615 = vrot.lane.b32.xlu0 %v1537, 32
    %v1616 = vpop.permute.xlu0 %1615
    %v1617 = vsel %vm785, %v1614, %v1616
    %v1620 = vsel %vm508, %v1616, 0
    %1622 = vmatprep.subr.bf16.mxu0 %v409
    %1623 = vmatpush1.bf16.msra.mxu0 %v408
    %1624 = vmatprep.subr.bf16.mxu0 %v414
    %1625 = vmatpush1.bf16.msra.mxu0 %v413
    %1626 = vmatprep.subr.bf16.mxu0 %v419
    %1627 = vmatpush1.bf16.msra.mxu0 %v418
    %1628 = vmatprep.subr.bf16.mxu0 %v424
    %1629 = vmatpush1.bf16.msra.mxu0 %v423
    %1630 = vmatprep.subr.bf16.mxu0 %v429
    %1631 = vmatpush1.bf16.msra.mxu0 %v428
    %1632 = vmatprep.subr.bf16.mxu0 %v434
    %1633 = vmatpush1.bf16.msra.mxu0 %v433
    %1634 = vmatprep.subr.bf16.mxu0 %v439
    %1635 = vmatpush1.bf16.msra.mxu0 %v438
    %1636 = vmatprep.subr.bf16.mxu0 %v444
    %1637 = vmatpush1.bf16.msra.mxu0 %v443
    %1638 = vmatprep.subr.bf16.mxu0 %v449
    %1639 = vmatpush1.bf16.msra.mxu0 %v448
    %1640 = vmatprep.subr.bf16.mxu0 %v454
    %1641 = vmatpush1.bf16.msra.mxu0 %v453
    %1642 = vmatprep.subr.bf16.mxu0 0
    %1643 = vmatpush1.bf16.msra.mxu0 0
    %1644 = vmatprep.subr.bf16.mxu0 0
    %1645 = vmatpush1.bf16.msra.mxu0 0
    %1646 = vmatprep.subr.bf16.mxu0 0
    %1647 = vmatpush1.bf16.msra.mxu0 0
    %1648 = vmatprep.subr.bf16.mxu0 0
    %1649 = vmatpush1.bf16.msra.mxu0 0
    %1650 = vmatprep.subr.bf16.mxu0 0
    %1651 = vmatpush1.bf16.msra.mxu0 0
    %1652 = vmatprep.subr.bf16.mxu0 0
    %1653 = vmatpush1.bf16.msra.mxu0 0
    %1654 = vmatprep.mubr.bf16.mxu0 %v1620
    %1655 = vmatmul.mubr.bf16.gmra.mrb[0].mxu0 %v1617
    %v1656 = vpop.f32.mrb[0].mxu0
    %v1657 = vadd.f32 %v1606, %v1656
    %v1658 = vpop.f32.mrb[0].mxu0
    %v1659 = vadd.f32 %v1607, %v1658
    %v1660 = vpop.f32.mrb[0].mxu0
    %v1661 = vpop.f32.mrb[0].mxu0
    %1662 = vdwg.mxu0
    %1663 = vmatprep.subr.bf16.mxu0 %v411
    %1664 = vmatpush1.bf16.msra.mxu0 %v410
    %1665 = vmatprep.subr.bf16.mxu0 %v416
    %1666 = vmatpush1.bf16.msra.mxu0 %v415
    %1667 = vmatprep.subr.bf16.mxu0 %v421
    %1668 = vmatpush1.bf16.msra.mxu0 %v420
    %1669 = vmatprep.subr.bf16.mxu0 %v426
    %1670 = vmatpush1.bf16.msra.mxu0 %v425
    %1671 = vmatprep.subr.bf16.mxu0 %v431
    %1672 = vmatpush1.bf16.msra.mxu0 %v430
    %1673 = vmatprep.subr.bf16.mxu0 %v436
    %1674 = vmatpush1.bf16.msra.mxu0 %v435
    %1675 = vmatprep.subr.bf16.mxu0 %v441
    %1676 = vmatpush1.bf16.msra.mxu0 %v440
    %1677 = vmatprep.subr.bf16.mxu0 %v446
    %1678 = vmatpush1.bf16.msra.mxu0 %v445
    %1679 = vmatprep.subr.bf16.mxu0 %v451
    %1680 = vmatpush1.bf16.msra.mxu0 %v450
    %1681 = vmatprep.subr.bf16.mxu0 %v456
    %1682 = vmatpush1.bf16.msra.mxu0 %v455
    %1683 = vmatprep.subr.bf16.mxu0 0
    %1684 = vmatpush1.bf16.msra.mxu0 0
    %1685 = vmatprep.subr.bf16.mxu0 0
    %1686 = vmatpush1.bf16.msra.mxu0 0
    %1687 = vmatprep.subr.bf16.mxu0 0
    %1688 = vmatpush1.bf16.msra.mxu0 0
    %1689 = vmatprep.subr.bf16.mxu0 0
    %1690 = vmatpush1.bf16.msra.mxu0 0
    %1691 = vmatprep.subr.bf16.mxu0 0
    %1692 = vmatpush1.bf16.msra.mxu0 0
    %1693 = vmatprep.subr.bf16.mxu0 0
    %1694 = vmatpush1.bf16.msra.mxu0 0
    %1695 = vmatprep.mubr.bf16.mxu0 %v1620
    %1696 = vmatmul.mubr.bf16.gmra.mrb[0].mxu0 %v1617
    %v1697 = vpop.f32.mrb[0].mxu0
    %v1698 = vadd.f32 %v1608, %v1697
    %v1699 = vpop.f32.mrb[0].mxu0
    %v1700 = vadd.f32 %v1609, %v1699
    %v1701 = vpop.f32.mrb[0].mxu0
    %v1702 = vpop.f32.mrb[0].mxu0
    %1703 = vdwg.mxu0
    %1704 = vmatprep.subr.bf16.mxu0 0
    %1705 = vmatpush1.bf16.msra.mxu0 %v412
    %1706 = vmatprep.subr.bf16.mxu0 0
    %1707 = vmatpush1.bf16.msra.mxu0 %v417
    %1708 = vmatprep.subr.bf16.mxu0 0
    %1709 = vmatpush1.bf16.msra.mxu0 %v422
    %1710 = vmatprep.subr.bf16.mxu0 0
    %1711 = vmatpush1.bf16.msra.mxu0 %v427
    %1712 = vmatprep.subr.bf16.mxu0 0
    %1713 = vmatpush1.bf16.msra.mxu0 %v432
    %1714 = vmatprep.subr.bf16.mxu0 0
    %1715 = vmatpush1.bf16.msra.mxu0 %v437
    %1716 = vmatprep.subr.bf16.mxu0 0
    %1717 = vmatpush1.bf16.msra.mxu0 %v442
    %1718 = vmatprep.subr.bf16.mxu0 0
    %1719 = vmatpush1.bf16.msra.mxu0 %v447
    %1720 = vmatprep.subr.bf16.mxu0 0
    %1721 = vmatpush1.bf16.msra.mxu0 %v452
    %1722 = vmatprep.subr.bf16.mxu0 0
    %1723 = vmatpush1.bf16.msra.mxu0 %v457
    %1724 = vmatprep.subr.bf16.mxu0 0
    %1725 = vmatpush1.bf16.msra.mxu0 0
    %1726 = vmatprep.subr.bf16.mxu0 0
    %1727 = vmatpush1.bf16.msra.mxu0 0
    %1728 = vmatprep.subr.bf16.mxu0 0
    %1729 = vmatpush1.bf16.msra.mxu0 0
    %1730 = vmatprep.subr.bf16.mxu0 0
    %1731 = vmatpush1.bf16.msra.mxu0 0
    %1732 = vmatprep.subr.bf16.mxu0 0
    %1733 = vmatpush1.bf16.msra.mxu0 0
    %1734 = vmatprep.subr.bf16.mxu0 0
    %1735 = vmatpush1.bf16.msra.mxu0 0
    %1736 = vmatprep.mubr.bf16.mxu0 %v1620
    %1737 = vmatmul.mubr.bf16.gmra.mrb[0].mxu0 %v1617
    %v1738 = vpop.f32.mrb[0].mxu0
    %v1739 = vadd.f32 %v1610, %v1738
    %v1740 = vpop.f32.mrb[0].mxu0
    %v1741 = vpop.f32.mrb[0].mxu0
    %v1742 = vpop.f32.mrb[0].mxu0
    %1743 = vdwg.mxu0
    %v1744 = vxor.u32 %v1657, 2147483648
    %v1745 = vxor.u32 %v1659, 2147483648
    %v1746 = vmul.f32 %v1744, 1.442695
    %v1747 = vpow.pop %v1746
    %v1748 = vmul.f32 %v1745, 1.442695
    %v1749 = vpow.pop %v1748
    %v1750 = vadd.f32 %v1747, 1.0
    %v1751 = vadd.f32 %v1749, 1.0
    %v1752 = vrcp.pop %v1750
    %v1753 = vmul.f32 1.0, %v1752
    %v1754 = vrcp.pop %v1751
    %v1755 = vmul.f32 1.0, %v1754
    %v1756 = vxor.u32 %v1698, 2147483648
    %v1757 = vmul.f32 %v1756, 1.442695
    %v1758 = vpow.pop %v1757
    %v1759 = vadd.f32 %v1758, 1.0
    %v1760 = vrcp.pop %v1759
    %v1761 = vmul.f32 1.0, %v1760
    %v1762 = vtanh.pop %v1698
    %v1763 = vtanh.pop %v1700
    %v1764 = vxor.u32 %v1700, 2147483648
    %v1765 = vxor.u32 %v1739, 2147483648
    %v1766 = vmul.f32 %v1764, 1.442695
    %v1767 = vpow.pop %v1766
    %v1768 = vmul.f32 %v1765, 1.442695
    %v1769 = vpow.pop %v1768
    %v1770 = vadd.f32 %v1767, 1.0
    %v1771 = vadd.f32 %v1769, 1.0
    %v1772 = vrcp.pop %v1770
    %v1773 = vmul.f32 1.0, %v1772
    %v1774 = vrcp.pop %v1771
    %v1775 = vmul.f32 1.0, %v1774
    %v1776 = vmul.f32 %v1755, %v1521
    %v1777 = vmul.f32 %v1761, %v1522
    %1780 = vrot.lane.b32.xlu0 %v1762, 64
    %v1781 = vpop.permute.xlu0 %1780
    %1782 = vrot.lane.b32.xlu0 %v1763, 64
    %v1783 = vpop.permute.xlu0 %1782
    %v1784 = vsel %vm674, %v1781, %v1783
    %v1787 = vmul.f32 %v1753, %v1784
    %v1788 = vmul.f32 %v1755, %v1783
    %1791 = vrot.lane.b32.xlu0 %v1787, 32
    %v1792 = vpop.permute.xlu0 %1791
    %1793 = vrot.lane.b32.xlu0 %v1788, 32
    %v1794 = vpop.permute.xlu0 %1793
    %v1795 = vsel %vm508, %v1792, %v1794
    %v1798 = vadd.f32 %v1776, %v1792
    %v1799 = vadd.f32 %v1777, %v1795
    %v1800 = vtanh.pop %v1798
    %v1801 = vtanh.pop %v1799
    %1804 = vrot.lane.b32.xlu0 %v1800, 64
    %v1805 = vpop.permute.xlu0 %1804
    %1806 = vrot.lane.b32.xlu0 %v1801, 64
    %v1807 = vpop.permute.xlu0 %1806
    %v1808 = vsel %vm674, %v1805, %v1807
    %v1811 = vmul.f32 %v1773, %v1805
    %v1812 = vmul.f32 %v1775, %v1808
    %v1813 = vpack.c.bf16 %v1811, %v1811
    %v1814 = vpack.c.bf16 %v1812, %v1812
    %s1815 = scalar_lea.vmem %s0, 50
    %v1816 = vld [vmem:[%s1815] sm:$0xff]
    %v1817 = vld [vmem:[%s1815 + $0x8] sm:$0x3]
    %s1818 = scalar_lea.vmem %s0, 100
    %v1819 = vld [vmem:[%s1818] sm:$0xff]
    %v1820 = vld [vmem:[%s1818 + $0x8] sm:$0x3]
    %v1823 = vcombine.high %v1816, %v1816
    %v1825 = vunpack.c.l.s4 1983009808
    %v1826 = vunpack.c.0.s8 %v1825
    %v1827 = vlaneseq
    %v1828 = vshrl.u32 %v1827, 7
    %v1829 = vsub.s32 %v1826, %v1828
    %v1830 = vrot.slane %v1816, %v1829
    %v1832 = vunpack.c.l.s4 1983009808
    %v1833 = vunpack.c.0.s8 %v1832
    %v1834 = vlaneseq
    %v1835 = vshrl.u32 %v1834, 7
    %v1836 = vsub.s32 %v1833, %v1835
    %v1837 = vrot.slane %v1823, %v1836
    %v1838 = vcombine.high %v1830, %v1830
    %v1839 = vcombine.high %v1837, %v1837
    %v1841 = vunpack.c.l.s4 1983009808
    %v1842 = vunpack.c.0.s8 %v1841
    %v1843 = vlaneseq
    %v1844 = vshrl.u32 %v1843, 7
    %v1845 = vsub.s32 %v1842, %v1844
    %v1846 = vrot.slane %v1817, %v1845
    %v1854 = vcombine.high %v1819, %v1819
    %v1856 = vunpack.c.l.s4 1983009808
    %v1857 = vunpack.c.0.s8 %v1856
    %v1858 = vlaneseq
    %v1859 = vshrl.u32 %v1858, 7
    %v1860 = vsub.s32 %v1857, %v1859
    %v1861 = vrot.slane %v1819, %v1860
    %v1863 = vunpack.c.l.s4 1983009808
    %v1864 = vunpack.c.0.s8 %v1863
    %v1865 = vlaneseq
    %v1866 = vshrl.u32 %v1865, 7
    %v1867 = vsub.s32 %v1864, %v1866
    %v1868 = vrot.slane %v1854, %v1867
    %v1869 = vcombine.high %v1861, %v1861
    %v1870 = vcombine.high %v1868, %v1868
    %v1872 = vunpack.c.l.s4 1983009808
    %v1873 = vunpack.c.0.s8 %v1872
    %v1874 = vlaneseq
    %v1875 = vshrl.u32 %v1874, 7
    %v1876 = vsub.s32 %v1873, %v1875
    %v1877 = vrot.slane %v1820, %v1876
    %v1883 = vsel %vm111, %v1830, %v1861
    %v1884 = vsel %vm112, %v1838, %v1869
    %v1885 = vsel %vm113, %v1837, %v1868
    %v1886 = vsel %vm114, %v1839, %v1870
    %v1887 = vsel %vm115, %v1846, %v1877
    %1890 = vrot.lane.b32.xlu0 %v1813, 32
    %v1891 = vpop.permute.xlu0 %1890
    %1892 = vrot.lane.b32.xlu0 %v1814, 32
    %v1893 = vpop.permute.xlu0 %1892
    %v1894 = vsel %vm785, %v1891, %v1893
    %v1897 = vsel %vm508, %v1893, 0
    %1899 = vmatprep.subr.bf16.mxu0 %v409
    %1900 = vmatpush1.bf16.msra.mxu0 %v408
    %1901 = vmatprep.subr.bf16.mxu0 %v414
    %1902 = vmatpush1.bf16.msra.mxu0 %v413
    %1903 = vmatprep.subr.bf16.mxu0 %v419
    %1904 = vmatpush1.bf16.msra.mxu0 %v418
    %1905 = vmatprep.subr.bf16.mxu0 %v424
    %1906 = vmatpush1.bf16.msra.mxu0 %v423
    %1907 = vmatprep.subr.bf16.mxu0 %v429
    %1908 = vmatpush1.bf16.msra.mxu0 %v428
    %1909 = vmatprep.subr.bf16.mxu0 %v434
    %1910 = vmatpush1.bf16.msra.mxu0 %v433
    %1911 = vmatprep.subr.bf16.mxu0 %v439
    %1912 = vmatpush1.bf16.msra.mxu0 %v438
    %1913 = vmatprep.subr.bf16.mxu0 %v444
    %1914 = vmatpush1.bf16.msra.mxu0 %v443
    %1915 = vmatprep.subr.bf16.mxu0 %v449
    %1916 = vmatpush1.bf16.msra.mxu0 %v448
    %1917 = vmatprep.subr.bf16.mxu0 %v454
    %1918 = vmatpush1.bf16.msra.mxu0 %v453
    %1919 = vmatprep.subr.bf16.mxu0 0
    %1920 = vmatpush1.bf16.msra.mxu0 0
    %1921 = vmatprep.subr.bf16.mxu0 0
    %1922 = vmatpush1.bf16.msra.mxu0 0
    %1923 = vmatprep.subr.bf16.mxu0 0
    %1924 = vmatpush1.bf16.msra.mxu0 0
    %1925 = vmatprep.subr.bf16.mxu0 0
    %1926 = vmatpush1.bf16.msra.mxu0 0
    %1927 = vmatprep.subr.bf16.mxu0 0
    %1928 = vmatpush1.bf16.msra.mxu0 0
    %1929 = vmatprep.subr.bf16.mxu0 0
    %1930 = vmatpush1.bf16.msra.mxu0 0
    %1931 = vmatprep.mubr.bf16.mxu0 %v1897
    %1932 = vmatmul.mubr.bf16.gmra.mrb[0].mxu0 %v1894
    %v1933 = vpop.f32.mrb[0].mxu0
    %v1934 = vadd.f32 %v1883, %v1933
    %v1935 = vpop.f32.mrb[0].mxu0
    %v1936 = vadd.f32 %v1884, %v1935
    %v1937 = vpop.f32.mrb[0].mxu0
    %v1938 = vpop.f32.mrb[0].mxu0
    %1939 = vdwg.mxu0
    %1940 = vmatprep.subr.bf16.mxu0 %v411
    %1941 = vmatpush1.bf16.msra.mxu0 %v410
    %1942 = vmatprep.subr.bf16.mxu0 %v416
    %1943 = vmatpush1.bf16.msra.mxu0 %v415
    %1944 = vmatprep.subr.bf16.mxu0 %v421
    %1945 = vmatpush1.bf16.msra.mxu0 %v420
    %1946 = vmatprep.subr.bf16.mxu0 %v426
    %1947 = vmatpush1.bf16.msra.mxu0 %v425
    %1948 = vmatprep.subr.bf16.mxu0 %v431
    %1949 = vmatpush1.bf16.msra.mxu0 %v430
    %1950 = vmatprep.subr.bf16.mxu0 %v436
    %1951 = vmatpush1.bf16.msra.mxu0 %v435
    %1952 = vmatprep.subr.bf16.mxu0 %v441
    %1953 = vmatpush1.bf16.msra.mxu0 %v440
    %1954 = vmatprep.subr.bf16.mxu0 %v446
    %1955 = vmatpush1.bf16.msra.mxu0 %v445
    %1956 = vmatprep.subr.bf16.mxu0 %v451
    %1957 = vmatpush1.bf16.msra.mxu0 %v450
    %1958 = vmatprep.subr.bf16.mxu0 %v456
    %1959 = vmatpush1.bf16.msra.mxu0 %v455
    %1960 = vmatprep.subr.bf16.mxu0 0
    %1961 = vmatpush1.bf16.msra.mxu0 0
    %1962 = vmatprep.subr.bf16.mxu0 0
    %1963 = vmatpush1.bf16.msra.mxu0 0
    %1964 = vmatprep.subr.bf16.mxu0 0
    %1965 = vmatpush1.bf16.msra.mxu0 0
    %1966 = vmatprep.subr.bf16.mxu0 0
    %1967 = vmatpush1.bf16.msra.mxu0 0
    %1968 = vmatprep.subr.bf16.mxu0 0
    %1969 = vmatpush1.bf16.msra.mxu0 0
    %1970 = vmatprep.subr.bf16.mxu0 0
    %1971 = vmatpush1.bf16.msra.mxu0 0
    %1972 = vmatprep.mubr.bf16.mxu0 %v1897
    %1973 = vmatmul.mubr.bf16.gmra.mrb[0].mxu0 %v1894
    %v1974 = vpop.f32.mrb[0].mxu0
    %v1975 = vadd.f32 %v1885, %v1974
    %v1976 = vpop.f32.mrb[0].mxu0
    %v1977 = vadd.f32 %v1886, %v1976
    %v1978 = vpop.f32.mrb[0].mxu0
    %v1979 = vpop.f32.mrb[0].mxu0
    %1980 = vdwg.mxu0
    %1981 = vmatprep.subr.bf16.mxu0 0
    %1982 = vmatpush1.bf16.msra.mxu0 %v412
    %1983 = vmatprep.subr.bf16.mxu0 0
    %1984 = vmatpush1.bf16.msra.mxu0 %v417
    %1985 = vmatprep.subr.bf16.mxu0 0
    %1986 = vmatpush1.bf16.msra.mxu0 %v422
    %1987 = vmatprep.subr.bf16.mxu0 0
    %1988 = vmatpush1.bf16.msra.mxu0 %v427
    %1989 = vmatprep.subr.bf16.mxu0 0
    %1990 = vmatpush1.bf16.msra.mxu0 %v432
    %1991 = vmatprep.subr.bf16.mxu0 0
    %1992 = vmatpush1.bf16.msra.mxu0 %v437
    %1993 = vmatprep.subr.bf16.mxu0 0
    %1994 = vmatpush1.bf16.msra.mxu0 %v442
    %1995 = vmatprep.subr.bf16.mxu0 0
    %1996 = vmatpush1.bf16.msra.mxu0 %v447
    %1997 = vmatprep.subr.bf16.mxu0 0
    %1998 = vmatpush1.bf16.msra.mxu0 %v452
    %1999 = vmatprep.subr.bf16.mxu0 0
    %2000 = vmatpush1.bf16.msra.mxu0 %v457
    %2001 = vmatprep.subr.bf16.mxu0 0
    %2002 = vmatpush1.bf16.msra.mxu0 0
    %2003 = vmatprep.subr.bf16.mxu0 0
    %2004 = vmatpush1.bf16.msra.mxu0 0
    %2005 = vmatprep.subr.bf16.mxu0 0
    %2006 = vmatpush1.bf16.msra.mxu0 0
    %2007 = vmatprep.subr.bf16.mxu0 0
    %2008 = vmatpush1.bf16.msra.mxu0 0
    %2009 = vmatprep.subr.bf16.mxu0 0
    %2010 = vmatpush1.bf16.msra.mxu0 0
    %2011 = vmatprep.subr.bf16.mxu0 0
    %2012 = vmatpush1.bf16.msra.mxu0 0
    %2013 = vmatprep.mubr.bf16.mxu0 %v1897
    %2014 = vmatmul.mubr.bf16.gmra.mrb[0].mxu0 %v1894
    %v2015 = vpop.f32.mrb[0].mxu0
    %v2016 = vadd.f32 %v1887, %v2015
    %v2017 = vpop.f32.mrb[0].mxu0
    %v2018 = vpop.f32.mrb[0].mxu0
    %v2019 = vpop.f32.mrb[0].mxu0
    %2020 = vdwg.mxu0
    %v2021 = vxor.u32 %v1934, 2147483648
    %v2022 = vxor.u32 %v1936, 2147483648
    %v2023 = vmul.f32 %v2021, 1.442695
    %v2024 = vpow.pop %v2023
    %v2025 = vmul.f32 %v2022, 1.442695
    %v2026 = vpow.pop %v2025
    %v2027 = vadd.f32 %v2024, 1.0
    %v2028 = vadd.f32 %v2026, 1.0
    %v2029 = vrcp.pop %v2027
    %v2030 = vmul.f32 1.0, %v2029
    %v2031 = vrcp.pop %v2028
    %v2032 = vmul.f32 1.0, %v2031
    %v2033 = vxor.u32 %v1975, 2147483648
    %v2034 = vmul.f32 %v2033, 1.442695
    %v2035 = vpow.pop %v2034
    %v2036 = vadd.f32 %v2035, 1.0
    %v2037 = vrcp.pop %v2036
    %v2038 = vmul.f32 1.0, %v2037
    %v2039 = vtanh.pop %v1975
    %v2040 = vtanh.pop %v1977
    %v2041 = vxor.u32 %v1977, 2147483648
    %v2042 = vxor.u32 %v2016, 2147483648
    %v2043 = vmul.f32 %v2041, 1.442695
    %v2044 = vpow.pop %v2043
    %v2045 = vmul.f32 %v2042, 1.442695
    %v2046 = vpow.pop %v2045
    %v2047 = vadd.f32 %v2044, 1.0
    %v2048 = vadd.f32 %v2046, 1.0
    %v2049 = vrcp.pop %v2047
    %v2050 = vmul.f32 1.0, %v2049
    %v2051 = vrcp.pop %v2048
    %v2052 = vmul.f32 1.0, %v2051
    %v2053 = vmul.f32 %v2032, %v1798
    %v2054 = vmul.f32 %v2038, %v1799
    %2057 = vrot.lane.b32.xlu0 %v2039, 64
    %v2058 = vpop.permute.xlu0 %2057
    %2059 = vrot.lane.b32.xlu0 %v2040, 64
    %v2060 = vpop.permute.xlu0 %2059
    %v2061 = vsel %vm674, %v2058, %v2060
    %v2064 = vmul.f32 %v2030, %v2061
    %v2065 = vmul.f32 %v2032, %v2060
    %2068 = vrot.lane.b32.xlu0 %v2064, 32
    %v2069 = vpop.permute.xlu0 %2068
    %2070 = vrot.lane.b32.xlu0 %v2065, 32
    %v2071 = vpop.permute.xlu0 %2070
    %v2072 = vsel %vm508, %v2069, %v2071
    %v2075 = vadd.f32 %v2053, %v2069
    %v2076 = vadd.f32 %v2054, %v2072
    %v2077 = vtanh.pop %v2075
    %v2078 = vtanh.pop %v2076
    %2081 = vrot.lane.b32.xlu0 %v2077, 64
    %v2082 = vpop.permute.xlu0 %2081
    %2083 = vrot.lane.b32.xlu0 %v2078, 64
    %v2084 = vpop.permute.xlu0 %2083
    %v2085 = vsel %vm674, %v2082, %v2084
    %v2088 = vmul.f32 %v2050, %v2082
    %v2089 = vmul.f32 %v2052, %v2085
    %v2090 = vpack.c.bf16 %v2088, %v2088
    %v2091 = vpack.c.bf16 %v2089, %v2089
    %s2092 = scalar_lea.vmem %s0, 60
    %v2093 = vld [vmem:[%s2092] sm:$0xff]
    %v2094 = vld [vmem:[%s2092 + $0x8] sm:$0x3]
    %s2095 = scalar_lea.vmem %s0, 90
    %v2096 = vld [vmem:[%s2095] sm:$0xff]
    %v2097 = vld [vmem:[%s2095 + $0x8] sm:$0x3]
    %v2100 = vcombine.high %v2093, %v2093
    %v2102 = vunpack.c.l.s4 1983009808
    %v2103 = vunpack.c.0.s8 %v2102
    %v2104 = vlaneseq
    %v2105 = vshrl.u32 %v2104, 7
    %v2106 = vsub.s32 %v2103, %v2105
    %v2107 = vrot.slane %v2093, %v2106
    %v2109 = vunpack.c.l.s4 1983009808
    %v2110 = vunpack.c.0.s8 %v2109
    %v2111 = vlaneseq
    %v2112 = vshrl.u32 %v2111, 7
    %v2113 = vsub.s32 %v2110, %v2112
    %v2114 = vrot.slane %v2100, %v2113
    %v2115 = vcombine.high %v2107, %v2107
    %v2116 = vcombine.high %v2114, %v2114
    %v2118 = vunpack.c.l.s4 1983009808
    %v2119 = vunpack.c.0.s8 %v2118
    %v2120 = vlaneseq
    %v2121 = vshrl.u32 %v2120, 7
    %v2122 = vsub.s32 %v2119, %v2121
    %v2123 = vrot.slane %v2094, %v2122
    %v2131 = vcombine.high %v2096, %v2096
    %v2133 = vunpack.c.l.s4 1983009808
    %v2134 = vunpack.c.0.s8 %v2133
    %v2135 = vlaneseq
    %v2136 = vshrl.u32 %v2135, 7
    %v2137 = vsub.s32 %v2134, %v2136
    %v2138 = vrot.slane %v2096, %v2137
    %v2140 = vunpack.c.l.s4 1983009808
    %v2141 = vunpack.c.0.s8 %v2140
    %v2142 = vlaneseq
    %v2143 = vshrl.u32 %v2142, 7
    %v2144 = vsub.s32 %v2141, %v2143
    %v2145 = vrot.slane %v2131, %v2144
    %v2146 = vcombine.high %v2138, %v2138
    %v2147 = vcombine.high %v2145, %v2145
    %v2149 = vunpack.c.l.s4 1983009808
    %v2150 = vunpack.c.0.s8 %v2149
    %v2151 = vlaneseq
    %v2152 = vshrl.u32 %v2151, 7
    %v2153 = vsub.s32 %v2150, %v2152
    %v2154 = vrot.slane %v2097, %v2153
    %v2160 = vsel %vm111, %v2107, %v2138
    %v2161 = vsel %vm112, %v2115, %v2146
    %v2162 = vsel %vm113, %v2114, %v2145
    %v2163 = vsel %vm114, %v2116, %v2147
    %v2164 = vsel %vm115, %v2123, %v2154
    %2167 = vrot.lane.b32.xlu0 %v2090, 32
    %v2168 = vpop.permute.xlu0 %2167
    %2169 = vrot.lane.b32.xlu0 %v2091, 32
    %v2170 = vpop.permute.xlu0 %2169
    %v2171 = vsel %vm785, %v2168, %v2170
    %v2174 = vsel %vm508, %v2170, 0
    %2176 = vmatprep.subr.bf16.mxu0 %v409
    %2177 = vmatpush1.bf16.msra.mxu0 %v408
    %2178 = vmatprep.subr.bf16.mxu0 %v414
    %2179 = vmatpush1.bf16.msra.mxu0 %v413
    %2180 = vmatprep.subr.bf16.mxu0 %v419
    %2181 = vmatpush1.bf16.msra.mxu0 %v418
    %2182 = vmatprep.subr.bf16.mxu0 %v424
    %2183 = vmatpush1.bf16.msra.mxu0 %v423
    %2184 = vmatprep.subr.bf16.mxu0 %v429
    %2185 = vmatpush1.bf16.msra.mxu0 %v428
    %2186 = vmatprep.subr.bf16.mxu0 %v434
    %2187 = vmatpush1.bf16.msra.mxu0 %v433
    %2188 = vmatprep.subr.bf16.mxu0 %v439
    %2189 = vmatpush1.bf16.msra.mxu0 %v438
    %2190 = vmatprep.subr.bf16.mxu0 %v444
    %2191 = vmatpush1.bf16.msra.mxu0 %v443
    %2192 = vmatprep.subr.bf16.mxu0 %v449
    %2193 = vmatpush1.bf16.msra.mxu0 %v448
    %2194 = vmatprep.subr.bf16.mxu0 %v454
    %2195 = vmatpush1.bf16.msra.mxu0 %v453
    %2196 = vmatprep.subr.bf16.mxu0 0
    %2197 = vmatpush1.bf16.msra.mxu0 0
    %2198 = vmatprep.subr.bf16.mxu0 0
    %2199 = vmatpush1.bf16.msra.mxu0 0
    %2200 = vmatprep.subr.bf16.mxu0 0
    %2201 = vmatpush1.bf16.msra.mxu0 0
    %2202 = vmatprep.subr.bf16.mxu0 0
    %2203 = vmatpush1.bf16.msra.mxu0 0
    %2204 = vmatprep.subr.bf16.mxu0 0
    %2205 = vmatpush1.bf16.msra.mxu0 0
    %2206 = vmatprep.subr.bf16.mxu0 0
    %2207 = vmatpush1.bf16.msra.mxu0 0
    %2208 = vmatprep.mubr.bf16.mxu0 %v2174
    %2209 = vmatmul.mubr.bf16.gmra.mrb[0].mxu0 %v2171
    %v2210 = vpop.f32.mrb[0].mxu0
    %v2211 = vadd.f32 %v2160, %v2210
    %v2212 = vpop.f32.mrb[0].mxu0
    %v2213 = vadd.f32 %v2161, %v2212
    %v2214 = vpop.f32.mrb[0].mxu0
    %v2215 = vpop.f32.mrb[0].mxu0
    %2216 = vdwg.mxu0
    %2217 = vmatprep.subr.bf16.mxu0 %v411
    %2218 = vmatpush1.bf16.msra.mxu0 %v410
    %2219 = vmatprep.subr.bf16.mxu0 %v416
    %2220 = vmatpush1.bf16.msra.mxu0 %v415
    %2221 = vmatprep.subr.bf16.mxu0 %v421
    %2222 = vmatpush1.bf16.msra.mxu0 %v420
    %2223 = vmatprep.subr.bf16.mxu0 %v426
    %2224 = vmatpush1.bf16.msra.mxu0 %v425
    %2225 = vmatprep.subr.bf16.mxu0 %v431
    %2226 = vmatpush1.bf16.msra.mxu0 %v430
    %2227 = vmatprep.subr.bf16.mxu0 %v436
    %2228 = vmatpush1.bf16.msra.mxu0 %v435
    %2229 = vmatprep.subr.bf16.mxu0 %v441
    %2230 = vmatpush1.bf16.msra.mxu0 %v440
    %2231 = vmatprep.subr.bf16.mxu0 %v446
    %2232 = vmatpush1.bf16.msra.mxu0 %v445
    %2233 = vmatprep.subr.bf16.mxu0 %v451
    %2234 = vmatpush1.bf16.msra.mxu0 %v450
    %2235 = vmatprep.subr.bf16.mxu0 %v456
    %2236 = vmatpush1.bf16.msra.mxu0 %v455
    %2237 = vmatprep.subr.bf16.mxu0 0
    %2238 = vmatpush1.bf16.msra.mxu0 0
    %2239 = vmatprep.subr.bf16.mxu0 0
    %2240 = vmatpush1.bf16.msra.mxu0 0
    %2241 = vmatprep.subr.bf16.mxu0 0
    %2242 = vmatpush1.bf16.msra.mxu0 0
    %2243 = vmatprep.subr.bf16.mxu0 0
    %2244 = vmatpush1.bf16.msra.mxu0 0
    %2245 = vmatprep.subr.bf16.mxu0 0
    %2246 = vmatpush1.bf16.msra.mxu0 0
    %2247 = vmatprep.subr.bf16.mxu0 0
    %2248 = vmatpush1.bf16.msra.mxu0 0
    %2249 = vmatprep.mubr.bf16.mxu0 %v2174
    %2250 = vmatmul.mubr.bf16.gmra.mrb[0].mxu0 %v2171
    %v2251 = vpop.f32.mrb[0].mxu0
    %v2252 = vadd.f32 %v2162, %v2251
    %v2253 = vpop.f32.mrb[0].mxu0
    %v2254 = vadd.f32 %v2163, %v2253
    %v2255 = vpop.f32.mrb[0].mxu0
    %v2256 = vpop.f32.mrb[0].mxu0
    %2257 = vdwg.mxu0
    %2258 = vmatprep.subr.bf16.mxu0 0
    %2259 = vmatpush1.bf16.msra.mxu0 %v412
    %2260 = vmatprep.subr.bf16.mxu0 0
    %2261 = vmatpush1.bf16.msra.mxu0 %v417
    %2262 = vmatprep.subr.bf16.mxu0 0
    %2263 = vmatpush1.bf16.msra.mxu0 %v422
    %2264 = vmatprep.subr.bf16.mxu0 0
    %2265 = vmatpush1.bf16.msra.mxu0 %v427
    %2266 = vmatprep.subr.bf16.mxu0 0
    %2267 = vmatpush1.bf16.msra.mxu0 %v432
    %2268 = vmatprep.subr.bf16.mxu0 0
    %2269 = vmatpush1.bf16.msra.mxu0 %v437
    %2270 = vmatprep.subr.bf16.mxu0 0
    %2271 = vmatpush1.bf16.msra.mxu0 %v442
    %2272 = vmatprep.subr.bf16.mxu0 0
    %2273 = vmatpush1.bf16.msra.mxu0 %v447
    %2274 = vmatprep.subr.bf16.mxu0 0
    %2275 = vmatpush1.bf16.msra.mxu0 %v452
    %2276 = vmatprep.subr.bf16.mxu0 0
    %2277 = vmatpush1.bf16.msra.mxu0 %v457
    %2278 = vmatprep.subr.bf16.mxu0 0
    %2279 = vmatpush1.bf16.msra.mxu0 0
    %2280 = vmatprep.subr.bf16.mxu0 0
    %2281 = vmatpush1.bf16.msra.mxu0 0
    %2282 = vmatprep.subr.bf16.mxu0 0
    %2283 = vmatpush1.bf16.msra.mxu0 0
    %2284 = vmatprep.subr.bf16.mxu0 0
    %2285 = vmatpush1.bf16.msra.mxu0 0
    %2286 = vmatprep.subr.bf16.mxu0 0
    %2287 = vmatpush1.bf16.msra.mxu0 0
    %2288 = vmatprep.subr.bf16.mxu0 0
    %2289 = vmatpush1.bf16.msra.mxu0 0
    %2290 = vmatprep.mubr.bf16.mxu0 %v2174
    %2291 = vmatmul.mubr.bf16.gmra.mrb[0].mxu0 %v2171
    %v2292 = vpop.f32.mrb[0].mxu0
    %v2293 = vadd.f32 %v2164, %v2292
    %v2294 = vpop.f32.mrb[0].mxu0
    %v2295 = vpop.f32.mrb[0].mxu0
    %v2296 = vpop.f32.mrb[0].mxu0
    %2297 = vdwg.mxu0
    %v2298 = vxor.u32 %v2211, 2147483648
    %v2299 = vxor.u32 %v2213, 2147483648
    %v2300 = vmul.f32 %v2298, 1.442695
    %v2301 = vpow.pop %v2300
    %v2302 = vmul.f32 %v2299, 1.442695
    %v2303 = vpow.pop %v2302
    %v2304 = vadd.f32 %v2301, 1.0
    %v2305 = vadd.f32 %v2303, 1.0
    %v2306 = vrcp.pop %v2304
    %v2307 = vmul.f32 1.0, %v2306
    %v2308 = vrcp.pop %v2305
    %v2309 = vmul.f32 1.0, %v2308
    %v2310 = vxor.u32 %v2252, 2147483648
    %v2311 = vmul.f32 %v2310, 1.442695
    %v2312 = vpow.pop %v2311
    %v2313 = vadd.f32 %v2312, 1.0
    %v2314 = vrcp.pop %v2313
    %v2315 = vmul.f32 1.0, %v2314
    %v2316 = vtanh.pop %v2252
    %v2317 = vtanh.pop %v2254
    %v2318 = vxor.u32 %v2254, 2147483648
    %v2319 = vxor.u32 %v2293, 2147483648
    %v2320 = vmul.f32 %v2318, 1.442695
    %v2321 = vpow.pop %v2320
    %v2322 = vmul.f32 %v2319, 1.442695
    %v2323 = vpow.pop %v2322
    %v2324 = vadd.f32 %v2321, 1.0
    %v2325 = vadd.f32 %v2323, 1.0
    %v2326 = vrcp.pop %v2324
    %v2327 = vmul.f32 1.0, %v2326
    %v2328 = vrcp.pop %v2325
    %v2329 = vmul.f32 1.0, %v2328
    %v2330 = vmul.f32 %v2309, %v2075
    %v2331 = vmul.f32 %v2315, %v2076
    %2334 = vrot.lane.b32.xlu0 %v2316, 64
    %v2335 = vpop.permute.xlu0 %2334
    %2336 = vrot.lane.b32.xlu0 %v2317, 64
    %v2337 = vpop.permute.xlu0 %2336
    %v2338 = vsel %vm674, %v2335, %v2337
    %v2341 = vmul.f32 %v2307, %v2338
    %v2342 = vmul.f32 %v2309, %v2337
    %2345 = vrot.lane.b32.xlu0 %v2341, 32
    %v2346 = vpop.permute.xlu0 %2345
    %2347 = vrot.lane.b32.xlu0 %v2342, 32
    %v2348 = vpop.permute.xlu0 %2347
    %v2349 = vsel %vm508, %v2346, %v2348
    %v2352 = vadd.f32 %v2330, %v2346
    %v2353 = vadd.f32 %v2331, %v2349
    %v2354 = vtanh.pop %v2352
    %v2355 = vtanh.pop %v2353
    %2358 = vrot.lane.b32.xlu0 %v2354, 64
    %v2359 = vpop.permute.xlu0 %2358
    %2360 = vrot.lane.b32.xlu0 %v2355, 64
    %v2361 = vpop.permute.xlu0 %2360
    %v2362 = vsel %vm674, %v2359, %v2361
    %v2365 = vmul.f32 %v2327, %v2359
    %v2366 = vmul.f32 %v2329, %v2362
    %v2367 = vpack.c.bf16 %v2365, %v2365
    %v2368 = vpack.c.bf16 %v2366, %v2366
    %s2369 = scalar_lea.vmem %s0, 70
    %v2370 = vld [vmem:[%s2369] sm:$0xff]
    %v2371 = vld [vmem:[%s2369 + $0x8] sm:$0x3]
    %s2372 = scalar_lea.vmem %s0, 80
    %v2373 = vld [vmem:[%s2372] sm:$0xff]
    %v2374 = vld [vmem:[%s2372 + $0x8] sm:$0x3]
    %v2377 = vcombine.high %v2370, %v2370
    %v2379 = vunpack.c.l.s4 1983009808
    %v2380 = vunpack.c.0.s8 %v2379
    %v2381 = vlaneseq
    %v2382 = vshrl.u32 %v2381, 7
    %v2383 = vsub.s32 %v2380, %v2382
    %v2384 = vrot.slane %v2370, %v2383
    %v2386 = vunpack.c.l.s4 1983009808
    %v2387 = vunpack.c.0.s8 %v2386
    %v2388 = vlaneseq
    %v2389 = vshrl.u32 %v2388, 7
    %v2390 = vsub.s32 %v2387, %v2389
    %v2391 = vrot.slane %v2377, %v2390
    %v2392 = vcombine.high %v2384, %v2384
    %v2393 = vcombine.high %v2391, %v2391
    %v2395 = vunpack.c.l.s4 1983009808
    %v2396 = vunpack.c.0.s8 %v2395
    %v2397 = vlaneseq
    %v2398 = vshrl.u32 %v2397, 7
    %v2399 = vsub.s32 %v2396, %v2398
    %v2400 = vrot.slane %v2371, %v2399
    %v2408 = vcombine.high %v2373, %v2373
    %v2410 = vunpack.c.l.s4 1983009808
    %v2411 = vunpack.c.0.s8 %v2410
    %v2412 = vlaneseq
    %v2413 = vshrl.u32 %v2412, 7
    %v2414 = vsub.s32 %v2411, %v2413
    %v2415 = vrot.slane %v2373, %v2414
    %v2417 = vunpack.c.l.s4 1983009808
    %v2418 = vunpack.c.0.s8 %v2417
    %v2419 = vlaneseq
    %v2420 = vshrl.u32 %v2419, 7
    %v2421 = vsub.s32 %v2418, %v2420
    %v2422 = vrot.slane %v2408, %v2421
    %v2423 = vcombine.high %v2415, %v2415
    %v2424 = vcombine.high %v2422, %v2422
    %v2426 = vunpack.c.l.s4 1983009808
    %v2427 = vunpack.c.0.s8 %v2426
    %v2428 = vlaneseq
    %v2429 = vshrl.u32 %v2428, 7
    %v2430 = vsub.s32 %v2427, %v2429
    %v2431 = vrot.slane %v2374, %v2430
    %v2437 = vsel %vm111, %v2384, %v2415
    %v2438 = vsel %vm112, %v2392, %v2423
    %v2439 = vsel %vm113, %v2391, %v2422
    %v2440 = vsel %vm114, %v2393, %v2424
    %v2441 = vsel %vm115, %v2400, %v2431
    %2444 = vrot.lane.b32.xlu0 %v2367, 32
    %v2445 = vpop.permute.xlu0 %2444
    %2446 = vrot.lane.b32.xlu0 %v2368, 32
    %v2447 = vpop.permute.xlu0 %2446
    %v2448 = vsel %vm785, %v2445, %v2447
    %v2451 = vsel %vm508, %v2447, 0
    %2453 = vmatprep.subr.bf16.mxu0 %v409
    %2454 = vmatpush1.bf16.msra.mxu0 %v408
    %2455 = vmatprep.subr.bf16.mxu0 %v414
    %2456 = vmatpush1.bf16.msra.mxu0 %v413
    %2457 = vmatprep.subr.bf16.mxu0 %v419
    %2458 = vmatpush1.bf16.msra.mxu0 %v418
    %2459 = vmatprep.subr.bf16.mxu0 %v424
    %2460 = vmatpush1.bf16.msra.mxu0 %v423
    %2461 = vmatprep.subr.bf16.mxu0 %v429
    %2462 = vmatpush1.bf16.msra.mxu0 %v428
    %2463 = vmatprep.subr.bf16.mxu0 %v434
    %2464 = vmatpush1.bf16.msra.mxu0 %v433
    %2465 = vmatprep.subr.bf16.mxu0 %v439
    %2466 = vmatpush1.bf16.msra.mxu0 %v438
    %2467 = vmatprep.subr.bf16.mxu0 %v444
    %2468 = vmatpush1.bf16.msra.mxu0 %v443
    %2469 = vmatprep.subr.bf16.mxu0 %v449
    %2470 = vmatpush1.bf16.msra.mxu0 %v448
    %2471 = vmatprep.subr.bf16.mxu0 %v454
    %2472 = vmatpush1.bf16.msra.mxu0 %v453
    %2473 = vmatprep.subr.bf16.mxu0 0
    %2474 = vmatpush1.bf16.msra.mxu0 0
    %2475 = vmatprep.subr.bf16.mxu0 0
    %2476 = vmatpush1.bf16.msra.mxu0 0
    %2477 = vmatprep.subr.bf16.mxu0 0
    %2478 = vmatpush1.bf16.msra.mxu0 0
    %2479 = vmatprep.subr.bf16.mxu0 0
    %2480 = vmatpush1.bf16.msra.mxu0 0
    %2481 = vmatprep.subr.bf16.mxu0 0
    %2482 = vmatpush1.bf16.msra.mxu0 0
    %2483 = vmatprep.subr.bf16.mxu0 0
    %2484 = vmatpush1.bf16.msra.mxu0 0
    %2485 = vmatprep.mubr.bf16.mxu0 %v2451
    %2486 = vmatmul.mubr.bf16.gmra.mrb[0].mxu0 %v2448
    %v2487 = vpop.f32.mrb[0].mxu0
    %v2488 = vadd.f32 %v2437, %v2487
    %v2489 = vpop.f32.mrb[0].mxu0
    %v2490 = vadd.f32 %v2438, %v2489
    %v2491 = vpop.f32.mrb[0].mxu0
    %v2492 = vpop.f32.mrb[0].mxu0
    %2493 = vdwg.mxu0
    %2494 = vmatprep.subr.bf16.mxu0 %v411
    %2495 = vmatpush1.bf16.msra.mxu0 %v410
    %2496 = vmatprep.subr.bf16.mxu0 %v416
    %2497 = vmatpush1.bf16.msra.mxu0 %v415
    %2498 = vmatprep.subr.bf16.mxu0 %v421
    %2499 = vmatpush1.bf16.msra.mxu0 %v420
    %2500 = vmatprep.subr.bf16.mxu0 %v426
    %2501 = vmatpush1.bf16.msra.mxu0 %v425
    %2502 = vmatprep.subr.bf16.mxu0 %v431
    %2503 = vmatpush1.bf16.msra.mxu0 %v430
    %2504 = vmatprep.subr.bf16.mxu0 %v436
    %2505 = vmatpush1.bf16.msra.mxu0 %v435
    %2506 = vmatprep.subr.bf16.mxu0 %v441
    %2507 = vmatpush1.bf16.msra.mxu0 %v440
    %2508 = vmatprep.subr.bf16.mxu0 %v446
    %2509 = vmatpush1.bf16.msra.mxu0 %v445
    %2510 = vmatprep.subr.bf16.mxu0 %v451
    %2511 = vmatpush1.bf16.msra.mxu0 %v450
    %2512 = vmatprep.subr.bf16.mxu0 %v456
    %2513 = vmatpush1.bf16.msra.mxu0 %v455
    %2514 = vmatprep.subr.bf16.mxu0 0
    %2515 = vmatpush1.bf16.msra.mxu0 0
    %2516 = vmatprep.subr.bf16.mxu0 0
    %2517 = vmatpush1.bf16.msra.mxu0 0
    %2518 = vmatprep.subr.bf16.mxu0 0
    %2519 = vmatpush1.bf16.msra.mxu0 0
    %2520 = vmatprep.subr.bf16.mxu0 0
    %2521 = vmatpush1.bf16.msra.mxu0 0
    %2522 = vmatprep.subr.bf16.mxu0 0
    %2523 = vmatpush1.bf16.msra.mxu0 0
    %2524 = vmatprep.subr.bf16.mxu0 0
    %2525 = vmatpush1.bf16.msra.mxu0 0
    %2526 = vmatprep.mubr.bf16.mxu0 %v2451
    %2527 = vmatmul.mubr.bf16.gmra.mrb[0].mxu0 %v2448
    %v2528 = vpop.f32.mrb[0].mxu0
    %v2529 = vadd.f32 %v2439, %v2528
    %v2530 = vpop.f32.mrb[0].mxu0
    %v2531 = vadd.f32 %v2440, %v2530
    %v2532 = vpop.f32.mrb[0].mxu0
    %v2533 = vpop.f32.mrb[0].mxu0
    %2534 = vdwg.mxu0
    %2535 = vmatprep.subr.bf16.mxu0 0
    %2536 = vmatpush1.bf16.msra.mxu0 %v412
    %2537 = vmatprep.subr.bf16.mxu0 0
    %2538 = vmatpush1.bf16.msra.mxu0 %v417
    %2539 = vmatprep.subr.bf16.mxu0 0
    %2540 = vmatpush1.bf16.msra.mxu0 %v422
    %2541 = vmatprep.subr.bf16.mxu0 0
    %2542 = vmatpush1.bf16.msra.mxu0 %v427
    %2543 = vmatprep.subr.bf16.mxu0 0
    %2544 = vmatpush1.bf16.msra.mxu0 %v432
    %2545 = vmatprep.subr.bf16.mxu0 0
    %2546 = vmatpush1.bf16.msra.mxu0 %v437
    %2547 = vmatprep.subr.bf16.mxu0 0
    %2548 = vmatpush1.bf16.msra.mxu0 %v442
    %2549 = vmatprep.subr.bf16.mxu0 0
    %2550 = vmatpush1.bf16.msra.mxu0 %v447
    %2551 = vmatprep.subr.bf16.mxu0 0
    %2552 = vmatpush1.bf16.msra.mxu0 %v452
    %2553 = vmatprep.subr.bf16.mxu0 0
    %2554 = vmatpush1.bf16.msra.mxu0 %v457
    %2555 = vmatprep.subr.bf16.mxu0 0
    %2556 = vmatpush1.bf16.msra.mxu0 0
    %2557 = vmatprep.subr.bf16.mxu0 0
    %2558 = vmatpush1.bf16.msra.mxu0 0
    %2559 = vmatprep.subr.bf16.mxu0 0
    %2560 = vmatpush1.bf16.msra.mxu0 0
    %2561 = vmatprep.subr.bf16.mxu0 0
    %2562 = vmatpush1.bf16.msra.mxu0 0
    %2563 = vmatprep.subr.bf16.mxu0 0
    %2564 = vmatpush1.bf16.msra.mxu0 0
    %2565 = vmatprep.subr.bf16.mxu0 0
    %2566 = vmatpush1.bf16.msra.mxu0 0
    %2567 = vmatprep.mubr.bf16.mxu0 %v2451
    %2568 = vmatmul.mubr.bf16.gmra.mrb[0].mxu0 %v2448
    %v2569 = vpop.f32.mrb[0].mxu0
    %v2570 = vadd.f32 %v2441, %v2569
    %v2571 = vpop.f32.mrb[0].mxu0
    %v2572 = vpop.f32.mrb[0].mxu0
    %v2573 = vpop.f32.mrb[0].mxu0
    %2574 = vdwg.mxu0
    %v2575 = vxor.u32 %v2488, 2147483648
    %v2576 = vxor.u32 %v2490, 2147483648
    %v2577 = vmul.f32 %v2575, 1.442695
    %v2578 = vpow.pop %v2577
    %v2579 = vmul.f32 %v2576, 1.442695
    %v2580 = vpow.pop %v2579
    %v2581 = vadd.f32 %v2578, 1.0
    %v2582 = vadd.f32 %v2580, 1.0
    %v2583 = vrcp.pop %v2581
    %v2584 = vmul.f32 1.0, %v2583
    %v2585 = vrcp.pop %v2582
    %v2586 = vmul.f32 1.0, %v2585
    %v2587 = vxor.u32 %v2529, 2147483648
    %v2588 = vmul.f32 %v2587, 1.442695
    %v2589 = vpow.pop %v2588
    %v2590 = vadd.f32 %v2589, 1.0
    %v2591 = vrcp.pop %v2590
    %v2592 = vmul.f32 1.0, %v2591
    %v2593 = vtanh.pop %v2529
    %v2594 = vtanh.pop %v2531
    %v2595 = vxor.u32 %v2531, 2147483648
    %v2596 = vxor.u32 %v2570, 2147483648
    %v2597 = vmul.f32 %v2595, 1.442695
    %v2598 = vpow.pop %v2597
    %v2599 = vmul.f32 %v2596, 1.442695
    %v2600 = vpow.pop %v2599
    %v2601 = vadd.f32 %v2598, 1.0
    %v2602 = vadd.f32 %v2600, 1.0
    %v2603 = vrcp.pop %v2601
    %v2604 = vmul.f32 1.0, %v2603
    %v2605 = vrcp.pop %v2602
    %v2606 = vmul.f32 1.0, %v2605
    %v2607 = vmul.f32 %v2586, %v2352
    %v2608 = vmul.f32 %v2592, %v2353
    %2611 = vrot.lane.b32.xlu0 %v2593, 64
    %v2612 = vpop.permute.xlu0 %2611
    %2613 = vrot.lane.b32.xlu0 %v2594, 64
    %v2614 = vpop.permute.xlu0 %2613
    %v2615 = vsel %vm674, %v2612, %v2614
    %v2618 = vmul.f32 %v2584, %v2615
    %v2619 = vmul.f32 %v2586, %v2614
    %2622 = vrot.lane.b32.xlu0 %v2618, 32
    %v2623 = vpop.permute.xlu0 %2622
    %2624 = vrot.lane.b32.xlu0 %v2619, 32
    %v2625 = vpop.permute.xlu0 %2624
    %v2626 = vsel %vm508, %v2623, %v2625
    %v2629 = vadd.f32 %v2607, %v2623
    %v2630 = vadd.f32 %v2608, %v2626
    %v2631 = vtanh.pop %v2629
    %v2632 = vtanh.pop %v2630
    %2635 = vrot.lane.b32.xlu0 %v2631, 64
    %v2636 = vpop.permute.xlu0 %2635
    %2637 = vrot.lane.b32.xlu0 %v2632, 64
    %v2638 = vpop.permute.xlu0 %2637
    %v2639 = vsel %vm674, %v2636, %v2638
    %v2642 = vmul.f32 %v2604, %v2636
    %v2643 = vmul.f32 %v2606, %v2639
    %v2644 = vpack.c.bf16 %v2642, %v2642
    %v2645 = vpack.c.bf16 %v2643, %v2643
    %v2646 = vsel %vm111, %v2415, %v2384
    %v2647 = vsel %vm112, %v2423, %v2392
    %v2648 = vsel %vm113, %v2422, %v2391
    %v2649 = vsel %vm114, %v2424, %v2393
    %v2650 = vsel %vm115, %v2431, %v2400
    %2653 = vrot.lane.b32.xlu0 %v2644, 32
    %v2654 = vpop.permute.xlu0 %2653
    %2655 = vrot.lane.b32.xlu0 %v2645, 32
    %v2656 = vpop.permute.xlu0 %2655
    %v2657 = vsel %vm785, %v2654, %v2656
    %v2660 = vsel %vm508, %v2656, 0
    %2662 = vmatprep.subr.bf16.mxu0 %v409
    %2663 = vmatpush1.bf16.msra.mxu0 %v408
    %2664 = vmatprep.subr.bf16.mxu0 %v414
    %2665 = vmatpush1.bf16.msra.mxu0 %v413
    %2666 = vmatprep.subr.bf16.mxu0 %v419
    %2667 = vmatpush1.bf16.msra.mxu0 %v418
    %2668 = vmatprep.subr.bf16.mxu0 %v424
    %2669 = vmatpush1.bf16.msra.mxu0 %v423
    %2670 = vmatprep.subr.bf16.mxu0 %v429
    %2671 = vmatpush1.bf16.msra.mxu0 %v428
    %2672 = vmatprep.subr.bf16.mxu0 %v434
    %2673 = vmatpush1.bf16.msra.mxu0 %v433
    %2674 = vmatprep.subr.bf16.mxu0 %v439
    %2675 = vmatpush1.bf16.msra.mxu0 %v438
    %2676 = vmatprep.subr.bf16.mxu0 %v444
    %2677 = vmatpush1.bf16.msra.mxu0 %v443
    %2678 = vmatprep.subr.bf16.mxu0 %v449
    %2679 = vmatpush1.bf16.msra.mxu0 %v448
    %2680 = vmatprep.subr.bf16.mxu0 %v454
    %2681 = vmatpush1.bf16.msra.mxu0 %v453
    %2682 = vmatprep.subr.bf16.mxu0 0
    %2683 = vmatpush1.bf16.msra.mxu0 0
    %2684 = vmatprep.subr.bf16.mxu0 0
    %2685 = vmatpush1.bf16.msra.mxu0 0
    %2686 = vmatprep.subr.bf16.mxu0 0
    %2687 = vmatpush1.bf16.msra.mxu0 0
    %2688 = vmatprep.subr.bf16.mxu0 0
    %2689 = vmatpush1.bf16.msra.mxu0 0
    %2690 = vmatprep.subr.bf16.mxu0 0
    %2691 = vmatpush1.bf16.msra.mxu0 0
    %2692 = vmatprep.subr.bf16.mxu0 0
    %2693 = vmatpush1.bf16.msra.mxu0 0
    %2694 = vmatprep.mubr.bf16.mxu0 %v2660
    %2695 = vmatmul.mubr.bf16.gmra.mrb[0].mxu0 %v2657
    %v2696 = vpop.f32.mrb[0].mxu0
    %v2697 = vadd.f32 %v2646, %v2696
    %v2698 = vpop.f32.mrb[0].mxu0
    %v2699 = vadd.f32 %v2647, %v2698
    %v2700 = vpop.f32.mrb[0].mxu0
    %v2701 = vpop.f32.mrb[0].mxu0
    %2702 = vdwg.mxu0
    %2703 = vmatprep.subr.bf16.mxu0 %v411
    %2704 = vmatpush1.bf16.msra.mxu0 %v410
    %2705 = vmatprep.subr.bf16.mxu0 %v416
    %2706 = vmatpush1.bf16.msra.mxu0 %v415
    %2707 = vmatprep.subr.bf16.mxu0 %v421
    %2708 = vmatpush1.bf16.msra.mxu0 %v420
    %2709 = vmatprep.subr.bf16.mxu0 %v426
    %2710 = vmatpush1.bf16.msra.mxu0 %v425
    %2711 = vmatprep.subr.bf16.mxu0 %v431
    %2712 = vmatpush1.bf16.msra.mxu0 %v430
    %2713 = vmatprep.subr.bf16.mxu0 %v436
    %2714 = vmatpush1.bf16.msra.mxu0 %v435
    %2715 = vmatprep.subr.bf16.mxu0 %v441
    %2716 = vmatpush1.bf16.msra.mxu0 %v440
    %2717 = vmatprep.subr.bf16.mxu0 %v446
    %2718 = vmatpush1.bf16.msra.mxu0 %v445
    %2719 = vmatprep.subr.bf16.mxu0 %v451
    %2720 = vmatpush1.bf16.msra.mxu0 %v450
    %2721 = vmatprep.subr.bf16.mxu0 %v456
    %2722 = vmatpush1.bf16.msra.mxu0 %v455
    %2723 = vmatprep.subr.bf16.mxu0 0
    %2724 = vmatpush1.bf16.msra.mxu0 0
    %2725 = vmatprep.subr.bf16.mxu0 0
    %2726 = vmatpush1.bf16.msra.mxu0 0
    %2727 = vmatprep.subr.bf16.mxu0 0
    %2728 = vmatpush1.bf16.msra.mxu0 0
    %2729 = vmatprep.subr.bf16.mxu0 0
    %2730 = vmatpush1.bf16.msra.mxu0 0
    %2731 = vmatprep.subr.bf16.mxu0 0
    %2732 = vmatpush1.bf16.msra.mxu0 0
    %2733 = vmatprep.subr.bf16.mxu0 0
    %2734 = vmatpush1.bf16.msra.mxu0 0
    %2735 = vmatprep.mubr.bf16.mxu0 %v2660
    %2736 = vmatmul.mubr.bf16.gmra.mrb[0].mxu0 %v2657
    %v2737 = vpop.f32.mrb[0].mxu0
    %v2738 = vadd.f32 %v2648, %v2737
    %v2739 = vpop.f32.mrb[0].mxu0
    %v2740 = vadd.f32 %v2649, %v2739
    %v2741 = vpop.f32.mrb[0].mxu0
    %v2742 = vpop.f32.mrb[0].mxu0
    %2743 = vdwg.mxu0
    %2744 = vmatprep.subr.bf16.mxu0 0
    %2745 = vmatpush1.bf16.msra.mxu0 %v412
    %2746 = vmatprep.subr.bf16.mxu0 0
    %2747 = vmatpush1.bf16.msra.mxu0 %v417
    %2748 = vmatprep.subr.bf16.mxu0 0
    %2749 = vmatpush1.bf16.msra.mxu0 %v422
    %2750 = vmatprep.subr.bf16.mxu0 0
    %2751 = vmatpush1.bf16.msra.mxu0 %v427
    %2752 = vmatprep.subr.bf16.mxu0 0
    %2753 = vmatpush1.bf16.msra.mxu0 %v432
    %2754 = vmatprep.subr.bf16.mxu0 0
    %2755 = vmatpush1.bf16.msra.mxu0 %v437
    %2756 = vmatprep.subr.bf16.mxu0 0
    %2757 = vmatpush1.bf16.msra.mxu0 %v442
    %2758 = vmatprep.subr.bf16.mxu0 0
    %2759 = vmatpush1.bf16.msra.mxu0 %v447
    %2760 = vmatprep.subr.bf16.mxu0 0
    %2761 = vmatpush1.bf16.msra.mxu0 %v452
    %2762 = vmatprep.subr.bf16.mxu0 0
    %2763 = vmatpush1.bf16.msra.mxu0 %v457
    %2764 = vmatprep.subr.bf16.mxu0 0
    %2765 = vmatpush1.bf16.msra.mxu0 0
    %2766 = vmatprep.subr.bf16.mxu0 0
    %2767 = vmatpush1.bf16.msra.mxu0 0
    %2768 = vmatprep.subr.bf16.mxu0 0
    %2769 = vmatpush1.bf16.msra.mxu0 0
    %2770 = vmatprep.subr.bf16.mxu0 0
    %2771 = vmatpush1.bf16.msra.mxu0 0
    %2772 = vmatprep.subr.bf16.mxu0 0
    %2773 = vmatpush1.bf16.msra.mxu0 0
    %2774 = vmatprep.subr.bf16.mxu0 0
    %2775 = vmatpush1.bf16.msra.mxu0 0
    %2776 = vmatprep.mubr.bf16.mxu0 %v2660
    %2777 = vmatmul.mubr.bf16.gmra.mrb[0].mxu0 %v2657
    %v2778 = vpop.f32.mrb[0].mxu0
    %v2779 = vadd.f32 %v2650, %v2778
    %v2780 = vpop.f32.mrb[0].mxu0
    %v2781 = vpop.f32.mrb[0].mxu0
    %v2782 = vpop.f32.mrb[0].mxu0
    %2783 = vdwg.mxu0
    %v2784 = vxor.u32 %v2697, 2147483648
    %v2785 = vxor.u32 %v2699, 2147483648
    %v2786 = vmul.f32 %v2784, 1.442695
    %v2787 = vpow.pop %v2786
    %v2788 = vmul.f32 %v2785, 1.442695
    %v2789 = vpow.pop %v2788
    %v2790 = vadd.f32 %v2787, 1.0
    %v2791 = vadd.f32 %v2789, 1.0
    %v2792 = vrcp.pop %v2790
    %v2793 = vmul.f32 1.0, %v2792
    %v2794 = vrcp.pop %v2791
    %v2795 = vmul.f32 1.0, %v2794
    %v2796 = vxor.u32 %v2738, 2147483648
    %v2797 = vmul.f32 %v2796, 1.442695
    %v2798 = vpow.pop %v2797
    %v2799 = vadd.f32 %v2798, 1.0
    %v2800 = vrcp.pop %v2799
    %v2801 = vmul.f32 1.0, %v2800
    %v2802 = vtanh.pop %v2738
    %v2803 = vtanh.pop %v2740
    %v2804 = vxor.u32 %v2740, 2147483648
    %v2805 = vxor.u32 %v2779, 2147483648
    %v2806 = vmul.f32 %v2804, 1.442695
    %v2807 = vpow.pop %v2806
    %v2808 = vmul.f32 %v2805, 1.442695
    %v2809 = vpow.pop %v2808
    %v2810 = vadd.f32 %v2807, 1.0
    %v2811 = vadd.f32 %v2809, 1.0
    %v2812 = vrcp.pop %v2810
    %v2813 = vmul.f32 1.0, %v2812
    %v2814 = vrcp.pop %v2811
    %v2815 = vmul.f32 1.0, %v2814
    %v2816 = vmul.f32 %v2795, %v2629
    %v2817 = vmul.f32 %v2801, %v2630
    %2820 = vrot.lane.b32.xlu0 %v2802, 64
    %v2821 = vpop.permute.xlu0 %2820
    %2822 = vrot.lane.b32.xlu0 %v2803, 64
    %v2823 = vpop.permute.xlu0 %2822
    %v2824 = vsel %vm674, %v2821, %v2823
    %v2827 = vmul.f32 %v2793, %v2824
    %v2828 = vmul.f32 %v2795, %v2823
    %2831 = vrot.lane.b32.xlu0 %v2827, 32
    %v2832 = vpop.permute.xlu0 %2831
    %2833 = vrot.lane.b32.xlu0 %v2828, 32
    %v2834 = vpop.permute.xlu0 %2833
    %v2835 = vsel %vm508, %v2832, %v2834
    %v2838 = vadd.f32 %v2816, %v2832
    %v2839 = vadd.f32 %v2817, %v2835
    %v2840 = vtanh.pop %v2838
    %v2841 = vtanh.pop %v2839
    %2844 = vrot.lane.b32.xlu0 %v2840, 64
    %v2845 = vpop.permute.xlu0 %2844
    %2846 = vrot.lane.b32.xlu0 %v2841, 64
    %v2847 = vpop.permute.xlu0 %2846
    %v2848 = vsel %vm674, %v2845, %v2847
    %v2851 = vmul.f32 %v2813, %v2845
    %v2852 = vmul.f32 %v2815, %v2848
    %v2853 = vpack.c.bf16 %v2851, %v2851
    %v2854 = vpack.c.bf16 %v2852, %v2852
    %v2855 = vsel %vm111, %v2138, %v2107
    %v2856 = vsel %vm112, %v2146, %v2115
    %v2857 = vsel %vm113, %v2145, %v2114
    %v2858 = vsel %vm114, %v2147, %v2116
    %v2859 = vsel %vm115, %v2154, %v2123
    %2862 = vrot.lane.b32.xlu0 %v2853, 32
    %v2863 = vpop.permute.xlu0 %2862
    %2864 = vrot.lane.b32.xlu0 %v2854, 32
    %v2865 = vpop.permute.xlu0 %2864
    %v2866 = vsel %vm785, %v2863, %v2865
    %v2869 = vsel %vm508, %v2865, 0
    %2871 = vmatprep.subr.bf16.mxu0 %v409
    %2872 = vmatpush1.bf16.msra.mxu0 %v408
    %2873 = vmatprep.subr.bf16.mxu0 %v414
    %2874 = vmatpush1.bf16.msra.mxu0 %v413
    %2875 = vmatprep.subr.bf16.mxu0 %v419
    %2876 = vmatpush1.bf16.msra.mxu0 %v418
    %2877 = vmatprep.subr.bf16.mxu0 %v424
    %2878 = vmatpush1.bf16.msra.mxu0 %v423
    %2879 = vmatprep.subr.bf16.mxu0 %v429
    %2880 = vmatpush1.bf16.msra.mxu0 %v428
    %2881 = vmatprep.subr.bf16.mxu0 %v434
    %2882 = vmatpush1.bf16.msra.mxu0 %v433
    %2883 = vmatprep.subr.bf16.mxu0 %v439
    %2884 = vmatpush1.bf16.msra.mxu0 %v438
    %2885 = vmatprep.subr.bf16.mxu0 %v444
    %2886 = vmatpush1.bf16.msra.mxu0 %v443
    %2887 = vmatprep.subr.bf16.mxu0 %v449
    %2888 = vmatpush1.bf16.msra.mxu0 %v448
    %2889 = vmatprep.subr.bf16.mxu0 %v454
    %2890 = vmatpush1.bf16.msra.mxu0 %v453
    %2891 = vmatprep.subr.bf16.mxu0 0
    %2892 = vmatpush1.bf16.msra.mxu0 0
    %2893 = vmatprep.subr.bf16.mxu0 0
    %2894 = vmatpush1.bf16.msra.mxu0 0
    %2895 = vmatprep.subr.bf16.mxu0 0
    %2896 = vmatpush1.bf16.msra.mxu0 0
    %2897 = vmatprep.subr.bf16.mxu0 0
    %2898 = vmatpush1.bf16.msra.mxu0 0
    %2899 = vmatprep.subr.bf16.mxu0 0
    %2900 = vmatpush1.bf16.msra.mxu0 0
    %2901 = vmatprep.subr.bf16.mxu0 0
    %2902 = vmatpush1.bf16.msra.mxu0 0
    %2903 = vmatprep.mubr.bf16.mxu0 %v2869
    %2904 = vmatmul.mubr.bf16.gmra.mrb[0].mxu0 %v2866
    %v2905 = vpop.f32.mrb[0].mxu0
    %v2906 = vadd.f32 %v2855, %v2905
    %v2907 = vpop.f32.mrb[0].mxu0
    %v2908 = vadd.f32 %v2856, %v2907
    %v2909 = vpop.f32.mrb[0].mxu0
    %v2910 = vpop.f32.mrb[0].mxu0
    %2911 = vdwg.mxu0
    %2912 = vmatprep.subr.bf16.mxu0 %v411
    %2913 = vmatpush1.bf16.msra.mxu0 %v410
    %2914 = vmatprep.subr.bf16.mxu0 %v416
    %2915 = vmatpush1.bf16.msra.mxu0 %v415
    %2916 = vmatprep.subr.bf16.mxu0 %v421
    %2917 = vmatpush1.bf16.msra.mxu0 %v420
    %2918 = vmatprep.subr.bf16.mxu0 %v426
    %2919 = vmatpush1.bf16.msra.mxu0 %v425
    %2920 = vmatprep.subr.bf16.mxu0 %v431
    %2921 = vmatpush1.bf16.msra.mxu0 %v430
    %2922 = vmatprep.subr.bf16.mxu0 %v436
    %2923 = vmatpush1.bf16.msra.mxu0 %v435
    %2924 = vmatprep.subr.bf16.mxu0 %v441
    %2925 = vmatpush1.bf16.msra.mxu0 %v440
    %2926 = vmatprep.subr.bf16.mxu0 %v446
    %2927 = vmatpush1.bf16.msra.mxu0 %v445
    %2928 = vmatprep.subr.bf16.mxu0 %v451
    %2929 = vmatpush1.bf16.msra.mxu0 %v450
    %2930 = vmatprep.subr.bf16.mxu0 %v456
    %2931 = vmatpush1.bf16.msra.mxu0 %v455
    %2932 = vmatprep.subr.bf16.mxu0 0
    %2933 = vmatpush1.bf16.msra.mxu0 0
    %2934 = vmatprep.subr.bf16.mxu0 0
    %2935 = vmatpush1.bf16.msra.mxu0 0
    %2936 = vmatprep.subr.bf16.mxu0 0
    %2937 = vmatpush1.bf16.msra.mxu0 0
    %2938 = vmatprep.subr.bf16.mxu0 0
    %2939 = vmatpush1.bf16.msra.mxu0 0
    %2940 = vmatprep.subr.bf16.mxu0 0
    %2941 = vmatpush1.bf16.msra.mxu0 0
    %2942 = vmatprep.subr.bf16.mxu0 0
    %2943 = vmatpush1.bf16.msra.mxu0 0
    %2944 = vmatprep.mubr.bf16.mxu0 %v2869
    %2945 = vmatmul.mubr.bf16.gmra.mrb[0].mxu0 %v2866
    %v2946 = vpop.f32.mrb[0].mxu0
    %v2947 = vadd.f32 %v2857, %v2946
    %v2948 = vpop.f32.mrb[0].mxu0
    %v2949 = vadd.f32 %v2858, %v2948
    %v2950 = vpop.f32.mrb[0].mxu0
    %v2951 = vpop.f32.mrb[0].mxu0
    %2952 = vdwg.mxu0
    %2953 = vmatprep.subr.bf16.mxu0 0
    %2954 = vmatpush1.bf16.msra.mxu0 %v412
    %2955 = vmatprep.subr.bf16.mxu0 0
    %2956 = vmatpush1.bf16.msra.mxu0 %v417
    %2957 = vmatprep.subr.bf16.mxu0 0
    %2958 = vmatpush1.bf16.msra.mxu0 %v422
    %2959 = vmatprep.subr.bf16.mxu0 0
    %2960 = vmatpush1.bf16.msra.mxu0 %v427
    %2961 = vmatprep.subr.bf16.mxu0 0
    %2962 = vmatpush1.bf16.msra.mxu0 %v432
    %2963 = vmatprep.subr.bf16.mxu0 0
    %2964 = vmatpush1.bf16.msra.mxu0 %v437
    %2965 = vmatprep.subr.bf16.mxu0 0
    %2966 = vmatpush1.bf16.msra.mxu0 %v442
    %2967 = vmatprep.subr.bf16.mxu0 0
    %2968 = vmatpush1.bf16.msra.mxu0 %v447
    %2969 = vmatprep.subr.bf16.mxu0 0
    %2970 = vmatpush1.bf16.msra.mxu0 %v452
    %2971 = vmatprep.subr.bf16.mxu0 0
    %2972 = vmatpush1.bf16.msra.mxu0 %v457
    %2973 = vmatprep.subr.bf16.mxu0 0
    %2974 = vmatpush1.bf16.msra.mxu0 0
    %2975 = vmatprep.subr.bf16.mxu0 0
    %2976 = vmatpush1.bf16.msra.mxu0 0
    %2977 = vmatprep.subr.bf16.mxu0 0
    %2978 = vmatpush1.bf16.msra.mxu0 0
    %2979 = vmatprep.subr.bf16.mxu0 0
    %2980 = vmatpush1.bf16.msra.mxu0 0
    %2981 = vmatprep.subr.bf16.mxu0 0
    %2982 = vmatpush1.bf16.msra.mxu0 0
    %2983 = vmatprep.subr.bf16.mxu0 0
    %2984 = vmatpush1.bf16.msra.mxu0 0
    %2985 = vmatprep.mubr.bf16.mxu0 %v2869
    %2986 = vmatmul.mubr.bf16.gmra.mrb[0].mxu0 %v2866
    %v2987 = vpop.f32.mrb[0].mxu0
    %v2988 = vadd.f32 %v2859, %v2987
    %v2989 = vpop.f32.mrb[0].mxu0
    %v2990 = vpop.f32.mrb[0].mxu0
    %v2991 = vpop.f32.mrb[0].mxu0
    %2992 = vdwg.mxu0
    %v2993 = vxor.u32 %v2906, 2147483648
    %v2994 = vxor.u32 %v2908, 2147483648
    %v2995 = vmul.f32 %v2993, 1.442695
    %v2996 = vpow.pop %v2995
    %v2997 = vmul.f32 %v2994, 1.442695
    %v2998 = vpow.pop %v2997
    %v2999 = vadd.f32 %v2996, 1.0
    %v3000 = vadd.f32 %v2998, 1.0
    %v3001 = vrcp.pop %v2999
    %v3002 = vmul.f32 1.0, %v3001
    %v3003 = vrcp.pop %v3000
    %v3004 = vmul.f32 1.0, %v3003
    %v3005 = vxor.u32 %v2947, 2147483648
    %v3006 = vmul.f32 %v3005, 1.442695
    %v3007 = vpow.pop %v3006
    %v3008 = vadd.f32 %v3007, 1.0
    %v3009 = vrcp.pop %v3008
    %v3010 = vmul.f32 1.0, %v3009
    %v3011 = vtanh.pop %v2947
    %v3012 = vtanh.pop %v2949
    %v3013 = vxor.u32 %v2949, 2147483648
    %v3014 = vxor.u32 %v2988, 2147483648
    %v3015 = vmul.f32 %v3013, 1.442695
    %v3016 = vpow.pop %v3015
    %v3017 = vmul.f32 %v3014, 1.442695
    %v3018 = vpow.pop %v3017
    %v3019 = vadd.f32 %v3016, 1.0
    %v3020 = vadd.f32 %v3018, 1.0
    %v3021 = vrcp.pop %v3019
    %v3022 = vmul.f32 1.0, %v3021
    %v3023 = vrcp.pop %v3020
    %v3024 = vmul.f32 1.0, %v3023
    %v3025 = vmul.f32 %v3004, %v2838
    %v3026 = vmul.f32 %v3010, %v2839
    %3029 = vrot.lane.b32.xlu0 %v3011, 64
    %v3030 = vpop.permute.xlu0 %3029
    %3031 = vrot.lane.b32.xlu0 %v3012, 64
    %v3032 = vpop.permute.xlu0 %3031
    %v3033 = vsel %vm674, %v3030, %v3032
    %v3036 = vmul.f32 %v3002, %v3033
    %v3037 = vmul.f32 %v3004, %v3032
    %3040 = vrot.lane.b32.xlu0 %v3036, 32
    %v3041 = vpop.permute.xlu0 %3040
    %3042 = vrot.lane.b32.xlu0 %v3037, 32
    %v3043 = vpop.permute.xlu0 %3042
    %v3044 = vsel %vm508, %v3041, %v3043
    %v3047 = vadd.f32 %v3025, %v3041
    %v3048 = vadd.f32 %v3026, %v3044
    %v3049 = vtanh.pop %v3047
    %v3050 = vtanh.pop %v3048
    %3053 = vrot.lane.b32.xlu0 %v3049, 64
    %v3054 = vpop.permute.xlu0 %3053
    %3055 = vrot.lane.b32.xlu0 %v3050, 64
    %v3056 = vpop.permute.xlu0 %3055
    %v3057 = vsel %vm674, %v3054, %v3056
    %v3060 = vmul.f32 %v3022, %v3054
    %v3061 = vmul.f32 %v3024, %v3057
    %v3062 = vpack.c.bf16 %v3060, %v3060
    %v3063 = vpack.c.bf16 %v3061, %v3061
    %v3064 = vsel %vm111, %v1861, %v1830
    %v3065 = vsel %vm112, %v1869, %v1838
    %v3066 = vsel %vm113, %v1868, %v1837
    %v3067 = vsel %vm114, %v1870, %v1839
    %v3068 = vsel %vm115, %v1877, %v1846
    %3071 = vrot.lane.b32.xlu0 %v3062, 32
    %v3072 = vpop.permute.xlu0 %3071
    %3073 = vrot.lane.b32.xlu0 %v3063, 32
    %v3074 = vpop.permute.xlu0 %3073
    %v3075 = vsel %vm785, %v3072, %v3074
    %v3078 = vsel %vm508, %v3074, 0
    %3080 = vmatprep.subr.bf16.mxu0 %v409
    %3081 = vmatpush1.bf16.msra.mxu0 %v408
    %3082 = vmatprep.subr.bf16.mxu0 %v414
    %3083 = vmatpush1.bf16.msra.mxu0 %v413
    %3084 = vmatprep.subr.bf16.mxu0 %v419
    %3085 = vmatpush1.bf16.msra.mxu0 %v418
    %3086 = vmatprep.subr.bf16.mxu0 %v424
    %3087 = vmatpush1.bf16.msra.mxu0 %v423
    %3088 = vmatprep.subr.bf16.mxu0 %v429
    %3089 = vmatpush1.bf16.msra.mxu0 %v428
    %3090 = vmatprep.subr.bf16.mxu0 %v434
    %3091 = vmatpush1.bf16.msra.mxu0 %v433
    %3092 = vmatprep.subr.bf16.mxu0 %v439
    %3093 = vmatpush1.bf16.msra.mxu0 %v438
    %3094 = vmatprep.subr.bf16.mxu0 %v444
    %3095 = vmatpush1.bf16.msra.mxu0 %v443
    %3096 = vmatprep.subr.bf16.mxu0 %v449
    %3097 = vmatpush1.bf16.msra.mxu0 %v448
    %3098 = vmatprep.subr.bf16.mxu0 %v454
    %3099 = vmatpush1.bf16.msra.mxu0 %v453
    %3100 = vmatprep.subr.bf16.mxu0 0
    %3101 = vmatpush1.bf16.msra.mxu0 0
    %3102 = vmatprep.subr.bf16.mxu0 0
    %3103 = vmatpush1.bf16.msra.mxu0 0
    %3104 = vmatprep.subr.bf16.mxu0 0
    %3105 = vmatpush1.bf16.msra.mxu0 0
    %3106 = vmatprep.subr.bf16.mxu0 0
    %3107 = vmatpush1.bf16.msra.mxu0 0
    %3108 = vmatprep.subr.bf16.mxu0 0
    %3109 = vmatpush1.bf16.msra.mxu0 0
    %3110 = vmatprep.subr.bf16.mxu0 0
    %3111 = vmatpush1.bf16.msra.mxu0 0
    %3112 = vmatprep.mubr.bf16.mxu0 %v3078
    %3113 = vmatmul.mubr.bf16.gmra.mrb[0].mxu0 %v3075
    %v3114 = vpop.f32.mrb[0].mxu0
    %v3115 = vadd.f32 %v3064, %v3114
    %v3116 = vpop.f32.mrb[0].mxu0
    %v3117 = vadd.f32 %v3065, %v3116
    %v3118 = vpop.f32.mrb[0].mxu0
    %v3119 = vpop.f32.mrb[0].mxu0
    %3120 = vdwg.mxu0
    %3121 = vmatprep.subr.bf16.mxu0 %v411
    %3122 = vmatpush1.bf16.msra.mxu0 %v410
    %3123 = vmatprep.subr.bf16.mxu0 %v416
    %3124 = vmatpush1.bf16.msra.mxu0 %v415
    %3125 = vmatprep.subr.bf16.mxu0 %v421
    %3126 = vmatpush1.bf16.msra.mxu0 %v420
    %3127 = vmatprep.subr.bf16.mxu0 %v426
    %3128 = vmatpush1.bf16.msra.mxu0 %v425
    %3129 = vmatprep.subr.bf16.mxu0 %v431
    %3130 = vmatpush1.bf16.msra.mxu0 %v430
    %3131 = vmatprep.subr.bf16.mxu0 %v436
    %3132 = vmatpush1.bf16.msra.mxu0 %v435
    %3133 = vmatprep.subr.bf16.mxu0 %v441
    %3134 = vmatpush1.bf16.msra.mxu0 %v440
    %3135 = vmatprep.subr.bf16.mxu0 %v446
    %3136 = vmatpush1.bf16.msra.mxu0 %v445
    %3137 = vmatprep.subr.bf16.mxu0 %v451
    %3138 = vmatpush1.bf16.msra.mxu0 %v450
    %3139 = vmatprep.subr.bf16.mxu0 %v456
    %3140 = vmatpush1.bf16.msra.mxu0 %v455
    %3141 = vmatprep.subr.bf16.mxu0 0
    %3142 = vmatpush1.bf16.msra.mxu0 0
    %3143 = vmatprep.subr.bf16.mxu0 0
    %3144 = vmatpush1.bf16.msra.mxu0 0
    %3145 = vmatprep.subr.bf16.mxu0 0
    %3146 = vmatpush1.bf16.msra.mxu0 0
    %3147 = vmatprep.subr.bf16.mxu0 0
    %3148 = vmatpush1.bf16.msra.mxu0 0
    %3149 = vmatprep.subr.bf16.mxu0 0
    %3150 = vmatpush1.bf16.msra.mxu0 0
    %3151 = vmatprep.subr.bf16.mxu0 0
    %3152 = vmatpush1.bf16.msra.mxu0 0
    %3153 = vmatprep.mubr.bf16.mxu0 %v3078
    %3154 = vmatmul.mubr.bf16.gmra.mrb[0].mxu0 %v3075
    %v3155 = vpop.f32.mrb[0].mxu0
    %v3156 = vadd.f32 %v3066, %v3155
    %v3157 = vpop.f32.mrb[0].mxu0
    %v3158 = vadd.f32 %v3067, %v3157
    %v3159 = vpop.f32.mrb[0].mxu0
    %v3160 = vpop.f32.mrb[0].mxu0
    %3161 = vdwg.mxu0
    %3162 = vmatprep.subr.bf16.mxu0 0
    %3163 = vmatpush1.bf16.msra.mxu0 %v412
    %3164 = vmatprep.subr.bf16.mxu0 0
    %3165 = vmatpush1.bf16.msra.mxu0 %v417
    %3166 = vmatprep.subr.bf16.mxu0 0
    %3167 = vmatpush1.bf16.msra.mxu0 %v422
    %3168 = vmatprep.subr.bf16.mxu0 0
    %3169 = vmatpush1.bf16.msra.mxu0 %v427
    %3170 = vmatprep.subr.bf16.mxu0 0
    %3171 = vmatpush1.bf16.msra.mxu0 %v432
    %3172 = vmatprep.subr.bf16.mxu0 0
    %3173 = vmatpush1.bf16.msra.mxu0 %v437
    %3174 = vmatprep.subr.bf16.mxu0 0
    %3175 = vmatpush1.bf16.msra.mxu0 %v442
    %3176 = vmatprep.subr.bf16.mxu0 0
    %3177 = vmatpush1.bf16.msra.mxu0 %v447
    %3178 = vmatprep.subr.bf16.mxu0 0
    %3179 = vmatpush1.bf16.msra.mxu0 %v452
    %3180 = vmatprep.subr.bf16.mxu0 0
    %3181 = vmatpush1.bf16.msra.mxu0 %v457
    %3182 = vmatprep.subr.bf16.mxu0 0
    %3183 = vmatpush1.bf16.msra.mxu0 0
    %3184 = vmatprep.subr.bf16.mxu0 0
    %3185 = vmatpush1.bf16.msra.mxu0 0
    %3186 = vmatprep.subr.bf16.mxu0 0
    %3187 = vmatpush1.bf16.msra.mxu0 0
    %3188 = vmatprep.subr.bf16.mxu0 0
    %3189 = vmatpush1.bf16.msra.mxu0 0
    %3190 = vmatprep.subr.bf16.mxu0 0
    %3191 = vmatpush1.bf16.msra.mxu0 0
    %3192 = vmatprep.subr.bf16.mxu0 0
    %3193 = vmatpush1.bf16.msra.mxu0 0
    %3194 = vmatprep.mubr.bf16.mxu0 %v3078
    %3195 = vmatmul.mubr.bf16.gmra.mrb[0].mxu0 %v3075
    %v3196 = vpop.f32.mrb[0].mxu0
    %v3197 = vadd.f32 %v3068, %v3196
    %v3198 = vpop.f32.mrb[0].mxu0
    %v3199 = vpop.f32.mrb[0].mxu0
    %v3200 = vpop.f32.mrb[0].mxu0
    %3201 = vdwg.mxu0
    %v3202 = vxor.u32 %v3115, 2147483648
    %v3203 = vxor.u32 %v3117, 2147483648
    %v3204 = vmul.f32 %v3202, 1.442695
    %v3205 = vpow.pop %v3204
    %v3206 = vmul.f32 %v3203, 1.442695
    %v3207 = vpow.pop %v3206
    %v3208 = vadd.f32 %v3205, 1.0
    %v3209 = vadd.f32 %v3207, 1.0
    %v3210 = vrcp.pop %v3208
    %v3211 = vmul.f32 1.0, %v3210
    %v3212 = vrcp.pop %v3209
    %v3213 = vmul.f32 1.0, %v3212
    %v3214 = vxor.u32 %v3156, 2147483648
    %v3215 = vmul.f32 %v3214, 1.442695
    %v3216 = vpow.pop %v3215
    %v3217 = vadd.f32 %v3216, 1.0
    %v3218 = vrcp.pop %v3217
    %v3219 = vmul.f32 1.0, %v3218
    %v3220 = vtanh.pop %v3156
    %v3221 = vtanh.pop %v3158
    %v3222 = vxor.u32 %v3158, 2147483648
    %v3223 = vxor.u32 %v3197, 2147483648
    %v3224 = vmul.f32 %v3222, 1.442695
    %v3225 = vpow.pop %v3224
    %v3226 = vmul.f32 %v3223, 1.442695
    %v3227 = vpow.pop %v3226
    %v3228 = vadd.f32 %v3225, 1.0
    %v3229 = vadd.f32 %v3227, 1.0
    %v3230 = vrcp.pop %v3228
    %v3231 = vmul.f32 1.0, %v3230
    %v3232 = vrcp.pop %v3229
    %v3233 = vmul.f32 1.0, %v3232
    %v3234 = vmul.f32 %v3213, %v3047
    %v3235 = vmul.f32 %v3219, %v3048
    %3238 = vrot.lane.b32.xlu0 %v3220, 64
    %v3239 = vpop.permute.xlu0 %3238
    %3240 = vrot.lane.b32.xlu0 %v3221, 64
    %v3241 = vpop.permute.xlu0 %3240
    %v3242 = vsel %vm674, %v3239, %v3241
    %v3245 = vmul.f32 %v3211, %v3242
    %v3246 = vmul.f32 %v3213, %v3241
    %3249 = vrot.lane.b32.xlu0 %v3245, 32
    %v3250 = vpop.permute.xlu0 %3249
    %3251 = vrot.lane.b32.xlu0 %v3246, 32
    %v3252 = vpop.permute.xlu0 %3251
    %v3253 = vsel %vm508, %v3250, %v3252
    %v3256 = vadd.f32 %v3234, %v3250
    %v3257 = vadd.f32 %v3235, %v3253
    %v3258 = vtanh.pop %v3256
    %v3259 = vtanh.pop %v3257
    %3262 = vrot.lane.b32.xlu0 %v3258, 64
    %v3263 = vpop.permute.xlu0 %3262
    %3264 = vrot.lane.b32.xlu0 %v3259, 64
    %v3265 = vpop.permute.xlu0 %3264
    %v3266 = vsel %vm674, %v3263, %v3265
    %v3269 = vmul.f32 %v3231, %v3263
    %v3270 = vmul.f32 %v3233, %v3266
    %v3271 = vpack.c.bf16 %v3269, %v3269
    %v3272 = vpack.c.bf16 %v3270, %v3270
    %v3273 = vsel %vm111, %v1584, %v1553
    %v3274 = vsel %vm112, %v1592, %v1561
    %v3275 = vsel %vm113, %v1591, %v1560
    %v3276 = vsel %vm114, %v1593, %v1562
    %v3277 = vsel %vm115, %v1600, %v1569
    %3280 = vrot.lane.b32.xlu0 %v3271, 32
    %v3281 = vpop.permute.xlu0 %3280
    %3282 = vrot.lane.b32.xlu0 %v3272, 32
    %v3283 = vpop.permute.xlu0 %3282
    %v3284 = vsel %vm785, %v3281, %v3283
    %v3287 = vsel %vm508, %v3283, 0
    %3289 = vmatprep.subr.bf16.mxu0 %v409
    %3290 = vmatpush1.bf16.msra.mxu0 %v408
    %3291 = vmatprep.subr.bf16.mxu0 %v414
    %3292 = vmatpush1.bf16.msra.mxu0 %v413
    %3293 = vmatprep.subr.bf16.mxu0 %v419
    %3294 = vmatpush1.bf16.msra.mxu0 %v418
    %3295 = vmatprep.subr.bf16.mxu0 %v424
    %3296 = vmatpush1.bf16.msra.mxu0 %v423
    %3297 = vmatprep.subr.bf16.mxu0 %v429
    %3298 = vmatpush1.bf16.msra.mxu0 %v428
    %3299 = vmatprep.subr.bf16.mxu0 %v434
    %3300 = vmatpush1.bf16.msra.mxu0 %v433
    %3301 = vmatprep.subr.bf16.mxu0 %v439
    %3302 = vmatpush1.bf16.msra.mxu0 %v438
    %3303 = vmatprep.subr.bf16.mxu0 %v444
    %3304 = vmatpush1.bf16.msra.mxu0 %v443
    %3305 = vmatprep.subr.bf16.mxu0 %v449
    %3306 = vmatpush1.bf16.msra.mxu0 %v448
    %3307 = vmatprep.subr.bf16.mxu0 %v454
    %3308 = vmatpush1.bf16.msra.mxu0 %v453
    %3309 = vmatprep.subr.bf16.mxu0 0
    %3310 = vmatpush1.bf16.msra.mxu0 0
    %3311 = vmatprep.subr.bf16.mxu0 0
    %3312 = vmatpush1.bf16.msra.mxu0 0
    %3313 = vmatprep.subr.bf16.mxu0 0
    %3314 = vmatpush1.bf16.msra.mxu0 0
    %3315 = vmatprep.subr.bf16.mxu0 0
    %3316 = vmatpush1.bf16.msra.mxu0 0
    %3317 = vmatprep.subr.bf16.mxu0 0
    %3318 = vmatpush1.bf16.msra.mxu0 0
    %3319 = vmatprep.subr.bf16.mxu0 0
    %3320 = vmatpush1.bf16.msra.mxu0 0
    %3321 = vmatprep.mubr.bf16.mxu0 %v3287
    %3322 = vmatmul.mubr.bf16.gmra.mrb[0].mxu0 %v3284
    %v3323 = vpop.f32.mrb[0].mxu0
    %v3324 = vadd.f32 %v3273, %v3323
    %v3325 = vpop.f32.mrb[0].mxu0
    %v3326 = vadd.f32 %v3274, %v3325
    %v3327 = vpop.f32.mrb[0].mxu0
    %v3328 = vpop.f32.mrb[0].mxu0
    %3329 = vdwg.mxu0
    %3330 = vmatprep.subr.bf16.mxu0 %v411
    %3331 = vmatpush1.bf16.msra.mxu0 %v410
    %3332 = vmatprep.subr.bf16.mxu0 %v416
    %3333 = vmatpush1.bf16.msra.mxu0 %v415
    %3334 = vmatprep.subr.bf16.mxu0 %v421
    %3335 = vmatpush1.bf16.msra.mxu0 %v420
    %3336 = vmatprep.subr.bf16.mxu0 %v426
    %3337 = vmatpush1.bf16.msra.mxu0 %v425
    %3338 = vmatprep.subr.bf16.mxu0 %v431
    %3339 = vmatpush1.bf16.msra.mxu0 %v430
    %3340 = vmatprep.subr.bf16.mxu0 %v436
    %3341 = vmatpush1.bf16.msra.mxu0 %v435
    %3342 = vmatprep.subr.bf16.mxu0 %v441
    %3343 = vmatpush1.bf16.msra.mxu0 %v440
    %3344 = vmatprep.subr.bf16.mxu0 %v446
    %3345 = vmatpush1.bf16.msra.mxu0 %v445
    %3346 = vmatprep.subr.bf16.mxu0 %v451
    %3347 = vmatpush1.bf16.msra.mxu0 %v450
    %3348 = vmatprep.subr.bf16.mxu0 %v456
    %3349 = vmatpush1.bf16.msra.mxu0 %v455
    %3350 = vmatprep.subr.bf16.mxu0 0
    %3351 = vmatpush1.bf16.msra.mxu0 0
    %3352 = vmatprep.subr.bf16.mxu0 0
    %3353 = vmatpush1.bf16.msra.mxu0 0
    %3354 = vmatprep.subr.bf16.mxu0 0
    %3355 = vmatpush1.bf16.msra.mxu0 0
    %3356 = vmatprep.subr.bf16.mxu0 0
    %3357 = vmatpush1.bf16.msra.mxu0 0
    %3358 = vmatprep.subr.bf16.mxu0 0
    %3359 = vmatpush1.bf16.msra.mxu0 0
    %3360 = vmatprep.subr.bf16.mxu0 0
    %3361 = vmatpush1.bf16.msra.mxu0 0
    %3362 = vmatprep.mubr.bf16.mxu0 %v3287
    %3363 = vmatmul.mubr.bf16.gmra.mrb[0].mxu0 %v3284
    %v3364 = vpop.f32.mrb[0].mxu0
    %v3365 = vadd.f32 %v3275, %v3364
    %v3366 = vpop.f32.mrb[0].mxu0
    %v3367 = vadd.f32 %v3276, %v3366
    %v3368 = vpop.f32.mrb[0].mxu0
    %v3369 = vpop.f32.mrb[0].mxu0
    %3370 = vdwg.mxu0
    %3371 = vmatprep.subr.bf16.mxu0 0
    %3372 = vmatpush1.bf16.msra.mxu0 %v412
    %3373 = vmatprep.subr.bf16.mxu0 0
    %3374 = vmatpush1.bf16.msra.mxu0 %v417
    %3375 = vmatprep.subr.bf16.mxu0 0
    %3376 = vmatpush1.bf16.msra.mxu0 %v422
    %3377 = vmatprep.subr.bf16.mxu0 0
    %3378 = vmatpush1.bf16.msra.mxu0 %v427
    %3379 = vmatprep.subr.bf16.mxu0 0
    %3380 = vmatpush1.bf16.msra.mxu0 %v432
    %3381 = vmatprep.subr.bf16.mxu0 0
    %3382 = vmatpush1.bf16.msra.mxu0 %v437
    %3383 = vmatprep.subr.bf16.mxu0 0
    %3384 = vmatpush1.bf16.msra.mxu0 %v442
    %3385 = vmatprep.subr.bf16.mxu0 0
    %3386 = vmatpush1.bf16.msra.mxu0 %v447
    %3387 = vmatprep.subr.bf16.mxu0 0
    %3388 = vmatpush1.bf16.msra.mxu0 %v452
    %3389 = vmatprep.subr.bf16.mxu0 0
    %3390 = vmatpush1.bf16.msra.mxu0 %v457
    %3391 = vmatprep.subr.bf16.mxu0 0
    %3392 = vmatpush1.bf16.msra.mxu0 0
    %3393 = vmatprep.subr.bf16.mxu0 0
    %3394 = vmatpush1.bf16.msra.mxu0 0
    %3395 = vmatprep.subr.bf16.mxu0 0
    %3396 = vmatpush1.bf16.msra.mxu0 0
    %3397 = vmatprep.subr.bf16.mxu0 0
    %3398 = vmatpush1.bf16.msra.mxu0 0
    %3399 = vmatprep.subr.bf16.mxu0 0
    %3400 = vmatpush1.bf16.msra.mxu0 0
    %3401 = vmatprep.subr.bf16.mxu0 0
    %3402 = vmatpush1.bf16.msra.mxu0 0
    %3403 = vmatprep.mubr.bf16.mxu0 %v3287
    %3404 = vmatmul.mubr.bf16.gmra.mrb[0].mxu0 %v3284
    %v3405 = vpop.f32.mrb[0].mxu0
    %v3406 = vadd.f32 %v3277, %v3405
    %v3407 = vpop.f32.mrb[0].mxu0
    %v3408 = vpop.f32.mrb[0].mxu0
    %v3409 = vpop.f32.mrb[0].mxu0
    %3410 = vdwg.mxu0
    %v3411 = vxor.u32 %v3324, 2147483648
    %v3412 = vxor.u32 %v3326, 2147483648
    %v3413 = vmul.f32 %v3411, 1.442695
    %v3414 = vpow.pop %v3413
    %v3415 = vmul.f32 %v3412, 1.442695
    %v3416 = vpow.pop %v3415
    %v3417 = vadd.f32 %v3414, 1.0
    %v3418 = vadd.f32 %v3416, 1.0
    %v3419 = vrcp.pop %v3417
    %v3420 = vmul.f32 1.0, %v3419
    %v3421 = vrcp.pop %v3418
    %v3422 = vmul.f32 1.0, %v3421
    %v3423 = vxor.u32 %v3365, 2147483648
    %v3424 = vmul.f32 %v3423, 1.442695
    %v3425 = vpow.pop %v3424
    %v3426 = vadd.f32 %v3425, 1.0
    %v3427 = vrcp.pop %v3426
    %v3428 = vmul.f32 1.0, %v3427
    %v3429 = vtanh.pop %v3365
    %v3430 = vtanh.pop %v3367
    %v3431 = vxor.u32 %v3367, 2147483648
    %v3432 = vxor.u32 %v3406, 2147483648
    %v3433 = vmul.f32 %v3431, 1.442695
    %v3434 = vpow.pop %v3433
    %v3435 = vmul.f32 %v3432, 1.442695
    %v3436 = vpow.pop %v3435
    %v3437 = vadd.f32 %v3434, 1.0
    %v3438 = vadd.f32 %v3436, 1.0
    %v3439 = vrcp.pop %v3437
    %v3440 = vmul.f32 1.0, %v3439
    %v3441 = vrcp.pop %v3438
    %v3442 = vmul.f32 1.0, %v3441
    %v3443 = vmul.f32 %v3422, %v3256
    %v3444 = vmul.f32 %v3428, %v3257
    %3447 = vrot.lane.b32.xlu0 %v3429, 64
    %v3448 = vpop.permute.xlu0 %3447
    %3449 = vrot.lane.b32.xlu0 %v3430, 64
    %v3450 = vpop.permute.xlu0 %3449
    %v3451 = vsel %vm674, %v3448, %v3450
    %v3454 = vmul.f32 %v3420, %v3451
    %v3455 = vmul.f32 %v3422, %v3450
    %3458 = vrot.lane.b32.xlu0 %v3454, 32
    %v3459 = vpop.permute.xlu0 %3458
    %3460 = vrot.lane.b32.xlu0 %v3455, 32
    %v3461 = vpop.permute.xlu0 %3460
    %v3462 = vsel %vm508, %v3459, %v3461
    %v3465 = vadd.f32 %v3443, %v3459
    %v3466 = vadd.f32 %v3444, %v3462
    %v3467 = vtanh.pop %v3465
    %v3468 = vtanh.pop %v3466
    %3471 = vrot.lane.b32.xlu0 %v3467, 64
    %v3472 = vpop.permute.xlu0 %3471
    %3473 = vrot.lane.b32.xlu0 %v3468, 64
    %v3474 = vpop.permute.xlu0 %3473
    %v3475 = vsel %vm674, %v3472, %v3474
    %v3478 = vmul.f32 %v3440, %v3472
    %v3479 = vmul.f32 %v3442, %v3475
    %v3480 = vpack.c.bf16 %v3478, %v3478
    %v3481 = vpack.c.bf16 %v3479, %v3479
    %v3482 = vsel %vm111, %v1307, %v1276
    %v3483 = vsel %vm112, %v1315, %v1284
    %v3484 = vsel %vm113, %v1314, %v1283
    %v3485 = vsel %vm114, %v1316, %v1285
    %v3486 = vsel %vm115, %v1323, %v1292
    %3489 = vrot.lane.b32.xlu0 %v3480, 32
    %v3490 = vpop.permute.xlu0 %3489
    %3491 = vrot.lane.b32.xlu0 %v3481, 32
    %v3492 = vpop.permute.xlu0 %3491
    %v3493 = vsel %vm785, %v3490, %v3492
    %v3496 = vsel %vm508, %v3492, 0
    %3498 = vmatprep.subr.bf16.mxu0 %v409
    %3499 = vmatpush1.bf16.msra.mxu0 %v408
    %3500 = vmatprep.subr.bf16.mxu0 %v414
    %3501 = vmatpush1.bf16.msra.mxu0 %v413
    %3502 = vmatprep.subr.bf16.mxu0 %v419
    %3503 = vmatpush1.bf16.msra.mxu0 %v418
    %3504 = vmatprep.subr.bf16.mxu0 %v424
    %3505 = vmatpush1.bf16.msra.mxu0 %v423
    %3506 = vmatprep.subr.bf16.mxu0 %v429
    %3507 = vmatpush1.bf16.msra.mxu0 %v428
    %3508 = vmatprep.subr.bf16.mxu0 %v434
    %3509 = vmatpush1.bf16.msra.mxu0 %v433
    %3510 = vmatprep.subr.bf16.mxu0 %v439
    %3511 = vmatpush1.bf16.msra.mxu0 %v438
    %3512 = vmatprep.subr.bf16.mxu0 %v444
    %3513 = vmatpush1.bf16.msra.mxu0 %v443
    %3514 = vmatprep.subr.bf16.mxu0 %v449
    %3515 = vmatpush1.bf16.msra.mxu0 %v448
    %3516 = vmatprep.subr.bf16.mxu0 %v454
    %3517 = vmatpush1.bf16.msra.mxu0 %v453
    %3518 = vmatprep.subr.bf16.mxu0 0
    %3519 = vmatpush1.bf16.msra.mxu0 0
    %3520 = vmatprep.subr.bf16.mxu0 0
    %3521 = vmatpush1.bf16.msra.mxu0 0
    %3522 = vmatprep.subr.bf16.mxu0 0
    %3523 = vmatpush1.bf16.msra.mxu0 0
    %3524 = vmatprep.subr.bf16.mxu0 0
    %3525 = vmatpush1.bf16.msra.mxu0 0
    %3526 = vmatprep.subr.bf16.mxu0 0
    %3527 = vmatpush1.bf16.msra.mxu0 0
    %3528 = vmatprep.subr.bf16.mxu0 0
    %3529 = vmatpush1.bf16.msra.mxu0 0
    %3530 = vmatprep.mubr.bf16.mxu0 %v3496
    %3531 = vmatmul.mubr.bf16.gmra.mrb[0].mxu0 %v3493
    %v3532 = vpop.f32.mrb[0].mxu0
    %v3533 = vadd.f32 %v3482, %v3532
    %v3534 = vpop.f32.mrb[0].mxu0
    %v3535 = vadd.f32 %v3483, %v3534
    %v3536 = vpop.f32.mrb[0].mxu0
    %v3537 = vpop.f32.mrb[0].mxu0
    %3538 = vdwg.mxu0
    %3539 = vmatprep.subr.bf16.mxu0 %v411
    %3540 = vmatpush1.bf16.msra.mxu0 %v410
    %3541 = vmatprep.subr.bf16.mxu0 %v416
    %3542 = vmatpush1.bf16.msra.mxu0 %v415
    %3543 = vmatprep.subr.bf16.mxu0 %v421
    %3544 = vmatpush1.bf16.msra.mxu0 %v420
    %3545 = vmatprep.subr.bf16.mxu0 %v426
    %3546 = vmatpush1.bf16.msra.mxu0 %v425
    %3547 = vmatprep.subr.bf16.mxu0 %v431
    %3548 = vmatpush1.bf16.msra.mxu0 %v430
    %3549 = vmatprep.subr.bf16.mxu0 %v436
    %3550 = vmatpush1.bf16.msra.mxu0 %v435
    %3551 = vmatprep.subr.bf16.mxu0 %v441
    %3552 = vmatpush1.bf16.msra.mxu0 %v440
    %3553 = vmatprep.subr.bf16.mxu0 %v446
    %3554 = vmatpush1.bf16.msra.mxu0 %v445
    %3555 = vmatprep.subr.bf16.mxu0 %v451
    %3556 = vmatpush1.bf16.msra.mxu0 %v450
    %3557 = vmatprep.subr.bf16.mxu0 %v456
    %3558 = vmatpush1.bf16.msra.mxu0 %v455
    %3559 = vmatprep.subr.bf16.mxu0 0
    %3560 = vmatpush1.bf16.msra.mxu0 0
    %3561 = vmatprep.subr.bf16.mxu0 0
    %3562 = vmatpush1.bf16.msra.mxu0 0
    %3563 = vmatprep.subr.bf16.mxu0 0
    %3564 = vmatpush1.bf16.msra.mxu0 0
    %3565 = vmatprep.subr.bf16.mxu0 0
    %3566 = vmatpush1.bf16.msra.mxu0 0
    %3567 = vmatprep.subr.bf16.mxu0 0
    %3568 = vmatpush1.bf16.msra.mxu0 0
    %3569 = vmatprep.subr.bf16.mxu0 0
    %3570 = vmatpush1.bf16.msra.mxu0 0
    %3571 = vmatprep.mubr.bf16.mxu0 %v3496
    %3572 = vmatmul.mubr.bf16.gmra.mrb[0].mxu0 %v3493
    %v3573 = vpop.f32.mrb[0].mxu0
    %v3574 = vadd.f32 %v3484, %v3573
    %v3575 = vpop.f32.mrb[0].mxu0
    %v3576 = vadd.f32 %v3485, %v3575
    %v3577 = vpop.f32.mrb[0].mxu0
    %v3578 = vpop.f32.mrb[0].mxu0
    %3579 = vdwg.mxu0
    %3580 = vmatprep.subr.bf16.mxu0 0
    %3581 = vmatpush1.bf16.msra.mxu0 %v412
    %3582 = vmatprep.subr.bf16.mxu0 0
    %3583 = vmatpush1.bf16.msra.mxu0 %v417
    %3584 = vmatprep.subr.bf16.mxu0 0
    %3585 = vmatpush1.bf16.msra.mxu0 %v422
    %3586 = vmatprep.subr.bf16.mxu0 0
    %3587 = vmatpush1.bf16.msra.mxu0 %v427
    %3588 = vmatprep.subr.bf16.mxu0 0
    %3589 = vmatpush1.bf16.msra.mxu0 %v432
    %3590 = vmatprep.subr.bf16.mxu0 0
    %3591 = vmatpush1.bf16.msra.mxu0 %v437
    %3592 = vmatprep.subr.bf16.mxu0 0
    %3593 = vmatpush1.bf16.msra.mxu0 %v442
    %3594 = vmatprep.subr.bf16.mxu0 0
    %3595 = vmatpush1.bf16.msra.mxu0 %v447
    %3596 = vmatprep.subr.bf16.mxu0 0
    %3597 = vmatpush1.bf16.msra.mxu0 %v452
    %3598 = vmatprep.subr.bf16.mxu0 0
    %3599 = vmatpush1.bf16.msra.mxu0 %v457
    %3600 = vmatprep.subr.bf16.mxu0 0
    %3601 = vmatpush1.bf16.msra.mxu0 0
    %3602 = vmatprep.subr.bf16.mxu0 0
    %3603 = vmatpush1.bf16.msra.mxu0 0
    %3604 = vmatprep.subr.bf16.mxu0 0
    %3605 = vmatpush1.bf16.msra.mxu0 0
    %3606 = vmatprep.subr.bf16.mxu0 0
    %3607 = vmatpush1.bf16.msra.mxu0 0
    %3608 = vmatprep.subr.bf16.mxu0 0
    %3609 = vmatpush1.bf16.msra.mxu0 0
    %3610 = vmatprep.subr.bf16.mxu0 0
    %3611 = vmatpush1.bf16.msra.mxu0 0
    %3612 = vmatprep.mubr.bf16.mxu0 %v3496
    %3613 = vmatmul.mubr.bf16.gmra.mrb[0].mxu0 %v3493
    %v3614 = vpop.f32.mrb[0].mxu0
    %v3615 = vadd.f32 %v3486, %v3614
    %v3616 = vpop.f32.mrb[0].mxu0
    %v3617 = vpop.f32.mrb[0].mxu0
    %v3618 = vpop.f32.mrb[0].mxu0
    %3619 = vdwg.mxu0
    %v3620 = vxor.u32 %v3533, 2147483648
    %v3621 = vxor.u32 %v3535, 2147483648
    %v3622 = vmul.f32 %v3620, 1.442695
    %v3623 = vpow.pop %v3622
    %v3624 = vmul.f32 %v3621, 1.442695
    %v3625 = vpow.pop %v3624
    %v3626 = vadd.f32 %v3623, 1.0
    %v3627 = vadd.f32 %v3625, 1.0
    %v3628 = vrcp.pop %v3626
    %v3629 = vmul.f32 1.0, %v3628
    %v3630 = vrcp.pop %v3627
    %v3631 = vmul.f32 1.0, %v3630
    %v3632 = vxor.u32 %v3574, 2147483648
    %v3633 = vmul.f32 %v3632, 1.442695
    %v3634 = vpow.pop %v3633
    %v3635 = vadd.f32 %v3634, 1.0
    %v3636 = vrcp.pop %v3635
    %v3637 = vmul.f32 1.0, %v3636
    %v3638 = vtanh.pop %v3574
    %v3639 = vtanh.pop %v3576
    %v3640 = vxor.u32 %v3576, 2147483648
    %v3641 = vxor.u32 %v3615, 2147483648
    %v3642 = vmul.f32 %v3640, 1.442695
    %v3643 = vpow.pop %v3642
    %v3644 = vmul.f32 %v3641, 1.442695
    %v3645 = vpow.pop %v3644
    %v3646 = vadd.f32 %v3643, 1.0
    %v3647 = vadd.f32 %v3645, 1.0
    %v3648 = vrcp.pop %v3646
    %v3649 = vmul.f32 1.0, %v3648
    %v3650 = vrcp.pop %v3647
    %v3651 = vmul.f32 1.0, %v3650
    %v3652 = vmul.f32 %v3631, %v3465
    %v3653 = vmul.f32 %v3637, %v3466
    %3656 = vrot.lane.b32.xlu0 %v3638, 64
    %v3657 = vpop.permute.xlu0 %3656
    %3658 = vrot.lane.b32.xlu0 %v3639, 64
    %v3659 = vpop.permute.xlu0 %3658
    %v3660 = vsel %vm674, %v3657, %v3659
    %v3663 = vmul.f32 %v3629, %v3660
    %v3664 = vmul.f32 %v3631, %v3659
    %3667 = vrot.lane.b32.xlu0 %v3663, 32
    %v3668 = vpop.permute.xlu0 %3667
    %3669 = vrot.lane.b32.xlu0 %v3664, 32
    %v3670 = vpop.permute.xlu0 %3669
    %v3671 = vsel %vm508, %v3668, %v3670
    %v3674 = vadd.f32 %v3652, %v3668
    %v3675 = vadd.f32 %v3653, %v3671
    %v3676 = vtanh.pop %v3674
    %v3677 = vtanh.pop %v3675
    %3680 = vrot.lane.b32.xlu0 %v3676, 64
    %v3681 = vpop.permute.xlu0 %3680
    %3682 = vrot.lane.b32.xlu0 %v3677, 64
    %v3683 = vpop.permute.xlu0 %3682
    %v3684 = vsel %vm674, %v3681, %v3683
    %v3687 = vmul.f32 %v3649, %v3681
    %v3688 = vmul.f32 %v3651, %v3684
    %v3689 = vpack.c.bf16 %v3687, %v3687
    %v3690 = vpack.c.bf16 %v3688, %v3688
    %v3691 = vsel %vm111, %v1030, %v999
    %v3692 = vsel %vm112, %v1038, %v1007
    %v3693 = vsel %vm113, %v1037, %v1006
    %v3694 = vsel %vm114, %v1039, %v1008
    %v3695 = vsel %vm115, %v1046, %v1015
    %3698 = vrot.lane.b32.xlu0 %v3689, 32
    %v3699 = vpop.permute.xlu0 %3698
    %3700 = vrot.lane.b32.xlu0 %v3690, 32
    %v3701 = vpop.permute.xlu0 %3700
    %v3702 = vsel %vm785, %v3699, %v3701
    %v3705 = vsel %vm508, %v3701, 0
    %3707 = vmatprep.subr.bf16.mxu0 %v409
    %3708 = vmatpush1.bf16.msra.mxu0 %v408
    %3709 = vmatprep.subr.bf16.mxu0 %v414
    %3710 = vmatpush1.bf16.msra.mxu0 %v413
    %3711 = vmatprep.subr.bf16.mxu0 %v419
    %3712 = vmatpush1.bf16.msra.mxu0 %v418
    %3713 = vmatprep.subr.bf16.mxu0 %v424
    %3714 = vmatpush1.bf16.msra.mxu0 %v423
    %3715 = vmatprep.subr.bf16.mxu0 %v429
    %3716 = vmatpush1.bf16.msra.mxu0 %v428
    %3717 = vmatprep.subr.bf16.mxu0 %v434
    %3718 = vmatpush1.bf16.msra.mxu0 %v433
    %3719 = vmatprep.subr.bf16.mxu0 %v439
    %3720 = vmatpush1.bf16.msra.mxu0 %v438
    %3721 = vmatprep.subr.bf16.mxu0 %v444
    %3722 = vmatpush1.bf16.msra.mxu0 %v443
    %3723 = vmatprep.subr.bf16.mxu0 %v449
    %3724 = vmatpush1.bf16.msra.mxu0 %v448
    %3725 = vmatprep.subr.bf16.mxu0 %v454
    %3726 = vmatpush1.bf16.msra.mxu0 %v453
    %3727 = vmatprep.subr.bf16.mxu0 0
    %3728 = vmatpush1.bf16.msra.mxu0 0
    %3729 = vmatprep.subr.bf16.mxu0 0
    %3730 = vmatpush1.bf16.msra.mxu0 0
    %3731 = vmatprep.subr.bf16.mxu0 0
    %3732 = vmatpush1.bf16.msra.mxu0 0
    %3733 = vmatprep.subr.bf16.mxu0 0
    %3734 = vmatpush1.bf16.msra.mxu0 0
    %3735 = vmatprep.subr.bf16.mxu0 0
    %3736 = vmatpush1.bf16.msra.mxu0 0
    %3737 = vmatprep.subr.bf16.mxu0 0
    %3738 = vmatpush1.bf16.msra.mxu0 0
    %3739 = vmatprep.mubr.bf16.mxu0 %v3705
    %3740 = vmatmul.mubr.bf16.gmra.mrb[0].mxu0 %v3702
    %v3741 = vpop.f32.mrb[0].mxu0
    %v3742 = vadd.f32 %v3691, %v3741
    %v3743 = vpop.f32.mrb[0].mxu0
    %v3744 = vadd.f32 %v3692, %v3743
    %v3745 = vpop.f32.mrb[0].mxu0
    %v3746 = vpop.f32.mrb[0].mxu0
    %3747 = vdwg.mxu0
    %3748 = vmatprep.subr.bf16.mxu0 %v411
    %3749 = vmatpush1.bf16.msra.mxu0 %v410
    %3750 = vmatprep.subr.bf16.mxu0 %v416
    %3751 = vmatpush1.bf16.msra.mxu0 %v415
    %3752 = vmatprep.subr.bf16.mxu0 %v421
    %3753 = vmatpush1.bf16.msra.mxu0 %v420
    %3754 = vmatprep.subr.bf16.mxu0 %v426
    %3755 = vmatpush1.bf16.msra.mxu0 %v425
    %3756 = vmatprep.subr.bf16.mxu0 %v431
    %3757 = vmatpush1.bf16.msra.mxu0 %v430
    %3758 = vmatprep.subr.bf16.mxu0 %v436
    %3759 = vmatpush1.bf16.msra.mxu0 %v435
    %3760 = vmatprep.subr.bf16.mxu0 %v441
    %3761 = vmatpush1.bf16.msra.mxu0 %v440
    %3762 = vmatprep.subr.bf16.mxu0 %v446
    %3763 = vmatpush1.bf16.msra.mxu0 %v445
    %3764 = vmatprep.subr.bf16.mxu0 %v451
    %3765 = vmatpush1.bf16.msra.mxu0 %v450
    %3766 = vmatprep.subr.bf16.mxu0 %v456
    %3767 = vmatpush1.bf16.msra.mxu0 %v455
    %3768 = vmatprep.subr.bf16.mxu0 0
    %3769 = vmatpush1.bf16.msra.mxu0 0
    %3770 = vmatprep.subr.bf16.mxu0 0
    %3771 = vmatpush1.bf16.msra.mxu0 0
    %3772 = vmatprep.subr.bf16.mxu0 0
    %3773 = vmatpush1.bf16.msra.mxu0 0
    %3774 = vmatprep.subr.bf16.mxu0 0
    %3775 = vmatpush1.bf16.msra.mxu0 0
    %3776 = vmatprep.subr.bf16.mxu0 0
    %3777 = vmatpush1.bf16.msra.mxu0 0
    %3778 = vmatprep.subr.bf16.mxu0 0
    %3779 = vmatpush1.bf16.msra.mxu0 0
    %3780 = vmatprep.mubr.bf16.mxu0 %v3705
    %3781 = vmatmul.mubr.bf16.gmra.mrb[0].mxu0 %v3702
    %v3782 = vpop.f32.mrb[0].mxu0
    %v3783 = vadd.f32 %v3693, %v3782
    %v3784 = vpop.f32.mrb[0].mxu0
    %v3785 = vadd.f32 %v3694, %v3784
    %v3786 = vpop.f32.mrb[0].mxu0
    %v3787 = vpop.f32.mrb[0].mxu0
    %3788 = vdwg.mxu0
    %3789 = vmatprep.subr.bf16.mxu0 0
    %3790 = vmatpush1.bf16.msra.mxu0 %v412
    %3791 = vmatprep.subr.bf16.mxu0 0
    %3792 = vmatpush1.bf16.msra.mxu0 %v417
    %3793 = vmatprep.subr.bf16.mxu0 0
    %3794 = vmatpush1.bf16.msra.mxu0 %v422
    %3795 = vmatprep.subr.bf16.mxu0 0
    %3796 = vmatpush1.bf16.msra.mxu0 %v427
    %3797 = vmatprep.subr.bf16.mxu0 0
    %3798 = vmatpush1.bf16.msra.mxu0 %v432
    %3799 = vmatprep.subr.bf16.mxu0 0
    %3800 = vmatpush1.bf16.msra.mxu0 %v437
    %3801 = vmatprep.subr.bf16.mxu0 0
    %3802 = vmatpush1.bf16.msra.mxu0 %v442
    %3803 = vmatprep.subr.bf16.mxu0 0
    %3804 = vmatpush1.bf16.msra.mxu0 %v447
    %3805 = vmatprep.subr.bf16.mxu0 0
    %3806 = vmatpush1.bf16.msra.mxu0 %v452
    %3807 = vmatprep.subr.bf16.mxu0 0
    %3808 = vmatpush1.bf16.msra.mxu0 %v457
    %3809 = vmatprep.subr.bf16.mxu0 0
    %3810 = vmatpush1.bf16.msra.mxu0 0
    %3811 = vmatprep.subr.bf16.mxu0 0
    %3812 = vmatpush1.bf16.msra.mxu0 0
    %3813 = vmatprep.subr.bf16.mxu0 0
    %3814 = vmatpush1.bf16.msra.mxu0 0
    %3815 = vmatprep.subr.bf16.mxu0 0
    %3816 = vmatpush1.bf16.msra.mxu0 0
    %3817 = vmatprep.subr.bf16.mxu0 0
    %3818 = vmatpush1.bf16.msra.mxu0 0
    %3819 = vmatprep.subr.bf16.mxu0 0
    %3820 = vmatpush1.bf16.msra.mxu0 0
    %3821 = vmatprep.mubr.bf16.mxu0 %v3705
    %3822 = vmatmul.mubr.bf16.gmra.mrb[0].mxu0 %v3702
    %v3823 = vpop.f32.mrb[0].mxu0
    %v3824 = vadd.f32 %v3695, %v3823
    %v3825 = vpop.f32.mrb[0].mxu0
    %v3826 = vpop.f32.mrb[0].mxu0
    %v3827 = vpop.f32.mrb[0].mxu0
    %3828 = vdwg.mxu0
    %v3829 = vxor.u32 %v3742, 2147483648
    %v3830 = vxor.u32 %v3744, 2147483648
    %v3831 = vmul.f32 %v3829, 1.442695
    %v3832 = vpow.pop %v3831
    %v3833 = vmul.f32 %v3830, 1.442695
    %v3834 = vpow.pop %v3833
    %v3835 = vadd.f32 %v3832, 1.0
    %v3836 = vadd.f32 %v3834, 1.0
    %v3837 = vrcp.pop %v3835
    %v3838 = vmul.f32 1.0, %v3837
    %v3839 = vrcp.pop %v3836
    %v3840 = vmul.f32 1.0, %v3839
    %v3841 = vxor.u32 %v3783, 2147483648
    %v3842 = vmul.f32 %v3841, 1.442695
    %v3843 = vpow.pop %v3842
    %v3844 = vadd.f32 %v3843, 1.0
    %v3845 = vrcp.pop %v3844
    %v3846 = vmul.f32 1.0, %v3845
    %v3847 = vtanh.pop %v3783
    %v3848 = vtanh.pop %v3785
    %v3849 = vxor.u32 %v3785, 2147483648
    %v3850 = vxor.u32 %v3824, 2147483648
    %v3851 = vmul.f32 %v3849, 1.442695
    %v3852 = vpow.pop %v3851
    %v3853 = vmul.f32 %v3850, 1.442695
    %v3854 = vpow.pop %v3853
    %v3855 = vadd.f32 %v3852, 1.0
    %v3856 = vadd.f32 %v3854, 1.0
    %v3857 = vrcp.pop %v3855
    %v3858 = vmul.f32 1.0, %v3857
    %v3859 = vrcp.pop %v3856
    %v3860 = vmul.f32 1.0, %v3859
    %v3861 = vmul.f32 %v3840, %v3674
    %v3862 = vmul.f32 %v3846, %v3675
    %3865 = vrot.lane.b32.xlu0 %v3847, 64
    %v3866 = vpop.permute.xlu0 %3865
    %3867 = vrot.lane.b32.xlu0 %v3848, 64
    %v3868 = vpop.permute.xlu0 %3867
    %v3869 = vsel %vm674, %v3866, %v3868
    %v3872 = vmul.f32 %v3838, %v3869
    %v3873 = vmul.f32 %v3840, %v3868
    %3876 = vrot.lane.b32.xlu0 %v3872, 32
    %v3877 = vpop.permute.xlu0 %3876
    %3878 = vrot.lane.b32.xlu0 %v3873, 32
    %v3879 = vpop.permute.xlu0 %3878
    %v3880 = vsel %vm508, %v3877, %v3879
    %v3883 = vadd.f32 %v3861, %v3877
    %v3884 = vadd.f32 %v3862, %v3880
    %v3885 = vtanh.pop %v3883
    %v3886 = vtanh.pop %v3884
    %3889 = vrot.lane.b32.xlu0 %v3885, 64
    %v3890 = vpop.permute.xlu0 %3889
    %3891 = vrot.lane.b32.xlu0 %v3886, 64
    %v3892 = vpop.permute.xlu0 %3891
    %v3893 = vsel %vm674, %v3890, %v3892
    %v3896 = vmul.f32 %v3858, %v3890
    %v3897 = vmul.f32 %v3860, %v3893
    %v3898 = vpack.c.bf16 %v3896, %v3896
    %v3899 = vpack.c.bf16 %v3897, %v3897
    %v3900 = vsel %vm111, %v752, %v721
    %v3901 = vsel %vm112, %v760, %v729
    %v3902 = vsel %vm113, %v759, %v728
    %v3903 = vsel %vm114, %v761, %v730
    %v3904 = vsel %vm115, %v768, %v737
    %3907 = vrot.lane.b32.xlu0 %v3898, 32
    %v3908 = vpop.permute.xlu0 %3907
    %3909 = vrot.lane.b32.xlu0 %v3899, 32
    %v3910 = vpop.permute.xlu0 %3909
    %v3911 = vsel %vm785, %v3908, %v3910
    %v3914 = vsel %vm508, %v3910, 0
    %3916 = vmatprep.subr.bf16.mxu0 %v409
    %3917 = vmatpush1.bf16.msra.mxu0 %v408
    %3918 = vmatprep.subr.bf16.mxu0 %v414
    %3919 = vmatpush1.bf16.msra.mxu0 %v413
    %3920 = vmatprep.subr.bf16.mxu0 %v419
    %3921 = vmatpush1.bf16.msra.mxu0 %v418
    %3922 = vmatprep.subr.bf16.mxu0 %v424
    %3923 = vmatpush1.bf16.msra.mxu0 %v423
    %3924 = vmatprep.subr.bf16.mxu0 %v429
    %3925 = vmatpush1.bf16.msra.mxu0 %v428
    %3926 = vmatprep.subr.bf16.mxu0 %v434
    %3927 = vmatpush1.bf16.msra.mxu0 %v433
    %3928 = vmatprep.subr.bf16.mxu0 %v439
    %3929 = vmatpush1.bf16.msra.mxu0 %v438
    %3930 = vmatprep.subr.bf16.mxu0 %v444
    %3931 = vmatpush1.bf16.msra.mxu0 %v443
    %3932 = vmatprep.subr.bf16.mxu0 %v449
    %3933 = vmatpush1.bf16.msra.mxu0 %v448
    %3934 = vmatprep.subr.bf16.mxu0 %v454
    %3935 = vmatpush1.bf16.msra.mxu0 %v453
    %3936 = vmatprep.subr.bf16.mxu0 0
    %3937 = vmatpush1.bf16.msra.mxu0 0
    %3938 = vmatprep.subr.bf16.mxu0 0
    %3939 = vmatpush1.bf16.msra.mxu0 0
    %3940 = vmatprep.subr.bf16.mxu0 0
    %3941 = vmatpush1.bf16.msra.mxu0 0
    %3942 = vmatprep.subr.bf16.mxu0 0
    %3943 = vmatpush1.bf16.msra.mxu0 0
    %3944 = vmatprep.subr.bf16.mxu0 0
    %3945 = vmatpush1.bf16.msra.mxu0 0
    %3946 = vmatprep.subr.bf16.mxu0 0
    %3947 = vmatpush1.bf16.msra.mxu0 0
    %3948 = vmatprep.mubr.bf16.mxu0 %v3914
    %3949 = vmatmul.mubr.bf16.gmra.mrb[0].mxu0 %v3911
    %v3950 = vpop.f32.mrb[0].mxu0
    %v3951 = vadd.f32 %v3900, %v3950
    %v3952 = vpop.f32.mrb[0].mxu0
    %v3953 = vadd.f32 %v3901, %v3952
    %v3954 = vpop.f32.mrb[0].mxu0
    %v3955 = vpop.f32.mrb[0].mxu0
    %3956 = vdwg.mxu0
    %3957 = vmatprep.subr.bf16.mxu0 %v411
    %3958 = vmatpush1.bf16.msra.mxu0 %v410
    %3959 = vmatprep.subr.bf16.mxu0 %v416
    %3960 = vmatpush1.bf16.msra.mxu0 %v415
    %3961 = vmatprep.subr.bf16.mxu0 %v421
    %3962 = vmatpush1.bf16.msra.mxu0 %v420
    %3963 = vmatprep.subr.bf16.mxu0 %v426
    %3964 = vmatpush1.bf16.msra.mxu0 %v425
    %3965 = vmatprep.subr.bf16.mxu0 %v431
    %3966 = vmatpush1.bf16.msra.mxu0 %v430
    %3967 = vmatprep.subr.bf16.mxu0 %v436
    %3968 = vmatpush1.bf16.msra.mxu0 %v435
    %3969 = vmatprep.subr.bf16.mxu0 %v441
    %3970 = vmatpush1.bf16.msra.mxu0 %v440
    %3971 = vmatprep.subr.bf16.mxu0 %v446
    %3972 = vmatpush1.bf16.msra.mxu0 %v445
    %3973 = vmatprep.subr.bf16.mxu0 %v451
    %3974 = vmatpush1.bf16.msra.mxu0 %v450
    %3975 = vmatprep.subr.bf16.mxu0 %v456
    %3976 = vmatpush1.bf16.msra.mxu0 %v455
    %3977 = vmatprep.subr.bf16.mxu0 0
    %3978 = vmatpush1.bf16.msra.mxu0 0
    %3979 = vmatprep.subr.bf16.mxu0 0
    %3980 = vmatpush1.bf16.msra.mxu0 0
    %3981 = vmatprep.subr.bf16.mxu0 0
    %3982 = vmatpush1.bf16.msra.mxu0 0
    %3983 = vmatprep.subr.bf16.mxu0 0
    %3984 = vmatpush1.bf16.msra.mxu0 0
    %3985 = vmatprep.subr.bf16.mxu0 0
    %3986 = vmatpush1.bf16.msra.mxu0 0
    %3987 = vmatprep.subr.bf16.mxu0 0
    %3988 = vmatpush1.bf16.msra.mxu0 0
    %3989 = vmatprep.mubr.bf16.mxu0 %v3914
    %3990 = vmatmul.mubr.bf16.gmra.mrb[0].mxu0 %v3911
    %v3991 = vpop.f32.mrb[0].mxu0
    %v3992 = vadd.f32 %v3902, %v3991
    %v3993 = vpop.f32.mrb[0].mxu0
    %v3994 = vadd.f32 %v3903, %v3993
    %v3995 = vpop.f32.mrb[0].mxu0
    %v3996 = vpop.f32.mrb[0].mxu0
    %3997 = vdwg.mxu0
    %3998 = vmatprep.subr.bf16.mxu0 0
    %3999 = vmatpush1.bf16.msra.mxu0 %v412
    %4000 = vmatprep.subr.bf16.mxu0 0
    %4001 = vmatpush1.bf16.msra.mxu0 %v417
    %4002 = vmatprep.subr.bf16.mxu0 0
    %4003 = vmatpush1.bf16.msra.mxu0 %v422
    %4004 = vmatprep.subr.bf16.mxu0 0
    %4005 = vmatpush1.bf16.msra.mxu0 %v427
    %4006 = vmatprep.subr.bf16.mxu0 0
    %4007 = vmatpush1.bf16.msra.mxu0 %v432
    %4008 = vmatprep.subr.bf16.mxu0 0
    %4009 = vmatpush1.bf16.msra.mxu0 %v437
    %4010 = vmatprep.subr.bf16.mxu0 0
    %4011 = vmatpush1.bf16.msra.mxu0 %v442
    %4012 = vmatprep.subr.bf16.mxu0 0
    %4013 = vmatpush1.bf16.msra.mxu0 %v447
    %4014 = vmatprep.subr.bf16.mxu0 0
    %4015 = vmatpush1.bf16.msra.mxu0 %v452
    %4016 = vmatprep.subr.bf16.mxu0 0
    %4017 = vmatpush1.bf16.msra.mxu0 %v457
    %4018 = vmatprep.subr.bf16.mxu0 0
    %4019 = vmatpush1.bf16.msra.mxu0 0
    %4020 = vmatprep.subr.bf16.mxu0 0
    %4021 = vmatpush1.bf16.msra.mxu0 0
    %4022 = vmatprep.subr.bf16.mxu0 0
    %4023 = vmatpush1.bf16.msra.mxu0 0
    %4024 = vmatprep.subr.bf16.mxu0 0
    %4025 = vmatpush1.bf16.msra.mxu0 0
    %4026 = vmatprep.subr.bf16.mxu0 0
    %4027 = vmatpush1.bf16.msra.mxu0 0
    %4028 = vmatprep.subr.bf16.mxu0 0
    %4029 = vmatpush1.bf16.msra.mxu0 0
    %4030 = vmatprep.mubr.bf16.mxu0 %v3914
    %4031 = vmatmul.mubr.bf16.gmra.mrb[0].mxu0 %v3911
    %v4032 = vpop.f32.mrb[0].mxu0
    %v4033 = vadd.f32 %v3904, %v4032
    %v4034 = vpop.f32.mrb[0].mxu0
    %v4035 = vpop.f32.mrb[0].mxu0
    %v4036 = vpop.f32.mrb[0].mxu0
    %4037 = vdwg.mxu0
    %v4038 = vxor.u32 %v3951, 2147483648
    %v4039 = vxor.u32 %v3953, 2147483648
    %v4040 = vmul.f32 %v4038, 1.442695
    %v4041 = vpow.pop %v4040
    %v4042 = vmul.f32 %v4039, 1.442695
    %v4043 = vpow.pop %v4042
    %v4044 = vadd.f32 %v4041, 1.0
    %v4045 = vadd.f32 %v4043, 1.0
    %v4046 = vrcp.pop %v4044
    %v4047 = vmul.f32 1.0, %v4046
    %v4048 = vrcp.pop %v4045
    %v4049 = vmul.f32 1.0, %v4048
    %v4050 = vxor.u32 %v3992, 2147483648
    %v4051 = vmul.f32 %v4050, 1.442695
    %v4052 = vpow.pop %v4051
    %v4053 = vadd.f32 %v4052, 1.0
    %v4054 = vrcp.pop %v4053
    %v4055 = vmul.f32 1.0, %v4054
    %v4056 = vtanh.pop %v3992
    %v4057 = vtanh.pop %v3994
    %v4058 = vxor.u32 %v3994, 2147483648
    %v4059 = vxor.u32 %v4033, 2147483648
    %v4060 = vmul.f32 %v4058, 1.442695
    %v4061 = vpow.pop %v4060
    %v4062 = vmul.f32 %v4059, 1.442695
    %v4063 = vpow.pop %v4062
    %v4064 = vadd.f32 %v4061, 1.0
    %v4065 = vadd.f32 %v4063, 1.0
    %v4066 = vrcp.pop %v4064
    %v4067 = vmul.f32 1.0, %v4066
    %v4068 = vrcp.pop %v4065
    %v4069 = vmul.f32 1.0, %v4068
    %v4070 = vmul.f32 %v4049, %v3883
    %v4071 = vmul.f32 %v4055, %v3884
    %4074 = vrot.lane.b32.xlu0 %v4056, 64
    %v4075 = vpop.permute.xlu0 %4074
    %4076 = vrot.lane.b32.xlu0 %v4057, 64
    %v4077 = vpop.permute.xlu0 %4076
    %v4078 = vsel %vm674, %v4075, %v4077
    %v4081 = vmul.f32 %v4047, %v4078
    %v4082 = vmul.f32 %v4049, %v4077
    %4085 = vrot.lane.b32.xlu0 %v4081, 32
    %v4086 = vpop.permute.xlu0 %4085
    %4087 = vrot.lane.b32.xlu0 %v4082, 32
    %v4088 = vpop.permute.xlu0 %4087
    %v4089 = vsel %vm508, %v4086, %v4088
    %v4092 = vadd.f32 %v4070, %v4086
    %v4093 = vadd.f32 %v4071, %v4089
    %v4094 = vtanh.pop %v4092
    %v4095 = vtanh.pop %v4093
    %4098 = vrot.lane.b32.xlu0 %v4094, 64
    %v4099 = vpop.permute.xlu0 %4098
    %4100 = vrot.lane.b32.xlu0 %v4095, 64
    %v4101 = vpop.permute.xlu0 %4100
    %v4102 = vsel %vm674, %v4099, %v4101
    %v4105 = vmul.f32 %v4067, %v4099
    %v4106 = vmul.f32 %v4069, %v4102
    %v4107 = vpack.c.bf16 %v4105, %v4105
    %v4108 = vpack.c.bf16 %v4106, %v4106
    %v4109 = vsel %vm111, %v221, %v190
    %v4110 = vsel %vm112, %v229, %v198
    %v4111 = vsel %vm113, %v228, %v197
    %v4112 = vsel %vm114, %v230, %v199
    %v4113 = vsel %vm115, %v237, %v206
    %4116 = vrot.lane.b32.xlu0 %v4107, 32
    %v4117 = vpop.permute.xlu0 %4116
    %4118 = vrot.lane.b32.xlu0 %v4108, 32
    %v4119 = vpop.permute.xlu0 %4118
    %v4120 = vsel %vm785, %v4117, %v4119
    %v4123 = vsel %vm508, %v4119, 0
    %4125 = vmatprep.subr.bf16.mxu0 %v409
    %4126 = vmatpush1.bf16.msra.mxu0 %v408
    %4127 = vmatprep.subr.bf16.mxu0 %v414
    %4128 = vmatpush1.bf16.msra.mxu0 %v413
    %4129 = vmatprep.subr.bf16.mxu0 %v419
    %4130 = vmatpush1.bf16.msra.mxu0 %v418
    %4131 = vmatprep.subr.bf16.mxu0 %v424
    %4132 = vmatpush1.bf16.msra.mxu0 %v423
    %4133 = vmatprep.subr.bf16.mxu0 %v429
    %4134 = vmatpush1.bf16.msra.mxu0 %v428
    %4135 = vmatprep.subr.bf16.mxu0 %v434
    %4136 = vmatpush1.bf16.msra.mxu0 %v433
    %4137 = vmatprep.subr.bf16.mxu0 %v439
    %4138 = vmatpush1.bf16.msra.mxu0 %v438
    %4139 = vmatprep.subr.bf16.mxu0 %v444
    %4140 = vmatpush1.bf16.msra.mxu0 %v443
    %4141 = vmatprep.subr.bf16.mxu0 %v449
    %4142 = vmatpush1.bf16.msra.mxu0 %v448
    %4143 = vmatprep.subr.bf16.mxu0 %v454
    %4144 = vmatpush1.bf16.msra.mxu0 %v453
    %4145 = vmatprep.subr.bf16.mxu0 0
    %4146 = vmatpush1.bf16.msra.mxu0 0
    %4147 = vmatprep.subr.bf16.mxu0 0
    %4148 = vmatpush1.bf16.msra.mxu0 0
    %4149 = vmatprep.subr.bf16.mxu0 0
    %4150 = vmatpush1.bf16.msra.mxu0 0
    %4151 = vmatprep.subr.bf16.mxu0 0
    %4152 = vmatpush1.bf16.msra.mxu0 0
    %4153 = vmatprep.subr.bf16.mxu0 0
    %4154 = vmatpush1.bf16.msra.mxu0 0
    %4155 = vmatprep.subr.bf16.mxu0 0
    %4156 = vmatpush1.bf16.msra.mxu0 0
    %4157 = vmatprep.mubr.bf16.mxu0 %v4123
    %4158 = vmatmul.mubr.bf16.gmra.mrb[0].mxu0 %v4120
    %v4159 = vpop.f32.mrb[0].mxu0
    %v4160 = vadd.f32 %v4109, %v4159
    %v4161 = vpop.f32.mrb[0].mxu0
    %v4162 = vadd.f32 %v4110, %v4161
    %v4163 = vpop.f32.mrb[0].mxu0
    %v4164 = vpop.f32.mrb[0].mxu0
    %4165 = vdwg.mxu0
    %4166 = vmatprep.subr.bf16.mxu0 %v411
    %4167 = vmatpush1.bf16.msra.mxu0 %v410
    %4168 = vmatprep.subr.bf16.mxu0 %v416
    %4169 = vmatpush1.bf16.msra.mxu0 %v415
    %4170 = vmatprep.subr.bf16.mxu0 %v421
    %4171 = vmatpush1.bf16.msra.mxu0 %v420
    %4172 = vmatprep.subr.bf16.mxu0 %v426
    %4173 = vmatpush1.bf16.msra.mxu0 %v425
    %4174 = vmatprep.subr.bf16.mxu0 %v431
    %4175 = vmatpush1.bf16.msra.mxu0 %v430
    %4176 = vmatprep.subr.bf16.mxu0 %v436
    %4177 = vmatpush1.bf16.msra.mxu0 %v435
    %4178 = vmatprep.subr.bf16.mxu0 %v441
    %4179 = vmatpush1.bf16.msra.mxu0 %v440
    %4180 = vmatprep.subr.bf16.mxu0 %v446
    %4181 = vmatpush1.bf16.msra.mxu0 %v445
    %4182 = vmatprep.subr.bf16.mxu0 %v451
    %4183 = vmatpush1.bf16.msra.mxu0 %v450
    %4184 = vmatprep.subr.bf16.mxu0 %v456
    %4185 = vmatpush1.bf16.msra.mxu0 %v455
    %4186 = vmatprep.subr.bf16.mxu0 0
    %4187 = vmatpush1.bf16.msra.mxu0 0
    %4188 = vmatprep.subr.bf16.mxu0 0
    %4189 = vmatpush1.bf16.msra.mxu0 0
    %4190 = vmatprep.subr.bf16.mxu0 0
    %4191 = vmatpush1.bf16.msra.mxu0 0
    %4192 = vmatprep.subr.bf16.mxu0 0
    %4193 = vmatpush1.bf16.msra.mxu0 0
    %4194 = vmatprep.subr.bf16.mxu0 0
    %4195 = vmatpush1.bf16.msra.mxu0 0
    %4196 = vmatprep.subr.bf16.mxu0 0
    %4197 = vmatpush1.bf16.msra.mxu0 0
    %4198 = vmatprep.mubr.bf16.mxu0 %v4123
    %4199 = vmatmul.mubr.bf16.gmra.mrb[0].mxu0 %v4120
    %v4200 = vpop.f32.mrb[0].mxu0
    %v4201 = vadd.f32 %v4111, %v4200
    %v4202 = vpop.f32.mrb[0].mxu0
    %v4203 = vadd.f32 %v4112, %v4202
    %v4204 = vpop.f32.mrb[0].mxu0
    %v4205 = vpop.f32.mrb[0].mxu0
    %4206 = vdwg.mxu0
    %4207 = vmatprep.subr.bf16.mxu0 0
    %4208 = vmatpush1.bf16.msra.mxu0 %v412
    %4209 = vmatprep.subr.bf16.mxu0 0
    %4210 = vmatpush1.bf16.msra.mxu0 %v417
    %4211 = vmatprep.subr.bf16.mxu0 0
    %4212 = vmatpush1.bf16.msra.mxu0 %v422
    %4213 = vmatprep.subr.bf16.mxu0 0
    %4214 = vmatpush1.bf16.msra.mxu0 %v427
    %4215 = vmatprep.subr.bf16.mxu0 0
    %4216 = vmatpush1.bf16.msra.mxu0 %v432
    %4217 = vmatprep.subr.bf16.mxu0 0
    %4218 = vmatpush1.bf16.msra.mxu0 %v437
    %4219 = vmatprep.subr.bf16.mxu0 0
    %4220 = vmatpush1.bf16.msra.mxu0 %v442
    %4221 = vmatprep.subr.bf16.mxu0 0
    %4222 = vmatpush1.bf16.msra.mxu0 %v447
    %4223 = vmatprep.subr.bf16.mxu0 0
    %4224 = vmatpush1.bf16.msra.mxu0 %v452
    %4225 = vmatprep.subr.bf16.mxu0 0
    %4226 = vmatpush1.bf16.msra.mxu0 %v457
    %4227 = vmatprep.subr.bf16.mxu0 0
    %4228 = vmatpush1.bf16.msra.mxu0 0
    %4229 = vmatprep.subr.bf16.mxu0 0
    %4230 = vmatpush1.bf16.msra.mxu0 0
    %4231 = vmatprep.subr.bf16.mxu0 0
    %4232 = vmatpush1.bf16.msra.mxu0 0
    %4233 = vmatprep.subr.bf16.mxu0 0
    %4234 = vmatpush1.bf16.msra.mxu0 0
    %4235 = vmatprep.subr.bf16.mxu0 0
    %4236 = vmatpush1.bf16.msra.mxu0 0
    %4237 = vmatprep.subr.bf16.mxu0 0
    %4238 = vmatpush1.bf16.msra.mxu0 0
    %4239 = vmatprep.mubr.bf16.mxu0 %v4123
    %4240 = vmatmul.mubr.bf16.gmra.mrb[0].mxu0 %v4120
    %v4241 = vpop.f32.mrb[0].mxu0
    %v4242 = vadd.f32 %v4113, %v4241
    %v4243 = vpop.f32.mrb[0].mxu0
    %v4244 = vpop.f32.mrb[0].mxu0
    %v4245 = vpop.f32.mrb[0].mxu0
    %4246 = vdwg.mxu0
    %v4247 = vxor.u32 %v4160, 2147483648
    %v4248 = vxor.u32 %v4162, 2147483648
    %v4249 = vmul.f32 %v4247, 1.442695
    %v4250 = vpow.pop %v4249
    %v4251 = vmul.f32 %v4248, 1.442695
    %v4252 = vpow.pop %v4251
    %v4253 = vadd.f32 %v4250, 1.0
    %v4254 = vadd.f32 %v4252, 1.0
    %v4255 = vrcp.pop %v4253
    %v4256 = vmul.f32 1.0, %v4255
    %v4257 = vrcp.pop %v4254
    %v4258 = vmul.f32 1.0, %v4257
    %v4259 = vxor.u32 %v4201, 2147483648
    %v4260 = vmul.f32 %v4259, 1.442695
    %v4261 = vpow.pop %v4260
    %v4262 = vadd.f32 %v4261, 1.0
    %v4263 = vrcp.pop %v4262
    %v4264 = vmul.f32 1.0, %v4263
    %v4265 = vtanh.pop %v4201
    %v4266 = vtanh.pop %v4203
    %v4267 = vxor.u32 %v4203, 2147483648
    %v4268 = vxor.u32 %v4242, 2147483648
    %v4269 = vmul.f32 %v4267, 1.442695
    %v4270 = vpow.pop %v4269
    %v4271 = vmul.f32 %v4268, 1.442695
    %v4272 = vpow.pop %v4271
    %v4273 = vadd.f32 %v4270, 1.0
    %v4274 = vadd.f32 %v4272, 1.0
    %v4275 = vrcp.pop %v4273
    %v4276 = vmul.f32 1.0, %v4275
    %v4277 = vrcp.pop %v4274
    %v4278 = vmul.f32 1.0, %v4277
    %v4279 = vmul.f32 %v4258, %v4092
    %v4280 = vmul.f32 %v4264, %v4093
    %4283 = vrot.lane.b32.xlu0 %v4265, 64
    %v4284 = vpop.permute.xlu0 %4283
    %4285 = vrot.lane.b32.xlu0 %v4266, 64
    %v4286 = vpop.permute.xlu0 %4285
    %v4287 = vsel %vm674, %v4284, %v4286
    %v4290 = vmul.f32 %v4256, %v4287
    %v4291 = vmul.f32 %v4258, %v4286
    %4294 = vrot.lane.b32.xlu0 %v4290, 32
    %v4295 = vpop.permute.xlu0 %4294
    %4296 = vrot.lane.b32.xlu0 %v4291, 32
    %v4297 = vpop.permute.xlu0 %4296
    %v4298 = vsel %vm508, %v4295, %v4297
    %v4301 = vadd.f32 %v4279, %v4295
    %v4302 = vadd.f32 %v4280, %v4298
    %v4303 = vtanh.pop %v4301
    %v4304 = vtanh.pop %v4302
    %4307 = vrot.lane.b32.xlu0 %v4303, 64
    %v4308 = vpop.permute.xlu0 %4307
    %4309 = vrot.lane.b32.xlu0 %v4304, 64
    %v4310 = vpop.permute.xlu0 %4309
    %v4311 = vsel %vm674, %v4308, %v4310
    %v4314 = vmul.f32 %v4276, %v4308
    %v4315 = vmul.f32 %v4278, %v4311
    %v4316 = vld [vmem:[%s2] sm:$0xff]
    %v4317 = vld [vmem:[%s2 + $0x8] sm:$0xff]
    %v4318 = vld [vmem:[%s2 + $0x10] sm:$0xff]
    %v4319 = vld [vmem:[%s2 + $0x18] sm:$0xff]
    %v4320 = vld [vmem:[%s2 + $0x20] sm:$0xff]
    %v4321 = vld [vmem:[%s2 + $0x28] sm:$0xff]
    %v4322 = vld [vmem:[%s2 + $0x30] sm:$0xff]
    %v4323 = vld [vmem:[%s2 + $0x38] sm:$0xff]
    %v4324 = vld [vmem:[%s2 + $0x40] sm:$0xff]
    %v4325 = vld [vmem:[%s2 + $0x48] sm:$0xff]
    %v4326 = vld [vmem:[%s2 + $0x50] sm:$0xff]
    %v4327 = vld [vmem:[%s2 + $0x58] sm:$0xff]
    %v4328 = vld [vmem:[%s2 + $0x60] sm:$0xff]
    %v4329 = vld [vmem:[%s2 + $0x68] sm:$0xff]
    %v4330 = vld [vmem:[%s2 + $0x70] sm:$0xff]
    %v4331 = vld [vmem:[%s2 + $0x78] sm:$0xff]
    %v4332 = vld [vmem:[%s2 + $0x80] sm:$0xff]
    %v4333 = vld [vmem:[%s2 + $0x88] sm:$0xff]
    %v4334 = vld [vmem:[%s2 + $0x90] sm:$0xff]
    %v4335 = vld [vmem:[%s2 + $0x98] sm:$0xff]
    %v4336 = vld [vmem:[%s3] sm:$0x1]
    %v4338 = vlaneseq
    %v4339 = vshrl.u32 %v4338, 7
    %v4340 = vsub.s32 0, %v4339
    %v4341 = vrot.slane %v4336, %v4340
    %4345 = vrot.lane.b32.xlu0 %v4314, 32
    %v4346 = vpop.permute.xlu0 %4345
    %4347 = vrot.lane.b32.xlu0 %v4315, 32
    %v4348 = vpop.permute.xlu0 %4347
    %v4349 = vsel %vm508, %v4346, %v4348
    %v4351 = vsel %vm508, %v4348, 0
    %4353 = vmatprep.subr.mxu0 0.0
    %4354 = vmatpush1.msra.mxu0 %v4316
    %4355 = vmatprep.subr.mxu0 0.0
    %4356 = vmatpush1.msra.mxu0 %v4317
    %4357 = vmatprep.subr.mxu0 0.0
    %4358 = vmatpush1.msra.mxu0 %v4318
    %4359 = vmatprep.subr.mxu0 0.0
    %4360 = vmatpush1.msra.mxu0 %v4319
    %4361 = vmatprep.subr.mxu0 0.0
    %4362 = vmatpush1.msra.mxu0 %v4320
    %4363 = vmatprep.subr.mxu0 0.0
    %4364 = vmatpush1.msra.mxu0 %v4321
    %4365 = vmatprep.subr.mxu0 0.0
    %4366 = vmatpush1.msra.mxu0 %v4322
    %4367 = vmatprep.subr.mxu0 0.0
    %4368 = vmatpush1.msra.mxu0 %v4323
    %4369 = vmatprep.subr.mxu0 0.0
    %4370 = vmatpush1.msra.mxu0 %v4324
    %4371 = vmatprep.subr.mxu0 0.0
    %4372 = vmatpush1.msra.mxu0 %v4325
    %4373 = vmatprep.subr.mxu0 0.0
    %4374 = vmatpush1.msra.mxu0 %v4326
    %4375 = vmatprep.subr.mxu0 0.0
    %4376 = vmatpush1.msra.mxu0 %v4327
    %4377 = vmatprep.subr.mxu0 0.0
    %4378 = vmatpush1.msra.mxu0 %v4328
    %4379 = vmatprep.subr.mxu0 0.0
    %4380 = vmatpush1.msra.mxu0 %v4329
    %4381 = vmatprep.subr.mxu0 0.0
    %4382 = vmatpush1.msra.mxu0 %v4330
    %4383 = vmatprep.subr.mxu0 0.0
    %4384 = vmatpush1.msra.mxu0 %v4331
    %4385 = vmatprep.subr.mxu0 0.0
    %4386 = vmatpush1.msra.mxu0 %v4332
    %4387 = vmatprep.subr.mxu0 0.0
    %4388 = vmatpush1.msra.mxu0 %v4333
    %4389 = vmatprep.subr.mxu0 0.0
    %4390 = vmatpush1.msra.mxu0 %v4334
    %4391 = vmatprep.subr.mxu0 0.0
    %4392 = vmatpush1.msra.mxu0 %v4335
    %4393 = vmatprep.subr.mxu0 0.0
    %4394 = vmatpush1.msra.mxu0 0.0
    %4395 = vmatprep.subr.mxu0 0.0
    %4396 = vmatpush1.msra.mxu0 0.0
    %4397 = vmatprep.subr.mxu0 0.0
    %4398 = vmatpush1.msra.mxu0 0.0
    %4399 = vmatprep.subr.mxu0 0.0
    %4400 = vmatpush1.msra.mxu0 0.0
    %4401 = vmatprep.subr.mxu0 0.0
    %4402 = vmatpush1.msra.mxu0 0.0
    %4403 = vmatprep.subr.mxu0 0.0
    %4404 = vmatpush1.msra.mxu0 0.0
    %4405 = vmatprep.subr.mxu0 0.0
    %4406 = vmatpush1.msra.mxu0 0.0
    %4407 = vmatprep.subr.mxu0 0.0
    %4408 = vmatpush1.msra.mxu0 0.0
    %4409 = vmatprep.subr.mxu0 0.0
    %4410 = vmatpush1.msra.mxu0 0.0
    %4411 = vmatprep.subr.mxu0 0.0
    %4412 = vmatpush1.msra.mxu0 0.0
    %4413 = vmatprep.subr.mxu0 0.0
    %4414 = vmatpush1.msra.mxu0 0.0
    %4415 = vmatprep.subr.mxu0 0.0
    %4416 = vmatpush1.msra.mxu0 0.0
    %4417 = vmatprep.mubr.f32.mxu0 %v4351
    %4418 = vmatmul.mubr.f32.gmra.mrb[0].mxu0 %v4349
    %v4419 = vpop.f32.mrb[0].mxu0
    %v4420 = vadd.f32 %v4341, %v4419
    %v4421 = vpop.f32.mrb[0].mxu0
    %4422 = vdwg.mxu0
    %v4423 = vmax.f32 %v4420, 0.0
    %v4424 = vld [vmem:[%s4] sm:$0xff]
    %v4425 = vld [vmem:[%s4 + $0x8] sm:$0xff]
    %v4426 = vld [vmem:[%s4 + $0x10] sm:$0xff]
    %v4427 = vld [vmem:[%s4 + $0x18] sm:$0xff]
    %v4428 = vld [vmem:[%s4 + $0x20] sm:$0xff]
    %v4429 = vld [vmem:[%s4 + $0x28] sm:$0xff]
    %v4430 = vld [vmem:[%s4 + $0x30] sm:$0xff]
    %v4431 = vld [vmem:[%s4 + $0x38] sm:$0xff]
    %v4432 = vld [vmem:[%s5] sm:$0x1]
    %v4434 = vlaneseq
    %v4435 = vshrl.u32 %v4434, 7
    %v4436 = vsub.s32 0, %v4435
    %v4437 = vrot.slane %v4432, %v4436
    %v4440 = vsel %vm674, %v4423, 0
    %4442 = vmatprep.subr.mxu0 0.0
    %4443 = vmatpush1.msra.mxu0 %v4424
    %4444 = vmatprep.subr.mxu0 0.0
    %4445 = vmatpush1.msra.mxu0 %v4425
    %4446 = vmatprep.subr.mxu0 0.0
    %4447 = vmatpush1.msra.mxu0 %v4426
    %4448 = vmatprep.subr.mxu0 0.0
    %4449 = vmatpush1.msra.mxu0 %v4427
    %4450 = vmatprep.subr.mxu0 0.0
    %4451 = vmatpush1.msra.mxu0 %v4428
    %4452 = vmatprep.subr.mxu0 0.0
    %4453 = vmatpush1.msra.mxu0 %v4429
    %4454 = vmatprep.subr.mxu0 0.0
    %4455 = vmatpush1.msra.mxu0 %v4430
    %4456 = vmatprep.subr.mxu0 0.0
    %4457 = vmatpush1.msra.mxu0 %v4431
    %4458 = vmatprep.subr.mxu0 0.0
    %4459 = vmatpush1.msra.mxu0 0.0
    %4460 = vmatprep.subr.mxu0 0.0
    %4461 = vmatpush1.msra.mxu0 0.0
    %4462 = vmatprep.subr.mxu0 0.0
    %4463 = vmatpush1.msra.mxu0 0.0
    %4464 = vmatprep.subr.mxu0 0.0
    %4465 = vmatpush1.msra.mxu0 0.0
    %4466 = vmatprep.subr.mxu0 0.0
    %4467 = vmatpush1.msra.mxu0 0.0
    %4468 = vmatprep.subr.mxu0 0.0
    %4469 = vmatpush1.msra.mxu0 0.0
    %4470 = vmatprep.subr.mxu0 0.0
    %4471 = vmatpush1.msra.mxu0 0.0
    %4472 = vmatprep.subr.mxu0 0.0
    %4473 = vmatpush1.msra.mxu0 0.0
    %4474 = vmatprep.subr.mxu0 0.0
    %4475 = vmatpush1.msra.mxu0 0.0
    %4476 = vmatprep.subr.mxu0 0.0
    %4477 = vmatpush1.msra.mxu0 0.0
    %4478 = vmatprep.subr.mxu0 0.0
    %4479 = vmatpush1.msra.mxu0 0.0
    %4480 = vmatprep.subr.mxu0 0.0
    %4481 = vmatpush1.msra.mxu0 0.0
    %4482 = vmatprep.subr.mxu0 0.0
    %4483 = vmatpush1.msra.mxu0 0.0
    %4484 = vmatprep.subr.mxu0 0.0
    %4485 = vmatpush1.msra.mxu0 0.0
    %4486 = vmatprep.subr.mxu0 0.0
    %4487 = vmatpush1.msra.mxu0 0.0
    %4488 = vmatprep.subr.mxu0 0.0
    %4489 = vmatpush1.msra.mxu0 0.0
    %4490 = vmatprep.subr.mxu0 0.0
    %4491 = vmatpush1.msra.mxu0 0.0
    %4492 = vmatprep.subr.mxu0 0.0
    %4493 = vmatpush1.msra.mxu0 0.0
    %4494 = vmatprep.subr.mxu0 0.0
    %4495 = vmatpush1.msra.mxu0 0.0
    %4496 = vmatprep.subr.mxu0 0.0
    %4497 = vmatpush1.msra.mxu0 0.0
    %4498 = vmatprep.subr.mxu0 0.0
    %4499 = vmatpush1.msra.mxu0 0.0
    %4500 = vmatprep.subr.mxu0 0.0
    %4501 = vmatpush1.msra.mxu0 0.0
    %4502 = vmatprep.subr.mxu0 0.0
    %4503 = vmatpush1.msra.mxu0 0.0
    %4504 = vmatprep.subr.mxu0 0.0
    %4505 = vmatpush1.msra.mxu0 0.0
    %4506 = vmatprep.mubr.f32.mxu0 0.0
    %4507 = vmatmul.mubr.f32.gmra.mrb[0].mxu0 %v4440
    %v4508 = vpop.f32.mrb[0].mxu0
    %v4509 = vadd.f32 %v4437, %v4508
    %v4510 = vpop.f32.mrb[0].mxu0
    %4511 = vdwg.mxu0
    %vm4512 = vcmask 33792
    %v4513 = vsel %vm4512, %v4509, -inf
    %4514 = vmax.xlane.f32.xlu0 %v4513
    %v4515 = vpop.xlane.xlu0 %4514
    %v4516 = vsub.f32 %v4509, %v4515
    %v4517 = vmul.f32 %v4516, 1.442695
    %v4518 = vpow.pop %v4517
    %v4519 = vsel %vm4512, %v4518, 0.0
    %4520 = vadd.xlane.f32.xlu0 %v4519
    %v4521 = vpop.xlane.xlu0 %4520
    %v4522 = vrcp.pop %v4521
    %v4523 = vmul.f32 %v4518, %v4522
    %4524 = vst.msk [vmem:[#allocation2] sm:$0x3] %vm4512, %v4523
    // Predicated region
    $region26: #{regime_detector_forward.3} parent=1 // pred_check
      _
    $region27: #{regime_detector_forward.3} parent=1 // pred_check_branch
      %4526 = sbr.rel (0) target = $region29
    $region28: #{regime_detector_forward.3} parent=1 // pred_region
      %s4528 = ssub.s32 32, 32
      %4529 = vsyncadd [#allocation3], %s4528
      %s4531 = sshll.u32 [#allocation2], 4
      %s4532 = int_to_ptr.vmem [resolvable:$true] %s4531
      %4534 = dma.vmem_to_hbm [thread:$0]  %s4532, 32, %s6, [#allocation3]
    $region29: #{regime_detector_forward.3} parent=1 // pred_fallthru
      _
    // Predicated region
    $region30: #{regime_detector_forward.3} parent=1 // pred_check
      _
    $region31: #{regime_detector_forward.3} parent=1 // pred_check_branch
      %4536 = sbr.rel (0) target = $region33
    $region32: #{regime_detector_forward.3} parent=1 // pred_region
      %4537 = dma.done [#allocation3], 32
    $region33: #{regime_detector_forward.3} parent=1 // pred_fallthru
      _
    %4538 = vsyncpa [#allocation3], 1

</llo_original>
